<compile_context>
chip_gen: v7x
topology: tpu7x:2x2x1
jax: 0.10.0
libtpu: 0.0.40
codegen_flags: <defaults>
</compile_context>

<pallas_src>
import jax
import jax.numpy as jnp
import numpy as np
from jax import lax
from jax.experimental import pallas as pl
from jax.experimental.pallas import tpu as pltpu

NUM_PC = 27
D_IN, D_H1, D_H2, D_OUT = 37, 30, 20, NUM_PC
LANE = 128  # TPU lane width


def _round_up(x, m):
    return (x + m - 1) // m * m


def mlp_kernel(x_ref, w1_ref, b1_ref, w2_ref, b2_ref, w3_ref, b3_ref, o_ref):
    # Batch-on-sublanes layout:
    #   x:  (TB, 37)            weights (pre-transposed): (in, out)
    #   h1: (TB, 30)  h2: (TB, 20)   biases: (1, out) -> broadcast over rows
    #   o:  (TB, 27)
    x = x_ref[...]
    h1 = jnp.dot(x, w1_ref[...], preferred_element_type=jnp.float32,
                 precision=lax.Precision.HIGHEST) + b1_ref[...]
    h1 = jnp.maximum(h1, 0.0)                                        # ReLU
    h2 = jnp.dot(h1, w2_ref[...], preferred_element_type=jnp.float32,
                 precision=lax.Precision.HIGHEST) + b2_ref[...]
    h2 = jnp.maximum(h2, 0.0)                                        # ReLU
    o_ref[...] = (jnp.dot(h2, w3_ref[...], preferred_element_type=jnp.float32,
                          precision=lax.Precision.HIGHEST)
                  + b3_ref[...]).astype(o_ref.dtype)


def net_forward(x, params, *, tb=8192):
    """x: (B, 37) float32.  params (PyTorch Linear layout): w1 (30,37) b1 (30,)
    w2 (20,30) b2 (20,) w3 (27,20) b3 (27,).

    tb: rows of the batch processed per grid step (rounded to a multiple of
    128).  Per-step VMEM (f32, last dim lane-padded to 128) is roughly
    TB * 3 KiB for the double-buffered x/out blocks plus h1/h2 temporaries.
    """
    B = x.shape[0]
    TB = max(LANE, min(_round_up(tb, LANE), _round_up(B, LANE)))
    grid = (pl.cdiv(B, TB),)

    # Tiny layout plumbing (weights only, ~5 KB total): (out,in) -> (in,out),
    # biases -> (1,out) row vectors that broadcast over the batch rows.
    w1t = params["w1"].T.astype(jnp.float32)
    w2t = params["w2"].T.astype(jnp.float32)
    w3t = params["w3"].T.astype(jnp.float32)
    b1 = params["b1"].astype(jnp.float32).reshape(1, D_H1)
    b2 = params["b2"].astype(jnp.float32).reshape(1, D_H2)
    b3 = params["b3"].astype(jnp.float32).reshape(1, D_OUT)

    # Weights/biases: constant index map -> resident in VMEM across grid steps.
    resident = lambda shape: pl.BlockSpec(shape, lambda i: (0, 0))
    # x / out: tiled along the batch (sublane) axis.
    tiled = lambda cols: pl.BlockSpec((TB, cols), lambda i: (i, 0))

    weight_bytes = 4 * (D_IN * D_H1 + D_H1 + D_H1 * D_H2 + D_H2
                        + D_H2 * D_OUT + D_OUT)
    cost = pl.CostEstimate(
        flops=2 * B * (D_IN * D_H1 + D_H1 * D_H2 + D_H2 * D_OUT),
        transcendentals=0,
        bytes_accessed=B * (D_IN + D_OUT) * 4 + weight_bytes,
    )

    # Scoped-VMEM limit: enough for this tile with ~2x headroom, capped below
    # v7x's 64 MiB/TC physical VMEM.
    vmem_needed = TB * 3072 + (2 << 20)
    vmem_limit = int(min(max(2 * vmem_needed, 32 << 20), 60 << 20))

    out = pl.pallas_call(
        mlp_kernel,
        out_shape=jax.ShapeDtypeStruct((B, D_OUT), jnp.float32),
        grid=grid,
        in_specs=[
            tiled(D_IN),                                    # x   (TB, 37)
            resident((D_IN, D_H1)), resident((1, D_H1)),    # w1t, b1
            resident((D_H1, D_H2)), resident((1, D_H2)),    # w2t, b2
            resident((D_H2, D_OUT)), resident((1, D_OUT)),  # w3t, b3
        ],
        out_specs=tiled(D_OUT),                             # out (TB, 27)
        compiler_params=pltpu.CompilerParams(
            # Independent batch tiles -> shard across both TensorCores on v7x.
            dimension_semantics=("parallel",),
            vmem_limit_bytes=vmem_limit),
        cost_estimate=cost,
    )(x, w1t, b1, w2t, b2, w3t, b3)

    return out                                              # (B, 27)


def init_params(key):
    """Deterministic init mimicking PyTorch Linear default:
    U(-1/sqrt(fan_in), 1/sqrt(fan_in)); stored as (out, in) / (out,)."""
    def linear(key, fan_in, fan_out):
        kw, kb = jax.random.split(key)
        bound = 1.0 / np.sqrt(fan_in)
        w = jax.random.uniform(kw, (fan_out, fan_in), jnp.float32, -bound, bound)
        b = jax.random.uniform(kb, (fan_out,), jnp.float32, -bound, bound)
        return w, b

    k1, k2, k3 = jax.random.split(key, 3)
    w1, b1 = linear(k1, D_IN, D_H1)
    w2, b2 = linear(k2, D_H1, D_H2)
    w3, b3 = linear(k3, D_H2, D_OUT)
    return dict(w1=w1, b1=b1, w2=w2, b2=b2, w3=w3, b3=b3)


def reference_forward_f64(x, p):
    """Float64 numpy reference (matches the PyTorch module's .double())."""
    xn = np.asarray(x, np.float64)
    w1 = np.asarray(p["w1"], np.float64); b1 = np.asarray(p["b1"], np.float64)
    w2 = np.asarray(p["w2"], np.float64); b2 = np.asarray(p["b2"], np.float64)
    w3 = np.asarray(p["w3"], np.float64); b3 = np.asarray(p["b3"], np.float64)
    h1 = np.maximum(xn @ w1.T + b1, 0.0)
    h2 = np.maximum(h1 @ w2.T + b2, 0.0)
    return h2 @ w3.T + b3


if __name__ == "__main__":
    key = jax.random.PRNGKey(0)
    kx, kp = jax.random.split(key)

    # B=1000 with tb=256 exercises multi-step batch tiling (grid=(4,)) plus a
    # partial last block (232 valid rows of 256), while staying tiny
    # (~150 KB of input).  Real workloads should use the default tb=8192+.
    B = 1000
    x = jax.random.normal(kx, (B, D_IN), dtype=jnp.float32)
    params = init_params(kp)

    out = jax.block_until_ready(net_forward(x, params, tb=256))

    ref = reference_forward_f64(x, params)
    # f32 (HIGHEST-precision MXU) vs f64 reference: tight tolerance so real
    # regressions aren't masked.  No float64 on TPU, see TODO(synk) above.
    np.testing.assert_allclose(np.asarray(out, np.float64), ref,
                               rtol=1e-5, atol=1e-5)
    assert out.shape == (B, NUM_PC)
    print("KERNEL_OK")
</pallas_src>

<mosaic_0001>
module attributes {stable_mosaic.version = 11 : i64} {
  func.func @mlp_kernel(%arg0: i32, %arg1: memref<256x37xf32, #tpu.memory_space<vmem>>, %arg2: memref<37x30xf32, #tpu.memory_space<vmem>>, %arg3: memref<1x30xf32, #tpu.memory_space<vmem>>, %arg4: memref<30x20xf32, #tpu.memory_space<vmem>>, %arg5: memref<1x20xf32, #tpu.memory_space<vmem>>, %arg6: memref<20x27xf32, #tpu.memory_space<vmem>>, %arg7: memref<1x27xf32, #tpu.memory_space<vmem>>, %arg8: memref<256x27xf32, #tpu.memory_space<vmem>>) attributes {dimension_semantics = [#tpu.dimension_semantics<parallel>], iteration_bounds = array<i64: 4>, scalar_prefetch = 0 : i64, scratch_operands = 0 : i64, tpu.core_type = #tpu.core_type<tc>, window_params = [{transform_indices = @transform_0, window_bounds = array<i64: 256, 37>}, {pipeline_mode = #tpu.pipeline_mode<synchronous>, transform_indices = @transform_1, window_bounds = array<i64: 37, 30>}, {pipeline_mode = #tpu.pipeline_mode<synchronous>, transform_indices = @transform_2, window_bounds = array<i64: 1, 30>}, {pipeline_mode = #tpu.pipeline_mode<synchronous>, transform_indices = @transform_3, window_bounds = array<i64: 30, 20>}, {pipeline_mode = #tpu.pipeline_mode<synchronous>, transform_indices = @transform_4, window_bounds = array<i64: 1, 20>}, {pipeline_mode = #tpu.pipeline_mode<synchronous>, transform_indices = @transform_5, window_bounds = array<i64: 20, 27>}, {pipeline_mode = #tpu.pipeline_mode<synchronous>, transform_indices = @transform_6, window_bounds = array<i64: 1, 27>}, {transform_indices = @transform_7, window_bounds = array<i64: 256, 27>}]} {
    %c0 = arith.constant 0 : index
    %c0_0 = arith.constant 0 : index
    %0 = vector.load %arg1[%c0, %c0_0] : memref<256x37xf32, #tpu.memory_space<vmem>>, vector<256x37xf32>
    %c0_1 = arith.constant 0 : index
    %c0_2 = arith.constant 0 : index
    %1 = vector.load %arg2[%c0_1, %c0_2] : memref<37x30xf32, #tpu.memory_space<vmem>>, vector<37x30xf32>
    %cst = arith.constant dense<0.000000e+00> : vector<256x30xf32>
    %2 = tpu.matmul %0, %1, %cst {dimension_numbers = #tpu.dot_dimension_numbers<[1], [0], [0], [1], [0, 0, 1, 1], [], []>, precision = #tpu.contract_precision<fp32>} : vector<256x37xf32>, vector<37x30xf32>, vector<256x30xf32> -> vector<256x30xf32>
    %c0_3 = arith.constant 0 : index
    %c0_4 = arith.constant 0 : index
    %3 = vector.load %arg3[%c0_3, %c0_4] : memref<1x30xf32, #tpu.memory_space<vmem>>, vector<1x30xf32>
    %4 = vector.broadcast %3 : vector<1x30xf32> to vector<256x30xf32>
    %5 = arith.addf %2, %4 : vector<256x30xf32>
    %cst_5 = arith.constant 0.000000e+00 : f32
    %6 = vector.broadcast %cst_5 : f32 to vector<256x30xf32>
    %7 = arith.maximumf %5, %6 : vector<256x30xf32>
    %c0_6 = arith.constant 0 : index
    %c0_7 = arith.constant 0 : index
    %8 = vector.load %arg4[%c0_6, %c0_7] : memref<30x20xf32, #tpu.memory_space<vmem>>, vector<30x20xf32>
    %cst_8 = arith.constant dense<0.000000e+00> : vector<256x20xf32>
    %9 = tpu.matmul %7, %8, %cst_8 {dimension_numbers = #tpu.dot_dimension_numbers<[1], [0], [0], [1], [0, 0, 1, 1], [], []>, precision = #tpu.contract_precision<fp32>} : vector<256x30xf32>, vector<30x20xf32>, vector<256x20xf32> -> vector<256x20xf32>
    %c0_9 = arith.constant 0 : index
    %c0_10 = arith.constant 0 : index
    %10 = vector.load %arg5[%c0_9, %c0_10] : memref<1x20xf32, #tpu.memory_space<vmem>>, vector<1x20xf32>
    %11 = vector.broadcast %10 : vector<1x20xf32> to vector<256x20xf32>
    %12 = arith.addf %9, %11 : vector<256x20xf32>
    %cst_11 = arith.constant 0.000000e+00 : f32
    %13 = vector.broadcast %cst_11 : f32 to vector<256x20xf32>
    %14 = arith.maximumf %12, %13 : vector<256x20xf32>
    %c0_12 = arith.constant 0 : index
    %c0_13 = arith.constant 0 : index
    %15 = vector.load %arg6[%c0_12, %c0_13] : memref<20x27xf32, #tpu.memory_space<vmem>>, vector<20x27xf32>
    %cst_14 = arith.constant dense<0.000000e+00> : vector<256x27xf32>
    %16 = tpu.matmul %14, %15, %cst_14 {dimension_numbers = #tpu.dot_dimension_numbers<[1], [0], [0], [1], [0, 0, 1, 1], [], []>, precision = #tpu.contract_precision<fp32>} : vector<256x20xf32>, vector<20x27xf32>, vector<256x27xf32> -> vector<256x27xf32>
    %c0_15 = arith.constant 0 : index
    %c0_16 = arith.constant 0 : index
    %17 = vector.load %arg7[%c0_15, %c0_16] : memref<1x27xf32, #tpu.memory_space<vmem>>, vector<1x27xf32>
    %18 = vector.broadcast %17 : vector<1x27xf32> to vector<256x27xf32>
    %19 = arith.addf %16, %18 : vector<256x27xf32>
    %c0_17 = arith.constant 0 : index
    %c0_18 = arith.constant 0 : index
    %20 = vector.load %arg8[%c0_17, %c0_18] : memref<256x27xf32, #tpu.memory_space<vmem>>, vector<256x27xf32>
    tpu.vector_store %arg8[%c0_17, %c0_18], %19 {strides = array<i32>} : memref<256x27xf32, #tpu.memory_space<vmem>>, vector<256x27xf32>,
    return
  }
  func.func @transform_0(%arg0: i32) -> (i32, i32) {
    %c0_i32 = arith.constant 0 : i32
    %c0_i32_0 = arith.constant 0 : i32
    return %arg0, %c0_i32 : i32, i32
  }
  func.func @transform_1(%arg0: i32) -> (i32, i32) {
    %c0_i32 = arith.constant 0 : i32
    %c0_i32_0 = arith.constant 0 : i32
    %c0_i32_1 = arith.constant 0 : i32
    return %c0_i32, %c0_i32_0 : i32, i32
  }
  func.func @transform_2(%arg0: i32) -> (i32, i32) {
    %c0_i32 = arith.constant 0 : i32
    %c0_i32_0 = arith.constant 0 : i32
    %c0_i32_1 = arith.constant 0 : i32
    return %c0_i32, %c0_i32_0 : i32, i32
  }
  func.func @transform_3(%arg0: i32) -> (i32, i32) {
    %c0_i32 = arith.constant 0 : i32
    %c0_i32_0 = arith.constant 0 : i32
    %c0_i32_1 = arith.constant 0 : i32
    return %c0_i32, %c0_i32_0 : i32, i32
  }
  func.func @transform_4(%arg0: i32) -> (i32, i32) {
    %c0_i32 = arith.constant 0 : i32
    %c0_i32_0 = arith.constant 0 : i32
    %c0_i32_1 = arith.constant 0 : i32
    return %c0_i32, %c0_i32_0 : i32, i32
  }
  func.func @transform_5(%arg0: i32) -> (i32, i32) {
    %c0_i32 = arith.constant 0 : i32
    %c0_i32_0 = arith.constant 0 : i32
    %c0_i32_1 = arith.constant 0 : i32
    return %c0_i32, %c0_i32_0 : i32, i32
  }
  func.func @transform_6(%arg0: i32) -> (i32, i32) {
    %c0_i32 = arith.constant 0 : i32
    %c0_i32_0 = arith.constant 0 : i32
    %c0_i32_1 = arith.constant 0 : i32
    return %c0_i32, %c0_i32_0 : i32, i32
  }
  func.func @transform_7(%arg0: i32) -> (i32, i32) {
    %c0_i32 = arith.constant 0 : i32
    %c0_i32_0 = arith.constant 0 : i32
    return %arg0, %c0_i32 : i32, i32
  }
}

</mosaic_0001>

<llo_original>
// kernel: tpu_custom_call.1
$region0: #{tpu_custom_call.1}
  #allocation0 [shape = 'u32[]', space=smem, size = 0x4, offset = 0x4, fixed_abs, tag = 'smem constant byte address 0x4 - core index']
  #allocation1 [shape = 'u32[144,128]{1,0:T(1,128)}', space=vmem, size = 0x12000, scoped, tag = 'internal scratch']
  %s0 = inlined_call_operand.vmem [shape: f32[1000,37], index: 0, kind: input, shape index: {}]
  %s1 = inlined_call_operand.vmem [shape: f32[37,30], index: 1, kind: input, shape index: {}]
  %s2 = inlined_call_operand.vmem [shape: f32[1,30], index: 2, kind: input, shape index: {}]
  %s3 = inlined_call_operand.vmem [shape: f32[30,20], index: 3, kind: input, shape index: {}]
  %s4 = inlined_call_operand.vmem [shape: f32[1,20], index: 4, kind: input, shape index: {}]
  %s5 = inlined_call_operand.vmem [shape: f32[20,27], index: 5, kind: input, shape index: {}]
  %s6 = inlined_call_operand.vmem [shape: f32[1,27], index: 6, kind: input, shape index: {}]
  %s7 = inlined_call_operand.vmem [shape: f32[1000,27], index: 7, kind: output, shape index: {}]
  %s8 = sld [smem:[#allocation0]]
  $region109: #{tpu_custom_call.1} parent=0
    _
  %s10 = ssub.s32 1, %s8
  %s11 = scalar_select 0, %s10, %s8
  $region1: #{tpu_custom_call.1} parent=0
    #allocation2 [shape = 'u8[262144]{0}', space=vmem, size = 0x40000, scoped, tag = 'output window, operand 0']
    loop: start=0, step=1, limit=6
    $region2: #{tpu_custom_call.1} parent=1 // loop_pre_header
      _
    $region3: #{tpu_custom_call.1} parent=1 // loop_header
      %s13 = sphi 0, %s17
      %p14 = scmp.ge.s32.totalorder %s13, 6
      %s23 = sphi 0, %s25
      %s26 = sphi 0, %s23
      %s27 = sphi 0, %s26
      %s43 = sphi 0, %s27
      %s47 = sphi 0, %s47
      %s49 = sphi 0, %s47
      %s50 = sphi 0, %s49
      %s64 = sphi 0, %s50
      %s68 = sphi 0, %s68
      %s70 = sphi 0, %s68
      %s71 = sphi 0, %s70
      %s85 = sphi 0, %s71
      %s89 = sphi 0, %s89
      %s91 = sphi 0, %s89
      %s92 = sphi 0, %s91
      %s106 = sphi 0, %s92
      %s110 = sphi 0, %s110
      %s112 = sphi 0, %s110
      %s113 = sphi 0, %s112
      %s127 = sphi 0, %s113
      %s131 = sphi 0, %s131
      %s133 = sphi 0, %s131
      %s134 = sphi 0, %s133
      %s148 = sphi 0, %s134
      %s152 = sphi 0, %s152
      %s154 = sphi 0, %s152
      %s155 = sphi 0, %s154
      %s169 = sphi 0, %s155
      %s175 = sphi 0, %s177
      %s178 = sphi 0, %s175
      %s179 = sphi 0, %s178
      %s195 = sphi 0, %s179
    $region4: #{tpu_custom_call.1} parent=1 // loop_header_branch
      %16 = sbr.rel (%p14) target = $region8
    $region5: #{tpu_custom_call.1} parent=1 // loop_body
      %s18 = ssub.s32 %s13, 1
      %s19 = ssub.s32 %s13, 2
      %s20 = sadd.s32 %s13, 1
      %s21 = ssub.s32 %s13, %s20
      %p22 = scmp.eq.s32.totalorder %s21, 0
      %s24 = sadd.s32 %s23, 1
      %s25 = scalar_select %p22, %s23, %s24
      %p28 = pneg %p22
      %p29 = scmp.eq.s32.totalorder %s13, 3
      %p30 = por %p28, %p29
      %p31 = scmp.ne.s32.totalorder %s23, %s26
      %p32 = scmp.eq.s32.totalorder %s13, 0
      %p33 = por %p31, %p32
      %p34 = scmp.ne.s32.totalorder %s23, %s26
      %p35 = scmp.eq.s32.totalorder %s18, 3
      %p36 = por %p34, %p35
      %p37 = scmp.ne.s32.totalorder %s26, %s27
      %p38 = scmp.eq.s32.totalorder %s18, 0
      %p39 = por %p37, %p38
      %p40 = scmp.ne.s32.totalorder %s26, %s27
      %p41 = scmp.eq.s32.totalorder %s19, 3
      %p42 = por %p40, %p41
      %p44 = scmp.ne.s32.totalorder %s27, %s43
      %p45 = scmp.eq.s32.totalorder %s19, 0
      %p46 = por %p44, %p45
      %s48 = sadd.s32 %s47, 1
      %p51 = scmp.eq.s32.totalorder %s13, 3
      %p52 = scmp.ne.s32.totalorder %s47, %s49
      %p53 = scmp.eq.s32.totalorder %s13, 0
      %p54 = por %p52, %p53
      %p55 = scmp.ne.s32.totalorder %s47, %s49
      %p56 = scmp.eq.s32.totalorder %s18, 3
      %p57 = por %p55, %p56
      %p58 = scmp.ne.s32.totalorder %s49, %s50
      %p59 = scmp.eq.s32.totalorder %s18, 0
      %p60 = por %p58, %p59
      %p61 = scmp.ne.s32.totalorder %s49, %s50
      %p62 = scmp.eq.s32.totalorder %s19, 3
      %p63 = por %p61, %p62
      %p65 = scmp.ne.s32.totalorder %s50, %s64
      %p66 = scmp.eq.s32.totalorder %s19, 0
      %p67 = por %p65, %p66
      %s69 = sadd.s32 %s68, 1
      %p72 = scmp.eq.s32.totalorder %s13, 3
      %p73 = scmp.ne.s32.totalorder %s68, %s70
      %p74 = scmp.eq.s32.totalorder %s13, 0
      %p75 = por %p73, %p74
      %p76 = scmp.ne.s32.totalorder %s68, %s70
      %p77 = scmp.eq.s32.totalorder %s18, 3
      %p78 = por %p76, %p77
      %p79 = scmp.ne.s32.totalorder %s70, %s71
      %p80 = scmp.eq.s32.totalorder %s18, 0
      %p81 = por %p79, %p80
      %p82 = scmp.ne.s32.totalorder %s70, %s71
      %p83 = scmp.eq.s32.totalorder %s19, 3
      %p84 = por %p82, %p83
      %p86 = scmp.ne.s32.totalorder %s71, %s85
      %p87 = scmp.eq.s32.totalorder %s19, 0
      %p88 = por %p86, %p87
      %s90 = sadd.s32 %s89, 1
      %p93 = scmp.eq.s32.totalorder %s13, 3
      %p94 = scmp.ne.s32.totalorder %s89, %s91
      %p95 = scmp.eq.s32.totalorder %s13, 0
      %p96 = por %p94, %p95
      %p97 = scmp.ne.s32.totalorder %s89, %s91
      %p98 = scmp.eq.s32.totalorder %s18, 3
      %p99 = por %p97, %p98
      %p100 = scmp.ne.s32.totalorder %s91, %s92
      %p101 = scmp.eq.s32.totalorder %s18, 0
      %p102 = por %p100, %p101
      %p103 = scmp.ne.s32.totalorder %s91, %s92
      %p104 = scmp.eq.s32.totalorder %s19, 3
      %p105 = por %p103, %p104
      %p107 = scmp.ne.s32.totalorder %s92, %s106
      %p108 = scmp.eq.s32.totalorder %s19, 0
      %p109 = por %p107, %p108
      %s111 = sadd.s32 %s110, 1
      %p114 = scmp.eq.s32.totalorder %s13, 3
      %p115 = scmp.ne.s32.totalorder %s110, %s112
      %p116 = scmp.eq.s32.totalorder %s13, 0
      %p117 = por %p115, %p116
      %p118 = scmp.ne.s32.totalorder %s110, %s112
      %p119 = scmp.eq.s32.totalorder %s18, 3
      %p120 = por %p118, %p119
      %p121 = scmp.ne.s32.totalorder %s112, %s113
      %p122 = scmp.eq.s32.totalorder %s18, 0
      %p123 = por %p121, %p122
      %p124 = scmp.ne.s32.totalorder %s112, %s113
      %p125 = scmp.eq.s32.totalorder %s19, 3
      %p126 = por %p124, %p125
      %p128 = scmp.ne.s32.totalorder %s113, %s127
      %p129 = scmp.eq.s32.totalorder %s19, 0
      %p130 = por %p128, %p129
      %s132 = sadd.s32 %s131, 1
      %p135 = scmp.eq.s32.totalorder %s13, 3
      %p136 = scmp.ne.s32.totalorder %s131, %s133
      %p137 = scmp.eq.s32.totalorder %s13, 0
      %p138 = por %p136, %p137
      %p139 = scmp.ne.s32.totalorder %s131, %s133
      %p140 = scmp.eq.s32.totalorder %s18, 3
      %p141 = por %p139, %p140
      %p142 = scmp.ne.s32.totalorder %s133, %s134
      %p143 = scmp.eq.s32.totalorder %s18, 0
      %p144 = por %p142, %p143
      %p145 = scmp.ne.s32.totalorder %s133, %s134
      %p146 = scmp.eq.s32.totalorder %s19, 3
      %p147 = por %p145, %p146
      %p149 = scmp.ne.s32.totalorder %s134, %s148
      %p150 = scmp.eq.s32.totalorder %s19, 0
      %p151 = por %p149, %p150
      %s153 = sadd.s32 %s152, 1
      %p156 = scmp.eq.s32.totalorder %s13, 3
      %p157 = scmp.ne.s32.totalorder %s152, %s154
      %p158 = scmp.eq.s32.totalorder %s13, 0
      %p159 = por %p157, %p158
      %p160 = scmp.ne.s32.totalorder %s152, %s154
      %p161 = scmp.eq.s32.totalorder %s18, 3
      %p162 = por %p160, %p161
      %p163 = scmp.ne.s32.totalorder %s154, %s155
      %p164 = scmp.eq.s32.totalorder %s18, 0
      %p165 = por %p163, %p164
      %p166 = scmp.ne.s32.totalorder %s154, %s155
      %p167 = scmp.eq.s32.totalorder %s19, 3
      %p168 = por %p166, %p167
      %p170 = scmp.ne.s32.totalorder %s155, %s169
      %p171 = scmp.eq.s32.totalorder %s19, 0
      %p172 = por %p170, %p171
      %s173 = ssub.s32 %s13, %s20
      %p174 = scmp.eq.s32.totalorder %s173, 0
      %s176 = sadd.s32 %s175, 1
      %s177 = scalar_select %p174, %s175, %s176
      %p180 = pneg %p174
      %p181 = scmp.eq.s32.totalorder %s13, 3
      %p182 = por %p180, %p181
      %p183 = scmp.ne.s32.totalorder %s175, %s178
      %p184 = scmp.eq.s32.totalorder %s13, 0
      %p185 = por %p183, %p184
      %p186 = scmp.ne.s32.totalorder %s175, %s178
      %p187 = scmp.eq.s32.totalorder %s18, 3
      %p188 = por %p186, %p187
      %p189 = scmp.ne.s32.totalorder %s178, %s179
      %p190 = scmp.eq.s32.totalorder %s18, 0
      %p191 = por %p189, %p190
      %p192 = scmp.ne.s32.totalorder %s178, %s179
      %p193 = scmp.eq.s32.totalorder %s19, 3
      %p194 = por %p192, %p193
      %p196 = scmp.ne.s32.totalorder %s179, %s195
      %p197 = scmp.eq.s32.totalorder %s19, 0
      %p198 = por %p196, %p197
      %p199 = scmp.le.s32.totalorder 1, %s13
      %p200 = scmp.lt.s32.totalorder %s13, 5
      %p201 = pnand %p199, %p200
      %p202 = pneg %p201
      // Predicated region
      $region9: #{tpu_custom_call.1} parent=5 // pred_check
        _
      $region10: #{tpu_custom_call.1} parent=5 // pred_check_branch
        %204 = sbr.rel (%p201) target = $region12
      $region11: #{tpu_custom_call.1} parent=5 // pred_region
        %s205 = ssub.s32 %s13, 1
        // Predicated region
        $region13: #{tpu_custom_call.1} parent=11 // pred_check
          %p206 = pneg %p60
        $region14: #{tpu_custom_call.1} parent=11 // pred_check_branch
          %208 = sbr.rel (%p206) target = $region16
        $region15: #{tpu_custom_call.1} parent=11 // pred_region
          _
        $region16: #{tpu_custom_call.1} parent=11 // pred_fallthru
          _
        // Predicated region
        $region17: #{tpu_custom_call.1} parent=11 // pred_check
          %p209 = pneg %p81
        $region18: #{tpu_custom_call.1} parent=11 // pred_check_branch
          %211 = sbr.rel (%p209) target = $region20
        $region19: #{tpu_custom_call.1} parent=11 // pred_region
          _
        $region20: #{tpu_custom_call.1} parent=11 // pred_fallthru
          _
        // Predicated region
        $region21: #{tpu_custom_call.1} parent=11 // pred_check
          %p212 = pneg %p102
        $region22: #{tpu_custom_call.1} parent=11 // pred_check_branch
          %214 = sbr.rel (%p212) target = $region24
        $region23: #{tpu_custom_call.1} parent=11 // pred_region
          _
        $region24: #{tpu_custom_call.1} parent=11 // pred_fallthru
          _
        // Predicated region
        $region25: #{tpu_custom_call.1} parent=11 // pred_check
          %p215 = pneg %p123
        $region26: #{tpu_custom_call.1} parent=11 // pred_check_branch
          %217 = sbr.rel (%p215) target = $region28
        $region27: #{tpu_custom_call.1} parent=11 // pred_region
          _
        $region28: #{tpu_custom_call.1} parent=11 // pred_fallthru
          _
        // Predicated region
        $region29: #{tpu_custom_call.1} parent=11 // pred_check
          %p218 = pneg %p144
        $region30: #{tpu_custom_call.1} parent=11 // pred_check_branch
          %220 = sbr.rel (%p218) target = $region32
        $region31: #{tpu_custom_call.1} parent=11 // pred_region
          _
        $region32: #{tpu_custom_call.1} parent=11 // pred_fallthru
          _
        // Predicated region
        $region33: #{tpu_custom_call.1} parent=11 // pred_check
          %p221 = pneg %p165
        $region34: #{tpu_custom_call.1} parent=11 // pred_check_branch
          %223 = sbr.rel (%p221) target = $region36
        $region35: #{tpu_custom_call.1} parent=11 // pred_region
          _
        $region36: #{tpu_custom_call.1} parent=11 // pred_fallthru
          _
      $region12: #{tpu_custom_call.1} parent=5 // pred_fallthru
        _
      %p224 = scmp.lt.s32.totalorder %s13, 4
      // Predicated region
      $region37: #{tpu_custom_call.1} parent=5 // pred_check
        %p225 = pneg %p224
      $region38: #{tpu_custom_call.1} parent=5 // pred_check_branch
        %227 = sbr.rel (%p225) target = $region40
      $region39: #{tpu_custom_call.1} parent=5 // pred_region
        // Predicated region
        $region41: #{tpu_custom_call.1} parent=39 // pred_check
          %p228 = pneg %p33
        $region42: #{tpu_custom_call.1} parent=39 // pred_check_branch
          %230 = sbr.rel (%p228) target = $region44
        $region43: #{tpu_custom_call.1} parent=39 // pred_region
          %s231 = smul.u32 32, %s13
          %s232 = ssub.s32 125, %s231
          %p233 = scmp.lt.s32.totalorder %s232, 32
          %s234 = scalar_select %p233, %s232, 32
          %s235 = smul.u32 128, %s234
          %p236 = scmp.lt.s32.totalorder %s231, 124
          %s237 = scalar_select %p236, %s231, 124
          %s238 = smul.addr %s237, 8
          %s239 = scalar_lea.vmem %s0, %s238
          %s240 = smul.u32 32, %s13
          %s241 = ssub.s32 125, %s240
          %p242 = scmp.lt.s32.totalorder %s241, 32
          %s243 = scalar_select %p242, %s241, 32
          %s244 = smul.u32 128, %s243
        $region44: #{tpu_custom_call.1} parent=39 // pred_fallthru
          _
      $region40: #{tpu_custom_call.1} parent=5 // pred_fallthru
        _
      %p245 = scmp.le.s32.totalorder 1, %s13
      %p246 = scmp.lt.s32.totalorder %s13, 5
      %p247 = pnand %p245, %p246
      %p248 = pneg %p247
      // Predicated region
      $region45: #{tpu_custom_call.1} parent=5 // pred_check
        _
      $region46: #{tpu_custom_call.1} parent=5 // pred_check_branch
        %250 = sbr.rel (%p247) target = $region48
      $region47: #{tpu_custom_call.1} parent=5 // pred_region
        %s251 = ssub.s32 %s13, 1
        %s252 = smul.u32 32, %s18
        %s253 = ssub.s32 125, %s252
        %p254 = scmp.lt.s32.totalorder %s253, 32
        %s255 = scalar_select %p254, %s253, 32
        %s256 = smul.u32 128, %s255
        %p257 = scmp.lt.s32.totalorder %s252, 124
        %s258 = scalar_select %p257, %s252, 124
        %s259 = smul.addr %s258, 8
        %s260 = scalar_lea.vmem %s0, %s259
        %p261 = pneg %p39
        %p262 = pneg %p36
        %p263 = pneg %p60
        %p264 = pneg %p57
        %p265 = pneg %p81
        %p266 = pneg %p78
        %p267 = pneg %p102
        %p268 = pneg %p99
        %p269 = pneg %p123
        %p270 = pneg %p120
        %p271 = pneg %p144
        %p272 = pneg %p141
        %p273 = pneg %p165
        %p274 = pneg %p162
        %p275 = pneg %p191
        %p276 = pneg %p188
        %s277 = sand.u32 %s178, 1
        %s278 = sand.u32 %s178, 1
        %s279 = smul.addr %s278, 256
        %s280 = scalar_lea.vmem [#allocation2], %s279
        %s281 = smul.u32 32, %s18
        %s282 = ssub.s32 125, %s281
        %p283 = scmp.lt.s32.totalorder %s282, 32
        %s284 = scalar_select %p283, %s282, 32
        %s285 = smul.u32 128, %s284
        %p286 = scmp.lt.s32.totalorder %s281, 124
        %s287 = scalar_select %p286, %s281, 124
        %s288 = smul.addr %s287, 8
        %s289 = scalar_lea.vmem %s0, %s288
        %s290 = smul.u32 32, %s18
        %s291 = ssub.s32 125, %s290
        %p292 = scmp.lt.s32.totalorder %s291, 32
        %s293 = scalar_select %p292, %s291, 32
        %s294 = smul.u32 128, %s293
        %s295 = smul.u32 32, %s18
        %s296 = ssub.s32 125, %s295
        %p297 = scmp.lt.s32.totalorder %s296, 32
        %s298 = scalar_select %p297, %s296, 32
        %s299 = smul.u32 128, %s298
        %v300 = vld [vmem:[%s289] sm:$0xff]
        %v301 = vld [vmem:[%s289 + $0x8] sm:$0xff]
        %v302 = vld [vmem:[%s289 + $0x10] sm:$0xff]
        %v303 = vld [vmem:[%s289 + $0x18] sm:$0xff]
        %v304 = vld [vmem:[%s289 + $0x20] sm:$0xff]
        %v305 = vld [vmem:[%s289 + $0x28] sm:$0xff]
        %v306 = vld [vmem:[%s289 + $0x30] sm:$0xff]
        %v307 = vld [vmem:[%s289 + $0x38] sm:$0xff]
        %v308 = vld [vmem:[%s289 + $0x40] sm:$0xff]
        %v309 = vld [vmem:[%s289 + $0x48] sm:$0xff]
        %v310 = vld [vmem:[%s289 + $0x50] sm:$0xff]
        %v311 = vld [vmem:[%s289 + $0x58] sm:$0xff]
        %v312 = vld [vmem:[%s289 + $0x60] sm:$0xff]
        %v313 = vld [vmem:[%s289 + $0x68] sm:$0xff]
        %v314 = vld [vmem:[%s289 + $0x70] sm:$0xff]
        %v315 = vld [vmem:[%s289 + $0x78] sm:$0xff]
        %v316 = vld [vmem:[%s289 + $0x80] sm:$0xff]
        %v317 = vld [vmem:[%s289 + $0x88] sm:$0xff]
        %v318 = vld [vmem:[%s289 + $0x90] sm:$0xff]
        %v319 = vld [vmem:[%s289 + $0x98] sm:$0xff]
        %v320 = vld [vmem:[%s289 + $0xa0] sm:$0xff]
        %v321 = vld [vmem:[%s289 + $0xa8] sm:$0xff]
        %v322 = vld [vmem:[%s289 + $0xb0] sm:$0xff]
        %v323 = vld [vmem:[%s289 + $0xb8] sm:$0xff]
        %v324 = vld [vmem:[%s289 + $0xc0] sm:$0xff]
        %v325 = vld [vmem:[%s289 + $0xc8] sm:$0xff]
        %v326 = vld [vmem:[%s289 + $0xd0] sm:$0xff]
        %v327 = vld [vmem:[%s289 + $0xd8] sm:$0xff]
        %v328 = vld [vmem:[%s289 + $0xe0] sm:$0xff]
        %v329 = vld [vmem:[%s289 + $0xe8] sm:$0xff]
        %v330 = vld [vmem:[%s289 + $0xf0] sm:$0xff]
        %v331 = vld [vmem:[%s289 + $0xf8] sm:$0xff]
        %v332 = vld [vmem:[%s1] sm:$0xff]
        %v333 = vld [vmem:[%s1 + $0x8] sm:$0xff]
        %v334 = vld [vmem:[%s1 + $0x10] sm:$0xff]
        %v335 = vld [vmem:[%s1 + $0x18] sm:$0xff]
        %v336 = vld [vmem:[%s1 + $0x20] sm:$0x1f]
        %v337 = vld [vmem:[%s2] sm:$0x1]
        %v339 = vlaneseq
        %v340 = vshrl.u32 %v339, 7
        %v341 = vsub.s32 0, %v340
        %v342 = vrot.slane %v337, %v341
        %vm344 = vcmask 302080
        %v346 = vsel %vm344, %v300, 0
        %v349 = vsel %vm344, %v301, 0
        %v352 = vsel %vm344, %v302, 0
        %v355 = vsel %vm344, %v303, 0
        %v358 = vsel %vm344, %v304, 0
        %v361 = vsel %vm344, %v305, 0
        %v364 = vsel %vm344, %v306, 0
        %v367 = vsel %vm344, %v307, 0
        %v370 = vsel %vm344, %v308, 0
        %v373 = vsel %vm344, %v309, 0
        %v376 = vsel %vm344, %v310, 0
        %v379 = vsel %vm344, %v311, 0
        %v382 = vsel %vm344, %v312, 0
        %v385 = vsel %vm344, %v313, 0
        %v388 = vsel %vm344, %v314, 0
        %v391 = vsel %vm344, %v315, 0
        %v394 = vsel %vm344, %v316, 0
        %v397 = vsel %vm344, %v317, 0
        %v400 = vsel %vm344, %v318, 0
        %v403 = vsel %vm344, %v319, 0
        %v406 = vsel %vm344, %v320, 0
        %v409 = vsel %vm344, %v321, 0
        %v412 = vsel %vm344, %v322, 0
        %v415 = vsel %vm344, %v323, 0
        %v418 = vsel %vm344, %v324, 0
        %v421 = vsel %vm344, %v325, 0
        %v424 = vsel %vm344, %v326, 0
        %v427 = vsel %vm344, %v327, 0
        %v430 = vsel %vm344, %v328, 0
        %v433 = vsel %vm344, %v329, 0
        %v436 = vsel %vm344, %v330, 0
        %v439 = vsel %vm344, %v331, 0
        %vm441 = vcmask 1044480
        %v443 = vsel %vm441, %v336, 0
        %445 = vmatprep.subr.mxu0 0.0
        %v446 = vand.u32 %v332, 4294901760
        %447 = vmatpush1.msra.mxu0 %v446
        %448 = vmatprep.subr.mxu0 0.0
        %v449 = vand.u32 %v333, 4294901760
        %450 = vmatpush1.msra.mxu0 %v449
        %451 = vmatprep.subr.mxu0 0.0
        %v452 = vand.u32 %v334, 4294901760
        %453 = vmatpush1.msra.mxu0 %v452
        %454 = vmatprep.subr.mxu0 0.0
        %v455 = vand.u32 %v335, 4294901760
        %456 = vmatpush1.msra.mxu0 %v455
        %457 = vmatprep.subr.mxu0 0.0
        %v458 = vand.u32 %v443, 4294901760
        %459 = vmatpush1.msra.mxu0 %v458
        %460 = vmatprep.subr.mxu0 0.0
        %461 = vmatpush1.msra.mxu0 0.0
        %462 = vmatprep.subr.mxu0 0.0
        %463 = vmatpush1.msra.mxu0 0.0
        %464 = vmatprep.subr.mxu0 0.0
        %465 = vmatpush1.msra.mxu0 0.0
        %466 = vmatprep.subr.mxu0 0.0
        %467 = vmatpush1.msra.mxu0 0.0
        %468 = vmatprep.subr.mxu0 0.0
        %469 = vmatpush1.msra.mxu0 0.0
        %470 = vmatprep.subr.mxu0 0.0
        %471 = vmatpush1.msra.mxu0 0.0
        %472 = vmatprep.subr.mxu0 0.0
        %473 = vmatpush1.msra.mxu0 0.0
        %474 = vmatprep.subr.mxu0 0.0
        %475 = vmatpush1.msra.mxu0 0.0
        %476 = vmatprep.subr.mxu0 0.0
        %477 = vmatpush1.msra.mxu0 0.0
        %478 = vmatprep.subr.mxu0 0.0
        %479 = vmatpush1.msra.mxu0 0.0
        %480 = vmatprep.subr.mxu0 0.0
        %481 = vmatpush1.msra.mxu0 0.0
        %482 = vmatprep.subr.mxu0 0.0
        %483 = vmatpush1.msra.mxu0 0.0
        %484 = vmatprep.subr.mxu0 0.0
        %485 = vmatpush1.msra.mxu0 0.0
        %486 = vmatprep.subr.mxu0 0.0
        %487 = vmatpush1.msra.mxu0 0.0
        %488 = vmatprep.subr.mxu0 0.0
        %489 = vmatpush1.msra.mxu0 0.0
        %490 = vmatprep.subr.mxu0 0.0
        %491 = vmatpush1.msra.mxu0 0.0
        %492 = vmatprep.subr.mxu0 0.0
        %493 = vmatpush1.msra.mxu0 0.0
        %494 = vmatprep.subr.mxu0 0.0
        %495 = vmatpush1.msra.mxu0 0.0
        %496 = vmatprep.subr.mxu0 0.0
        %497 = vmatpush1.msra.mxu0 0.0
        %498 = vmatprep.subr.mxu0 0.0
        %499 = vmatpush1.msra.mxu0 0.0
        %500 = vmatprep.subr.mxu0 0.0
        %501 = vmatpush1.msra.mxu0 0.0
        %502 = vmatprep.subr.mxu0 0.0
        %503 = vmatpush1.msra.mxu0 0.0
        %504 = vmatprep.subr.mxu0 0.0
        %505 = vmatpush1.msra.mxu0 0.0
        %506 = vmatprep.subr.mxu0 0.0
        %507 = vmatpush1.msra.mxu0 0.0
        %508 = vmatprep.subr.mxu0 0.0
        %509 = vmatpush1.msra.mxu0 0.0
        %510 = vmatprep.subr.mxu0 0.0
        %511 = vmatpush1.msra.mxu0 0.0
        %512 = vmatprep.subr.mxu0 0.0
        %513 = vmatpush1.msra.mxu0 0.0
        %514 = vmatprep.mubr.f32.mxu0 0.0
        %v515 = vand.u32 %v346, 4294901760
        %v516 = vsub.f32 %v346, %v515
        %v517 = vand.u32 %v516, 4294901760
        %v518 = vsub.f32 %v516, %v517
        %v519 = vand.u32 %v518, 4294901760
        %520 = vmatmul.mubr.f32.gmra.mrb[0].mxu0 %v519
        %v521 = vpop.f32.mrb[0].mxu0
        %v522 = vadd.f32 %v342, %v521
        %v523 = vpop.f32.mrb[0].mxu0
        %524 = vmatprep.mubr.f32.mxu0 0.0
        %v525 = vand.u32 %v349, 4294901760
        %v526 = vsub.f32 %v349, %v525
        %v527 = vand.u32 %v526, 4294901760
        %v528 = vsub.f32 %v526, %v527
        %v529 = vand.u32 %v528, 4294901760
        %530 = vmatmul.mubr.f32.gmra.mrb[0].mxu0 %v529
        %v531 = vpop.f32.mrb[0].mxu0
        %v532 = vadd.f32 %v342, %v531
        %v533 = vpop.f32.mrb[0].mxu0
        %534 = vmatprep.mubr.f32.mxu0 0.0
        %v535 = vand.u32 %v352, 4294901760
        %v536 = vsub.f32 %v352, %v535
        %v537 = vand.u32 %v536, 4294901760
        %v538 = vsub.f32 %v536, %v537
        %v539 = vand.u32 %v538, 4294901760
        %540 = vmatmul.mubr.f32.gmra.mrb[0].mxu0 %v539
        %v541 = vpop.f32.mrb[0].mxu0
        %v542 = vadd.f32 %v342, %v541
        %v543 = vpop.f32.mrb[0].mxu0
        %544 = vmatprep.mubr.f32.mxu0 0.0
        %v545 = vand.u32 %v355, 4294901760
        %v546 = vsub.f32 %v355, %v545
        %v547 = vand.u32 %v546, 4294901760
        %v548 = vsub.f32 %v546, %v547
        %v549 = vand.u32 %v548, 4294901760
        %550 = vmatmul.mubr.f32.gmra.mrb[0].mxu0 %v549
        %v551 = vpop.f32.mrb[0].mxu0
        %v552 = vadd.f32 %v342, %v551
        %v553 = vpop.f32.mrb[0].mxu0
        %554 = vmatprep.mubr.f32.mxu0 0.0
        %v555 = vand.u32 %v358, 4294901760
        %v556 = vsub.f32 %v358, %v555
        %v557 = vand.u32 %v556, 4294901760
        %v558 = vsub.f32 %v556, %v557
        %v559 = vand.u32 %v558, 4294901760
        %560 = vmatmul.mubr.f32.gmra.mrb[0].mxu0 %v559
        %v561 = vpop.f32.mrb[0].mxu0
        %v562 = vadd.f32 %v342, %v561
        %v563 = vpop.f32.mrb[0].mxu0
        %564 = vmatprep.mubr.f32.mxu0 0.0
        %v565 = vand.u32 %v361, 4294901760
        %v566 = vsub.f32 %v361, %v565
        %v567 = vand.u32 %v566, 4294901760
        %v568 = vsub.f32 %v566, %v567
        %v569 = vand.u32 %v568, 4294901760
        %570 = vmatmul.mubr.f32.gmra.mrb[0].mxu0 %v569
        %v571 = vpop.f32.mrb[0].mxu0
        %v572 = vadd.f32 %v342, %v571
        %v573 = vpop.f32.mrb[0].mxu0
        %574 = vmatprep.mubr.f32.mxu0 0.0
        %v575 = vand.u32 %v364, 4294901760
        %v576 = vsub.f32 %v364, %v575
        %v577 = vand.u32 %v576, 4294901760
        %v578 = vsub.f32 %v576, %v577
        %v579 = vand.u32 %v578, 4294901760
        %580 = vmatmul.mubr.f32.gmra.mrb[0].mxu0 %v579
        %v581 = vpop.f32.mrb[0].mxu0
        %v582 = vadd.f32 %v342, %v581
        %v583 = vpop.f32.mrb[0].mxu0
        %584 = vmatprep.mubr.f32.mxu0 0.0
        %v585 = vand.u32 %v367, 4294901760
        %v586 = vsub.f32 %v367, %v585
        %v587 = vand.u32 %v586, 4294901760
        %v588 = vsub.f32 %v586, %v587
        %v589 = vand.u32 %v588, 4294901760
        %590 = vmatmul.mubr.f32.gmra.mrb[0].mxu0 %v589
        %v591 = vpop.f32.mrb[0].mxu0
        %v592 = vadd.f32 %v342, %v591
        %v593 = vpop.f32.mrb[0].mxu0
        %594 = vmatprep.mubr.f32.mxu0 0.0
        %v595 = vand.u32 %v370, 4294901760
        %v596 = vsub.f32 %v370, %v595
        %v597 = vand.u32 %v596, 4294901760
        %v598 = vsub.f32 %v596, %v597
        %v599 = vand.u32 %v598, 4294901760
        %600 = vmatmul.mubr.f32.gmra.mrb[0].mxu0 %v599
        %v601 = vpop.f32.mrb[0].mxu0
        %v602 = vadd.f32 %v342, %v601
        %v603 = vpop.f32.mrb[0].mxu0
        %604 = vmatprep.mubr.f32.mxu0 0.0
        %v605 = vand.u32 %v373, 4294901760
        %v606 = vsub.f32 %v373, %v605
        %v607 = vand.u32 %v606, 4294901760
        %v608 = vsub.f32 %v606, %v607
        %v609 = vand.u32 %v608, 4294901760
        %610 = vmatmul.mubr.f32.gmra.mrb[0].mxu0 %v609
        %v611 = vpop.f32.mrb[0].mxu0
        %v612 = vadd.f32 %v342, %v611
        %v613 = vpop.f32.mrb[0].mxu0
        %614 = vmatprep.mubr.f32.mxu0 0.0
        %v615 = vand.u32 %v376, 4294901760
        %v616 = vsub.f32 %v376, %v615
        %v617 = vand.u32 %v616, 4294901760
        %v618 = vsub.f32 %v616, %v617
        %v619 = vand.u32 %v618, 4294901760
        %620 = vmatmul.mubr.f32.gmra.mrb[0].mxu0 %v619
        %v621 = vpop.f32.mrb[0].mxu0
        %v622 = vadd.f32 %v342, %v621
        %v623 = vpop.f32.mrb[0].mxu0
        %624 = vmatprep.mubr.f32.mxu0 0.0
        %v625 = vand.u32 %v379, 4294901760
        %v626 = vsub.f32 %v379, %v625
        %v627 = vand.u32 %v626, 4294901760
        %v628 = vsub.f32 %v626, %v627
        %v629 = vand.u32 %v628, 4294901760
        %630 = vmatmul.mubr.f32.gmra.mrb[0].mxu0 %v629
        %v631 = vpop.f32.mrb[0].mxu0
        %v632 = vadd.f32 %v342, %v631
        %v633 = vpop.f32.mrb[0].mxu0
        %634 = vmatprep.mubr.f32.mxu0 0.0
        %v635 = vand.u32 %v382, 4294901760
        %v636 = vsub.f32 %v382, %v635
        %v637 = vand.u32 %v636, 4294901760
        %v638 = vsub.f32 %v636, %v637
        %v639 = vand.u32 %v638, 4294901760
        %640 = vmatmul.mubr.f32.gmra.mrb[0].mxu0 %v639
        %v641 = vpop.f32.mrb[0].mxu0
        %v642 = vadd.f32 %v342, %v641
        %v643 = vpop.f32.mrb[0].mxu0
        %644 = vmatprep.mubr.f32.mxu0 0.0
        %v645 = vand.u32 %v385, 4294901760
        %v646 = vsub.f32 %v385, %v645
        %v647 = vand.u32 %v646, 4294901760
        %v648 = vsub.f32 %v646, %v647
        %v649 = vand.u32 %v648, 4294901760
        %650 = vmatmul.mubr.f32.gmra.mrb[0].mxu0 %v649
        %v651 = vpop.f32.mrb[0].mxu0
        %v652 = vadd.f32 %v342, %v651
        %v653 = vpop.f32.mrb[0].mxu0
        %654 = vmatprep.mubr.f32.mxu0 0.0
        %v655 = vand.u32 %v388, 4294901760
        %v656 = vsub.f32 %v388, %v655
        %v657 = vand.u32 %v656, 4294901760
        %v658 = vsub.f32 %v656, %v657
        %v659 = vand.u32 %v658, 4294901760
        %660 = vmatmul.mubr.f32.gmra.mrb[0].mxu0 %v659
        %v661 = vpop.f32.mrb[0].mxu0
        %v662 = vadd.f32 %v342, %v661
        %v663 = vpop.f32.mrb[0].mxu0
        %664 = vmatprep.mubr.f32.mxu0 0.0
        %v665 = vand.u32 %v391, 4294901760
        %v666 = vsub.f32 %v391, %v665
        %v667 = vand.u32 %v666, 4294901760
        %v668 = vsub.f32 %v666, %v667
        %v669 = vand.u32 %v668, 4294901760
        %670 = vmatmul.mubr.f32.gmra.mrb[0].mxu0 %v669
        %v671 = vpop.f32.mrb[0].mxu0
        %v672 = vadd.f32 %v342, %v671
        %v673 = vpop.f32.mrb[0].mxu0
        %674 = vmatprep.mubr.f32.mxu0 0.0
        %v675 = vand.u32 %v394, 4294901760
        %v676 = vsub.f32 %v394, %v675
        %v677 = vand.u32 %v676, 4294901760
        %v678 = vsub.f32 %v676, %v677
        %v679 = vand.u32 %v678, 4294901760
        %680 = vmatmul.mubr.f32.gmra.mrb[0].mxu0 %v679
        %v681 = vpop.f32.mrb[0].mxu0
        %v682 = vadd.f32 %v342, %v681
        %v683 = vpop.f32.mrb[0].mxu0
        %684 = vmatprep.mubr.f32.mxu0 0.0
        %v685 = vand.u32 %v397, 4294901760
        %v686 = vsub.f32 %v397, %v685
        %v687 = vand.u32 %v686, 4294901760
        %v688 = vsub.f32 %v686, %v687
        %v689 = vand.u32 %v688, 4294901760
        %690 = vmatmul.mubr.f32.gmra.mrb[0].mxu0 %v689
        %v691 = vpop.f32.mrb[0].mxu0
        %v692 = vadd.f32 %v342, %v691
        %v693 = vpop.f32.mrb[0].mxu0
        %694 = vmatprep.mubr.f32.mxu0 0.0
        %v695 = vand.u32 %v400, 4294901760
        %v696 = vsub.f32 %v400, %v695
        %v697 = vand.u32 %v696, 4294901760
        %v698 = vsub.f32 %v696, %v697
        %v699 = vand.u32 %v698, 4294901760
        %700 = vmatmul.mubr.f32.gmra.mrb[0].mxu0 %v699
        %v701 = vpop.f32.mrb[0].mxu0
        %v702 = vadd.f32 %v342, %v701
        %v703 = vpop.f32.mrb[0].mxu0
        %704 = vmatprep.mubr.f32.mxu0 0.0
        %v705 = vand.u32 %v403, 4294901760
        %v706 = vsub.f32 %v403, %v705
        %v707 = vand.u32 %v706, 4294901760
        %v708 = vsub.f32 %v706, %v707
        %v709 = vand.u32 %v708, 4294901760
        %710 = vmatmul.mubr.f32.gmra.mrb[0].mxu0 %v709
        %v711 = vpop.f32.mrb[0].mxu0
        %v712 = vadd.f32 %v342, %v711
        %v713 = vpop.f32.mrb[0].mxu0
        %714 = vmatprep.mubr.f32.mxu0 0.0
        %v715 = vand.u32 %v406, 4294901760
        %v716 = vsub.f32 %v406, %v715
        %v717 = vand.u32 %v716, 4294901760
        %v718 = vsub.f32 %v716, %v717
        %v719 = vand.u32 %v718, 4294901760
        %720 = vmatmul.mubr.f32.gmra.mrb[0].mxu0 %v719
        %v721 = vpop.f32.mrb[0].mxu0
        %v722 = vadd.f32 %v342, %v721
        %v723 = vpop.f32.mrb[0].mxu0
        %724 = vmatprep.mubr.f32.mxu0 0.0
        %v725 = vand.u32 %v409, 4294901760
        %v726 = vsub.f32 %v409, %v725
        %v727 = vand.u32 %v726, 4294901760
        %v728 = vsub.f32 %v726, %v727
        %v729 = vand.u32 %v728, 4294901760
        %730 = vmatmul.mubr.f32.gmra.mrb[0].mxu0 %v729
        %v731 = vpop.f32.mrb[0].mxu0
        %v732 = vadd.f32 %v342, %v731
        %v733 = vpop.f32.mrb[0].mxu0
        %734 = vmatprep.mubr.f32.mxu0 0.0
        %v735 = vand.u32 %v412, 4294901760
        %v736 = vsub.f32 %v412, %v735
        %v737 = vand.u32 %v736, 4294901760
        %v738 = vsub.f32 %v736, %v737
        %v739 = vand.u32 %v738, 4294901760
        %740 = vmatmul.mubr.f32.gmra.mrb[0].mxu0 %v739
        %v741 = vpop.f32.mrb[0].mxu0
        %v742 = vadd.f32 %v342, %v741
        %v743 = vpop.f32.mrb[0].mxu0
        %744 = vmatprep.mubr.f32.mxu0 0.0
        %v745 = vand.u32 %v415, 4294901760
        %v746 = vsub.f32 %v415, %v745
        %v747 = vand.u32 %v746, 4294901760
        %v748 = vsub.f32 %v746, %v747
        %v749 = vand.u32 %v748, 4294901760
        %750 = vmatmul.mubr.f32.gmra.mrb[0].mxu0 %v749
        %v751 = vpop.f32.mrb[0].mxu0
        %v752 = vadd.f32 %v342, %v751
        %v753 = vpop.f32.mrb[0].mxu0
        %754 = vmatprep.mubr.f32.mxu0 0.0
        %v755 = vand.u32 %v418, 4294901760
        %v756 = vsub.f32 %v418, %v755
        %v757 = vand.u32 %v756, 4294901760
        %v758 = vsub.f32 %v756, %v757
        %v759 = vand.u32 %v758, 4294901760
        %760 = vmatmul.mubr.f32.gmra.mrb[0].mxu0 %v759
        %v761 = vpop.f32.mrb[0].mxu0
        %v762 = vadd.f32 %v342, %v761
        %v763 = vpop.f32.mrb[0].mxu0
        %764 = vmatprep.mubr.f32.mxu0 0.0
        %v765 = vand.u32 %v421, 4294901760
        %v766 = vsub.f32 %v421, %v765
        %v767 = vand.u32 %v766, 4294901760
        %v768 = vsub.f32 %v766, %v767
        %v769 = vand.u32 %v768, 4294901760
        %770 = vmatmul.mubr.f32.gmra.mrb[0].mxu0 %v769
        %v771 = vpop.f32.mrb[0].mxu0
        %v772 = vadd.f32 %v342, %v771
        %v773 = vpop.f32.mrb[0].mxu0
        %774 = vmatprep.mubr.f32.mxu0 0.0
        %v775 = vand.u32 %v424, 4294901760
        %v776 = vsub.f32 %v424, %v775
        %v777 = vand.u32 %v776, 4294901760
        %v778 = vsub.f32 %v776, %v777
        %v779 = vand.u32 %v778, 4294901760
        %780 = vmatmul.mubr.f32.gmra.mrb[0].mxu0 %v779
        %v781 = vpop.f32.mrb[0].mxu0
        %v782 = vadd.f32 %v342, %v781
        %v783 = vpop.f32.mrb[0].mxu0
        %784 = vmatprep.mubr.f32.mxu0 0.0
        %v785 = vand.u32 %v427, 4294901760
        %v786 = vsub.f32 %v427, %v785
        %v787 = vand.u32 %v786, 4294901760
        %v788 = vsub.f32 %v786, %v787
        %v789 = vand.u32 %v788, 4294901760
        %790 = vmatmul.mubr.f32.gmra.mrb[0].mxu0 %v789
        %v791 = vpop.f32.mrb[0].mxu0
        %v792 = vadd.f32 %v342, %v791
        %v793 = vpop.f32.mrb[0].mxu0
        %794 = vmatprep.mubr.f32.mxu0 0.0
        %v795 = vand.u32 %v430, 4294901760
        %v796 = vsub.f32 %v430, %v795
        %v797 = vand.u32 %v796, 4294901760
        %v798 = vsub.f32 %v796, %v797
        %v799 = vand.u32 %v798, 4294901760
        %800 = vmatmul.mubr.f32.gmra.mrb[0].mxu0 %v799
        %v801 = vpop.f32.mrb[0].mxu0
        %v802 = vadd.f32 %v342, %v801
        %v803 = vpop.f32.mrb[0].mxu0
        %804 = vmatprep.mubr.f32.mxu0 0.0
        %v805 = vand.u32 %v433, 4294901760
        %v806 = vsub.f32 %v433, %v805
        %v807 = vand.u32 %v806, 4294901760
        %v808 = vsub.f32 %v806, %v807
        %v809 = vand.u32 %v808, 4294901760
        %810 = vmatmul.mubr.f32.gmra.mrb[0].mxu0 %v809
        %v811 = vpop.f32.mrb[0].mxu0
        %v812 = vadd.f32 %v342, %v811
        %v813 = vpop.f32.mrb[0].mxu0
        %814 = vmatprep.mubr.f32.mxu0 0.0
        %v815 = vand.u32 %v436, 4294901760
        %v816 = vsub.f32 %v436, %v815
        %v817 = vand.u32 %v816, 4294901760
        %v818 = vsub.f32 %v816, %v817
        %v819 = vand.u32 %v818, 4294901760
        %820 = vmatmul.mubr.f32.gmra.mrb[0].mxu0 %v819
        %v821 = vpop.f32.mrb[0].mxu0
        %v822 = vadd.f32 %v342, %v821
        %v823 = vpop.f32.mrb[0].mxu0
        %824 = vmatprep.mubr.f32.mxu0 0.0
        %v825 = vand.u32 %v439, 4294901760
        %v826 = vsub.f32 %v439, %v825
        %v827 = vand.u32 %v826, 4294901760
        %v828 = vsub.f32 %v826, %v827
        %v829 = vand.u32 %v828, 4294901760
        %830 = vmatmul.mubr.f32.gmra.mrb[0].mxu0 %v829
        %v831 = vpop.f32.mrb[0].mxu0
        %v832 = vadd.f32 %v342, %v831
        %v833 = vpop.f32.mrb[0].mxu0
        %834 = vdwg.mxu0
        %835 = vmatprep.subr.mxu0 0.0
        %v836 = vand.u32 %v332, 4294901760
        %v837 = vsub.f32 %v332, %v836
        %v838 = vand.u32 %v837, 4294901760
        %v839 = vsub.f32 %v837, %v838
        %v840 = vand.u32 %v839, 4294901760
        %841 = vmatpush1.msra.mxu0 %v840
        %842 = vmatprep.subr.mxu0 0.0
        %v843 = vand.u32 %v333, 4294901760
        %v844 = vsub.f32 %v333, %v843
        %v845 = vand.u32 %v844, 4294901760
        %v846 = vsub.f32 %v844, %v845
        %v847 = vand.u32 %v846, 4294901760
        %848 = vmatpush1.msra.mxu0 %v847
        %849 = vmatprep.subr.mxu0 0.0
        %v850 = vand.u32 %v334, 4294901760
        %v851 = vsub.f32 %v334, %v850
        %v852 = vand.u32 %v851, 4294901760
        %v853 = vsub.f32 %v851, %v852
        %v854 = vand.u32 %v853, 4294901760
        %855 = vmatpush1.msra.mxu0 %v854
        %856 = vmatprep.subr.mxu0 0.0
        %v857 = vand.u32 %v335, 4294901760
        %v858 = vsub.f32 %v335, %v857
        %v859 = vand.u32 %v858, 4294901760
        %v860 = vsub.f32 %v858, %v859
        %v861 = vand.u32 %v860, 4294901760
        %862 = vmatpush1.msra.mxu0 %v861
        %863 = vmatprep.subr.mxu0 0.0
        %v864 = vand.u32 %v443, 4294901760
        %v865 = vsub.f32 %v443, %v864
        %v866 = vand.u32 %v865, 4294901760
        %v867 = vsub.f32 %v865, %v866
        %v868 = vand.u32 %v867, 4294901760
        %869 = vmatpush1.msra.mxu0 %v868
        %870 = vmatprep.subr.mxu0 0.0
        %871 = vmatpush1.msra.mxu0 0.0
        %872 = vmatprep.subr.mxu0 0.0
        %873 = vmatpush1.msra.mxu0 0.0
        %874 = vmatprep.subr.mxu0 0.0
        %875 = vmatpush1.msra.mxu0 0.0
        %876 = vmatprep.subr.mxu0 0.0
        %877 = vmatpush1.msra.mxu0 0.0
        %878 = vmatprep.subr.mxu0 0.0
        %879 = vmatpush1.msra.mxu0 0.0
        %880 = vmatprep.subr.mxu0 0.0
        %881 = vmatpush1.msra.mxu0 0.0
        %882 = vmatprep.subr.mxu0 0.0
        %883 = vmatpush1.msra.mxu0 0.0
        %884 = vmatprep.subr.mxu0 0.0
        %885 = vmatpush1.msra.mxu0 0.0
        %886 = vmatprep.subr.mxu0 0.0
        %887 = vmatpush1.msra.mxu0 0.0
        %888 = vmatprep.subr.mxu0 0.0
        %889 = vmatpush1.msra.mxu0 0.0
        %890 = vmatprep.subr.mxu0 0.0
        %891 = vmatpush1.msra.mxu0 0.0
        %892 = vmatprep.subr.mxu0 0.0
        %893 = vmatpush1.msra.mxu0 0.0
        %894 = vmatprep.subr.mxu0 0.0
        %895 = vmatpush1.msra.mxu0 0.0
        %896 = vmatprep.subr.mxu0 0.0
        %897 = vmatpush1.msra.mxu0 0.0
        %898 = vmatprep.subr.mxu0 0.0
        %899 = vmatpush1.msra.mxu0 0.0
        %900 = vmatprep.subr.mxu0 0.0
        %901 = vmatpush1.msra.mxu0 0.0
        %902 = vmatprep.subr.mxu0 0.0
        %903 = vmatpush1.msra.mxu0 0.0
        %904 = vmatprep.subr.mxu0 0.0
        %905 = vmatpush1.msra.mxu0 0.0
        %906 = vmatprep.subr.mxu0 0.0
        %907 = vmatpush1.msra.mxu0 0.0
        %908 = vmatprep.subr.mxu0 0.0
        %909 = vmatpush1.msra.mxu0 0.0
        %910 = vmatprep.subr.mxu0 0.0
        %911 = vmatpush1.msra.mxu0 0.0
        %912 = vmatprep.subr.mxu0 0.0
        %913 = vmatpush1.msra.mxu0 0.0
        %914 = vmatprep.subr.mxu0 0.0
        %915 = vmatpush1.msra.mxu0 0.0
        %916 = vmatprep.subr.mxu0 0.0
        %917 = vmatpush1.msra.mxu0 0.0
        %918 = vmatprep.subr.mxu0 0.0
        %919 = vmatpush1.msra.mxu0 0.0
        %920 = vmatprep.subr.mxu0 0.0
        %921 = vmatpush1.msra.mxu0 0.0
        %922 = vmatprep.subr.mxu0 0.0
        %923 = vmatpush1.msra.mxu0 0.0
        %924 = vmatprep.mubr.f32.mxu0 0.0
        %v925 = vand.u32 %v346, 4294901760
        %926 = vmatmul.mubr.f32.gmra.mrb[0].mxu0 %v925
        %v927 = vpop.f32.mrb[0].mxu0
        %v928 = vadd.f32 %v522, %v927
        %v929 = vpop.f32.mrb[0].mxu0
        %930 = vmatprep.mubr.f32.mxu0 0.0
        %v931 = vand.u32 %v349, 4294901760
        %932 = vmatmul.mubr.f32.gmra.mrb[0].mxu0 %v931
        %v933 = vpop.f32.mrb[0].mxu0
        %v934 = vadd.f32 %v532, %v933
        %v935 = vpop.f32.mrb[0].mxu0
        %936 = vmatprep.mubr.f32.mxu0 0.0
        %v937 = vand.u32 %v352, 4294901760
        %938 = vmatmul.mubr.f32.gmra.mrb[0].mxu0 %v937
        %v939 = vpop.f32.mrb[0].mxu0
        %v940 = vadd.f32 %v542, %v939
        %v941 = vpop.f32.mrb[0].mxu0
        %942 = vmatprep.mubr.f32.mxu0 0.0
        %v943 = vand.u32 %v355, 4294901760
        %944 = vmatmul.mubr.f32.gmra.mrb[0].mxu0 %v943
        %v945 = vpop.f32.mrb[0].mxu0
        %v946 = vadd.f32 %v552, %v945
        %v947 = vpop.f32.mrb[0].mxu0
        %948 = vmatprep.mubr.f32.mxu0 0.0
        %v949 = vand.u32 %v358, 4294901760
        %950 = vmatmul.mubr.f32.gmra.mrb[0].mxu0 %v949
        %v951 = vpop.f32.mrb[0].mxu0
        %v952 = vadd.f32 %v562, %v951
        %v953 = vpop.f32.mrb[0].mxu0
        %954 = vmatprep.mubr.f32.mxu0 0.0
        %v955 = vand.u32 %v361, 4294901760
        %956 = vmatmul.mubr.f32.gmra.mrb[0].mxu0 %v955
        %v957 = vpop.f32.mrb[0].mxu0
        %v958 = vadd.f32 %v572, %v957
        %v959 = vpop.f32.mrb[0].mxu0
        %960 = vmatprep.mubr.f32.mxu0 0.0
        %v961 = vand.u32 %v364, 4294901760
        %962 = vmatmul.mubr.f32.gmra.mrb[0].mxu0 %v961
        %v963 = vpop.f32.mrb[0].mxu0
        %v964 = vadd.f32 %v582, %v963
        %v965 = vpop.f32.mrb[0].mxu0
        %966 = vmatprep.mubr.f32.mxu0 0.0
        %v967 = vand.u32 %v367, 4294901760
        %968 = vmatmul.mubr.f32.gmra.mrb[0].mxu0 %v967
        %v969 = vpop.f32.mrb[0].mxu0
        %v970 = vadd.f32 %v592, %v969
        %v971 = vpop.f32.mrb[0].mxu0
        %972 = vmatprep.mubr.f32.mxu0 0.0
        %v973 = vand.u32 %v370, 4294901760
        %974 = vmatmul.mubr.f32.gmra.mrb[0].mxu0 %v973
        %v975 = vpop.f32.mrb[0].mxu0
        %v976 = vadd.f32 %v602, %v975
        %v977 = vpop.f32.mrb[0].mxu0
        %978 = vmatprep.mubr.f32.mxu0 0.0
        %v979 = vand.u32 %v373, 4294901760
        %980 = vmatmul.mubr.f32.gmra.mrb[0].mxu0 %v979
        %v981 = vpop.f32.mrb[0].mxu0
        %v982 = vadd.f32 %v612, %v981
        %v983 = vpop.f32.mrb[0].mxu0
        %984 = vmatprep.mubr.f32.mxu0 0.0
        %v985 = vand.u32 %v376, 4294901760
        %986 = vmatmul.mubr.f32.gmra.mrb[0].mxu0 %v985
        %v987 = vpop.f32.mrb[0].mxu0
        %v988 = vadd.f32 %v622, %v987
        %v989 = vpop.f32.mrb[0].mxu0
        %990 = vmatprep.mubr.f32.mxu0 0.0
        %v991 = vand.u32 %v379, 4294901760
        %992 = vmatmul.mubr.f32.gmra.mrb[0].mxu0 %v991
        %v993 = vpop.f32.mrb[0].mxu0
        %v994 = vadd.f32 %v632, %v993
        %v995 = vpop.f32.mrb[0].mxu0
        %996 = vmatprep.mubr.f32.mxu0 0.0
        %v997 = vand.u32 %v382, 4294901760
        %998 = vmatmul.mubr.f32.gmra.mrb[0].mxu0 %v997
        %v999 = vpop.f32.mrb[0].mxu0
        %v1000 = vadd.f32 %v642, %v999
        %v1001 = vpop.f32.mrb[0].mxu0
        %1002 = vmatprep.mubr.f32.mxu0 0.0
        %v1003 = vand.u32 %v385, 4294901760
        %1004 = vmatmul.mubr.f32.gmra.mrb[0].mxu0 %v1003
        %v1005 = vpop.f32.mrb[0].mxu0
        %v1006 = vadd.f32 %v652, %v1005
        %v1007 = vpop.f32.mrb[0].mxu0
        %1008 = vmatprep.mubr.f32.mxu0 0.0
        %v1009 = vand.u32 %v388, 4294901760
        %1010 = vmatmul.mubr.f32.gmra.mrb[0].mxu0 %v1009
        %v1011 = vpop.f32.mrb[0].mxu0
        %v1012 = vadd.f32 %v662, %v1011
        %v1013 = vpop.f32.mrb[0].mxu0
        %1014 = vmatprep.mubr.f32.mxu0 0.0
        %v1015 = vand.u32 %v391, 4294901760
        %1016 = vmatmul.mubr.f32.gmra.mrb[0].mxu0 %v1015
        %v1017 = vpop.f32.mrb[0].mxu0
        %v1018 = vadd.f32 %v672, %v1017
        %v1019 = vpop.f32.mrb[0].mxu0
        %1020 = vmatprep.mubr.f32.mxu0 0.0
        %v1021 = vand.u32 %v394, 4294901760
        %1022 = vmatmul.mubr.f32.gmra.mrb[0].mxu0 %v1021
        %v1023 = vpop.f32.mrb[0].mxu0
        %v1024 = vadd.f32 %v682, %v1023
        %v1025 = vpop.f32.mrb[0].mxu0
        %1026 = vmatprep.mubr.f32.mxu0 0.0
        %v1027 = vand.u32 %v397, 4294901760
        %1028 = vmatmul.mubr.f32.gmra.mrb[0].mxu0 %v1027
        %v1029 = vpop.f32.mrb[0].mxu0
        %v1030 = vadd.f32 %v692, %v1029
        %v1031 = vpop.f32.mrb[0].mxu0
        %1032 = vmatprep.mubr.f32.mxu0 0.0
        %v1033 = vand.u32 %v400, 4294901760
        %1034 = vmatmul.mubr.f32.gmra.mrb[0].mxu0 %v1033
        %v1035 = vpop.f32.mrb[0].mxu0
        %v1036 = vadd.f32 %v702, %v1035
        %v1037 = vpop.f32.mrb[0].mxu0
        %1038 = vmatprep.mubr.f32.mxu0 0.0
        %v1039 = vand.u32 %v403, 4294901760
        %1040 = vmatmul.mubr.f32.gmra.mrb[0].mxu0 %v1039
        %v1041 = vpop.f32.mrb[0].mxu0
        %v1042 = vadd.f32 %v712, %v1041
        %v1043 = vpop.f32.mrb[0].mxu0
        %1044 = vmatprep.mubr.f32.mxu0 0.0
        %v1045 = vand.u32 %v406, 4294901760
        %1046 = vmatmul.mubr.f32.gmra.mrb[0].mxu0 %v1045
        %v1047 = vpop.f32.mrb[0].mxu0
        %v1048 = vadd.f32 %v722, %v1047
        %v1049 = vpop.f32.mrb[0].mxu0
        %1050 = vmatprep.mubr.f32.mxu0 0.0
        %v1051 = vand.u32 %v409, 4294901760
        %1052 = vmatmul.mubr.f32.gmra.mrb[0].mxu0 %v1051
        %v1053 = vpop.f32.mrb[0].mxu0
        %v1054 = vadd.f32 %v732, %v1053
        %v1055 = vpop.f32.mrb[0].mxu0
        %1056 = vmatprep.mubr.f32.mxu0 0.0
        %v1057 = vand.u32 %v412, 4294901760
        %1058 = vmatmul.mubr.f32.gmra.mrb[0].mxu0 %v1057
        %v1059 = vpop.f32.mrb[0].mxu0
        %v1060 = vadd.f32 %v742, %v1059
        %v1061 = vpop.f32.mrb[0].mxu0
        %1062 = vmatprep.mubr.f32.mxu0 0.0
        %v1063 = vand.u32 %v415, 4294901760
        %1064 = vmatmul.mubr.f32.gmra.mrb[0].mxu0 %v1063
        %v1065 = vpop.f32.mrb[0].mxu0
        %v1066 = vadd.f32 %v752, %v1065
        %v1067 = vpop.f32.mrb[0].mxu0
        %1068 = vmatprep.mubr.f32.mxu0 0.0
        %v1069 = vand.u32 %v418, 4294901760
        %1070 = vmatmul.mubr.f32.gmra.mrb[0].mxu0 %v1069
        %v1071 = vpop.f32.mrb[0].mxu0
        %v1072 = vadd.f32 %v762, %v1071
        %v1073 = vpop.f32.mrb[0].mxu0
        %1074 = vmatprep.mubr.f32.mxu0 0.0
        %v1075 = vand.u32 %v421, 4294901760
        %1076 = vmatmul.mubr.f32.gmra.mrb[0].mxu0 %v1075
        %v1077 = vpop.f32.mrb[0].mxu0
        %v1078 = vadd.f32 %v772, %v1077
        %v1079 = vpop.f32.mrb[0].mxu0
        %1080 = vmatprep.mubr.f32.mxu0 0.0
        %v1081 = vand.u32 %v424, 4294901760
        %1082 = vmatmul.mubr.f32.gmra.mrb[0].mxu0 %v1081
        %v1083 = vpop.f32.mrb[0].mxu0
        %v1084 = vadd.f32 %v782, %v1083
        %v1085 = vpop.f32.mrb[0].mxu0
        %1086 = vmatprep.mubr.f32.mxu0 0.0
        %v1087 = vand.u32 %v427, 4294901760
        %1088 = vmatmul.mubr.f32.gmra.mrb[0].mxu0 %v1087
        %v1089 = vpop.f32.mrb[0].mxu0
        %v1090 = vadd.f32 %v792, %v1089
        %v1091 = vpop.f32.mrb[0].mxu0
        %1092 = vmatprep.mubr.f32.mxu0 0.0
        %v1093 = vand.u32 %v430, 4294901760
        %1094 = vmatmul.mubr.f32.gmra.mrb[0].mxu0 %v1093
        %v1095 = vpop.f32.mrb[0].mxu0
        %v1096 = vadd.f32 %v802, %v1095
        %v1097 = vpop.f32.mrb[0].mxu0
        %1098 = vmatprep.mubr.f32.mxu0 0.0
        %v1099 = vand.u32 %v433, 4294901760
        %1100 = vmatmul.mubr.f32.gmra.mrb[0].mxu0 %v1099
        %v1101 = vpop.f32.mrb[0].mxu0
        %v1102 = vadd.f32 %v812, %v1101
        %v1103 = vpop.f32.mrb[0].mxu0
        %1104 = vmatprep.mubr.f32.mxu0 0.0
        %v1105 = vand.u32 %v436, 4294901760
        %1106 = vmatmul.mubr.f32.gmra.mrb[0].mxu0 %v1105
        %v1107 = vpop.f32.mrb[0].mxu0
        %v1108 = vadd.f32 %v822, %v1107
        %v1109 = vpop.f32.mrb[0].mxu0
        %1110 = vmatprep.mubr.f32.mxu0 0.0
        %v1111 = vand.u32 %v439, 4294901760
        %1112 = vmatmul.mubr.f32.gmra.mrb[0].mxu0 %v1111
        %v1113 = vpop.f32.mrb[0].mxu0
        %v1114 = vadd.f32 %v832, %v1113
        %v1115 = vpop.f32.mrb[0].mxu0
        %1116 = vdwg.mxu0
        %1117 = vmatprep.subr.mxu0 0.0
        %v1118 = vand.u32 %v332, 4294901760
        %v1119 = vsub.f32 %v332, %v1118
        %1120 = vmatpush1.msra.mxu0 %v1119
        %1121 = vmatprep.subr.mxu0 0.0
        %v1122 = vand.u32 %v333, 4294901760
        %v1123 = vsub.f32 %v333, %v1122
        %1124 = vmatpush1.msra.mxu0 %v1123
        %1125 = vmatprep.subr.mxu0 0.0
        %v1126 = vand.u32 %v334, 4294901760
        %v1127 = vsub.f32 %v334, %v1126
        %1128 = vmatpush1.msra.mxu0 %v1127
        %1129 = vmatprep.subr.mxu0 0.0
        %v1130 = vand.u32 %v335, 4294901760
        %v1131 = vsub.f32 %v335, %v1130
        %1132 = vmatpush1.msra.mxu0 %v1131
        %1133 = vmatprep.subr.mxu0 0.0
        %v1134 = vand.u32 %v443, 4294901760
        %v1135 = vsub.f32 %v443, %v1134
        %1136 = vmatpush1.msra.mxu0 %v1135
        %1137 = vmatprep.subr.mxu0 0.0
        %1138 = vmatpush1.msra.mxu0 0.0
        %1139 = vmatprep.subr.mxu0 0.0
        %1140 = vmatpush1.msra.mxu0 0.0
        %1141 = vmatprep.subr.mxu0 0.0
        %1142 = vmatpush1.msra.mxu0 0.0
        %1143 = vmatprep.subr.mxu0 0.0
        %1144 = vmatpush1.msra.mxu0 0.0
        %1145 = vmatprep.subr.mxu0 0.0
        %1146 = vmatpush1.msra.mxu0 0.0
        %1147 = vmatprep.subr.mxu0 0.0
        %1148 = vmatpush1.msra.mxu0 0.0
        %1149 = vmatprep.subr.mxu0 0.0
        %1150 = vmatpush1.msra.mxu0 0.0
        %1151 = vmatprep.subr.mxu0 0.0
        %1152 = vmatpush1.msra.mxu0 0.0
        %1153 = vmatprep.subr.mxu0 0.0
        %1154 = vmatpush1.msra.mxu0 0.0
        %1155 = vmatprep.subr.mxu0 0.0
        %1156 = vmatpush1.msra.mxu0 0.0
        %1157 = vmatprep.subr.mxu0 0.0
        %1158 = vmatpush1.msra.mxu0 0.0
        %1159 = vmatprep.subr.mxu0 0.0
        %1160 = vmatpush1.msra.mxu0 0.0
        %1161 = vmatprep.subr.mxu0 0.0
        %1162 = vmatpush1.msra.mxu0 0.0
        %1163 = vmatprep.subr.mxu0 0.0
        %1164 = vmatpush1.msra.mxu0 0.0
        %1165 = vmatprep.subr.mxu0 0.0
        %1166 = vmatpush1.msra.mxu0 0.0
        %1167 = vmatprep.subr.mxu0 0.0
        %1168 = vmatpush1.msra.mxu0 0.0
        %1169 = vmatprep.subr.mxu0 0.0
        %1170 = vmatpush1.msra.mxu0 0.0
        %1171 = vmatprep.subr.mxu0 0.0
        %1172 = vmatpush1.msra.mxu0 0.0
        %1173 = vmatprep.subr.mxu0 0.0
        %1174 = vmatpush1.msra.mxu0 0.0
        %1175 = vmatprep.subr.mxu0 0.0
        %1176 = vmatpush1.msra.mxu0 0.0
        %1177 = vmatprep.subr.mxu0 0.0
        %1178 = vmatpush1.msra.mxu0 0.0
        %1179 = vmatprep.subr.mxu0 0.0
        %1180 = vmatpush1.msra.mxu0 0.0
        %1181 = vmatprep.subr.mxu0 0.0
        %1182 = vmatpush1.msra.mxu0 0.0
        %1183 = vmatprep.subr.mxu0 0.0
        %1184 = vmatpush1.msra.mxu0 0.0
        %1185 = vmatprep.subr.mxu0 0.0
        %1186 = vmatpush1.msra.mxu0 0.0
        %1187 = vmatprep.subr.mxu0 0.0
        %1188 = vmatpush1.msra.mxu0 0.0
        %1189 = vmatprep.subr.mxu0 0.0
        %1190 = vmatpush1.msra.mxu0 0.0
        %1191 = vmatprep.mubr.f32.mxu0 0.0
        %v1192 = vand.u32 %v346, 4294901760
        %v1193 = vsub.f32 %v346, %v1192
        %1194 = vmatmul.mubr.f32.gmra.mrb[0].mxu0 %v1193
        %v1195 = vpop.f32.mrb[0].mxu0
        %v1196 = vadd.f32 %v928, %v1195
        %v1197 = vpop.f32.mrb[0].mxu0
        %1198 = vmatprep.mubr.f32.mxu0 0.0
        %v1199 = vand.u32 %v349, 4294901760
        %v1200 = vsub.f32 %v349, %v1199
        %1201 = vmatmul.mubr.f32.gmra.mrb[0].mxu0 %v1200
        %v1202 = vpop.f32.mrb[0].mxu0
        %v1203 = vadd.f32 %v934, %v1202
        %v1204 = vpop.f32.mrb[0].mxu0
        %1205 = vmatprep.mubr.f32.mxu0 0.0
        %v1206 = vand.u32 %v352, 4294901760
        %v1207 = vsub.f32 %v352, %v1206
        %1208 = vmatmul.mubr.f32.gmra.mrb[0].mxu0 %v1207
        %v1209 = vpop.f32.mrb[0].mxu0
        %v1210 = vadd.f32 %v940, %v1209
        %v1211 = vpop.f32.mrb[0].mxu0
        %1212 = vmatprep.mubr.f32.mxu0 0.0
        %v1213 = vand.u32 %v355, 4294901760
        %v1214 = vsub.f32 %v355, %v1213
        %1215 = vmatmul.mubr.f32.gmra.mrb[0].mxu0 %v1214
        %v1216 = vpop.f32.mrb[0].mxu0
        %v1217 = vadd.f32 %v946, %v1216
        %v1218 = vpop.f32.mrb[0].mxu0
        %1219 = vmatprep.mubr.f32.mxu0 0.0
        %v1220 = vand.u32 %v358, 4294901760
        %v1221 = vsub.f32 %v358, %v1220
        %1222 = vmatmul.mubr.f32.gmra.mrb[0].mxu0 %v1221
        %v1223 = vpop.f32.mrb[0].mxu0
        %v1224 = vadd.f32 %v952, %v1223
        %v1225 = vpop.f32.mrb[0].mxu0
        %1226 = vmatprep.mubr.f32.mxu0 0.0
        %v1227 = vand.u32 %v361, 4294901760
        %v1228 = vsub.f32 %v361, %v1227
        %1229 = vmatmul.mubr.f32.gmra.mrb[0].mxu0 %v1228
        %v1230 = vpop.f32.mrb[0].mxu0
        %v1231 = vadd.f32 %v958, %v1230
        %v1232 = vpop.f32.mrb[0].mxu0
        %1233 = vmatprep.mubr.f32.mxu0 0.0
        %v1234 = vand.u32 %v364, 4294901760
        %v1235 = vsub.f32 %v364, %v1234
        %1236 = vmatmul.mubr.f32.gmra.mrb[0].mxu0 %v1235
        %v1237 = vpop.f32.mrb[0].mxu0
        %v1238 = vadd.f32 %v964, %v1237
        %v1239 = vpop.f32.mrb[0].mxu0
        %1240 = vmatprep.mubr.f32.mxu0 0.0
        %v1241 = vand.u32 %v367, 4294901760
        %v1242 = vsub.f32 %v367, %v1241
        %1243 = vmatmul.mubr.f32.gmra.mrb[0].mxu0 %v1242
        %v1244 = vpop.f32.mrb[0].mxu0
        %v1245 = vadd.f32 %v970, %v1244
        %v1246 = vpop.f32.mrb[0].mxu0
        %1247 = vmatprep.mubr.f32.mxu0 0.0
        %v1248 = vand.u32 %v370, 4294901760
        %v1249 = vsub.f32 %v370, %v1248
        %1250 = vmatmul.mubr.f32.gmra.mrb[0].mxu0 %v1249
        %v1251 = vpop.f32.mrb[0].mxu0
        %v1252 = vadd.f32 %v976, %v1251
        %v1253 = vpop.f32.mrb[0].mxu0
        %1254 = vmatprep.mubr.f32.mxu0 0.0
        %v1255 = vand.u32 %v373, 4294901760
        %v1256 = vsub.f32 %v373, %v1255
        %1257 = vmatmul.mubr.f32.gmra.mrb[0].mxu0 %v1256
        %v1258 = vpop.f32.mrb[0].mxu0
        %v1259 = vadd.f32 %v982, %v1258
        %v1260 = vpop.f32.mrb[0].mxu0
        %1261 = vmatprep.mubr.f32.mxu0 0.0
        %v1262 = vand.u32 %v376, 4294901760
        %v1263 = vsub.f32 %v376, %v1262
        %1264 = vmatmul.mubr.f32.gmra.mrb[0].mxu0 %v1263
        %v1265 = vpop.f32.mrb[0].mxu0
        %v1266 = vadd.f32 %v988, %v1265
        %v1267 = vpop.f32.mrb[0].mxu0
        %1268 = vmatprep.mubr.f32.mxu0 0.0
        %v1269 = vand.u32 %v379, 4294901760
        %v1270 = vsub.f32 %v379, %v1269
        %1271 = vmatmul.mubr.f32.gmra.mrb[0].mxu0 %v1270
        %v1272 = vpop.f32.mrb[0].mxu0
        %v1273 = vadd.f32 %v994, %v1272
        %v1274 = vpop.f32.mrb[0].mxu0
        %1275 = vmatprep.mubr.f32.mxu0 0.0
        %v1276 = vand.u32 %v382, 4294901760
        %v1277 = vsub.f32 %v382, %v1276
        %1278 = vmatmul.mubr.f32.gmra.mrb[0].mxu0 %v1277
        %v1279 = vpop.f32.mrb[0].mxu0
        %v1280 = vadd.f32 %v1000, %v1279
        %v1281 = vpop.f32.mrb[0].mxu0
        %1282 = vmatprep.mubr.f32.mxu0 0.0
        %v1283 = vand.u32 %v385, 4294901760
        %v1284 = vsub.f32 %v385, %v1283
        %1285 = vmatmul.mubr.f32.gmra.mrb[0].mxu0 %v1284
        %v1286 = vpop.f32.mrb[0].mxu0
        %v1287 = vadd.f32 %v1006, %v1286
        %v1288 = vpop.f32.mrb[0].mxu0
        %1289 = vmatprep.mubr.f32.mxu0 0.0
        %v1290 = vand.u32 %v388, 4294901760
        %v1291 = vsub.f32 %v388, %v1290
        %1292 = vmatmul.mubr.f32.gmra.mrb[0].mxu0 %v1291
        %v1293 = vpop.f32.mrb[0].mxu0
        %v1294 = vadd.f32 %v1012, %v1293
        %v1295 = vpop.f32.mrb[0].mxu0
        %1296 = vmatprep.mubr.f32.mxu0 0.0
        %v1297 = vand.u32 %v391, 4294901760
        %v1298 = vsub.f32 %v391, %v1297
        %1299 = vmatmul.mubr.f32.gmra.mrb[0].mxu0 %v1298
        %v1300 = vpop.f32.mrb[0].mxu0
        %v1301 = vadd.f32 %v1018, %v1300
        %v1302 = vpop.f32.mrb[0].mxu0
        %1303 = vmatprep.mubr.f32.mxu0 0.0
        %v1304 = vand.u32 %v394, 4294901760
        %v1305 = vsub.f32 %v394, %v1304
        %1306 = vmatmul.mubr.f32.gmra.mrb[0].mxu0 %v1305
        %v1307 = vpop.f32.mrb[0].mxu0
        %v1308 = vadd.f32 %v1024, %v1307
        %v1309 = vpop.f32.mrb[0].mxu0
        %1310 = vmatprep.mubr.f32.mxu0 0.0
        %v1311 = vand.u32 %v397, 4294901760
        %v1312 = vsub.f32 %v397, %v1311
        %1313 = vmatmul.mubr.f32.gmra.mrb[0].mxu0 %v1312
        %v1314 = vpop.f32.mrb[0].mxu0
        %v1315 = vadd.f32 %v1030, %v1314
        %v1316 = vpop.f32.mrb[0].mxu0
        %1317 = vmatprep.mubr.f32.mxu0 0.0
        %v1318 = vand.u32 %v400, 4294901760
        %v1319 = vsub.f32 %v400, %v1318
        %1320 = vmatmul.mubr.f32.gmra.mrb[0].mxu0 %v1319
        %v1321 = vpop.f32.mrb[0].mxu0
        %v1322 = vadd.f32 %v1036, %v1321
        %v1323 = vpop.f32.mrb[0].mxu0
        %1324 = vmatprep.mubr.f32.mxu0 0.0
        %v1325 = vand.u32 %v403, 4294901760
        %v1326 = vsub.f32 %v403, %v1325
        %1327 = vmatmul.mubr.f32.gmra.mrb[0].mxu0 %v1326
        %v1328 = vpop.f32.mrb[0].mxu0
        %v1329 = vadd.f32 %v1042, %v1328
        %v1330 = vpop.f32.mrb[0].mxu0
        %1331 = vmatprep.mubr.f32.mxu0 0.0
        %v1332 = vand.u32 %v406, 4294901760
        %v1333 = vsub.f32 %v406, %v1332
        %1334 = vmatmul.mubr.f32.gmra.mrb[0].mxu0 %v1333
        %v1335 = vpop.f32.mrb[0].mxu0
        %v1336 = vadd.f32 %v1048, %v1335
        %v1337 = vpop.f32.mrb[0].mxu0
        %1338 = vmatprep.mubr.f32.mxu0 0.0
        %v1339 = vand.u32 %v409, 4294901760
        %v1340 = vsub.f32 %v409, %v1339
        %1341 = vmatmul.mubr.f32.gmra.mrb[0].mxu0 %v1340
        %v1342 = vpop.f32.mrb[0].mxu0
        %v1343 = vadd.f32 %v1054, %v1342
        %v1344 = vpop.f32.mrb[0].mxu0
        %1345 = vmatprep.mubr.f32.mxu0 0.0
        %v1346 = vand.u32 %v412, 4294901760
        %v1347 = vsub.f32 %v412, %v1346
        %1348 = vmatmul.mubr.f32.gmra.mrb[0].mxu0 %v1347
        %v1349 = vpop.f32.mrb[0].mxu0
        %v1350 = vadd.f32 %v1060, %v1349
        %v1351 = vpop.f32.mrb[0].mxu0
        %1352 = vmatprep.mubr.f32.mxu0 0.0
        %v1353 = vand.u32 %v415, 4294901760
        %v1354 = vsub.f32 %v415, %v1353
        %1355 = vmatmul.mubr.f32.gmra.mrb[0].mxu0 %v1354
        %v1356 = vpop.f32.mrb[0].mxu0
        %v1357 = vadd.f32 %v1066, %v1356
        %v1358 = vpop.f32.mrb[0].mxu0
        %1359 = vmatprep.mubr.f32.mxu0 0.0
        %v1360 = vand.u32 %v418, 4294901760
        %v1361 = vsub.f32 %v418, %v1360
        %1362 = vmatmul.mubr.f32.gmra.mrb[0].mxu0 %v1361
        %v1363 = vpop.f32.mrb[0].mxu0
        %v1364 = vadd.f32 %v1072, %v1363
        %v1365 = vpop.f32.mrb[0].mxu0
        %1366 = vmatprep.mubr.f32.mxu0 0.0
        %v1367 = vand.u32 %v421, 4294901760
        %v1368 = vsub.f32 %v421, %v1367
        %1369 = vmatmul.mubr.f32.gmra.mrb[0].mxu0 %v1368
        %v1370 = vpop.f32.mrb[0].mxu0
        %v1371 = vadd.f32 %v1078, %v1370
        %v1372 = vpop.f32.mrb[0].mxu0
        %1373 = vmatprep.mubr.f32.mxu0 0.0
        %v1374 = vand.u32 %v424, 4294901760
        %v1375 = vsub.f32 %v424, %v1374
        %1376 = vmatmul.mubr.f32.gmra.mrb[0].mxu0 %v1375
        %v1377 = vpop.f32.mrb[0].mxu0
        %v1378 = vadd.f32 %v1084, %v1377
        %v1379 = vpop.f32.mrb[0].mxu0
        %1380 = vmatprep.mubr.f32.mxu0 0.0
        %v1381 = vand.u32 %v427, 4294901760
        %v1382 = vsub.f32 %v427, %v1381
        %1383 = vmatmul.mubr.f32.gmra.mrb[0].mxu0 %v1382
        %v1384 = vpop.f32.mrb[0].mxu0
        %v1385 = vadd.f32 %v1090, %v1384
        %v1386 = vpop.f32.mrb[0].mxu0
        %1387 = vmatprep.mubr.f32.mxu0 0.0
        %v1388 = vand.u32 %v430, 4294901760
        %v1389 = vsub.f32 %v430, %v1388
        %1390 = vmatmul.mubr.f32.gmra.mrb[0].mxu0 %v1389
        %v1391 = vpop.f32.mrb[0].mxu0
        %v1392 = vadd.f32 %v1096, %v1391
        %v1393 = vpop.f32.mrb[0].mxu0
        %1394 = vmatprep.mubr.f32.mxu0 0.0
        %v1395 = vand.u32 %v433, 4294901760
        %v1396 = vsub.f32 %v433, %v1395
        %1397 = vmatmul.mubr.f32.gmra.mrb[0].mxu0 %v1396
        %v1398 = vpop.f32.mrb[0].mxu0
        %v1399 = vadd.f32 %v1102, %v1398
        %v1400 = vpop.f32.mrb[0].mxu0
        %1401 = vmatprep.mubr.f32.mxu0 0.0
        %v1402 = vand.u32 %v436, 4294901760
        %v1403 = vsub.f32 %v436, %v1402
        %1404 = vmatmul.mubr.f32.gmra.mrb[0].mxu0 %v1403
        %v1405 = vpop.f32.mrb[0].mxu0
        %v1406 = vadd.f32 %v1108, %v1405
        %v1407 = vpop.f32.mrb[0].mxu0
        %1408 = vmatprep.mubr.f32.mxu0 0.0
        %v1409 = vand.u32 %v439, 4294901760
        %v1410 = vsub.f32 %v439, %v1409
        %1411 = vmatmul.mubr.f32.gmra.mrb[0].mxu0 %v1410
        %v1412 = vpop.f32.mrb[0].mxu0
        %v1413 = vadd.f32 %v1114, %v1412
        %v1414 = vpop.f32.mrb[0].mxu0
        %1415 = vdwg.mxu0
        %1416 = vmatprep.subr.mxu0 0.0
        %v1417 = vand.u32 %v332, 4294901760
        %1418 = vmatpush1.msra.mxu0 %v1417
        %1419 = vmatprep.subr.mxu0 0.0
        %v1420 = vand.u32 %v333, 4294901760
        %1421 = vmatpush1.msra.mxu0 %v1420
        %1422 = vmatprep.subr.mxu0 0.0
        %v1423 = vand.u32 %v334, 4294901760
        %1424 = vmatpush1.msra.mxu0 %v1423
        %1425 = vmatprep.subr.mxu0 0.0
        %v1426 = vand.u32 %v335, 4294901760
        %1427 = vmatpush1.msra.mxu0 %v1426
        %1428 = vmatprep.subr.mxu0 0.0
        %v1429 = vand.u32 %v443, 4294901760
        %1430 = vmatpush1.msra.mxu0 %v1429
        %1431 = vmatprep.subr.mxu0 0.0
        %1432 = vmatpush1.msra.mxu0 0.0
        %1433 = vmatprep.subr.mxu0 0.0
        %1434 = vmatpush1.msra.mxu0 0.0
        %1435 = vmatprep.subr.mxu0 0.0
        %1436 = vmatpush1.msra.mxu0 0.0
        %1437 = vmatprep.subr.mxu0 0.0
        %1438 = vmatpush1.msra.mxu0 0.0
        %1439 = vmatprep.subr.mxu0 0.0
        %1440 = vmatpush1.msra.mxu0 0.0
        %1441 = vmatprep.subr.mxu0 0.0
        %1442 = vmatpush1.msra.mxu0 0.0
        %1443 = vmatprep.subr.mxu0 0.0
        %1444 = vmatpush1.msra.mxu0 0.0
        %1445 = vmatprep.subr.mxu0 0.0
        %1446 = vmatpush1.msra.mxu0 0.0
        %1447 = vmatprep.subr.mxu0 0.0
        %1448 = vmatpush1.msra.mxu0 0.0
        %1449 = vmatprep.subr.mxu0 0.0
        %1450 = vmatpush1.msra.mxu0 0.0
        %1451 = vmatprep.subr.mxu0 0.0
        %1452 = vmatpush1.msra.mxu0 0.0
        %1453 = vmatprep.subr.mxu0 0.0
        %1454 = vmatpush1.msra.mxu0 0.0
        %1455 = vmatprep.subr.mxu0 0.0
        %1456 = vmatpush1.msra.mxu0 0.0
        %1457 = vmatprep.subr.mxu0 0.0
        %1458 = vmatpush1.msra.mxu0 0.0
        %1459 = vmatprep.subr.mxu0 0.0
        %1460 = vmatpush1.msra.mxu0 0.0
        %1461 = vmatprep.subr.mxu0 0.0
        %1462 = vmatpush1.msra.mxu0 0.0
        %1463 = vmatprep.subr.mxu0 0.0
        %1464 = vmatpush1.msra.mxu0 0.0
        %1465 = vmatprep.subr.mxu0 0.0
        %1466 = vmatpush1.msra.mxu0 0.0
        %1467 = vmatprep.subr.mxu0 0.0
        %1468 = vmatpush1.msra.mxu0 0.0
        %1469 = vmatprep.subr.mxu0 0.0
        %1470 = vmatpush1.msra.mxu0 0.0
        %1471 = vmatprep.subr.mxu0 0.0
        %1472 = vmatpush1.msra.mxu0 0.0
        %1473 = vmatprep.subr.mxu0 0.0
        %1474 = vmatpush1.msra.mxu0 0.0
        %1475 = vmatprep.subr.mxu0 0.0
        %1476 = vmatpush1.msra.mxu0 0.0
        %1477 = vmatprep.subr.mxu0 0.0
        %1478 = vmatpush1.msra.mxu0 0.0
        %1479 = vmatprep.subr.mxu0 0.0
        %1480 = vmatpush1.msra.mxu0 0.0
        %1481 = vmatprep.subr.mxu0 0.0
        %1482 = vmatpush1.msra.mxu0 0.0
        %1483 = vmatprep.subr.mxu0 0.0
        %1484 = vmatpush1.msra.mxu0 0.0
        %1485 = vmatprep.mubr.f32.mxu0 0.0
        %v1486 = vand.u32 %v346, 4294901760
        %v1487 = vsub.f32 %v346, %v1486
        %v1488 = vand.u32 %v1487, 4294901760
        %1489 = vmatmul.mubr.f32.gmra.mrb[0].mxu0 %v1488
        %v1490 = vpop.f32.mrb[0].mxu0
        %v1491 = vadd.f32 %v1196, %v1490
        %v1492 = vpop.f32.mrb[0].mxu0
        %1493 = vmatprep.mubr.f32.mxu0 0.0
        %v1494 = vand.u32 %v349, 4294901760
        %v1495 = vsub.f32 %v349, %v1494
        %v1496 = vand.u32 %v1495, 4294901760
        %1497 = vmatmul.mubr.f32.gmra.mrb[0].mxu0 %v1496
        %v1498 = vpop.f32.mrb[0].mxu0
        %v1499 = vadd.f32 %v1203, %v1498
        %v1500 = vpop.f32.mrb[0].mxu0
        %1501 = vmatprep.mubr.f32.mxu0 0.0
        %v1502 = vand.u32 %v352, 4294901760
        %v1503 = vsub.f32 %v352, %v1502
        %v1504 = vand.u32 %v1503, 4294901760
        %1505 = vmatmul.mubr.f32.gmra.mrb[0].mxu0 %v1504
        %v1506 = vpop.f32.mrb[0].mxu0
        %v1507 = vadd.f32 %v1210, %v1506
        %v1508 = vpop.f32.mrb[0].mxu0
        %1509 = vmatprep.mubr.f32.mxu0 0.0
        %v1510 = vand.u32 %v355, 4294901760
        %v1511 = vsub.f32 %v355, %v1510
        %v1512 = vand.u32 %v1511, 4294901760
        %1513 = vmatmul.mubr.f32.gmra.mrb[0].mxu0 %v1512
        %v1514 = vpop.f32.mrb[0].mxu0
        %v1515 = vadd.f32 %v1217, %v1514
        %v1516 = vpop.f32.mrb[0].mxu0
        %1517 = vmatprep.mubr.f32.mxu0 0.0
        %v1518 = vand.u32 %v358, 4294901760
        %v1519 = vsub.f32 %v358, %v1518
        %v1520 = vand.u32 %v1519, 4294901760
        %1521 = vmatmul.mubr.f32.gmra.mrb[0].mxu0 %v1520
        %v1522 = vpop.f32.mrb[0].mxu0
        %v1523 = vadd.f32 %v1224, %v1522
        %v1524 = vpop.f32.mrb[0].mxu0
        %1525 = vmatprep.mubr.f32.mxu0 0.0
        %v1526 = vand.u32 %v361, 4294901760
        %v1527 = vsub.f32 %v361, %v1526
        %v1528 = vand.u32 %v1527, 4294901760
        %1529 = vmatmul.mubr.f32.gmra.mrb[0].mxu0 %v1528
        %v1530 = vpop.f32.mrb[0].mxu0
        %v1531 = vadd.f32 %v1231, %v1530
        %v1532 = vpop.f32.mrb[0].mxu0
        %1533 = vmatprep.mubr.f32.mxu0 0.0
        %v1534 = vand.u32 %v364, 4294901760
        %v1535 = vsub.f32 %v364, %v1534
        %v1536 = vand.u32 %v1535, 4294901760
        %1537 = vmatmul.mubr.f32.gmra.mrb[0].mxu0 %v1536
        %v1538 = vpop.f32.mrb[0].mxu0
        %v1539 = vadd.f32 %v1238, %v1538
        %v1540 = vpop.f32.mrb[0].mxu0
        %1541 = vmatprep.mubr.f32.mxu0 0.0
        %v1542 = vand.u32 %v367, 4294901760
        %v1543 = vsub.f32 %v367, %v1542
        %v1544 = vand.u32 %v1543, 4294901760
        %1545 = vmatmul.mubr.f32.gmra.mrb[0].mxu0 %v1544
        %v1546 = vpop.f32.mrb[0].mxu0
        %v1547 = vadd.f32 %v1245, %v1546
        %v1548 = vpop.f32.mrb[0].mxu0
        %1549 = vmatprep.mubr.f32.mxu0 0.0
        %v1550 = vand.u32 %v370, 4294901760
        %v1551 = vsub.f32 %v370, %v1550
        %v1552 = vand.u32 %v1551, 4294901760
        %1553 = vmatmul.mubr.f32.gmra.mrb[0].mxu0 %v1552
        %v1554 = vpop.f32.mrb[0].mxu0
        %v1555 = vadd.f32 %v1252, %v1554
        %v1556 = vpop.f32.mrb[0].mxu0
        %1557 = vmatprep.mubr.f32.mxu0 0.0
        %v1558 = vand.u32 %v373, 4294901760
        %v1559 = vsub.f32 %v373, %v1558
        %v1560 = vand.u32 %v1559, 4294901760
        %1561 = vmatmul.mubr.f32.gmra.mrb[0].mxu0 %v1560
        %v1562 = vpop.f32.mrb[0].mxu0
        %v1563 = vadd.f32 %v1259, %v1562
        %v1564 = vpop.f32.mrb[0].mxu0
        %1565 = vmatprep.mubr.f32.mxu0 0.0
        %v1566 = vand.u32 %v376, 4294901760
        %v1567 = vsub.f32 %v376, %v1566
        %v1568 = vand.u32 %v1567, 4294901760
        %1569 = vmatmul.mubr.f32.gmra.mrb[0].mxu0 %v1568
        %v1570 = vpop.f32.mrb[0].mxu0
        %v1571 = vadd.f32 %v1266, %v1570
        %v1572 = vpop.f32.mrb[0].mxu0
        %1573 = vmatprep.mubr.f32.mxu0 0.0
        %v1574 = vand.u32 %v379, 4294901760
        %v1575 = vsub.f32 %v379, %v1574
        %v1576 = vand.u32 %v1575, 4294901760
        %1577 = vmatmul.mubr.f32.gmra.mrb[0].mxu0 %v1576
        %v1578 = vpop.f32.mrb[0].mxu0
        %v1579 = vadd.f32 %v1273, %v1578
        %v1580 = vpop.f32.mrb[0].mxu0
        %1581 = vmatprep.mubr.f32.mxu0 0.0
        %v1582 = vand.u32 %v382, 4294901760
        %v1583 = vsub.f32 %v382, %v1582
        %v1584 = vand.u32 %v1583, 4294901760
        %1585 = vmatmul.mubr.f32.gmra.mrb[0].mxu0 %v1584
        %v1586 = vpop.f32.mrb[0].mxu0
        %v1587 = vadd.f32 %v1280, %v1586
        %v1588 = vpop.f32.mrb[0].mxu0
        %1589 = vmatprep.mubr.f32.mxu0 0.0
        %v1590 = vand.u32 %v385, 4294901760
        %v1591 = vsub.f32 %v385, %v1590
        %v1592 = vand.u32 %v1591, 4294901760
        %1593 = vmatmul.mubr.f32.gmra.mrb[0].mxu0 %v1592
        %v1594 = vpop.f32.mrb[0].mxu0
        %v1595 = vadd.f32 %v1287, %v1594
        %v1596 = vpop.f32.mrb[0].mxu0
        %1597 = vmatprep.mubr.f32.mxu0 0.0
        %v1598 = vand.u32 %v388, 4294901760
        %v1599 = vsub.f32 %v388, %v1598
        %v1600 = vand.u32 %v1599, 4294901760
        %1601 = vmatmul.mubr.f32.gmra.mrb[0].mxu0 %v1600
        %v1602 = vpop.f32.mrb[0].mxu0
        %v1603 = vadd.f32 %v1294, %v1602
        %v1604 = vpop.f32.mrb[0].mxu0
        %1605 = vmatprep.mubr.f32.mxu0 0.0
        %v1606 = vand.u32 %v391, 4294901760
        %v1607 = vsub.f32 %v391, %v1606
        %v1608 = vand.u32 %v1607, 4294901760
        %1609 = vmatmul.mubr.f32.gmra.mrb[0].mxu0 %v1608
        %v1610 = vpop.f32.mrb[0].mxu0
        %v1611 = vadd.f32 %v1301, %v1610
        %v1612 = vpop.f32.mrb[0].mxu0
        %1613 = vmatprep.mubr.f32.mxu0 0.0
        %v1614 = vand.u32 %v394, 4294901760
        %v1615 = vsub.f32 %v394, %v1614
        %v1616 = vand.u32 %v1615, 4294901760
        %1617 = vmatmul.mubr.f32.gmra.mrb[0].mxu0 %v1616
        %v1618 = vpop.f32.mrb[0].mxu0
        %v1619 = vadd.f32 %v1308, %v1618
        %v1620 = vpop.f32.mrb[0].mxu0
        %1621 = vmatprep.mubr.f32.mxu0 0.0
        %v1622 = vand.u32 %v397, 4294901760
        %v1623 = vsub.f32 %v397, %v1622
        %v1624 = vand.u32 %v1623, 4294901760
        %1625 = vmatmul.mubr.f32.gmra.mrb[0].mxu0 %v1624
        %v1626 = vpop.f32.mrb[0].mxu0
        %v1627 = vadd.f32 %v1315, %v1626
        %v1628 = vpop.f32.mrb[0].mxu0
        %1629 = vmatprep.mubr.f32.mxu0 0.0
        %v1630 = vand.u32 %v400, 4294901760
        %v1631 = vsub.f32 %v400, %v1630
        %v1632 = vand.u32 %v1631, 4294901760
        %1633 = vmatmul.mubr.f32.gmra.mrb[0].mxu0 %v1632
        %v1634 = vpop.f32.mrb[0].mxu0
        %v1635 = vadd.f32 %v1322, %v1634
        %v1636 = vpop.f32.mrb[0].mxu0
        %1637 = vmatprep.mubr.f32.mxu0 0.0
        %v1638 = vand.u32 %v403, 4294901760
        %v1639 = vsub.f32 %v403, %v1638
        %v1640 = vand.u32 %v1639, 4294901760
        %1641 = vmatmul.mubr.f32.gmra.mrb[0].mxu0 %v1640
        %v1642 = vpop.f32.mrb[0].mxu0
        %v1643 = vadd.f32 %v1329, %v1642
        %v1644 = vpop.f32.mrb[0].mxu0
        %1645 = vmatprep.mubr.f32.mxu0 0.0
        %v1646 = vand.u32 %v406, 4294901760
        %v1647 = vsub.f32 %v406, %v1646
        %v1648 = vand.u32 %v1647, 4294901760
        %1649 = vmatmul.mubr.f32.gmra.mrb[0].mxu0 %v1648
        %v1650 = vpop.f32.mrb[0].mxu0
        %v1651 = vadd.f32 %v1336, %v1650
        %v1652 = vpop.f32.mrb[0].mxu0
        %1653 = vmatprep.mubr.f32.mxu0 0.0
        %v1654 = vand.u32 %v409, 4294901760
        %v1655 = vsub.f32 %v409, %v1654
        %v1656 = vand.u32 %v1655, 4294901760
        %1657 = vmatmul.mubr.f32.gmra.mrb[0].mxu0 %v1656
        %v1658 = vpop.f32.mrb[0].mxu0
        %v1659 = vadd.f32 %v1343, %v1658
        %v1660 = vpop.f32.mrb[0].mxu0
        %1661 = vmatprep.mubr.f32.mxu0 0.0
        %v1662 = vand.u32 %v412, 4294901760
        %v1663 = vsub.f32 %v412, %v1662
        %v1664 = vand.u32 %v1663, 4294901760
        %1665 = vmatmul.mubr.f32.gmra.mrb[0].mxu0 %v1664
        %v1666 = vpop.f32.mrb[0].mxu0
        %v1667 = vadd.f32 %v1350, %v1666
        %v1668 = vpop.f32.mrb[0].mxu0
        %1669 = vmatprep.mubr.f32.mxu0 0.0
        %v1670 = vand.u32 %v415, 4294901760
        %v1671 = vsub.f32 %v415, %v1670
        %v1672 = vand.u32 %v1671, 4294901760
        %1673 = vmatmul.mubr.f32.gmra.mrb[0].mxu0 %v1672
        %v1674 = vpop.f32.mrb[0].mxu0
        %v1675 = vadd.f32 %v1357, %v1674
        %v1676 = vpop.f32.mrb[0].mxu0
        %1677 = vmatprep.mubr.f32.mxu0 0.0
        %v1678 = vand.u32 %v418, 4294901760
        %v1679 = vsub.f32 %v418, %v1678
        %v1680 = vand.u32 %v1679, 4294901760
        %1681 = vmatmul.mubr.f32.gmra.mrb[0].mxu0 %v1680
        %v1682 = vpop.f32.mrb[0].mxu0
        %v1683 = vadd.f32 %v1364, %v1682
        %v1684 = vpop.f32.mrb[0].mxu0
        %1685 = vmatprep.mubr.f32.mxu0 0.0
        %v1686 = vand.u32 %v421, 4294901760
        %v1687 = vsub.f32 %v421, %v1686
        %v1688 = vand.u32 %v1687, 4294901760
        %1689 = vmatmul.mubr.f32.gmra.mrb[0].mxu0 %v1688
        %v1690 = vpop.f32.mrb[0].mxu0
        %v1691 = vadd.f32 %v1371, %v1690
        %v1692 = vpop.f32.mrb[0].mxu0
        %1693 = vmatprep.mubr.f32.mxu0 0.0
        %v1694 = vand.u32 %v424, 4294901760
        %v1695 = vsub.f32 %v424, %v1694
        %v1696 = vand.u32 %v1695, 4294901760
        %1697 = vmatmul.mubr.f32.gmra.mrb[0].mxu0 %v1696
        %v1698 = vpop.f32.mrb[0].mxu0
        %v1699 = vadd.f32 %v1378, %v1698
        %v1700 = vpop.f32.mrb[0].mxu0
        %1701 = vmatprep.mubr.f32.mxu0 0.0
        %v1702 = vand.u32 %v427, 4294901760
        %v1703 = vsub.f32 %v427, %v1702
        %v1704 = vand.u32 %v1703, 4294901760
        %1705 = vmatmul.mubr.f32.gmra.mrb[0].mxu0 %v1704
        %v1706 = vpop.f32.mrb[0].mxu0
        %v1707 = vadd.f32 %v1385, %v1706
        %v1708 = vpop.f32.mrb[0].mxu0
        %1709 = vmatprep.mubr.f32.mxu0 0.0
        %v1710 = vand.u32 %v430, 4294901760
        %v1711 = vsub.f32 %v430, %v1710
        %v1712 = vand.u32 %v1711, 4294901760
        %1713 = vmatmul.mubr.f32.gmra.mrb[0].mxu0 %v1712
        %v1714 = vpop.f32.mrb[0].mxu0
        %v1715 = vadd.f32 %v1392, %v1714
        %v1716 = vpop.f32.mrb[0].mxu0
        %1717 = vmatprep.mubr.f32.mxu0 0.0
        %v1718 = vand.u32 %v433, 4294901760
        %v1719 = vsub.f32 %v433, %v1718
        %v1720 = vand.u32 %v1719, 4294901760
        %1721 = vmatmul.mubr.f32.gmra.mrb[0].mxu0 %v1720
        %v1722 = vpop.f32.mrb[0].mxu0
        %v1723 = vadd.f32 %v1399, %v1722
        %v1724 = vpop.f32.mrb[0].mxu0
        %1725 = vmatprep.mubr.f32.mxu0 0.0
        %v1726 = vand.u32 %v436, 4294901760
        %v1727 = vsub.f32 %v436, %v1726
        %v1728 = vand.u32 %v1727, 4294901760
        %1729 = vmatmul.mubr.f32.gmra.mrb[0].mxu0 %v1728
        %v1730 = vpop.f32.mrb[0].mxu0
        %v1731 = vadd.f32 %v1406, %v1730
        %v1732 = vpop.f32.mrb[0].mxu0
        %1733 = vmatprep.mubr.f32.mxu0 0.0
        %v1734 = vand.u32 %v439, 4294901760
        %v1735 = vsub.f32 %v439, %v1734
        %v1736 = vand.u32 %v1735, 4294901760
        %1737 = vmatmul.mubr.f32.gmra.mrb[0].mxu0 %v1736
        %v1738 = vpop.f32.mrb[0].mxu0
        %v1739 = vadd.f32 %v1413, %v1738
        %v1740 = vpop.f32.mrb[0].mxu0
        %1741 = vdwg.mxu0
        %1742 = vmatprep.subr.mxu0 0.0
        %v1743 = vand.u32 %v332, 4294901760
        %v1744 = vsub.f32 %v332, %v1743
        %v1745 = vand.u32 %v1744, 4294901760
        %1746 = vmatpush1.msra.mxu0 %v1745
        %1747 = vmatprep.subr.mxu0 0.0
        %v1748 = vand.u32 %v333, 4294901760
        %v1749 = vsub.f32 %v333, %v1748
        %v1750 = vand.u32 %v1749, 4294901760
        %1751 = vmatpush1.msra.mxu0 %v1750
        %1752 = vmatprep.subr.mxu0 0.0
        %v1753 = vand.u32 %v334, 4294901760
        %v1754 = vsub.f32 %v334, %v1753
        %v1755 = vand.u32 %v1754, 4294901760
        %1756 = vmatpush1.msra.mxu0 %v1755
        %1757 = vmatprep.subr.mxu0 0.0
        %v1758 = vand.u32 %v335, 4294901760
        %v1759 = vsub.f32 %v335, %v1758
        %v1760 = vand.u32 %v1759, 4294901760
        %1761 = vmatpush1.msra.mxu0 %v1760
        %1762 = vmatprep.subr.mxu0 0.0
        %v1763 = vand.u32 %v443, 4294901760
        %v1764 = vsub.f32 %v443, %v1763
        %v1765 = vand.u32 %v1764, 4294901760
        %1766 = vmatpush1.msra.mxu0 %v1765
        %1767 = vmatprep.subr.mxu0 0.0
        %1768 = vmatpush1.msra.mxu0 0.0
        %1769 = vmatprep.subr.mxu0 0.0
        %1770 = vmatpush1.msra.mxu0 0.0
        %1771 = vmatprep.subr.mxu0 0.0
        %1772 = vmatpush1.msra.mxu0 0.0
        %1773 = vmatprep.subr.mxu0 0.0
        %1774 = vmatpush1.msra.mxu0 0.0
        %1775 = vmatprep.subr.mxu0 0.0
        %1776 = vmatpush1.msra.mxu0 0.0
        %1777 = vmatprep.subr.mxu0 0.0
        %1778 = vmatpush1.msra.mxu0 0.0
        %1779 = vmatprep.subr.mxu0 0.0
        %1780 = vmatpush1.msra.mxu0 0.0
        %1781 = vmatprep.subr.mxu0 0.0
        %1782 = vmatpush1.msra.mxu0 0.0
        %1783 = vmatprep.subr.mxu0 0.0
        %1784 = vmatpush1.msra.mxu0 0.0
        %1785 = vmatprep.subr.mxu0 0.0
        %1786 = vmatpush1.msra.mxu0 0.0
        %1787 = vmatprep.subr.mxu0 0.0
        %1788 = vmatpush1.msra.mxu0 0.0
        %1789 = vmatprep.subr.mxu0 0.0
        %1790 = vmatpush1.msra.mxu0 0.0
        %1791 = vmatprep.subr.mxu0 0.0
        %1792 = vmatpush1.msra.mxu0 0.0
        %1793 = vmatprep.subr.mxu0 0.0
        %1794 = vmatpush1.msra.mxu0 0.0
        %1795 = vmatprep.subr.mxu0 0.0
        %1796 = vmatpush1.msra.mxu0 0.0
        %1797 = vmatprep.subr.mxu0 0.0
        %1798 = vmatpush1.msra.mxu0 0.0
        %1799 = vmatprep.subr.mxu0 0.0
        %1800 = vmatpush1.msra.mxu0 0.0
        %1801 = vmatprep.subr.mxu0 0.0
        %1802 = vmatpush1.msra.mxu0 0.0
        %1803 = vmatprep.subr.mxu0 0.0
        %1804 = vmatpush1.msra.mxu0 0.0
        %1805 = vmatprep.subr.mxu0 0.0
        %1806 = vmatpush1.msra.mxu0 0.0
        %1807 = vmatprep.subr.mxu0 0.0
        %1808 = vmatpush1.msra.mxu0 0.0
        %1809 = vmatprep.subr.mxu0 0.0
        %1810 = vmatpush1.msra.mxu0 0.0
        %1811 = vmatprep.subr.mxu0 0.0
        %1812 = vmatpush1.msra.mxu0 0.0
        %1813 = vmatprep.subr.mxu0 0.0
        %1814 = vmatpush1.msra.mxu0 0.0
        %1815 = vmatprep.subr.mxu0 0.0
        %1816 = vmatpush1.msra.mxu0 0.0
        %1817 = vmatprep.subr.mxu0 0.0
        %1818 = vmatpush1.msra.mxu0 0.0
        %1819 = vmatprep.subr.mxu0 0.0
        %1820 = vmatpush1.msra.mxu0 0.0
        %1821 = vmatprep.mubr.f32.mxu0 0.0
        %v1822 = vand.u32 %v346, 4294901760
        %1823 = vmatmul.mubr.f32.gmra.mrb[0].mxu0 %v1822
        %v1824 = vpop.f32.mrb[0].mxu0
        %v1825 = vadd.f32 %v1491, %v1824
        %v1826 = vpop.f32.mrb[0].mxu0
        %1827 = vmatprep.mubr.f32.mxu0 0.0
        %v1828 = vand.u32 %v349, 4294901760
        %1829 = vmatmul.mubr.f32.gmra.mrb[0].mxu0 %v1828
        %v1830 = vpop.f32.mrb[0].mxu0
        %v1831 = vadd.f32 %v1499, %v1830
        %v1832 = vpop.f32.mrb[0].mxu0
        %1833 = vmatprep.mubr.f32.mxu0 0.0
        %v1834 = vand.u32 %v352, 4294901760
        %1835 = vmatmul.mubr.f32.gmra.mrb[0].mxu0 %v1834
        %v1836 = vpop.f32.mrb[0].mxu0
        %v1837 = vadd.f32 %v1507, %v1836
        %v1838 = vpop.f32.mrb[0].mxu0
        %1839 = vmatprep.mubr.f32.mxu0 0.0
        %v1840 = vand.u32 %v355, 4294901760
        %1841 = vmatmul.mubr.f32.gmra.mrb[0].mxu0 %v1840
        %v1842 = vpop.f32.mrb[0].mxu0
        %v1843 = vadd.f32 %v1515, %v1842
        %v1844 = vpop.f32.mrb[0].mxu0
        %1845 = vmatprep.mubr.f32.mxu0 0.0
        %v1846 = vand.u32 %v358, 4294901760
        %1847 = vmatmul.mubr.f32.gmra.mrb[0].mxu0 %v1846
        %v1848 = vpop.f32.mrb[0].mxu0
        %v1849 = vadd.f32 %v1523, %v1848
        %v1850 = vpop.f32.mrb[0].mxu0
        %1851 = vmatprep.mubr.f32.mxu0 0.0
        %v1852 = vand.u32 %v361, 4294901760
        %1853 = vmatmul.mubr.f32.gmra.mrb[0].mxu0 %v1852
        %v1854 = vpop.f32.mrb[0].mxu0
        %v1855 = vadd.f32 %v1531, %v1854
        %v1856 = vpop.f32.mrb[0].mxu0
        %1857 = vmatprep.mubr.f32.mxu0 0.0
        %v1858 = vand.u32 %v364, 4294901760
        %1859 = vmatmul.mubr.f32.gmra.mrb[0].mxu0 %v1858
        %v1860 = vpop.f32.mrb[0].mxu0
        %v1861 = vadd.f32 %v1539, %v1860
        %v1862 = vpop.f32.mrb[0].mxu0
        %1863 = vmatprep.mubr.f32.mxu0 0.0
        %v1864 = vand.u32 %v367, 4294901760
        %1865 = vmatmul.mubr.f32.gmra.mrb[0].mxu0 %v1864
        %v1866 = vpop.f32.mrb[0].mxu0
        %v1867 = vadd.f32 %v1547, %v1866
        %v1868 = vpop.f32.mrb[0].mxu0
        %1869 = vmatprep.mubr.f32.mxu0 0.0
        %v1870 = vand.u32 %v370, 4294901760
        %1871 = vmatmul.mubr.f32.gmra.mrb[0].mxu0 %v1870
        %v1872 = vpop.f32.mrb[0].mxu0
        %v1873 = vadd.f32 %v1555, %v1872
        %v1874 = vpop.f32.mrb[0].mxu0
        %1875 = vmatprep.mubr.f32.mxu0 0.0
        %v1876 = vand.u32 %v373, 4294901760
        %1877 = vmatmul.mubr.f32.gmra.mrb[0].mxu0 %v1876
        %v1878 = vpop.f32.mrb[0].mxu0
        %v1879 = vadd.f32 %v1563, %v1878
        %v1880 = vpop.f32.mrb[0].mxu0
        %1881 = vmatprep.mubr.f32.mxu0 0.0
        %v1882 = vand.u32 %v376, 4294901760
        %1883 = vmatmul.mubr.f32.gmra.mrb[0].mxu0 %v1882
        %v1884 = vpop.f32.mrb[0].mxu0
        %v1885 = vadd.f32 %v1571, %v1884
        %v1886 = vpop.f32.mrb[0].mxu0
        %1887 = vmatprep.mubr.f32.mxu0 0.0
        %v1888 = vand.u32 %v379, 4294901760
        %1889 = vmatmul.mubr.f32.gmra.mrb[0].mxu0 %v1888
        %v1890 = vpop.f32.mrb[0].mxu0
        %v1891 = vadd.f32 %v1579, %v1890
        %v1892 = vpop.f32.mrb[0].mxu0
        %1893 = vmatprep.mubr.f32.mxu0 0.0
        %v1894 = vand.u32 %v382, 4294901760
        %1895 = vmatmul.mubr.f32.gmra.mrb[0].mxu0 %v1894
        %v1896 = vpop.f32.mrb[0].mxu0
        %v1897 = vadd.f32 %v1587, %v1896
        %v1898 = vpop.f32.mrb[0].mxu0
        %1899 = vmatprep.mubr.f32.mxu0 0.0
        %v1900 = vand.u32 %v385, 4294901760
        %1901 = vmatmul.mubr.f32.gmra.mrb[0].mxu0 %v1900
        %v1902 = vpop.f32.mrb[0].mxu0
        %v1903 = vadd.f32 %v1595, %v1902
        %v1904 = vpop.f32.mrb[0].mxu0
        %1905 = vmatprep.mubr.f32.mxu0 0.0
        %v1906 = vand.u32 %v388, 4294901760
        %1907 = vmatmul.mubr.f32.gmra.mrb[0].mxu0 %v1906
        %v1908 = vpop.f32.mrb[0].mxu0
        %v1909 = vadd.f32 %v1603, %v1908
        %v1910 = vpop.f32.mrb[0].mxu0
        %1911 = vmatprep.mubr.f32.mxu0 0.0
        %v1912 = vand.u32 %v391, 4294901760
        %1913 = vmatmul.mubr.f32.gmra.mrb[0].mxu0 %v1912
        %v1914 = vpop.f32.mrb[0].mxu0
        %v1915 = vadd.f32 %v1611, %v1914
        %v1916 = vpop.f32.mrb[0].mxu0
        %1917 = vmatprep.mubr.f32.mxu0 0.0
        %v1918 = vand.u32 %v394, 4294901760
        %1919 = vmatmul.mubr.f32.gmra.mrb[0].mxu0 %v1918
        %v1920 = vpop.f32.mrb[0].mxu0
        %v1921 = vadd.f32 %v1619, %v1920
        %v1922 = vpop.f32.mrb[0].mxu0
        %1923 = vmatprep.mubr.f32.mxu0 0.0
        %v1924 = vand.u32 %v397, 4294901760
        %1925 = vmatmul.mubr.f32.gmra.mrb[0].mxu0 %v1924
        %v1926 = vpop.f32.mrb[0].mxu0
        %v1927 = vadd.f32 %v1627, %v1926
        %v1928 = vpop.f32.mrb[0].mxu0
        %1929 = vmatprep.mubr.f32.mxu0 0.0
        %v1930 = vand.u32 %v400, 4294901760
        %1931 = vmatmul.mubr.f32.gmra.mrb[0].mxu0 %v1930
        %v1932 = vpop.f32.mrb[0].mxu0
        %v1933 = vadd.f32 %v1635, %v1932
        %v1934 = vpop.f32.mrb[0].mxu0
        %1935 = vmatprep.mubr.f32.mxu0 0.0
        %v1936 = vand.u32 %v403, 4294901760
        %1937 = vmatmul.mubr.f32.gmra.mrb[0].mxu0 %v1936
        %v1938 = vpop.f32.mrb[0].mxu0
        %v1939 = vadd.f32 %v1643, %v1938
        %v1940 = vpop.f32.mrb[0].mxu0
        %1941 = vmatprep.mubr.f32.mxu0 0.0
        %v1942 = vand.u32 %v406, 4294901760
        %1943 = vmatmul.mubr.f32.gmra.mrb[0].mxu0 %v1942
        %v1944 = vpop.f32.mrb[0].mxu0
        %v1945 = vadd.f32 %v1651, %v1944
        %v1946 = vpop.f32.mrb[0].mxu0
        %1947 = vmatprep.mubr.f32.mxu0 0.0
        %v1948 = vand.u32 %v409, 4294901760
        %1949 = vmatmul.mubr.f32.gmra.mrb[0].mxu0 %v1948
        %v1950 = vpop.f32.mrb[0].mxu0
        %v1951 = vadd.f32 %v1659, %v1950
        %v1952 = vpop.f32.mrb[0].mxu0
        %1953 = vmatprep.mubr.f32.mxu0 0.0
        %v1954 = vand.u32 %v412, 4294901760
        %1955 = vmatmul.mubr.f32.gmra.mrb[0].mxu0 %v1954
        %v1956 = vpop.f32.mrb[0].mxu0
        %v1957 = vadd.f32 %v1667, %v1956
        %v1958 = vpop.f32.mrb[0].mxu0
        %1959 = vmatprep.mubr.f32.mxu0 0.0
        %v1960 = vand.u32 %v415, 4294901760
        %1961 = vmatmul.mubr.f32.gmra.mrb[0].mxu0 %v1960
        %v1962 = vpop.f32.mrb[0].mxu0
        %v1963 = vadd.f32 %v1675, %v1962
        %v1964 = vpop.f32.mrb[0].mxu0
        %1965 = vmatprep.mubr.f32.mxu0 0.0
        %v1966 = vand.u32 %v418, 4294901760
        %1967 = vmatmul.mubr.f32.gmra.mrb[0].mxu0 %v1966
        %v1968 = vpop.f32.mrb[0].mxu0
        %v1969 = vadd.f32 %v1683, %v1968
        %v1970 = vpop.f32.mrb[0].mxu0
        %1971 = vmatprep.mubr.f32.mxu0 0.0
        %v1972 = vand.u32 %v421, 4294901760
        %1973 = vmatmul.mubr.f32.gmra.mrb[0].mxu0 %v1972
        %v1974 = vpop.f32.mrb[0].mxu0
        %v1975 = vadd.f32 %v1691, %v1974
        %v1976 = vpop.f32.mrb[0].mxu0
        %1977 = vmatprep.mubr.f32.mxu0 0.0
        %v1978 = vand.u32 %v424, 4294901760
        %1979 = vmatmul.mubr.f32.gmra.mrb[0].mxu0 %v1978
        %v1980 = vpop.f32.mrb[0].mxu0
        %v1981 = vadd.f32 %v1699, %v1980
        %v1982 = vpop.f32.mrb[0].mxu0
        %1983 = vmatprep.mubr.f32.mxu0 0.0
        %v1984 = vand.u32 %v427, 4294901760
        %1985 = vmatmul.mubr.f32.gmra.mrb[0].mxu0 %v1984
        %v1986 = vpop.f32.mrb[0].mxu0
        %v1987 = vadd.f32 %v1707, %v1986
        %v1988 = vpop.f32.mrb[0].mxu0
        %1989 = vmatprep.mubr.f32.mxu0 0.0
        %v1990 = vand.u32 %v430, 4294901760
        %1991 = vmatmul.mubr.f32.gmra.mrb[0].mxu0 %v1990
        %v1992 = vpop.f32.mrb[0].mxu0
        %v1993 = vadd.f32 %v1715, %v1992
        %v1994 = vpop.f32.mrb[0].mxu0
        %1995 = vmatprep.mubr.f32.mxu0 0.0
        %v1996 = vand.u32 %v433, 4294901760
        %1997 = vmatmul.mubr.f32.gmra.mrb[0].mxu0 %v1996
        %v1998 = vpop.f32.mrb[0].mxu0
        %v1999 = vadd.f32 %v1723, %v1998
        %v2000 = vpop.f32.mrb[0].mxu0
        %2001 = vmatprep.mubr.f32.mxu0 0.0
        %v2002 = vand.u32 %v436, 4294901760
        %2003 = vmatmul.mubr.f32.gmra.mrb[0].mxu0 %v2002
        %v2004 = vpop.f32.mrb[0].mxu0
        %v2005 = vadd.f32 %v1731, %v2004
        %v2006 = vpop.f32.mrb[0].mxu0
        %2007 = vmatprep.mubr.f32.mxu0 0.0
        %v2008 = vand.u32 %v439, 4294901760
        %2009 = vmatmul.mubr.f32.gmra.mrb[0].mxu0 %v2008
        %v2010 = vpop.f32.mrb[0].mxu0
        %v2011 = vadd.f32 %v1739, %v2010
        %v2012 = vpop.f32.mrb[0].mxu0
        %2013 = vdwg.mxu0
        %2014 = vmatprep.subr.mxu0 0.0
        %v2015 = vand.u32 %v332, 4294901760
        %2016 = vmatpush1.msra.mxu0 %v2015
        %2017 = vmatprep.subr.mxu0 0.0
        %v2018 = vand.u32 %v333, 4294901760
        %2019 = vmatpush1.msra.mxu0 %v2018
        %2020 = vmatprep.subr.mxu0 0.0
        %v2021 = vand.u32 %v334, 4294901760
        %2022 = vmatpush1.msra.mxu0 %v2021
        %2023 = vmatprep.subr.mxu0 0.0
        %v2024 = vand.u32 %v335, 4294901760
        %2025 = vmatpush1.msra.mxu0 %v2024
        %2026 = vmatprep.subr.mxu0 0.0
        %v2027 = vand.u32 %v443, 4294901760
        %2028 = vmatpush1.msra.mxu0 %v2027
        %2029 = vmatprep.subr.mxu0 0.0
        %2030 = vmatpush1.msra.mxu0 0.0
        %2031 = vmatprep.subr.mxu0 0.0
        %2032 = vmatpush1.msra.mxu0 0.0
        %2033 = vmatprep.subr.mxu0 0.0
        %2034 = vmatpush1.msra.mxu0 0.0
        %2035 = vmatprep.subr.mxu0 0.0
        %2036 = vmatpush1.msra.mxu0 0.0
        %2037 = vmatprep.subr.mxu0 0.0
        %2038 = vmatpush1.msra.mxu0 0.0
        %2039 = vmatprep.subr.mxu0 0.0
        %2040 = vmatpush1.msra.mxu0 0.0
        %2041 = vmatprep.subr.mxu0 0.0
        %2042 = vmatpush1.msra.mxu0 0.0
        %2043 = vmatprep.subr.mxu0 0.0
        %2044 = vmatpush1.msra.mxu0 0.0
        %2045 = vmatprep.subr.mxu0 0.0
        %2046 = vmatpush1.msra.mxu0 0.0
        %2047 = vmatprep.subr.mxu0 0.0
        %2048 = vmatpush1.msra.mxu0 0.0
        %2049 = vmatprep.subr.mxu0 0.0
        %2050 = vmatpush1.msra.mxu0 0.0
        %2051 = vmatprep.subr.mxu0 0.0
        %2052 = vmatpush1.msra.mxu0 0.0
        %2053 = vmatprep.subr.mxu0 0.0
        %2054 = vmatpush1.msra.mxu0 0.0
        %2055 = vmatprep.subr.mxu0 0.0
        %2056 = vmatpush1.msra.mxu0 0.0
        %2057 = vmatprep.subr.mxu0 0.0
        %2058 = vmatpush1.msra.mxu0 0.0
        %2059 = vmatprep.subr.mxu0 0.0
        %2060 = vmatpush1.msra.mxu0 0.0
        %2061 = vmatprep.subr.mxu0 0.0
        %2062 = vmatpush1.msra.mxu0 0.0
        %2063 = vmatprep.subr.mxu0 0.0
        %2064 = vmatpush1.msra.mxu0 0.0
        %2065 = vmatprep.subr.mxu0 0.0
        %2066 = vmatpush1.msra.mxu0 0.0
        %2067 = vmatprep.subr.mxu0 0.0
        %2068 = vmatpush1.msra.mxu0 0.0
        %2069 = vmatprep.subr.mxu0 0.0
        %2070 = vmatpush1.msra.mxu0 0.0
        %2071 = vmatprep.subr.mxu0 0.0
        %2072 = vmatpush1.msra.mxu0 0.0
        %2073 = vmatprep.subr.mxu0 0.0
        %2074 = vmatpush1.msra.mxu0 0.0
        %2075 = vmatprep.subr.mxu0 0.0
        %2076 = vmatpush1.msra.mxu0 0.0
        %2077 = vmatprep.subr.mxu0 0.0
        %2078 = vmatpush1.msra.mxu0 0.0
        %2079 = vmatprep.subr.mxu0 0.0
        %2080 = vmatpush1.msra.mxu0 0.0
        %2081 = vmatprep.subr.mxu0 0.0
        %2082 = vmatpush1.msra.mxu0 0.0
        %2083 = vmatprep.mubr.f32.mxu0 0.0
        %v2084 = vand.u32 %v346, 4294901760
        %2085 = vmatmul.mubr.f32.gmra.mrb[0].mxu0 %v2084
        %v2086 = vpop.f32.mrb[0].mxu0
        %v2087 = vadd.f32 %v1825, %v2086
        %v2088 = vpop.f32.mrb[0].mxu0
        %2089 = vmatprep.mubr.f32.mxu0 0.0
        %v2090 = vand.u32 %v349, 4294901760
        %2091 = vmatmul.mubr.f32.gmra.mrb[0].mxu0 %v2090
        %v2092 = vpop.f32.mrb[0].mxu0
        %v2093 = vadd.f32 %v1831, %v2092
        %v2094 = vpop.f32.mrb[0].mxu0
        %2095 = vmatprep.mubr.f32.mxu0 0.0
        %v2096 = vand.u32 %v352, 4294901760
        %2097 = vmatmul.mubr.f32.gmra.mrb[0].mxu0 %v2096
        %v2098 = vpop.f32.mrb[0].mxu0
        %v2099 = vadd.f32 %v1837, %v2098
        %v2100 = vpop.f32.mrb[0].mxu0
        %2101 = vmatprep.mubr.f32.mxu0 0.0
        %v2102 = vand.u32 %v355, 4294901760
        %2103 = vmatmul.mubr.f32.gmra.mrb[0].mxu0 %v2102
        %v2104 = vpop.f32.mrb[0].mxu0
        %v2105 = vadd.f32 %v1843, %v2104
        %v2106 = vpop.f32.mrb[0].mxu0
        %2107 = vmatprep.mubr.f32.mxu0 0.0
        %v2108 = vand.u32 %v358, 4294901760
        %2109 = vmatmul.mubr.f32.gmra.mrb[0].mxu0 %v2108
        %v2110 = vpop.f32.mrb[0].mxu0
        %v2111 = vadd.f32 %v1849, %v2110
        %v2112 = vpop.f32.mrb[0].mxu0
        %2113 = vmatprep.mubr.f32.mxu0 0.0
        %v2114 = vand.u32 %v361, 4294901760
        %2115 = vmatmul.mubr.f32.gmra.mrb[0].mxu0 %v2114
        %v2116 = vpop.f32.mrb[0].mxu0
        %v2117 = vadd.f32 %v1855, %v2116
        %v2118 = vpop.f32.mrb[0].mxu0
        %2119 = vmatprep.mubr.f32.mxu0 0.0
        %v2120 = vand.u32 %v364, 4294901760
        %2121 = vmatmul.mubr.f32.gmra.mrb[0].mxu0 %v2120
        %v2122 = vpop.f32.mrb[0].mxu0
        %v2123 = vadd.f32 %v1861, %v2122
        %v2124 = vpop.f32.mrb[0].mxu0
        %2125 = vmatprep.mubr.f32.mxu0 0.0
        %v2126 = vand.u32 %v367, 4294901760
        %2127 = vmatmul.mubr.f32.gmra.mrb[0].mxu0 %v2126
        %v2128 = vpop.f32.mrb[0].mxu0
        %v2129 = vadd.f32 %v1867, %v2128
        %v2130 = vpop.f32.mrb[0].mxu0
        %2131 = vmatprep.mubr.f32.mxu0 0.0
        %v2132 = vand.u32 %v370, 4294901760
        %2133 = vmatmul.mubr.f32.gmra.mrb[0].mxu0 %v2132
        %v2134 = vpop.f32.mrb[0].mxu0
        %v2135 = vadd.f32 %v1873, %v2134
        %v2136 = vpop.f32.mrb[0].mxu0
        %2137 = vmatprep.mubr.f32.mxu0 0.0
        %v2138 = vand.u32 %v373, 4294901760
        %2139 = vmatmul.mubr.f32.gmra.mrb[0].mxu0 %v2138
        %v2140 = vpop.f32.mrb[0].mxu0
        %v2141 = vadd.f32 %v1879, %v2140
        %v2142 = vpop.f32.mrb[0].mxu0
        %2143 = vmatprep.mubr.f32.mxu0 0.0
        %v2144 = vand.u32 %v376, 4294901760
        %2145 = vmatmul.mubr.f32.gmra.mrb[0].mxu0 %v2144
        %v2146 = vpop.f32.mrb[0].mxu0
        %v2147 = vadd.f32 %v1885, %v2146
        %v2148 = vpop.f32.mrb[0].mxu0
        %2149 = vmatprep.mubr.f32.mxu0 0.0
        %v2150 = vand.u32 %v379, 4294901760
        %2151 = vmatmul.mubr.f32.gmra.mrb[0].mxu0 %v2150
        %v2152 = vpop.f32.mrb[0].mxu0
        %v2153 = vadd.f32 %v1891, %v2152
        %v2154 = vpop.f32.mrb[0].mxu0
        %2155 = vmatprep.mubr.f32.mxu0 0.0
        %v2156 = vand.u32 %v382, 4294901760
        %2157 = vmatmul.mubr.f32.gmra.mrb[0].mxu0 %v2156
        %v2158 = vpop.f32.mrb[0].mxu0
        %v2159 = vadd.f32 %v1897, %v2158
        %v2160 = vpop.f32.mrb[0].mxu0
        %2161 = vmatprep.mubr.f32.mxu0 0.0
        %v2162 = vand.u32 %v385, 4294901760
        %2163 = vmatmul.mubr.f32.gmra.mrb[0].mxu0 %v2162
        %v2164 = vpop.f32.mrb[0].mxu0
        %v2165 = vadd.f32 %v1903, %v2164
        %v2166 = vpop.f32.mrb[0].mxu0
        %2167 = vmatprep.mubr.f32.mxu0 0.0
        %v2168 = vand.u32 %v388, 4294901760
        %2169 = vmatmul.mubr.f32.gmra.mrb[0].mxu0 %v2168
        %v2170 = vpop.f32.mrb[0].mxu0
        %v2171 = vadd.f32 %v1909, %v2170
        %v2172 = vpop.f32.mrb[0].mxu0
        %2173 = vmatprep.mubr.f32.mxu0 0.0
        %v2174 = vand.u32 %v391, 4294901760
        %2175 = vmatmul.mubr.f32.gmra.mrb[0].mxu0 %v2174
        %v2176 = vpop.f32.mrb[0].mxu0
        %v2177 = vadd.f32 %v1915, %v2176
        %v2178 = vpop.f32.mrb[0].mxu0
        %2179 = vmatprep.mubr.f32.mxu0 0.0
        %v2180 = vand.u32 %v394, 4294901760
        %2181 = vmatmul.mubr.f32.gmra.mrb[0].mxu0 %v2180
        %v2182 = vpop.f32.mrb[0].mxu0
        %v2183 = vadd.f32 %v1921, %v2182
        %v2184 = vpop.f32.mrb[0].mxu0
        %2185 = vmatprep.mubr.f32.mxu0 0.0
        %v2186 = vand.u32 %v397, 4294901760
        %2187 = vmatmul.mubr.f32.gmra.mrb[0].mxu0 %v2186
        %v2188 = vpop.f32.mrb[0].mxu0
        %v2189 = vadd.f32 %v1927, %v2188
        %v2190 = vpop.f32.mrb[0].mxu0
        %2191 = vmatprep.mubr.f32.mxu0 0.0
        %v2192 = vand.u32 %v400, 4294901760
        %2193 = vmatmul.mubr.f32.gmra.mrb[0].mxu0 %v2192
        %v2194 = vpop.f32.mrb[0].mxu0
        %v2195 = vadd.f32 %v1933, %v2194
        %v2196 = vpop.f32.mrb[0].mxu0
        %2197 = vmatprep.mubr.f32.mxu0 0.0
        %v2198 = vand.u32 %v403, 4294901760
        %2199 = vmatmul.mubr.f32.gmra.mrb[0].mxu0 %v2198
        %v2200 = vpop.f32.mrb[0].mxu0
        %v2201 = vadd.f32 %v1939, %v2200
        %v2202 = vpop.f32.mrb[0].mxu0
        %2203 = vmatprep.mubr.f32.mxu0 0.0
        %v2204 = vand.u32 %v406, 4294901760
        %2205 = vmatmul.mubr.f32.gmra.mrb[0].mxu0 %v2204
        %v2206 = vpop.f32.mrb[0].mxu0
        %v2207 = vadd.f32 %v1945, %v2206
        %v2208 = vpop.f32.mrb[0].mxu0
        %2209 = vmatprep.mubr.f32.mxu0 0.0
        %v2210 = vand.u32 %v409, 4294901760
        %2211 = vmatmul.mubr.f32.gmra.mrb[0].mxu0 %v2210
        %v2212 = vpop.f32.mrb[0].mxu0
        %v2213 = vadd.f32 %v1951, %v2212
        %v2214 = vpop.f32.mrb[0].mxu0
        %2215 = vmatprep.mubr.f32.mxu0 0.0
        %v2216 = vand.u32 %v412, 4294901760
        %2217 = vmatmul.mubr.f32.gmra.mrb[0].mxu0 %v2216
        %v2218 = vpop.f32.mrb[0].mxu0
        %v2219 = vadd.f32 %v1957, %v2218
        %v2220 = vpop.f32.mrb[0].mxu0
        %2221 = vmatprep.mubr.f32.mxu0 0.0
        %v2222 = vand.u32 %v415, 4294901760
        %2223 = vmatmul.mubr.f32.gmra.mrb[0].mxu0 %v2222
        %v2224 = vpop.f32.mrb[0].mxu0
        %v2225 = vadd.f32 %v1963, %v2224
        %v2226 = vpop.f32.mrb[0].mxu0
        %2227 = vmatprep.mubr.f32.mxu0 0.0
        %v2228 = vand.u32 %v418, 4294901760
        %2229 = vmatmul.mubr.f32.gmra.mrb[0].mxu0 %v2228
        %v2230 = vpop.f32.mrb[0].mxu0
        %v2231 = vadd.f32 %v1969, %v2230
        %v2232 = vpop.f32.mrb[0].mxu0
        %2233 = vmatprep.mubr.f32.mxu0 0.0
        %v2234 = vand.u32 %v421, 4294901760
        %2235 = vmatmul.mubr.f32.gmra.mrb[0].mxu0 %v2234
        %v2236 = vpop.f32.mrb[0].mxu0
        %v2237 = vadd.f32 %v1975, %v2236
        %v2238 = vpop.f32.mrb[0].mxu0
        %2239 = vmatprep.mubr.f32.mxu0 0.0
        %v2240 = vand.u32 %v424, 4294901760
        %2241 = vmatmul.mubr.f32.gmra.mrb[0].mxu0 %v2240
        %v2242 = vpop.f32.mrb[0].mxu0
        %v2243 = vadd.f32 %v1981, %v2242
        %v2244 = vpop.f32.mrb[0].mxu0
        %2245 = vmatprep.mubr.f32.mxu0 0.0
        %v2246 = vand.u32 %v427, 4294901760
        %2247 = vmatmul.mubr.f32.gmra.mrb[0].mxu0 %v2246
        %v2248 = vpop.f32.mrb[0].mxu0
        %v2249 = vadd.f32 %v1987, %v2248
        %v2250 = vpop.f32.mrb[0].mxu0
        %2251 = vmatprep.mubr.f32.mxu0 0.0
        %v2252 = vand.u32 %v430, 4294901760
        %2253 = vmatmul.mubr.f32.gmra.mrb[0].mxu0 %v2252
        %v2254 = vpop.f32.mrb[0].mxu0
        %v2255 = vadd.f32 %v1993, %v2254
        %v2256 = vpop.f32.mrb[0].mxu0
        %2257 = vmatprep.mubr.f32.mxu0 0.0
        %v2258 = vand.u32 %v433, 4294901760
        %2259 = vmatmul.mubr.f32.gmra.mrb[0].mxu0 %v2258
        %v2260 = vpop.f32.mrb[0].mxu0
        %v2261 = vadd.f32 %v1999, %v2260
        %v2262 = vpop.f32.mrb[0].mxu0
        %2263 = vmatprep.mubr.f32.mxu0 0.0
        %v2264 = vand.u32 %v436, 4294901760
        %2265 = vmatmul.mubr.f32.gmra.mrb[0].mxu0 %v2264
        %v2266 = vpop.f32.mrb[0].mxu0
        %v2267 = vadd.f32 %v2005, %v2266
        %v2268 = vpop.f32.mrb[0].mxu0
        %2269 = vmatprep.mubr.f32.mxu0 0.0
        %v2270 = vand.u32 %v439, 4294901760
        %2271 = vmatmul.mubr.f32.gmra.mrb[0].mxu0 %v2270
        %v2272 = vpop.f32.mrb[0].mxu0
        %v2273 = vadd.f32 %v2011, %v2272
        %v2274 = vpop.f32.mrb[0].mxu0
        %2275 = vdwg.mxu0
        %v2276 = vmax.f32 %v2087, 0.0
        %v2277 = vmax.f32 %v2093, 0.0
        %v2278 = vmax.f32 %v2099, 0.0
        %v2279 = vmax.f32 %v2105, 0.0
        %v2280 = vmax.f32 %v2111, 0.0
        %v2281 = vmax.f32 %v2117, 0.0
        %v2282 = vmax.f32 %v2123, 0.0
        %v2283 = vmax.f32 %v2129, 0.0
        %v2284 = vmax.f32 %v2135, 0.0
        %v2285 = vmax.f32 %v2141, 0.0
        %v2286 = vmax.f32 %v2147, 0.0
        %v2287 = vmax.f32 %v2153, 0.0
        %v2288 = vmax.f32 %v2159, 0.0
        %v2289 = vmax.f32 %v2165, 0.0
        %v2290 = vmax.f32 %v2171, 0.0
        %v2291 = vmax.f32 %v2177, 0.0
        %v2292 = vmax.f32 %v2183, 0.0
        %v2293 = vmax.f32 %v2189, 0.0
        %v2294 = vmax.f32 %v2195, 0.0
        %v2295 = vmax.f32 %v2201, 0.0
        %v2296 = vmax.f32 %v2207, 0.0
        %v2297 = vmax.f32 %v2213, 0.0
        %v2298 = vmax.f32 %v2219, 0.0
        %v2299 = vmax.f32 %v2225, 0.0
        %v2300 = vmax.f32 %v2231, 0.0
        %v2301 = vmax.f32 %v2237, 0.0
        %v2302 = vmax.f32 %v2243, 0.0
        %v2303 = vmax.f32 %v2249, 0.0
        %v2304 = vmax.f32 %v2255, 0.0
        %v2305 = vmax.f32 %v2261, 0.0
        %v2306 = vmax.f32 %v2267, 0.0
        %v2307 = vmax.f32 %v2273, 0.0
        %v2308 = vld [vmem:[%s3] sm:$0xff]
        %v2309 = vld [vmem:[%s3 + $0x8] sm:$0xff]
        %v2310 = vld [vmem:[%s3 + $0x10] sm:$0xff]
        %v2311 = vld [vmem:[%s3 + $0x18] sm:$0x3f]
        %v2312 = vld [vmem:[%s4] sm:$0x1]
        %v2314 = vlaneseq
        %v2315 = vshrl.u32 %v2314, 7
        %v2316 = vsub.s32 0, %v2315
        %v2317 = vrot.slane %v2312, %v2316
        %vm2319 = vcmask 244736
        %v2321 = vsel %vm2319, %v2276, 0
        %v2324 = vsel %vm2319, %v2277, 0
        %v2327 = vsel %vm2319, %v2278, 0
        %v2330 = vsel %vm2319, %v2279, 0
        %v2333 = vsel %vm2319, %v2280, 0
        %v2336 = vsel %vm2319, %v2281, 0
        %v2339 = vsel %vm2319, %v2282, 0
        %v2342 = vsel %vm2319, %v2283, 0
        %v2345 = vsel %vm2319, %v2284, 0
        %v2348 = vsel %vm2319, %v2285, 0
        %v2351 = vsel %vm2319, %v2286, 0
        %v2354 = vsel %vm2319, %v2287, 0
        %v2357 = vsel %vm2319, %v2288, 0
        %v2360 = vsel %vm2319, %v2289, 0
        %v2363 = vsel %vm2319, %v2290, 0
        %v2366 = vsel %vm2319, %v2291, 0
        %v2369 = vsel %vm2319, %v2292, 0
        %v2372 = vsel %vm2319, %v2293, 0
        %v2375 = vsel %vm2319, %v2294, 0
        %v2378 = vsel %vm2319, %v2295, 0
        %v2381 = vsel %vm2319, %v2296, 0
        %v2384 = vsel %vm2319, %v2297, 0
        %v2387 = vsel %vm2319, %v2298, 0
        %v2390 = vsel %vm2319, %v2299, 0
        %v2393 = vsel %vm2319, %v2300, 0
        %v2396 = vsel %vm2319, %v2301, 0
        %v2399 = vsel %vm2319, %v2302, 0
        %v2402 = vsel %vm2319, %v2303, 0
        %v2405 = vsel %vm2319, %v2304, 0
        %v2408 = vsel %vm2319, %v2305, 0
        %v2411 = vsel %vm2319, %v2306, 0
        %v2414 = vsel %vm2319, %v2307, 0
        %vm2416 = vcmask 1045504
        %v2418 = vsel %vm2416, %v2311, 0
        %2420 = vmatprep.subr.mxu0 0.0
        %v2421 = vand.u32 %v2308, 4294901760
        %2422 = vmatpush1.msra.mxu0 %v2421
        %2423 = vmatprep.subr.mxu0 0.0
        %v2424 = vand.u32 %v2309, 4294901760
        %2425 = vmatpush1.msra.mxu0 %v2424
        %2426 = vmatprep.subr.mxu0 0.0
        %v2427 = vand.u32 %v2310, 4294901760
        %2428 = vmatpush1.msra.mxu0 %v2427
        %2429 = vmatprep.subr.mxu0 0.0
        %v2430 = vand.u32 %v2418, 4294901760
        %2431 = vmatpush1.msra.mxu0 %v2430
        %2432 = vmatprep.subr.mxu0 0.0
        %2433 = vmatpush1.msra.mxu0 0.0
        %2434 = vmatprep.subr.mxu0 0.0
        %2435 = vmatpush1.msra.mxu0 0.0
        %2436 = vmatprep.subr.mxu0 0.0
        %2437 = vmatpush1.msra.mxu0 0.0
        %2438 = vmatprep.subr.mxu0 0.0
        %2439 = vmatpush1.msra.mxu0 0.0
        %2440 = vmatprep.subr.mxu0 0.0
        %2441 = vmatpush1.msra.mxu0 0.0
        %2442 = vmatprep.subr.mxu0 0.0
        %2443 = vmatpush1.msra.mxu0 0.0
        %2444 = vmatprep.subr.mxu0 0.0
        %2445 = vmatpush1.msra.mxu0 0.0
        %2446 = vmatprep.subr.mxu0 0.0
        %2447 = vmatpush1.msra.mxu0 0.0
        %2448 = vmatprep.subr.mxu0 0.0
        %2449 = vmatpush1.msra.mxu0 0.0
        %2450 = vmatprep.subr.mxu0 0.0
        %2451 = vmatpush1.msra.mxu0 0.0
        %2452 = vmatprep.subr.mxu0 0.0
        %2453 = vmatpush1.msra.mxu0 0.0
        %2454 = vmatprep.subr.mxu0 0.0
        %2455 = vmatpush1.msra.mxu0 0.0
        %2456 = vmatprep.subr.mxu0 0.0
        %2457 = vmatpush1.msra.mxu0 0.0
        %2458 = vmatprep.subr.mxu0 0.0
        %2459 = vmatpush1.msra.mxu0 0.0
        %2460 = vmatprep.subr.mxu0 0.0
        %2461 = vmatpush1.msra.mxu0 0.0
        %2462 = vmatprep.subr.mxu0 0.0
        %2463 = vmatpush1.msra.mxu0 0.0
        %2464 = vmatprep.subr.mxu0 0.0
        %2465 = vmatpush1.msra.mxu0 0.0
        %2466 = vmatprep.subr.mxu0 0.0
        %2467 = vmatpush1.msra.mxu0 0.0
        %2468 = vmatprep.subr.mxu0 0.0
        %2469 = vmatpush1.msra.mxu0 0.0
        %2470 = vmatprep.subr.mxu0 0.0
        %2471 = vmatpush1.msra.mxu0 0.0
        %2472 = vmatprep.subr.mxu0 0.0
        %2473 = vmatpush1.msra.mxu0 0.0
        %2474 = vmatprep.subr.mxu0 0.0
        %2475 = vmatpush1.msra.mxu0 0.0
        %2476 = vmatprep.subr.mxu0 0.0
        %2477 = vmatpush1.msra.mxu0 0.0
        %2478 = vmatprep.subr.mxu0 0.0
        %2479 = vmatpush1.msra.mxu0 0.0
        %2480 = vmatprep.subr.mxu0 0.0
        %2481 = vmatpush1.msra.mxu0 0.0
        %2482 = vmatprep.subr.mxu0 0.0
        %2483 = vmatpush1.msra.mxu0 0.0
        %2484 = vmatprep.subr.mxu0 0.0
        %2485 = vmatpush1.msra.mxu0 0.0
        %2486 = vmatprep.subr.mxu0 0.0
        %2487 = vmatpush1.msra.mxu0 0.0
        %2488 = vmatprep.mubr.f32.mxu0 0.0
        %v2489 = vand.u32 %v2321, 4294901760
        %v2490 = vsub.f32 %v2321, %v2489
        %v2491 = vand.u32 %v2490, 4294901760
        %v2492 = vsub.f32 %v2490, %v2491
        %v2493 = vand.u32 %v2492, 4294901760
        %2494 = vmatmul.mubr.f32.gmra.mrb[0].mxu0 %v2493
        %v2495 = vpop.f32.mrb[0].mxu0
        %v2496 = vadd.f32 %v2317, %v2495
        %v2497 = vpop.f32.mrb[0].mxu0
        %2498 = vmatprep.mubr.f32.mxu0 0.0
        %v2499 = vand.u32 %v2324, 4294901760
        %v2500 = vsub.f32 %v2324, %v2499
        %v2501 = vand.u32 %v2500, 4294901760
        %v2502 = vsub.f32 %v2500, %v2501
        %v2503 = vand.u32 %v2502, 4294901760
        %2504 = vmatmul.mubr.f32.gmra.mrb[0].mxu0 %v2503
        %v2505 = vpop.f32.mrb[0].mxu0
        %v2506 = vadd.f32 %v2317, %v2505
        %v2507 = vpop.f32.mrb[0].mxu0
        %2508 = vmatprep.mubr.f32.mxu0 0.0
        %v2509 = vand.u32 %v2327, 4294901760
        %v2510 = vsub.f32 %v2327, %v2509
        %v2511 = vand.u32 %v2510, 4294901760
        %v2512 = vsub.f32 %v2510, %v2511
        %v2513 = vand.u32 %v2512, 4294901760
        %2514 = vmatmul.mubr.f32.gmra.mrb[0].mxu0 %v2513
        %v2515 = vpop.f32.mrb[0].mxu0
        %v2516 = vadd.f32 %v2317, %v2515
        %v2517 = vpop.f32.mrb[0].mxu0
        %2518 = vmatprep.mubr.f32.mxu0 0.0
        %v2519 = vand.u32 %v2330, 4294901760
        %v2520 = vsub.f32 %v2330, %v2519
        %v2521 = vand.u32 %v2520, 4294901760
        %v2522 = vsub.f32 %v2520, %v2521
        %v2523 = vand.u32 %v2522, 4294901760
        %2524 = vmatmul.mubr.f32.gmra.mrb[0].mxu0 %v2523
        %v2525 = vpop.f32.mrb[0].mxu0
        %v2526 = vadd.f32 %v2317, %v2525
        %v2527 = vpop.f32.mrb[0].mxu0
        %2528 = vmatprep.mubr.f32.mxu0 0.0
        %v2529 = vand.u32 %v2333, 4294901760
        %v2530 = vsub.f32 %v2333, %v2529
        %v2531 = vand.u32 %v2530, 4294901760
        %v2532 = vsub.f32 %v2530, %v2531
        %v2533 = vand.u32 %v2532, 4294901760
        %2534 = vmatmul.mubr.f32.gmra.mrb[0].mxu0 %v2533
        %v2535 = vpop.f32.mrb[0].mxu0
        %v2536 = vadd.f32 %v2317, %v2535
        %v2537 = vpop.f32.mrb[0].mxu0
        %2538 = vmatprep.mubr.f32.mxu0 0.0
        %v2539 = vand.u32 %v2336, 4294901760
        %v2540 = vsub.f32 %v2336, %v2539
        %v2541 = vand.u32 %v2540, 4294901760
        %v2542 = vsub.f32 %v2540, %v2541
        %v2543 = vand.u32 %v2542, 4294901760
        %2544 = vmatmul.mubr.f32.gmra.mrb[0].mxu0 %v2543
        %v2545 = vpop.f32.mrb[0].mxu0
        %v2546 = vadd.f32 %v2317, %v2545
        %v2547 = vpop.f32.mrb[0].mxu0
        %2548 = vmatprep.mubr.f32.mxu0 0.0
        %v2549 = vand.u32 %v2339, 4294901760
        %v2550 = vsub.f32 %v2339, %v2549
        %v2551 = vand.u32 %v2550, 4294901760
        %v2552 = vsub.f32 %v2550, %v2551
        %v2553 = vand.u32 %v2552, 4294901760
        %2554 = vmatmul.mubr.f32.gmra.mrb[0].mxu0 %v2553
        %v2555 = vpop.f32.mrb[0].mxu0
        %v2556 = vadd.f32 %v2317, %v2555
        %v2557 = vpop.f32.mrb[0].mxu0
        %2558 = vmatprep.mubr.f32.mxu0 0.0
        %v2559 = vand.u32 %v2342, 4294901760
        %v2560 = vsub.f32 %v2342, %v2559
        %v2561 = vand.u32 %v2560, 4294901760
        %v2562 = vsub.f32 %v2560, %v2561
        %v2563 = vand.u32 %v2562, 4294901760
        %2564 = vmatmul.mubr.f32.gmra.mrb[0].mxu0 %v2563
        %v2565 = vpop.f32.mrb[0].mxu0
        %v2566 = vadd.f32 %v2317, %v2565
        %v2567 = vpop.f32.mrb[0].mxu0
        %2568 = vmatprep.mubr.f32.mxu0 0.0
        %v2569 = vand.u32 %v2345, 4294901760
        %v2570 = vsub.f32 %v2345, %v2569
        %v2571 = vand.u32 %v2570, 4294901760
        %v2572 = vsub.f32 %v2570, %v2571
        %v2573 = vand.u32 %v2572, 4294901760
        %2574 = vmatmul.mubr.f32.gmra.mrb[0].mxu0 %v2573
        %v2575 = vpop.f32.mrb[0].mxu0
        %v2576 = vadd.f32 %v2317, %v2575
        %v2577 = vpop.f32.mrb[0].mxu0
        %2578 = vmatprep.mubr.f32.mxu0 0.0
        %v2579 = vand.u32 %v2348, 4294901760
        %v2580 = vsub.f32 %v2348, %v2579
        %v2581 = vand.u32 %v2580, 4294901760
        %v2582 = vsub.f32 %v2580, %v2581
        %v2583 = vand.u32 %v2582, 4294901760
        %2584 = vmatmul.mubr.f32.gmra.mrb[0].mxu0 %v2583
        %v2585 = vpop.f32.mrb[0].mxu0
        %v2586 = vadd.f32 %v2317, %v2585
        %v2587 = vpop.f32.mrb[0].mxu0
        %2588 = vmatprep.mubr.f32.mxu0 0.0
        %v2589 = vand.u32 %v2351, 4294901760
        %v2590 = vsub.f32 %v2351, %v2589
        %v2591 = vand.u32 %v2590, 4294901760
        %v2592 = vsub.f32 %v2590, %v2591
        %v2593 = vand.u32 %v2592, 4294901760
        %2594 = vmatmul.mubr.f32.gmra.mrb[0].mxu0 %v2593
        %v2595 = vpop.f32.mrb[0].mxu0
        %v2596 = vadd.f32 %v2317, %v2595
        %v2597 = vpop.f32.mrb[0].mxu0
        %2598 = vmatprep.mubr.f32.mxu0 0.0
        %v2599 = vand.u32 %v2354, 4294901760
        %v2600 = vsub.f32 %v2354, %v2599
        %v2601 = vand.u32 %v2600, 4294901760
        %v2602 = vsub.f32 %v2600, %v2601
        %v2603 = vand.u32 %v2602, 4294901760
        %2604 = vmatmul.mubr.f32.gmra.mrb[0].mxu0 %v2603
        %v2605 = vpop.f32.mrb[0].mxu0
        %v2606 = vadd.f32 %v2317, %v2605
        %v2607 = vpop.f32.mrb[0].mxu0
        %2608 = vmatprep.mubr.f32.mxu0 0.0
        %v2609 = vand.u32 %v2357, 4294901760
        %v2610 = vsub.f32 %v2357, %v2609
        %v2611 = vand.u32 %v2610, 4294901760
        %v2612 = vsub.f32 %v2610, %v2611
        %v2613 = vand.u32 %v2612, 4294901760
        %2614 = vmatmul.mubr.f32.gmra.mrb[0].mxu0 %v2613
        %v2615 = vpop.f32.mrb[0].mxu0
        %v2616 = vadd.f32 %v2317, %v2615
        %v2617 = vpop.f32.mrb[0].mxu0
        %2618 = vmatprep.mubr.f32.mxu0 0.0
        %v2619 = vand.u32 %v2360, 4294901760
        %v2620 = vsub.f32 %v2360, %v2619
        %v2621 = vand.u32 %v2620, 4294901760
        %v2622 = vsub.f32 %v2620, %v2621
        %v2623 = vand.u32 %v2622, 4294901760
        %2624 = vmatmul.mubr.f32.gmra.mrb[0].mxu0 %v2623
        %v2625 = vpop.f32.mrb[0].mxu0
        %v2626 = vadd.f32 %v2317, %v2625
        %v2627 = vpop.f32.mrb[0].mxu0
        %2628 = vmatprep.mubr.f32.mxu0 0.0
        %v2629 = vand.u32 %v2363, 4294901760
        %v2630 = vsub.f32 %v2363, %v2629
        %v2631 = vand.u32 %v2630, 4294901760
        %v2632 = vsub.f32 %v2630, %v2631
        %v2633 = vand.u32 %v2632, 4294901760
        %2634 = vmatmul.mubr.f32.gmra.mrb[0].mxu0 %v2633
        %v2635 = vpop.f32.mrb[0].mxu0
        %v2636 = vadd.f32 %v2317, %v2635
        %v2637 = vpop.f32.mrb[0].mxu0
        %2638 = vmatprep.mubr.f32.mxu0 0.0
        %v2639 = vand.u32 %v2366, 4294901760
        %v2640 = vsub.f32 %v2366, %v2639
        %v2641 = vand.u32 %v2640, 4294901760
        %v2642 = vsub.f32 %v2640, %v2641
        %v2643 = vand.u32 %v2642, 4294901760
        %2644 = vmatmul.mubr.f32.gmra.mrb[0].mxu0 %v2643
        %v2645 = vpop.f32.mrb[0].mxu0
        %v2646 = vadd.f32 %v2317, %v2645
        %v2647 = vpop.f32.mrb[0].mxu0
        %2648 = vmatprep.mubr.f32.mxu0 0.0
        %v2649 = vand.u32 %v2369, 4294901760
        %v2650 = vsub.f32 %v2369, %v2649
        %v2651 = vand.u32 %v2650, 4294901760
        %v2652 = vsub.f32 %v2650, %v2651
        %v2653 = vand.u32 %v2652, 4294901760
        %2654 = vmatmul.mubr.f32.gmra.mrb[0].mxu0 %v2653
        %v2655 = vpop.f32.mrb[0].mxu0
        %v2656 = vadd.f32 %v2317, %v2655
        %v2657 = vpop.f32.mrb[0].mxu0
        %2658 = vmatprep.mubr.f32.mxu0 0.0
        %v2659 = vand.u32 %v2372, 4294901760
        %v2660 = vsub.f32 %v2372, %v2659
        %v2661 = vand.u32 %v2660, 4294901760
        %v2662 = vsub.f32 %v2660, %v2661
        %v2663 = vand.u32 %v2662, 4294901760
        %2664 = vmatmul.mubr.f32.gmra.mrb[0].mxu0 %v2663
        %v2665 = vpop.f32.mrb[0].mxu0
        %v2666 = vadd.f32 %v2317, %v2665
        %v2667 = vpop.f32.mrb[0].mxu0
        %2668 = vmatprep.mubr.f32.mxu0 0.0
        %v2669 = vand.u32 %v2375, 4294901760
        %v2670 = vsub.f32 %v2375, %v2669
        %v2671 = vand.u32 %v2670, 4294901760
        %v2672 = vsub.f32 %v2670, %v2671
        %v2673 = vand.u32 %v2672, 4294901760
        %2674 = vmatmul.mubr.f32.gmra.mrb[0].mxu0 %v2673
        %v2675 = vpop.f32.mrb[0].mxu0
        %v2676 = vadd.f32 %v2317, %v2675
        %v2677 = vpop.f32.mrb[0].mxu0
        %2678 = vmatprep.mubr.f32.mxu0 0.0
        %v2679 = vand.u32 %v2378, 4294901760
        %v2680 = vsub.f32 %v2378, %v2679
        %v2681 = vand.u32 %v2680, 4294901760
        %v2682 = vsub.f32 %v2680, %v2681
        %v2683 = vand.u32 %v2682, 4294901760
        %2684 = vmatmul.mubr.f32.gmra.mrb[0].mxu0 %v2683
        %v2685 = vpop.f32.mrb[0].mxu0
        %v2686 = vadd.f32 %v2317, %v2685
        %v2687 = vpop.f32.mrb[0].mxu0
        %2688 = vmatprep.mubr.f32.mxu0 0.0
        %v2689 = vand.u32 %v2381, 4294901760
        %v2690 = vsub.f32 %v2381, %v2689
        %v2691 = vand.u32 %v2690, 4294901760
        %v2692 = vsub.f32 %v2690, %v2691
        %v2693 = vand.u32 %v2692, 4294901760
        %2694 = vmatmul.mubr.f32.gmra.mrb[0].mxu0 %v2693
        %v2695 = vpop.f32.mrb[0].mxu0
        %v2696 = vadd.f32 %v2317, %v2695
        %v2697 = vpop.f32.mrb[0].mxu0
        %2698 = vmatprep.mubr.f32.mxu0 0.0
        %v2699 = vand.u32 %v2384, 4294901760
        %v2700 = vsub.f32 %v2384, %v2699
        %v2701 = vand.u32 %v2700, 4294901760
        %v2702 = vsub.f32 %v2700, %v2701
        %v2703 = vand.u32 %v2702, 4294901760
        %2704 = vmatmul.mubr.f32.gmra.mrb[0].mxu0 %v2703
        %v2705 = vpop.f32.mrb[0].mxu0
        %v2706 = vadd.f32 %v2317, %v2705
        %v2707 = vpop.f32.mrb[0].mxu0
        %2708 = vmatprep.mubr.f32.mxu0 0.0
        %v2709 = vand.u32 %v2387, 4294901760
        %v2710 = vsub.f32 %v2387, %v2709
        %v2711 = vand.u32 %v2710, 4294901760
        %v2712 = vsub.f32 %v2710, %v2711
        %v2713 = vand.u32 %v2712, 4294901760
        %2714 = vmatmul.mubr.f32.gmra.mrb[0].mxu0 %v2713
        %v2715 = vpop.f32.mrb[0].mxu0
        %v2716 = vadd.f32 %v2317, %v2715
        %v2717 = vpop.f32.mrb[0].mxu0
        %2718 = vmatprep.mubr.f32.mxu0 0.0
        %v2719 = vand.u32 %v2390, 4294901760
        %v2720 = vsub.f32 %v2390, %v2719
        %v2721 = vand.u32 %v2720, 4294901760
        %v2722 = vsub.f32 %v2720, %v2721
        %v2723 = vand.u32 %v2722, 4294901760
        %2724 = vmatmul.mubr.f32.gmra.mrb[0].mxu0 %v2723
        %v2725 = vpop.f32.mrb[0].mxu0
        %v2726 = vadd.f32 %v2317, %v2725
        %v2727 = vpop.f32.mrb[0].mxu0
        %2728 = vmatprep.mubr.f32.mxu0 0.0
        %v2729 = vand.u32 %v2393, 4294901760
        %v2730 = vsub.f32 %v2393, %v2729
        %v2731 = vand.u32 %v2730, 4294901760
        %v2732 = vsub.f32 %v2730, %v2731
        %v2733 = vand.u32 %v2732, 4294901760
        %2734 = vmatmul.mubr.f32.gmra.mrb[0].mxu0 %v2733
        %v2735 = vpop.f32.mrb[0].mxu0
        %v2736 = vadd.f32 %v2317, %v2735
        %v2737 = vpop.f32.mrb[0].mxu0
        %2738 = vmatprep.mubr.f32.mxu0 0.0
        %v2739 = vand.u32 %v2396, 4294901760
        %v2740 = vsub.f32 %v2396, %v2739
        %v2741 = vand.u32 %v2740, 4294901760
        %v2742 = vsub.f32 %v2740, %v2741
        %v2743 = vand.u32 %v2742, 4294901760
        %2744 = vmatmul.mubr.f32.gmra.mrb[0].mxu0 %v2743
        %v2745 = vpop.f32.mrb[0].mxu0
        %v2746 = vadd.f32 %v2317, %v2745
        %v2747 = vpop.f32.mrb[0].mxu0
        %2748 = vmatprep.mubr.f32.mxu0 0.0
        %v2749 = vand.u32 %v2399, 4294901760
        %v2750 = vsub.f32 %v2399, %v2749
        %v2751 = vand.u32 %v2750, 4294901760
        %v2752 = vsub.f32 %v2750, %v2751
        %v2753 = vand.u32 %v2752, 4294901760
        %2754 = vmatmul.mubr.f32.gmra.mrb[0].mxu0 %v2753
        %v2755 = vpop.f32.mrb[0].mxu0
        %v2756 = vadd.f32 %v2317, %v2755
        %v2757 = vpop.f32.mrb[0].mxu0
        %2758 = vmatprep.mubr.f32.mxu0 0.0
        %v2759 = vand.u32 %v2402, 4294901760
        %v2760 = vsub.f32 %v2402, %v2759
        %v2761 = vand.u32 %v2760, 4294901760
        %v2762 = vsub.f32 %v2760, %v2761
        %v2763 = vand.u32 %v2762, 4294901760
        %2764 = vmatmul.mubr.f32.gmra.mrb[0].mxu0 %v2763
        %v2765 = vpop.f32.mrb[0].mxu0
        %v2766 = vadd.f32 %v2317, %v2765
        %v2767 = vpop.f32.mrb[0].mxu0
        %2768 = vmatprep.mubr.f32.mxu0 0.0
        %v2769 = vand.u32 %v2405, 4294901760
        %v2770 = vsub.f32 %v2405, %v2769
        %v2771 = vand.u32 %v2770, 4294901760
        %v2772 = vsub.f32 %v2770, %v2771
        %v2773 = vand.u32 %v2772, 4294901760
        %2774 = vmatmul.mubr.f32.gmra.mrb[0].mxu0 %v2773
        %v2775 = vpop.f32.mrb[0].mxu0
        %v2776 = vadd.f32 %v2317, %v2775
        %v2777 = vpop.f32.mrb[0].mxu0
        %2778 = vmatprep.mubr.f32.mxu0 0.0
        %v2779 = vand.u32 %v2408, 4294901760
        %v2780 = vsub.f32 %v2408, %v2779
        %v2781 = vand.u32 %v2780, 4294901760
        %v2782 = vsub.f32 %v2780, %v2781
        %v2783 = vand.u32 %v2782, 4294901760
        %2784 = vmatmul.mubr.f32.gmra.mrb[0].mxu0 %v2783
        %v2785 = vpop.f32.mrb[0].mxu0
        %v2786 = vadd.f32 %v2317, %v2785
        %v2787 = vpop.f32.mrb[0].mxu0
        %2788 = vmatprep.mubr.f32.mxu0 0.0
        %v2789 = vand.u32 %v2411, 4294901760
        %v2790 = vsub.f32 %v2411, %v2789
        %v2791 = vand.u32 %v2790, 4294901760
        %v2792 = vsub.f32 %v2790, %v2791
        %v2793 = vand.u32 %v2792, 4294901760
        %2794 = vmatmul.mubr.f32.gmra.mrb[0].mxu0 %v2793
        %v2795 = vpop.f32.mrb[0].mxu0
        %v2796 = vadd.f32 %v2317, %v2795
        %v2797 = vpop.f32.mrb[0].mxu0
        %2798 = vmatprep.mubr.f32.mxu0 0.0
        %v2799 = vand.u32 %v2414, 4294901760
        %v2800 = vsub.f32 %v2414, %v2799
        %v2801 = vand.u32 %v2800, 4294901760
        %v2802 = vsub.f32 %v2800, %v2801
        %v2803 = vand.u32 %v2802, 4294901760
        %2804 = vmatmul.mubr.f32.gmra.mrb[0].mxu0 %v2803
        %v2805 = vpop.f32.mrb[0].mxu0
        %v2806 = vadd.f32 %v2317, %v2805
        %v2807 = vpop.f32.mrb[0].mxu0
        %2808 = vdwg.mxu0
        %2809 = vmatprep.subr.mxu0 0.0
        %v2810 = vand.u32 %v2308, 4294901760
        %v2811 = vsub.f32 %v2308, %v2810
        %v2812 = vand.u32 %v2811, 4294901760
        %v2813 = vsub.f32 %v2811, %v2812
        %v2814 = vand.u32 %v2813, 4294901760
        %2815 = vmatpush1.msra.mxu0 %v2814
        %2816 = vmatprep.subr.mxu0 0.0
        %v2817 = vand.u32 %v2309, 4294901760
        %v2818 = vsub.f32 %v2309, %v2817
        %v2819 = vand.u32 %v2818, 4294901760
        %v2820 = vsub.f32 %v2818, %v2819
        %v2821 = vand.u32 %v2820, 4294901760
        %2822 = vmatpush1.msra.mxu0 %v2821
        %2823 = vmatprep.subr.mxu0 0.0
        %v2824 = vand.u32 %v2310, 4294901760
        %v2825 = vsub.f32 %v2310, %v2824
        %v2826 = vand.u32 %v2825, 4294901760
        %v2827 = vsub.f32 %v2825, %v2826
        %v2828 = vand.u32 %v2827, 4294901760
        %2829 = vmatpush1.msra.mxu0 %v2828
        %2830 = vmatprep.subr.mxu0 0.0
        %v2831 = vand.u32 %v2418, 4294901760
        %v2832 = vsub.f32 %v2418, %v2831
        %v2833 = vand.u32 %v2832, 4294901760
        %v2834 = vsub.f32 %v2832, %v2833
        %v2835 = vand.u32 %v2834, 4294901760
        %2836 = vmatpush1.msra.mxu0 %v2835
        %2837 = vmatprep.subr.mxu0 0.0
        %2838 = vmatpush1.msra.mxu0 0.0
        %2839 = vmatprep.subr.mxu0 0.0
        %2840 = vmatpush1.msra.mxu0 0.0
        %2841 = vmatprep.subr.mxu0 0.0
        %2842 = vmatpush1.msra.mxu0 0.0
        %2843 = vmatprep.subr.mxu0 0.0
        %2844 = vmatpush1.msra.mxu0 0.0
        %2845 = vmatprep.subr.mxu0 0.0
        %2846 = vmatpush1.msra.mxu0 0.0
        %2847 = vmatprep.subr.mxu0 0.0
        %2848 = vmatpush1.msra.mxu0 0.0
        %2849 = vmatprep.subr.mxu0 0.0
        %2850 = vmatpush1.msra.mxu0 0.0
        %2851 = vmatprep.subr.mxu0 0.0
        %2852 = vmatpush1.msra.mxu0 0.0
        %2853 = vmatprep.subr.mxu0 0.0
        %2854 = vmatpush1.msra.mxu0 0.0
        %2855 = vmatprep.subr.mxu0 0.0
        %2856 = vmatpush1.msra.mxu0 0.0
        %2857 = vmatprep.subr.mxu0 0.0
        %2858 = vmatpush1.msra.mxu0 0.0
        %2859 = vmatprep.subr.mxu0 0.0
        %2860 = vmatpush1.msra.mxu0 0.0
        %2861 = vmatprep.subr.mxu0 0.0
        %2862 = vmatpush1.msra.mxu0 0.0
        %2863 = vmatprep.subr.mxu0 0.0
        %2864 = vmatpush1.msra.mxu0 0.0
        %2865 = vmatprep.subr.mxu0 0.0
        %2866 = vmatpush1.msra.mxu0 0.0
        %2867 = vmatprep.subr.mxu0 0.0
        %2868 = vmatpush1.msra.mxu0 0.0
        %2869 = vmatprep.subr.mxu0 0.0
        %2870 = vmatpush1.msra.mxu0 0.0
        %2871 = vmatprep.subr.mxu0 0.0
        %2872 = vmatpush1.msra.mxu0 0.0
        %2873 = vmatprep.subr.mxu0 0.0
        %2874 = vmatpush1.msra.mxu0 0.0
        %2875 = vmatprep.subr.mxu0 0.0
        %2876 = vmatpush1.msra.mxu0 0.0
        %2877 = vmatprep.subr.mxu0 0.0
        %2878 = vmatpush1.msra.mxu0 0.0
        %2879 = vmatprep.subr.mxu0 0.0
        %2880 = vmatpush1.msra.mxu0 0.0
        %2881 = vmatprep.subr.mxu0 0.0
        %2882 = vmatpush1.msra.mxu0 0.0
        %2883 = vmatprep.subr.mxu0 0.0
        %2884 = vmatpush1.msra.mxu0 0.0
        %2885 = vmatprep.subr.mxu0 0.0
        %2886 = vmatpush1.msra.mxu0 0.0
        %2887 = vmatprep.subr.mxu0 0.0
        %2888 = vmatpush1.msra.mxu0 0.0
        %2889 = vmatprep.subr.mxu0 0.0
        %2890 = vmatpush1.msra.mxu0 0.0
        %2891 = vmatprep.subr.mxu0 0.0
        %2892 = vmatpush1.msra.mxu0 0.0
        %2893 = vmatprep.mubr.f32.mxu0 0.0
        %v2894 = vand.u32 %v2321, 4294901760
        %2895 = vmatmul.mubr.f32.gmra.mrb[0].mxu0 %v2894
        %v2896 = vpop.f32.mrb[0].mxu0
        %v2897 = vadd.f32 %v2496, %v2896
        %v2898 = vpop.f32.mrb[0].mxu0
        %2899 = vmatprep.mubr.f32.mxu0 0.0
        %v2900 = vand.u32 %v2324, 4294901760
        %2901 = vmatmul.mubr.f32.gmra.mrb[0].mxu0 %v2900
        %v2902 = vpop.f32.mrb[0].mxu0
        %v2903 = vadd.f32 %v2506, %v2902
        %v2904 = vpop.f32.mrb[0].mxu0
        %2905 = vmatprep.mubr.f32.mxu0 0.0
        %v2906 = vand.u32 %v2327, 4294901760
        %2907 = vmatmul.mubr.f32.gmra.mrb[0].mxu0 %v2906
        %v2908 = vpop.f32.mrb[0].mxu0
        %v2909 = vadd.f32 %v2516, %v2908
        %v2910 = vpop.f32.mrb[0].mxu0
        %2911 = vmatprep.mubr.f32.mxu0 0.0
        %v2912 = vand.u32 %v2330, 4294901760
        %2913 = vmatmul.mubr.f32.gmra.mrb[0].mxu0 %v2912
        %v2914 = vpop.f32.mrb[0].mxu0
        %v2915 = vadd.f32 %v2526, %v2914
        %v2916 = vpop.f32.mrb[0].mxu0
        %2917 = vmatprep.mubr.f32.mxu0 0.0
        %v2918 = vand.u32 %v2333, 4294901760
        %2919 = vmatmul.mubr.f32.gmra.mrb[0].mxu0 %v2918
        %v2920 = vpop.f32.mrb[0].mxu0
        %v2921 = vadd.f32 %v2536, %v2920
        %v2922 = vpop.f32.mrb[0].mxu0
        %2923 = vmatprep.mubr.f32.mxu0 0.0
        %v2924 = vand.u32 %v2336, 4294901760
        %2925 = vmatmul.mubr.f32.gmra.mrb[0].mxu0 %v2924
        %v2926 = vpop.f32.mrb[0].mxu0
        %v2927 = vadd.f32 %v2546, %v2926
        %v2928 = vpop.f32.mrb[0].mxu0
        %2929 = vmatprep.mubr.f32.mxu0 0.0
        %v2930 = vand.u32 %v2339, 4294901760
        %2931 = vmatmul.mubr.f32.gmra.mrb[0].mxu0 %v2930
        %v2932 = vpop.f32.mrb[0].mxu0
        %v2933 = vadd.f32 %v2556, %v2932
        %v2934 = vpop.f32.mrb[0].mxu0
        %2935 = vmatprep.mubr.f32.mxu0 0.0
        %v2936 = vand.u32 %v2342, 4294901760
        %2937 = vmatmul.mubr.f32.gmra.mrb[0].mxu0 %v2936
        %v2938 = vpop.f32.mrb[0].mxu0
        %v2939 = vadd.f32 %v2566, %v2938
        %v2940 = vpop.f32.mrb[0].mxu0
        %2941 = vmatprep.mubr.f32.mxu0 0.0
        %v2942 = vand.u32 %v2345, 4294901760
        %2943 = vmatmul.mubr.f32.gmra.mrb[0].mxu0 %v2942
        %v2944 = vpop.f32.mrb[0].mxu0
        %v2945 = vadd.f32 %v2576, %v2944
        %v2946 = vpop.f32.mrb[0].mxu0
        %2947 = vmatprep.mubr.f32.mxu0 0.0
        %v2948 = vand.u32 %v2348, 4294901760
        %2949 = vmatmul.mubr.f32.gmra.mrb[0].mxu0 %v2948
        %v2950 = vpop.f32.mrb[0].mxu0
        %v2951 = vadd.f32 %v2586, %v2950
        %v2952 = vpop.f32.mrb[0].mxu0
        %2953 = vmatprep.mubr.f32.mxu0 0.0
        %v2954 = vand.u32 %v2351, 4294901760
        %2955 = vmatmul.mubr.f32.gmra.mrb[0].mxu0 %v2954
        %v2956 = vpop.f32.mrb[0].mxu0
        %v2957 = vadd.f32 %v2596, %v2956
        %v2958 = vpop.f32.mrb[0].mxu0
        %2959 = vmatprep.mubr.f32.mxu0 0.0
        %v2960 = vand.u32 %v2354, 4294901760
        %2961 = vmatmul.mubr.f32.gmra.mrb[0].mxu0 %v2960
        %v2962 = vpop.f32.mrb[0].mxu0
        %v2963 = vadd.f32 %v2606, %v2962
        %v2964 = vpop.f32.mrb[0].mxu0
        %2965 = vmatprep.mubr.f32.mxu0 0.0
        %v2966 = vand.u32 %v2357, 4294901760
        %2967 = vmatmul.mubr.f32.gmra.mrb[0].mxu0 %v2966
        %v2968 = vpop.f32.mrb[0].mxu0
        %v2969 = vadd.f32 %v2616, %v2968
        %v2970 = vpop.f32.mrb[0].mxu0
        %2971 = vmatprep.mubr.f32.mxu0 0.0
        %v2972 = vand.u32 %v2360, 4294901760
        %2973 = vmatmul.mubr.f32.gmra.mrb[0].mxu0 %v2972
        %v2974 = vpop.f32.mrb[0].mxu0
        %v2975 = vadd.f32 %v2626, %v2974
        %v2976 = vpop.f32.mrb[0].mxu0
        %2977 = vmatprep.mubr.f32.mxu0 0.0
        %v2978 = vand.u32 %v2363, 4294901760
        %2979 = vmatmul.mubr.f32.gmra.mrb[0].mxu0 %v2978
        %v2980 = vpop.f32.mrb[0].mxu0
        %v2981 = vadd.f32 %v2636, %v2980
        %v2982 = vpop.f32.mrb[0].mxu0
        %2983 = vmatprep.mubr.f32.mxu0 0.0
        %v2984 = vand.u32 %v2366, 4294901760
        %2985 = vmatmul.mubr.f32.gmra.mrb[0].mxu0 %v2984
        %v2986 = vpop.f32.mrb[0].mxu0
        %v2987 = vadd.f32 %v2646, %v2986
        %v2988 = vpop.f32.mrb[0].mxu0
        %2989 = vmatprep.mubr.f32.mxu0 0.0
        %v2990 = vand.u32 %v2369, 4294901760
        %2991 = vmatmul.mubr.f32.gmra.mrb[0].mxu0 %v2990
        %v2992 = vpop.f32.mrb[0].mxu0
        %v2993 = vadd.f32 %v2656, %v2992
        %v2994 = vpop.f32.mrb[0].mxu0
        %2995 = vmatprep.mubr.f32.mxu0 0.0
        %v2996 = vand.u32 %v2372, 4294901760
        %2997 = vmatmul.mubr.f32.gmra.mrb[0].mxu0 %v2996
        %v2998 = vpop.f32.mrb[0].mxu0
        %v2999 = vadd.f32 %v2666, %v2998
        %v3000 = vpop.f32.mrb[0].mxu0
        %3001 = vmatprep.mubr.f32.mxu0 0.0
        %v3002 = vand.u32 %v2375, 4294901760
        %3003 = vmatmul.mubr.f32.gmra.mrb[0].mxu0 %v3002
        %v3004 = vpop.f32.mrb[0].mxu0
        %v3005 = vadd.f32 %v2676, %v3004
        %v3006 = vpop.f32.mrb[0].mxu0
        %3007 = vmatprep.mubr.f32.mxu0 0.0
        %v3008 = vand.u32 %v2378, 4294901760
        %3009 = vmatmul.mubr.f32.gmra.mrb[0].mxu0 %v3008
        %v3010 = vpop.f32.mrb[0].mxu0
        %v3011 = vadd.f32 %v2686, %v3010
        %v3012 = vpop.f32.mrb[0].mxu0
        %3013 = vmatprep.mubr.f32.mxu0 0.0
        %v3014 = vand.u32 %v2381, 4294901760
        %3015 = vmatmul.mubr.f32.gmra.mrb[0].mxu0 %v3014
        %v3016 = vpop.f32.mrb[0].mxu0
        %v3017 = vadd.f32 %v2696, %v3016
        %v3018 = vpop.f32.mrb[0].mxu0
        %3019 = vmatprep.mubr.f32.mxu0 0.0
        %v3020 = vand.u32 %v2384, 4294901760
        %3021 = vmatmul.mubr.f32.gmra.mrb[0].mxu0 %v3020
        %v3022 = vpop.f32.mrb[0].mxu0
        %v3023 = vadd.f32 %v2706, %v3022
        %v3024 = vpop.f32.mrb[0].mxu0
        %3025 = vmatprep.mubr.f32.mxu0 0.0
        %v3026 = vand.u32 %v2387, 4294901760
        %3027 = vmatmul.mubr.f32.gmra.mrb[0].mxu0 %v3026
        %v3028 = vpop.f32.mrb[0].mxu0
        %v3029 = vadd.f32 %v2716, %v3028
        %v3030 = vpop.f32.mrb[0].mxu0
        %3031 = vmatprep.mubr.f32.mxu0 0.0
        %v3032 = vand.u32 %v2390, 4294901760
        %3033 = vmatmul.mubr.f32.gmra.mrb[0].mxu0 %v3032
        %v3034 = vpop.f32.mrb[0].mxu0
        %v3035 = vadd.f32 %v2726, %v3034
        %v3036 = vpop.f32.mrb[0].mxu0
        %3037 = vmatprep.mubr.f32.mxu0 0.0
        %v3038 = vand.u32 %v2393, 4294901760
        %3039 = vmatmul.mubr.f32.gmra.mrb[0].mxu0 %v3038
        %v3040 = vpop.f32.mrb[0].mxu0
        %v3041 = vadd.f32 %v2736, %v3040
        %v3042 = vpop.f32.mrb[0].mxu0
        %3043 = vmatprep.mubr.f32.mxu0 0.0
        %v3044 = vand.u32 %v2396, 4294901760
        %3045 = vmatmul.mubr.f32.gmra.mrb[0].mxu0 %v3044
        %v3046 = vpop.f32.mrb[0].mxu0
        %v3047 = vadd.f32 %v2746, %v3046
        %v3048 = vpop.f32.mrb[0].mxu0
        %3049 = vmatprep.mubr.f32.mxu0 0.0
        %v3050 = vand.u32 %v2399, 4294901760
        %3051 = vmatmul.mubr.f32.gmra.mrb[0].mxu0 %v3050
        %v3052 = vpop.f32.mrb[0].mxu0
        %v3053 = vadd.f32 %v2756, %v3052
        %v3054 = vpop.f32.mrb[0].mxu0
        %3055 = vmatprep.mubr.f32.mxu0 0.0
        %v3056 = vand.u32 %v2402, 4294901760
        %3057 = vmatmul.mubr.f32.gmra.mrb[0].mxu0 %v3056
        %v3058 = vpop.f32.mrb[0].mxu0
        %v3059 = vadd.f32 %v2766, %v3058
        %v3060 = vpop.f32.mrb[0].mxu0
        %3061 = vmatprep.mubr.f32.mxu0 0.0
        %v3062 = vand.u32 %v2405, 4294901760
        %3063 = vmatmul.mubr.f32.gmra.mrb[0].mxu0 %v3062
        %v3064 = vpop.f32.mrb[0].mxu0
        %v3065 = vadd.f32 %v2776, %v3064
        %v3066 = vpop.f32.mrb[0].mxu0
        %3067 = vmatprep.mubr.f32.mxu0 0.0
        %v3068 = vand.u32 %v2408, 4294901760
        %3069 = vmatmul.mubr.f32.gmra.mrb[0].mxu0 %v3068
        %v3070 = vpop.f32.mrb[0].mxu0
        %v3071 = vadd.f32 %v2786, %v3070
        %v3072 = vpop.f32.mrb[0].mxu0
        %3073 = vmatprep.mubr.f32.mxu0 0.0
        %v3074 = vand.u32 %v2411, 4294901760
        %3075 = vmatmul.mubr.f32.gmra.mrb[0].mxu0 %v3074
        %v3076 = vpop.f32.mrb[0].mxu0
        %v3077 = vadd.f32 %v2796, %v3076
        %v3078 = vpop.f32.mrb[0].mxu0
        %3079 = vmatprep.mubr.f32.mxu0 0.0
        %v3080 = vand.u32 %v2414, 4294901760
        %3081 = vmatmul.mubr.f32.gmra.mrb[0].mxu0 %v3080
        %v3082 = vpop.f32.mrb[0].mxu0
        %v3083 = vadd.f32 %v2806, %v3082
        %v3084 = vpop.f32.mrb[0].mxu0
        %3085 = vdwg.mxu0
        %3086 = vmatprep.subr.mxu0 0.0
        %v3087 = vand.u32 %v2308, 4294901760
        %v3088 = vsub.f32 %v2308, %v3087
        %3089 = vmatpush1.msra.mxu0 %v3088
        %3090 = vmatprep.subr.mxu0 0.0
        %v3091 = vand.u32 %v2309, 4294901760
        %v3092 = vsub.f32 %v2309, %v3091
        %3093 = vmatpush1.msra.mxu0 %v3092
        %3094 = vmatprep.subr.mxu0 0.0
        %v3095 = vand.u32 %v2310, 4294901760
        %v3096 = vsub.f32 %v2310, %v3095
        %3097 = vmatpush1.msra.mxu0 %v3096
        %3098 = vmatprep.subr.mxu0 0.0
        %v3099 = vand.u32 %v2418, 4294901760
        %v3100 = vsub.f32 %v2418, %v3099
        %3101 = vmatpush1.msra.mxu0 %v3100
        %3102 = vmatprep.subr.mxu0 0.0
        %3103 = vmatpush1.msra.mxu0 0.0
        %3104 = vmatprep.subr.mxu0 0.0
        %3105 = vmatpush1.msra.mxu0 0.0
        %3106 = vmatprep.subr.mxu0 0.0
        %3107 = vmatpush1.msra.mxu0 0.0
        %3108 = vmatprep.subr.mxu0 0.0
        %3109 = vmatpush1.msra.mxu0 0.0
        %3110 = vmatprep.subr.mxu0 0.0
        %3111 = vmatpush1.msra.mxu0 0.0
        %3112 = vmatprep.subr.mxu0 0.0
        %3113 = vmatpush1.msra.mxu0 0.0
        %3114 = vmatprep.subr.mxu0 0.0
        %3115 = vmatpush1.msra.mxu0 0.0
        %3116 = vmatprep.subr.mxu0 0.0
        %3117 = vmatpush1.msra.mxu0 0.0
        %3118 = vmatprep.subr.mxu0 0.0
        %3119 = vmatpush1.msra.mxu0 0.0
        %3120 = vmatprep.subr.mxu0 0.0
        %3121 = vmatpush1.msra.mxu0 0.0
        %3122 = vmatprep.subr.mxu0 0.0
        %3123 = vmatpush1.msra.mxu0 0.0
        %3124 = vmatprep.subr.mxu0 0.0
        %3125 = vmatpush1.msra.mxu0 0.0
        %3126 = vmatprep.subr.mxu0 0.0
        %3127 = vmatpush1.msra.mxu0 0.0
        %3128 = vmatprep.subr.mxu0 0.0
        %3129 = vmatpush1.msra.mxu0 0.0
        %3130 = vmatprep.subr.mxu0 0.0
        %3131 = vmatpush1.msra.mxu0 0.0
        %3132 = vmatprep.subr.mxu0 0.0
        %3133 = vmatpush1.msra.mxu0 0.0
        %3134 = vmatprep.subr.mxu0 0.0
        %3135 = vmatpush1.msra.mxu0 0.0
        %3136 = vmatprep.subr.mxu0 0.0
        %3137 = vmatpush1.msra.mxu0 0.0
        %3138 = vmatprep.subr.mxu0 0.0
        %3139 = vmatpush1.msra.mxu0 0.0
        %3140 = vmatprep.subr.mxu0 0.0
        %3141 = vmatpush1.msra.mxu0 0.0
        %3142 = vmatprep.subr.mxu0 0.0
        %3143 = vmatpush1.msra.mxu0 0.0
        %3144 = vmatprep.subr.mxu0 0.0
        %3145 = vmatpush1.msra.mxu0 0.0
        %3146 = vmatprep.subr.mxu0 0.0
        %3147 = vmatpush1.msra.mxu0 0.0
        %3148 = vmatprep.subr.mxu0 0.0
        %3149 = vmatpush1.msra.mxu0 0.0
        %3150 = vmatprep.subr.mxu0 0.0
        %3151 = vmatpush1.msra.mxu0 0.0
        %3152 = vmatprep.subr.mxu0 0.0
        %3153 = vmatpush1.msra.mxu0 0.0
        %3154 = vmatprep.subr.mxu0 0.0
        %3155 = vmatpush1.msra.mxu0 0.0
        %3156 = vmatprep.subr.mxu0 0.0
        %3157 = vmatpush1.msra.mxu0 0.0
        %3158 = vmatprep.mubr.f32.mxu0 0.0
        %v3159 = vand.u32 %v2321, 4294901760
        %v3160 = vsub.f32 %v2321, %v3159
        %3161 = vmatmul.mubr.f32.gmra.mrb[0].mxu0 %v3160
        %v3162 = vpop.f32.mrb[0].mxu0
        %v3163 = vadd.f32 %v2897, %v3162
        %v3164 = vpop.f32.mrb[0].mxu0
        %3165 = vmatprep.mubr.f32.mxu0 0.0
        %v3166 = vand.u32 %v2324, 4294901760
        %v3167 = vsub.f32 %v2324, %v3166
        %3168 = vmatmul.mubr.f32.gmra.mrb[0].mxu0 %v3167
        %v3169 = vpop.f32.mrb[0].mxu0
        %v3170 = vadd.f32 %v2903, %v3169
        %v3171 = vpop.f32.mrb[0].mxu0
        %3172 = vmatprep.mubr.f32.mxu0 0.0
        %v3173 = vand.u32 %v2327, 4294901760
        %v3174 = vsub.f32 %v2327, %v3173
        %3175 = vmatmul.mubr.f32.gmra.mrb[0].mxu0 %v3174
        %v3176 = vpop.f32.mrb[0].mxu0
        %v3177 = vadd.f32 %v2909, %v3176
        %v3178 = vpop.f32.mrb[0].mxu0
        %3179 = vmatprep.mubr.f32.mxu0 0.0
        %v3180 = vand.u32 %v2330, 4294901760
        %v3181 = vsub.f32 %v2330, %v3180
        %3182 = vmatmul.mubr.f32.gmra.mrb[0].mxu0 %v3181
        %v3183 = vpop.f32.mrb[0].mxu0
        %v3184 = vadd.f32 %v2915, %v3183
        %v3185 = vpop.f32.mrb[0].mxu0
        %3186 = vmatprep.mubr.f32.mxu0 0.0
        %v3187 = vand.u32 %v2333, 4294901760
        %v3188 = vsub.f32 %v2333, %v3187
        %3189 = vmatmul.mubr.f32.gmra.mrb[0].mxu0 %v3188
        %v3190 = vpop.f32.mrb[0].mxu0
        %v3191 = vadd.f32 %v2921, %v3190
        %v3192 = vpop.f32.mrb[0].mxu0
        %3193 = vmatprep.mubr.f32.mxu0 0.0
        %v3194 = vand.u32 %v2336, 4294901760
        %v3195 = vsub.f32 %v2336, %v3194
        %3196 = vmatmul.mubr.f32.gmra.mrb[0].mxu0 %v3195
        %v3197 = vpop.f32.mrb[0].mxu0
        %v3198 = vadd.f32 %v2927, %v3197
        %v3199 = vpop.f32.mrb[0].mxu0
        %3200 = vmatprep.mubr.f32.mxu0 0.0
        %v3201 = vand.u32 %v2339, 4294901760
        %v3202 = vsub.f32 %v2339, %v3201
        %3203 = vmatmul.mubr.f32.gmra.mrb[0].mxu0 %v3202
        %v3204 = vpop.f32.mrb[0].mxu0
        %v3205 = vadd.f32 %v2933, %v3204
        %v3206 = vpop.f32.mrb[0].mxu0
        %3207 = vmatprep.mubr.f32.mxu0 0.0
        %v3208 = vand.u32 %v2342, 4294901760
        %v3209 = vsub.f32 %v2342, %v3208
        %3210 = vmatmul.mubr.f32.gmra.mrb[0].mxu0 %v3209
        %v3211 = vpop.f32.mrb[0].mxu0
        %v3212 = vadd.f32 %v2939, %v3211
        %v3213 = vpop.f32.mrb[0].mxu0
        %3214 = vmatprep.mubr.f32.mxu0 0.0
        %v3215 = vand.u32 %v2345, 4294901760
        %v3216 = vsub.f32 %v2345, %v3215
        %3217 = vmatmul.mubr.f32.gmra.mrb[0].mxu0 %v3216
        %v3218 = vpop.f32.mrb[0].mxu0
        %v3219 = vadd.f32 %v2945, %v3218
        %v3220 = vpop.f32.mrb[0].mxu0
        %3221 = vmatprep.mubr.f32.mxu0 0.0
        %v3222 = vand.u32 %v2348, 4294901760
        %v3223 = vsub.f32 %v2348, %v3222
        %3224 = vmatmul.mubr.f32.gmra.mrb[0].mxu0 %v3223
        %v3225 = vpop.f32.mrb[0].mxu0
        %v3226 = vadd.f32 %v2951, %v3225
        %v3227 = vpop.f32.mrb[0].mxu0
        %3228 = vmatprep.mubr.f32.mxu0 0.0
        %v3229 = vand.u32 %v2351, 4294901760
        %v3230 = vsub.f32 %v2351, %v3229
        %3231 = vmatmul.mubr.f32.gmra.mrb[0].mxu0 %v3230
        %v3232 = vpop.f32.mrb[0].mxu0
        %v3233 = vadd.f32 %v2957, %v3232
        %v3234 = vpop.f32.mrb[0].mxu0
        %3235 = vmatprep.mubr.f32.mxu0 0.0
        %v3236 = vand.u32 %v2354, 4294901760
        %v3237 = vsub.f32 %v2354, %v3236
        %3238 = vmatmul.mubr.f32.gmra.mrb[0].mxu0 %v3237
        %v3239 = vpop.f32.mrb[0].mxu0
        %v3240 = vadd.f32 %v2963, %v3239
        %v3241 = vpop.f32.mrb[0].mxu0
        %3242 = vmatprep.mubr.f32.mxu0 0.0
        %v3243 = vand.u32 %v2357, 4294901760
        %v3244 = vsub.f32 %v2357, %v3243
        %3245 = vmatmul.mubr.f32.gmra.mrb[0].mxu0 %v3244
        %v3246 = vpop.f32.mrb[0].mxu0
        %v3247 = vadd.f32 %v2969, %v3246
        %v3248 = vpop.f32.mrb[0].mxu0
        %3249 = vmatprep.mubr.f32.mxu0 0.0
        %v3250 = vand.u32 %v2360, 4294901760
        %v3251 = vsub.f32 %v2360, %v3250
        %3252 = vmatmul.mubr.f32.gmra.mrb[0].mxu0 %v3251
        %v3253 = vpop.f32.mrb[0].mxu0
        %v3254 = vadd.f32 %v2975, %v3253
        %v3255 = vpop.f32.mrb[0].mxu0
        %3256 = vmatprep.mubr.f32.mxu0 0.0
        %v3257 = vand.u32 %v2363, 4294901760
        %v3258 = vsub.f32 %v2363, %v3257
        %3259 = vmatmul.mubr.f32.gmra.mrb[0].mxu0 %v3258
        %v3260 = vpop.f32.mrb[0].mxu0
        %v3261 = vadd.f32 %v2981, %v3260
        %v3262 = vpop.f32.mrb[0].mxu0
        %3263 = vmatprep.mubr.f32.mxu0 0.0
        %v3264 = vand.u32 %v2366, 4294901760
        %v3265 = vsub.f32 %v2366, %v3264
        %3266 = vmatmul.mubr.f32.gmra.mrb[0].mxu0 %v3265
        %v3267 = vpop.f32.mrb[0].mxu0
        %v3268 = vadd.f32 %v2987, %v3267
        %v3269 = vpop.f32.mrb[0].mxu0
        %3270 = vmatprep.mubr.f32.mxu0 0.0
        %v3271 = vand.u32 %v2369, 4294901760
        %v3272 = vsub.f32 %v2369, %v3271
        %3273 = vmatmul.mubr.f32.gmra.mrb[0].mxu0 %v3272
        %v3274 = vpop.f32.mrb[0].mxu0
        %v3275 = vadd.f32 %v2993, %v3274
        %v3276 = vpop.f32.mrb[0].mxu0
        %3277 = vmatprep.mubr.f32.mxu0 0.0
        %v3278 = vand.u32 %v2372, 4294901760
        %v3279 = vsub.f32 %v2372, %v3278
        %3280 = vmatmul.mubr.f32.gmra.mrb[0].mxu0 %v3279
        %v3281 = vpop.f32.mrb[0].mxu0
        %v3282 = vadd.f32 %v2999, %v3281
        %v3283 = vpop.f32.mrb[0].mxu0
        %3284 = vmatprep.mubr.f32.mxu0 0.0
        %v3285 = vand.u32 %v2375, 4294901760
        %v3286 = vsub.f32 %v2375, %v3285
        %3287 = vmatmul.mubr.f32.gmra.mrb[0].mxu0 %v3286
        %v3288 = vpop.f32.mrb[0].mxu0
        %v3289 = vadd.f32 %v3005, %v3288
        %v3290 = vpop.f32.mrb[0].mxu0
        %3291 = vmatprep.mubr.f32.mxu0 0.0
        %v3292 = vand.u32 %v2378, 4294901760
        %v3293 = vsub.f32 %v2378, %v3292
        %3294 = vmatmul.mubr.f32.gmra.mrb[0].mxu0 %v3293
        %v3295 = vpop.f32.mrb[0].mxu0
        %v3296 = vadd.f32 %v3011, %v3295
        %v3297 = vpop.f32.mrb[0].mxu0
        %3298 = vmatprep.mubr.f32.mxu0 0.0
        %v3299 = vand.u32 %v2381, 4294901760
        %v3300 = vsub.f32 %v2381, %v3299
        %3301 = vmatmul.mubr.f32.gmra.mrb[0].mxu0 %v3300
        %v3302 = vpop.f32.mrb[0].mxu0
        %v3303 = vadd.f32 %v3017, %v3302
        %v3304 = vpop.f32.mrb[0].mxu0
        %3305 = vmatprep.mubr.f32.mxu0 0.0
        %v3306 = vand.u32 %v2384, 4294901760
        %v3307 = vsub.f32 %v2384, %v3306
        %3308 = vmatmul.mubr.f32.gmra.mrb[0].mxu0 %v3307
        %v3309 = vpop.f32.mrb[0].mxu0
        %v3310 = vadd.f32 %v3023, %v3309
        %v3311 = vpop.f32.mrb[0].mxu0
        %3312 = vmatprep.mubr.f32.mxu0 0.0
        %v3313 = vand.u32 %v2387, 4294901760
        %v3314 = vsub.f32 %v2387, %v3313
        %3315 = vmatmul.mubr.f32.gmra.mrb[0].mxu0 %v3314
        %v3316 = vpop.f32.mrb[0].mxu0
        %v3317 = vadd.f32 %v3029, %v3316
        %v3318 = vpop.f32.mrb[0].mxu0
        %3319 = vmatprep.mubr.f32.mxu0 0.0
        %v3320 = vand.u32 %v2390, 4294901760
        %v3321 = vsub.f32 %v2390, %v3320
        %3322 = vmatmul.mubr.f32.gmra.mrb[0].mxu0 %v3321
        %v3323 = vpop.f32.mrb[0].mxu0
        %v3324 = vadd.f32 %v3035, %v3323
        %v3325 = vpop.f32.mrb[0].mxu0
        %3326 = vmatprep.mubr.f32.mxu0 0.0
        %v3327 = vand.u32 %v2393, 4294901760
        %v3328 = vsub.f32 %v2393, %v3327
        %3329 = vmatmul.mubr.f32.gmra.mrb[0].mxu0 %v3328
        %v3330 = vpop.f32.mrb[0].mxu0
        %v3331 = vadd.f32 %v3041, %v3330
        %v3332 = vpop.f32.mrb[0].mxu0
        %3333 = vmatprep.mubr.f32.mxu0 0.0
        %v3334 = vand.u32 %v2396, 4294901760
        %v3335 = vsub.f32 %v2396, %v3334
        %3336 = vmatmul.mubr.f32.gmra.mrb[0].mxu0 %v3335
        %v3337 = vpop.f32.mrb[0].mxu0
        %v3338 = vadd.f32 %v3047, %v3337
        %v3339 = vpop.f32.mrb[0].mxu0
        %3340 = vmatprep.mubr.f32.mxu0 0.0
        %v3341 = vand.u32 %v2399, 4294901760
        %v3342 = vsub.f32 %v2399, %v3341
        %3343 = vmatmul.mubr.f32.gmra.mrb[0].mxu0 %v3342
        %v3344 = vpop.f32.mrb[0].mxu0
        %v3345 = vadd.f32 %v3053, %v3344
        %v3346 = vpop.f32.mrb[0].mxu0
        %3347 = vmatprep.mubr.f32.mxu0 0.0
        %v3348 = vand.u32 %v2402, 4294901760
        %v3349 = vsub.f32 %v2402, %v3348
        %3350 = vmatmul.mubr.f32.gmra.mrb[0].mxu0 %v3349
        %v3351 = vpop.f32.mrb[0].mxu0
        %v3352 = vadd.f32 %v3059, %v3351
        %v3353 = vpop.f32.mrb[0].mxu0
        %3354 = vmatprep.mubr.f32.mxu0 0.0
        %v3355 = vand.u32 %v2405, 4294901760
        %v3356 = vsub.f32 %v2405, %v3355
        %3357 = vmatmul.mubr.f32.gmra.mrb[0].mxu0 %v3356
        %v3358 = vpop.f32.mrb[0].mxu0
        %v3359 = vadd.f32 %v3065, %v3358
        %v3360 = vpop.f32.mrb[0].mxu0
        %3361 = vmatprep.mubr.f32.mxu0 0.0
        %v3362 = vand.u32 %v2408, 4294901760
        %v3363 = vsub.f32 %v2408, %v3362
        %3364 = vmatmul.mubr.f32.gmra.mrb[0].mxu0 %v3363
        %v3365 = vpop.f32.mrb[0].mxu0
        %v3366 = vadd.f32 %v3071, %v3365
        %v3367 = vpop.f32.mrb[0].mxu0
        %3368 = vmatprep.mubr.f32.mxu0 0.0
        %v3369 = vand.u32 %v2411, 4294901760
        %v3370 = vsub.f32 %v2411, %v3369
        %3371 = vmatmul.mubr.f32.gmra.mrb[0].mxu0 %v3370
        %v3372 = vpop.f32.mrb[0].mxu0
        %v3373 = vadd.f32 %v3077, %v3372
        %v3374 = vpop.f32.mrb[0].mxu0
        %3375 = vmatprep.mubr.f32.mxu0 0.0
        %v3376 = vand.u32 %v2414, 4294901760
        %v3377 = vsub.f32 %v2414, %v3376
        %3378 = vmatmul.mubr.f32.gmra.mrb[0].mxu0 %v3377
        %v3379 = vpop.f32.mrb[0].mxu0
        %v3380 = vadd.f32 %v3083, %v3379
        %v3381 = vpop.f32.mrb[0].mxu0
        %3382 = vdwg.mxu0
        %3383 = vmatprep.subr.mxu0 0.0
        %v3384 = vand.u32 %v2308, 4294901760
        %3385 = vmatpush1.msra.mxu0 %v3384
        %3386 = vmatprep.subr.mxu0 0.0
        %v3387 = vand.u32 %v2309, 4294901760
        %3388 = vmatpush1.msra.mxu0 %v3387
        %3389 = vmatprep.subr.mxu0 0.0
        %v3390 = vand.u32 %v2310, 4294901760
        %3391 = vmatpush1.msra.mxu0 %v3390
        %3392 = vmatprep.subr.mxu0 0.0
        %v3393 = vand.u32 %v2418, 4294901760
        %3394 = vmatpush1.msra.mxu0 %v3393
        %3395 = vmatprep.subr.mxu0 0.0
        %3396 = vmatpush1.msra.mxu0 0.0
        %3397 = vmatprep.subr.mxu0 0.0
        %3398 = vmatpush1.msra.mxu0 0.0
        %3399 = vmatprep.subr.mxu0 0.0
        %3400 = vmatpush1.msra.mxu0 0.0
        %3401 = vmatprep.subr.mxu0 0.0
        %3402 = vmatpush1.msra.mxu0 0.0
        %3403 = vmatprep.subr.mxu0 0.0
        %3404 = vmatpush1.msra.mxu0 0.0
        %3405 = vmatprep.subr.mxu0 0.0
        %3406 = vmatpush1.msra.mxu0 0.0
        %3407 = vmatprep.subr.mxu0 0.0
        %3408 = vmatpush1.msra.mxu0 0.0
        %3409 = vmatprep.subr.mxu0 0.0
        %3410 = vmatpush1.msra.mxu0 0.0
        %3411 = vmatprep.subr.mxu0 0.0
        %3412 = vmatpush1.msra.mxu0 0.0
        %3413 = vmatprep.subr.mxu0 0.0
        %3414 = vmatpush1.msra.mxu0 0.0
        %3415 = vmatprep.subr.mxu0 0.0
        %3416 = vmatpush1.msra.mxu0 0.0
        %3417 = vmatprep.subr.mxu0 0.0
        %3418 = vmatpush1.msra.mxu0 0.0
        %3419 = vmatprep.subr.mxu0 0.0
        %3420 = vmatpush1.msra.mxu0 0.0
        %3421 = vmatprep.subr.mxu0 0.0
        %3422 = vmatpush1.msra.mxu0 0.0
        %3423 = vmatprep.subr.mxu0 0.0
        %3424 = vmatpush1.msra.mxu0 0.0
        %3425 = vmatprep.subr.mxu0 0.0
        %3426 = vmatpush1.msra.mxu0 0.0
        %3427 = vmatprep.subr.mxu0 0.0
        %3428 = vmatpush1.msra.mxu0 0.0
        %3429 = vmatprep.subr.mxu0 0.0
        %3430 = vmatpush1.msra.mxu0 0.0
        %3431 = vmatprep.subr.mxu0 0.0
        %3432 = vmatpush1.msra.mxu0 0.0
        %3433 = vmatprep.subr.mxu0 0.0
        %3434 = vmatpush1.msra.mxu0 0.0
        %3435 = vmatprep.subr.mxu0 0.0
        %3436 = vmatpush1.msra.mxu0 0.0
        %3437 = vmatprep.subr.mxu0 0.0
        %3438 = vmatpush1.msra.mxu0 0.0
        %3439 = vmatprep.subr.mxu0 0.0
        %3440 = vmatpush1.msra.mxu0 0.0
        %3441 = vmatprep.subr.mxu0 0.0
        %3442 = vmatpush1.msra.mxu0 0.0
        %3443 = vmatprep.subr.mxu0 0.0
        %3444 = vmatpush1.msra.mxu0 0.0
        %3445 = vmatprep.subr.mxu0 0.0
        %3446 = vmatpush1.msra.mxu0 0.0
        %3447 = vmatprep.subr.mxu0 0.0
        %3448 = vmatpush1.msra.mxu0 0.0
        %3449 = vmatprep.subr.mxu0 0.0
        %3450 = vmatpush1.msra.mxu0 0.0
        %3451 = vmatprep.mubr.f32.mxu0 0.0
        %v3452 = vand.u32 %v2321, 4294901760
        %v3453 = vsub.f32 %v2321, %v3452
        %v3454 = vand.u32 %v3453, 4294901760
        %3455 = vmatmul.mubr.f32.gmra.mrb[0].mxu0 %v3454
        %v3456 = vpop.f32.mrb[0].mxu0
        %v3457 = vadd.f32 %v3163, %v3456
        %v3458 = vpop.f32.mrb[0].mxu0
        %3459 = vmatprep.mubr.f32.mxu0 0.0
        %v3460 = vand.u32 %v2324, 4294901760
        %v3461 = vsub.f32 %v2324, %v3460
        %v3462 = vand.u32 %v3461, 4294901760
        %3463 = vmatmul.mubr.f32.gmra.mrb[0].mxu0 %v3462
        %v3464 = vpop.f32.mrb[0].mxu0
        %v3465 = vadd.f32 %v3170, %v3464
        %v3466 = vpop.f32.mrb[0].mxu0
        %3467 = vmatprep.mubr.f32.mxu0 0.0
        %v3468 = vand.u32 %v2327, 4294901760
        %v3469 = vsub.f32 %v2327, %v3468
        %v3470 = vand.u32 %v3469, 4294901760
        %3471 = vmatmul.mubr.f32.gmra.mrb[0].mxu0 %v3470
        %v3472 = vpop.f32.mrb[0].mxu0
        %v3473 = vadd.f32 %v3177, %v3472
        %v3474 = vpop.f32.mrb[0].mxu0
        %3475 = vmatprep.mubr.f32.mxu0 0.0
        %v3476 = vand.u32 %v2330, 4294901760
        %v3477 = vsub.f32 %v2330, %v3476
        %v3478 = vand.u32 %v3477, 4294901760
        %3479 = vmatmul.mubr.f32.gmra.mrb[0].mxu0 %v3478
        %v3480 = vpop.f32.mrb[0].mxu0
        %v3481 = vadd.f32 %v3184, %v3480
        %v3482 = vpop.f32.mrb[0].mxu0
        %3483 = vmatprep.mubr.f32.mxu0 0.0
        %v3484 = vand.u32 %v2333, 4294901760
        %v3485 = vsub.f32 %v2333, %v3484
        %v3486 = vand.u32 %v3485, 4294901760
        %3487 = vmatmul.mubr.f32.gmra.mrb[0].mxu0 %v3486
        %v3488 = vpop.f32.mrb[0].mxu0
        %v3489 = vadd.f32 %v3191, %v3488
        %v3490 = vpop.f32.mrb[0].mxu0
        %3491 = vmatprep.mubr.f32.mxu0 0.0
        %v3492 = vand.u32 %v2336, 4294901760
        %v3493 = vsub.f32 %v2336, %v3492
        %v3494 = vand.u32 %v3493, 4294901760
        %3495 = vmatmul.mubr.f32.gmra.mrb[0].mxu0 %v3494
        %v3496 = vpop.f32.mrb[0].mxu0
        %v3497 = vadd.f32 %v3198, %v3496
        %v3498 = vpop.f32.mrb[0].mxu0
        %3499 = vmatprep.mubr.f32.mxu0 0.0
        %v3500 = vand.u32 %v2339, 4294901760
        %v3501 = vsub.f32 %v2339, %v3500
        %v3502 = vand.u32 %v3501, 4294901760
        %3503 = vmatmul.mubr.f32.gmra.mrb[0].mxu0 %v3502
        %v3504 = vpop.f32.mrb[0].mxu0
        %v3505 = vadd.f32 %v3205, %v3504
        %v3506 = vpop.f32.mrb[0].mxu0
        %3507 = vmatprep.mubr.f32.mxu0 0.0
        %v3508 = vand.u32 %v2342, 4294901760
        %v3509 = vsub.f32 %v2342, %v3508
        %v3510 = vand.u32 %v3509, 4294901760
        %3511 = vmatmul.mubr.f32.gmra.mrb[0].mxu0 %v3510
        %v3512 = vpop.f32.mrb[0].mxu0
        %v3513 = vadd.f32 %v3212, %v3512
        %v3514 = vpop.f32.mrb[0].mxu0
        %3515 = vmatprep.mubr.f32.mxu0 0.0
        %v3516 = vand.u32 %v2345, 4294901760
        %v3517 = vsub.f32 %v2345, %v3516
        %v3518 = vand.u32 %v3517, 4294901760
        %3519 = vmatmul.mubr.f32.gmra.mrb[0].mxu0 %v3518
        %v3520 = vpop.f32.mrb[0].mxu0
        %v3521 = vadd.f32 %v3219, %v3520
        %v3522 = vpop.f32.mrb[0].mxu0
        %3523 = vmatprep.mubr.f32.mxu0 0.0
        %v3524 = vand.u32 %v2348, 4294901760
        %v3525 = vsub.f32 %v2348, %v3524
        %v3526 = vand.u32 %v3525, 4294901760
        %3527 = vmatmul.mubr.f32.gmra.mrb[0].mxu0 %v3526
        %v3528 = vpop.f32.mrb[0].mxu0
        %v3529 = vadd.f32 %v3226, %v3528
        %v3530 = vpop.f32.mrb[0].mxu0
        %3531 = vmatprep.mubr.f32.mxu0 0.0
        %v3532 = vand.u32 %v2351, 4294901760
        %v3533 = vsub.f32 %v2351, %v3532
        %v3534 = vand.u32 %v3533, 4294901760
        %3535 = vmatmul.mubr.f32.gmra.mrb[0].mxu0 %v3534
        %v3536 = vpop.f32.mrb[0].mxu0
        %v3537 = vadd.f32 %v3233, %v3536
        %v3538 = vpop.f32.mrb[0].mxu0
        %3539 = vmatprep.mubr.f32.mxu0 0.0
        %v3540 = vand.u32 %v2354, 4294901760
        %v3541 = vsub.f32 %v2354, %v3540
        %v3542 = vand.u32 %v3541, 4294901760
        %3543 = vmatmul.mubr.f32.gmra.mrb[0].mxu0 %v3542
        %v3544 = vpop.f32.mrb[0].mxu0
        %v3545 = vadd.f32 %v3240, %v3544
        %v3546 = vpop.f32.mrb[0].mxu0
        %3547 = vmatprep.mubr.f32.mxu0 0.0
        %v3548 = vand.u32 %v2357, 4294901760
        %v3549 = vsub.f32 %v2357, %v3548
        %v3550 = vand.u32 %v3549, 4294901760
        %3551 = vmatmul.mubr.f32.gmra.mrb[0].mxu0 %v3550
        %v3552 = vpop.f32.mrb[0].mxu0
        %v3553 = vadd.f32 %v3247, %v3552
        %v3554 = vpop.f32.mrb[0].mxu0
        %3555 = vmatprep.mubr.f32.mxu0 0.0
        %v3556 = vand.u32 %v2360, 4294901760
        %v3557 = vsub.f32 %v2360, %v3556
        %v3558 = vand.u32 %v3557, 4294901760
        %3559 = vmatmul.mubr.f32.gmra.mrb[0].mxu0 %v3558
        %v3560 = vpop.f32.mrb[0].mxu0
        %v3561 = vadd.f32 %v3254, %v3560
        %v3562 = vpop.f32.mrb[0].mxu0
        %3563 = vmatprep.mubr.f32.mxu0 0.0
        %v3564 = vand.u32 %v2363, 4294901760
        %v3565 = vsub.f32 %v2363, %v3564
        %v3566 = vand.u32 %v3565, 4294901760
        %3567 = vmatmul.mubr.f32.gmra.mrb[0].mxu0 %v3566
        %v3568 = vpop.f32.mrb[0].mxu0
        %v3569 = vadd.f32 %v3261, %v3568
        %v3570 = vpop.f32.mrb[0].mxu0
        %3571 = vmatprep.mubr.f32.mxu0 0.0
        %v3572 = vand.u32 %v2366, 4294901760
        %v3573 = vsub.f32 %v2366, %v3572
        %v3574 = vand.u32 %v3573, 4294901760
        %3575 = vmatmul.mubr.f32.gmra.mrb[0].mxu0 %v3574
        %v3576 = vpop.f32.mrb[0].mxu0
        %v3577 = vadd.f32 %v3268, %v3576
        %v3578 = vpop.f32.mrb[0].mxu0
        %3579 = vmatprep.mubr.f32.mxu0 0.0
        %v3580 = vand.u32 %v2369, 4294901760
        %v3581 = vsub.f32 %v2369, %v3580
        %v3582 = vand.u32 %v3581, 4294901760
        %3583 = vmatmul.mubr.f32.gmra.mrb[0].mxu0 %v3582
        %v3584 = vpop.f32.mrb[0].mxu0
        %v3585 = vadd.f32 %v3275, %v3584
        %v3586 = vpop.f32.mrb[0].mxu0
        %3587 = vmatprep.mubr.f32.mxu0 0.0
        %v3588 = vand.u32 %v2372, 4294901760
        %v3589 = vsub.f32 %v2372, %v3588
        %v3590 = vand.u32 %v3589, 4294901760
        %3591 = vmatmul.mubr.f32.gmra.mrb[0].mxu0 %v3590
        %v3592 = vpop.f32.mrb[0].mxu0
        %v3593 = vadd.f32 %v3282, %v3592
        %v3594 = vpop.f32.mrb[0].mxu0
        %3595 = vmatprep.mubr.f32.mxu0 0.0
        %v3596 = vand.u32 %v2375, 4294901760
        %v3597 = vsub.f32 %v2375, %v3596
        %v3598 = vand.u32 %v3597, 4294901760
        %3599 = vmatmul.mubr.f32.gmra.mrb[0].mxu0 %v3598
        %v3600 = vpop.f32.mrb[0].mxu0
        %v3601 = vadd.f32 %v3289, %v3600
        %v3602 = vpop.f32.mrb[0].mxu0
        %3603 = vmatprep.mubr.f32.mxu0 0.0
        %v3604 = vand.u32 %v2378, 4294901760
        %v3605 = vsub.f32 %v2378, %v3604
        %v3606 = vand.u32 %v3605, 4294901760
        %3607 = vmatmul.mubr.f32.gmra.mrb[0].mxu0 %v3606
        %v3608 = vpop.f32.mrb[0].mxu0
        %v3609 = vadd.f32 %v3296, %v3608
        %v3610 = vpop.f32.mrb[0].mxu0
        %3611 = vmatprep.mubr.f32.mxu0 0.0
        %v3612 = vand.u32 %v2381, 4294901760
        %v3613 = vsub.f32 %v2381, %v3612
        %v3614 = vand.u32 %v3613, 4294901760
        %3615 = vmatmul.mubr.f32.gmra.mrb[0].mxu0 %v3614
        %v3616 = vpop.f32.mrb[0].mxu0
        %v3617 = vadd.f32 %v3303, %v3616
        %v3618 = vpop.f32.mrb[0].mxu0
        %3619 = vmatprep.mubr.f32.mxu0 0.0
        %v3620 = vand.u32 %v2384, 4294901760
        %v3621 = vsub.f32 %v2384, %v3620
        %v3622 = vand.u32 %v3621, 4294901760
        %3623 = vmatmul.mubr.f32.gmra.mrb[0].mxu0 %v3622
        %v3624 = vpop.f32.mrb[0].mxu0
        %v3625 = vadd.f32 %v3310, %v3624
        %v3626 = vpop.f32.mrb[0].mxu0
        %3627 = vmatprep.mubr.f32.mxu0 0.0
        %v3628 = vand.u32 %v2387, 4294901760
        %v3629 = vsub.f32 %v2387, %v3628
        %v3630 = vand.u32 %v3629, 4294901760
        %3631 = vmatmul.mubr.f32.gmra.mrb[0].mxu0 %v3630
        %v3632 = vpop.f32.mrb[0].mxu0
        %v3633 = vadd.f32 %v3317, %v3632
        %v3634 = vpop.f32.mrb[0].mxu0
        %3635 = vmatprep.mubr.f32.mxu0 0.0
        %v3636 = vand.u32 %v2390, 4294901760
        %v3637 = vsub.f32 %v2390, %v3636
        %v3638 = vand.u32 %v3637, 4294901760
        %3639 = vmatmul.mubr.f32.gmra.mrb[0].mxu0 %v3638
        %v3640 = vpop.f32.mrb[0].mxu0
        %v3641 = vadd.f32 %v3324, %v3640
        %v3642 = vpop.f32.mrb[0].mxu0
        %3643 = vmatprep.mubr.f32.mxu0 0.0
        %v3644 = vand.u32 %v2393, 4294901760
        %v3645 = vsub.f32 %v2393, %v3644
        %v3646 = vand.u32 %v3645, 4294901760
        %3647 = vmatmul.mubr.f32.gmra.mrb[0].mxu0 %v3646
        %v3648 = vpop.f32.mrb[0].mxu0
        %v3649 = vadd.f32 %v3331, %v3648
        %v3650 = vpop.f32.mrb[0].mxu0
        %3651 = vmatprep.mubr.f32.mxu0 0.0
        %v3652 = vand.u32 %v2396, 4294901760
        %v3653 = vsub.f32 %v2396, %v3652
        %v3654 = vand.u32 %v3653, 4294901760
        %3655 = vmatmul.mubr.f32.gmra.mrb[0].mxu0 %v3654
        %v3656 = vpop.f32.mrb[0].mxu0
        %v3657 = vadd.f32 %v3338, %v3656
        %v3658 = vpop.f32.mrb[0].mxu0
        %3659 = vmatprep.mubr.f32.mxu0 0.0
        %v3660 = vand.u32 %v2399, 4294901760
        %v3661 = vsub.f32 %v2399, %v3660
        %v3662 = vand.u32 %v3661, 4294901760
        %3663 = vmatmul.mubr.f32.gmra.mrb[0].mxu0 %v3662
        %v3664 = vpop.f32.mrb[0].mxu0
        %v3665 = vadd.f32 %v3345, %v3664
        %v3666 = vpop.f32.mrb[0].mxu0
        %3667 = vmatprep.mubr.f32.mxu0 0.0
        %v3668 = vand.u32 %v2402, 4294901760
        %v3669 = vsub.f32 %v2402, %v3668
        %v3670 = vand.u32 %v3669, 4294901760
        %3671 = vmatmul.mubr.f32.gmra.mrb[0].mxu0 %v3670
        %v3672 = vpop.f32.mrb[0].mxu0
        %v3673 = vadd.f32 %v3352, %v3672
        %v3674 = vpop.f32.mrb[0].mxu0
        %3675 = vmatprep.mubr.f32.mxu0 0.0
        %v3676 = vand.u32 %v2405, 4294901760
        %v3677 = vsub.f32 %v2405, %v3676
        %v3678 = vand.u32 %v3677, 4294901760
        %3679 = vmatmul.mubr.f32.gmra.mrb[0].mxu0 %v3678
        %v3680 = vpop.f32.mrb[0].mxu0
        %v3681 = vadd.f32 %v3359, %v3680
        %v3682 = vpop.f32.mrb[0].mxu0
        %3683 = vmatprep.mubr.f32.mxu0 0.0
        %v3684 = vand.u32 %v2408, 4294901760
        %v3685 = vsub.f32 %v2408, %v3684
        %v3686 = vand.u32 %v3685, 4294901760
        %3687 = vmatmul.mubr.f32.gmra.mrb[0].mxu0 %v3686
        %v3688 = vpop.f32.mrb[0].mxu0
        %v3689 = vadd.f32 %v3366, %v3688
        %v3690 = vpop.f32.mrb[0].mxu0
        %3691 = vmatprep.mubr.f32.mxu0 0.0
        %v3692 = vand.u32 %v2411, 4294901760
        %v3693 = vsub.f32 %v2411, %v3692
        %v3694 = vand.u32 %v3693, 4294901760
        %3695 = vmatmul.mubr.f32.gmra.mrb[0].mxu0 %v3694
        %v3696 = vpop.f32.mrb[0].mxu0
        %v3697 = vadd.f32 %v3373, %v3696
        %v3698 = vpop.f32.mrb[0].mxu0
        %3699 = vmatprep.mubr.f32.mxu0 0.0
        %v3700 = vand.u32 %v2414, 4294901760
        %v3701 = vsub.f32 %v2414, %v3700
        %v3702 = vand.u32 %v3701, 4294901760
        %3703 = vmatmul.mubr.f32.gmra.mrb[0].mxu0 %v3702
        %v3704 = vpop.f32.mrb[0].mxu0
        %v3705 = vadd.f32 %v3380, %v3704
        %v3706 = vpop.f32.mrb[0].mxu0
        %3707 = vdwg.mxu0
        %3708 = vmatprep.subr.mxu0 0.0
        %v3709 = vand.u32 %v2308, 4294901760
        %v3710 = vsub.f32 %v2308, %v3709
        %v3711 = vand.u32 %v3710, 4294901760
        %3712 = vmatpush1.msra.mxu0 %v3711
        %3713 = vmatprep.subr.mxu0 0.0
        %v3714 = vand.u32 %v2309, 4294901760
        %v3715 = vsub.f32 %v2309, %v3714
        %v3716 = vand.u32 %v3715, 4294901760
        %3717 = vmatpush1.msra.mxu0 %v3716
        %3718 = vmatprep.subr.mxu0 0.0
        %v3719 = vand.u32 %v2310, 4294901760
        %v3720 = vsub.f32 %v2310, %v3719
        %v3721 = vand.u32 %v3720, 4294901760
        %3722 = vmatpush1.msra.mxu0 %v3721
        %3723 = vmatprep.subr.mxu0 0.0
        %v3724 = vand.u32 %v2418, 4294901760
        %v3725 = vsub.f32 %v2418, %v3724
        %v3726 = vand.u32 %v3725, 4294901760
        %3727 = vmatpush1.msra.mxu0 %v3726
        %3728 = vmatprep.subr.mxu0 0.0
        %3729 = vmatpush1.msra.mxu0 0.0
        %3730 = vmatprep.subr.mxu0 0.0
        %3731 = vmatpush1.msra.mxu0 0.0
        %3732 = vmatprep.subr.mxu0 0.0
        %3733 = vmatpush1.msra.mxu0 0.0
        %3734 = vmatprep.subr.mxu0 0.0
        %3735 = vmatpush1.msra.mxu0 0.0
        %3736 = vmatprep.subr.mxu0 0.0
        %3737 = vmatpush1.msra.mxu0 0.0
        %3738 = vmatprep.subr.mxu0 0.0
        %3739 = vmatpush1.msra.mxu0 0.0
        %3740 = vmatprep.subr.mxu0 0.0
        %3741 = vmatpush1.msra.mxu0 0.0
        %3742 = vmatprep.subr.mxu0 0.0
        %3743 = vmatpush1.msra.mxu0 0.0
        %3744 = vmatprep.subr.mxu0 0.0
        %3745 = vmatpush1.msra.mxu0 0.0
        %3746 = vmatprep.subr.mxu0 0.0
        %3747 = vmatpush1.msra.mxu0 0.0
        %3748 = vmatprep.subr.mxu0 0.0
        %3749 = vmatpush1.msra.mxu0 0.0
        %3750 = vmatprep.subr.mxu0 0.0
        %3751 = vmatpush1.msra.mxu0 0.0
        %3752 = vmatprep.subr.mxu0 0.0
        %3753 = vmatpush1.msra.mxu0 0.0
        %3754 = vmatprep.subr.mxu0 0.0
        %3755 = vmatpush1.msra.mxu0 0.0
        %3756 = vmatprep.subr.mxu0 0.0
        %3757 = vmatpush1.msra.mxu0 0.0
        %3758 = vmatprep.subr.mxu0 0.0
        %3759 = vmatpush1.msra.mxu0 0.0
        %3760 = vmatprep.subr.mxu0 0.0
        %3761 = vmatpush1.msra.mxu0 0.0
        %3762 = vmatprep.subr.mxu0 0.0
        %3763 = vmatpush1.msra.mxu0 0.0
        %3764 = vmatprep.subr.mxu0 0.0
        %3765 = vmatpush1.msra.mxu0 0.0
        %3766 = vmatprep.subr.mxu0 0.0
        %3767 = vmatpush1.msra.mxu0 0.0
        %3768 = vmatprep.subr.mxu0 0.0
        %3769 = vmatpush1.msra.mxu0 0.0
        %3770 = vmatprep.subr.mxu0 0.0
        %3771 = vmatpush1.msra.mxu0 0.0
        %3772 = vmatprep.subr.mxu0 0.0
        %3773 = vmatpush1.msra.mxu0 0.0
        %3774 = vmatprep.subr.mxu0 0.0
        %3775 = vmatpush1.msra.mxu0 0.0
        %3776 = vmatprep.subr.mxu0 0.0
        %3777 = vmatpush1.msra.mxu0 0.0
        %3778 = vmatprep.subr.mxu0 0.0
        %3779 = vmatpush1.msra.mxu0 0.0
        %3780 = vmatprep.subr.mxu0 0.0
        %3781 = vmatpush1.msra.mxu0 0.0
        %3782 = vmatprep.subr.mxu0 0.0
        %3783 = vmatpush1.msra.mxu0 0.0
        %3784 = vmatprep.mubr.f32.mxu0 0.0
        %v3785 = vand.u32 %v2321, 4294901760
        %3786 = vmatmul.mubr.f32.gmra.mrb[0].mxu0 %v3785
        %v3787 = vpop.f32.mrb[0].mxu0
        %v3788 = vadd.f32 %v3457, %v3787
        %v3789 = vpop.f32.mrb[0].mxu0
        %3790 = vmatprep.mubr.f32.mxu0 0.0
        %v3791 = vand.u32 %v2324, 4294901760
        %3792 = vmatmul.mubr.f32.gmra.mrb[0].mxu0 %v3791
        %v3793 = vpop.f32.mrb[0].mxu0
        %v3794 = vadd.f32 %v3465, %v3793
        %v3795 = vpop.f32.mrb[0].mxu0
        %3796 = vmatprep.mubr.f32.mxu0 0.0
        %v3797 = vand.u32 %v2327, 4294901760
        %3798 = vmatmul.mubr.f32.gmra.mrb[0].mxu0 %v3797
        %v3799 = vpop.f32.mrb[0].mxu0
        %v3800 = vadd.f32 %v3473, %v3799
        %v3801 = vpop.f32.mrb[0].mxu0
        %3802 = vmatprep.mubr.f32.mxu0 0.0
        %v3803 = vand.u32 %v2330, 4294901760
        %3804 = vmatmul.mubr.f32.gmra.mrb[0].mxu0 %v3803
        %v3805 = vpop.f32.mrb[0].mxu0
        %v3806 = vadd.f32 %v3481, %v3805
        %v3807 = vpop.f32.mrb[0].mxu0
        %3808 = vmatprep.mubr.f32.mxu0 0.0
        %v3809 = vand.u32 %v2333, 4294901760
        %3810 = vmatmul.mubr.f32.gmra.mrb[0].mxu0 %v3809
        %v3811 = vpop.f32.mrb[0].mxu0
        %v3812 = vadd.f32 %v3489, %v3811
        %v3813 = vpop.f32.mrb[0].mxu0
        %3814 = vmatprep.mubr.f32.mxu0 0.0
        %v3815 = vand.u32 %v2336, 4294901760
        %3816 = vmatmul.mubr.f32.gmra.mrb[0].mxu0 %v3815
        %v3817 = vpop.f32.mrb[0].mxu0
        %v3818 = vadd.f32 %v3497, %v3817
        %v3819 = vpop.f32.mrb[0].mxu0
        %3820 = vmatprep.mubr.f32.mxu0 0.0
        %v3821 = vand.u32 %v2339, 4294901760
        %3822 = vmatmul.mubr.f32.gmra.mrb[0].mxu0 %v3821
        %v3823 = vpop.f32.mrb[0].mxu0
        %v3824 = vadd.f32 %v3505, %v3823
        %v3825 = vpop.f32.mrb[0].mxu0
        %3826 = vmatprep.mubr.f32.mxu0 0.0
        %v3827 = vand.u32 %v2342, 4294901760
        %3828 = vmatmul.mubr.f32.gmra.mrb[0].mxu0 %v3827
        %v3829 = vpop.f32.mrb[0].mxu0
        %v3830 = vadd.f32 %v3513, %v3829
        %v3831 = vpop.f32.mrb[0].mxu0
        %3832 = vmatprep.mubr.f32.mxu0 0.0
        %v3833 = vand.u32 %v2345, 4294901760
        %3834 = vmatmul.mubr.f32.gmra.mrb[0].mxu0 %v3833
        %v3835 = vpop.f32.mrb[0].mxu0
        %v3836 = vadd.f32 %v3521, %v3835
        %v3837 = vpop.f32.mrb[0].mxu0
        %3838 = vmatprep.mubr.f32.mxu0 0.0
        %v3839 = vand.u32 %v2348, 4294901760
        %3840 = vmatmul.mubr.f32.gmra.mrb[0].mxu0 %v3839
        %v3841 = vpop.f32.mrb[0].mxu0
        %v3842 = vadd.f32 %v3529, %v3841
        %v3843 = vpop.f32.mrb[0].mxu0
        %3844 = vmatprep.mubr.f32.mxu0 0.0
        %v3845 = vand.u32 %v2351, 4294901760
        %3846 = vmatmul.mubr.f32.gmra.mrb[0].mxu0 %v3845
        %v3847 = vpop.f32.mrb[0].mxu0
        %v3848 = vadd.f32 %v3537, %v3847
        %v3849 = vpop.f32.mrb[0].mxu0
        %3850 = vmatprep.mubr.f32.mxu0 0.0
        %v3851 = vand.u32 %v2354, 4294901760
        %3852 = vmatmul.mubr.f32.gmra.mrb[0].mxu0 %v3851
        %v3853 = vpop.f32.mrb[0].mxu0
        %v3854 = vadd.f32 %v3545, %v3853
        %v3855 = vpop.f32.mrb[0].mxu0
        %3856 = vmatprep.mubr.f32.mxu0 0.0
        %v3857 = vand.u32 %v2357, 4294901760
        %3858 = vmatmul.mubr.f32.gmra.mrb[0].mxu0 %v3857
        %v3859 = vpop.f32.mrb[0].mxu0
        %v3860 = vadd.f32 %v3553, %v3859
        %v3861 = vpop.f32.mrb[0].mxu0
        %3862 = vmatprep.mubr.f32.mxu0 0.0
        %v3863 = vand.u32 %v2360, 4294901760
        %3864 = vmatmul.mubr.f32.gmra.mrb[0].mxu0 %v3863
        %v3865 = vpop.f32.mrb[0].mxu0
        %v3866 = vadd.f32 %v3561, %v3865
        %v3867 = vpop.f32.mrb[0].mxu0
        %3868 = vmatprep.mubr.f32.mxu0 0.0
        %v3869 = vand.u32 %v2363, 4294901760
        %3870 = vmatmul.mubr.f32.gmra.mrb[0].mxu0 %v3869
        %v3871 = vpop.f32.mrb[0].mxu0
        %v3872 = vadd.f32 %v3569, %v3871
        %v3873 = vpop.f32.mrb[0].mxu0
        %3874 = vmatprep.mubr.f32.mxu0 0.0
        %v3875 = vand.u32 %v2366, 4294901760
        %3876 = vmatmul.mubr.f32.gmra.mrb[0].mxu0 %v3875
        %v3877 = vpop.f32.mrb[0].mxu0
        %v3878 = vadd.f32 %v3577, %v3877
        %v3879 = vpop.f32.mrb[0].mxu0
        %3880 = vmatprep.mubr.f32.mxu0 0.0
        %v3881 = vand.u32 %v2369, 4294901760
        %3882 = vmatmul.mubr.f32.gmra.mrb[0].mxu0 %v3881
        %v3883 = vpop.f32.mrb[0].mxu0
        %v3884 = vadd.f32 %v3585, %v3883
        %v3885 = vpop.f32.mrb[0].mxu0
        %3886 = vmatprep.mubr.f32.mxu0 0.0
        %v3887 = vand.u32 %v2372, 4294901760
        %3888 = vmatmul.mubr.f32.gmra.mrb[0].mxu0 %v3887
        %v3889 = vpop.f32.mrb[0].mxu0
        %v3890 = vadd.f32 %v3593, %v3889
        %v3891 = vpop.f32.mrb[0].mxu0
        %3892 = vmatprep.mubr.f32.mxu0 0.0
        %v3893 = vand.u32 %v2375, 4294901760
        %3894 = vmatmul.mubr.f32.gmra.mrb[0].mxu0 %v3893
        %v3895 = vpop.f32.mrb[0].mxu0
        %v3896 = vadd.f32 %v3601, %v3895
        %v3897 = vpop.f32.mrb[0].mxu0
        %3898 = vmatprep.mubr.f32.mxu0 0.0
        %v3899 = vand.u32 %v2378, 4294901760
        %3900 = vmatmul.mubr.f32.gmra.mrb[0].mxu0 %v3899
        %v3901 = vpop.f32.mrb[0].mxu0
        %v3902 = vadd.f32 %v3609, %v3901
        %v3903 = vpop.f32.mrb[0].mxu0
        %3904 = vmatprep.mubr.f32.mxu0 0.0
        %v3905 = vand.u32 %v2381, 4294901760
        %3906 = vmatmul.mubr.f32.gmra.mrb[0].mxu0 %v3905
        %v3907 = vpop.f32.mrb[0].mxu0
        %v3908 = vadd.f32 %v3617, %v3907
        %v3909 = vpop.f32.mrb[0].mxu0
        %3910 = vmatprep.mubr.f32.mxu0 0.0
        %v3911 = vand.u32 %v2384, 4294901760
        %3912 = vmatmul.mubr.f32.gmra.mrb[0].mxu0 %v3911
        %v3913 = vpop.f32.mrb[0].mxu0
        %v3914 = vadd.f32 %v3625, %v3913
        %v3915 = vpop.f32.mrb[0].mxu0
        %3916 = vmatprep.mubr.f32.mxu0 0.0
        %v3917 = vand.u32 %v2387, 4294901760
        %3918 = vmatmul.mubr.f32.gmra.mrb[0].mxu0 %v3917
        %v3919 = vpop.f32.mrb[0].mxu0
        %v3920 = vadd.f32 %v3633, %v3919
        %v3921 = vpop.f32.mrb[0].mxu0
        %3922 = vmatprep.mubr.f32.mxu0 0.0
        %v3923 = vand.u32 %v2390, 4294901760
        %3924 = vmatmul.mubr.f32.gmra.mrb[0].mxu0 %v3923
        %v3925 = vpop.f32.mrb[0].mxu0
        %v3926 = vadd.f32 %v3641, %v3925
        %v3927 = vpop.f32.mrb[0].mxu0
        %3928 = vmatprep.mubr.f32.mxu0 0.0
        %v3929 = vand.u32 %v2393, 4294901760
        %3930 = vmatmul.mubr.f32.gmra.mrb[0].mxu0 %v3929
        %v3931 = vpop.f32.mrb[0].mxu0
        %v3932 = vadd.f32 %v3649, %v3931
        %v3933 = vpop.f32.mrb[0].mxu0
        %3934 = vmatprep.mubr.f32.mxu0 0.0
        %v3935 = vand.u32 %v2396, 4294901760
        %3936 = vmatmul.mubr.f32.gmra.mrb[0].mxu0 %v3935
        %v3937 = vpop.f32.mrb[0].mxu0
        %v3938 = vadd.f32 %v3657, %v3937
        %v3939 = vpop.f32.mrb[0].mxu0
        %3940 = vmatprep.mubr.f32.mxu0 0.0
        %v3941 = vand.u32 %v2399, 4294901760
        %3942 = vmatmul.mubr.f32.gmra.mrb[0].mxu0 %v3941
        %v3943 = vpop.f32.mrb[0].mxu0
        %v3944 = vadd.f32 %v3665, %v3943
        %v3945 = vpop.f32.mrb[0].mxu0
        %3946 = vmatprep.mubr.f32.mxu0 0.0
        %v3947 = vand.u32 %v2402, 4294901760
        %3948 = vmatmul.mubr.f32.gmra.mrb[0].mxu0 %v3947
        %v3949 = vpop.f32.mrb[0].mxu0
        %v3950 = vadd.f32 %v3673, %v3949
        %v3951 = vpop.f32.mrb[0].mxu0
        %3952 = vmatprep.mubr.f32.mxu0 0.0
        %v3953 = vand.u32 %v2405, 4294901760
        %3954 = vmatmul.mubr.f32.gmra.mrb[0].mxu0 %v3953
        %v3955 = vpop.f32.mrb[0].mxu0
        %v3956 = vadd.f32 %v3681, %v3955
        %v3957 = vpop.f32.mrb[0].mxu0
        %3958 = vmatprep.mubr.f32.mxu0 0.0
        %v3959 = vand.u32 %v2408, 4294901760
        %3960 = vmatmul.mubr.f32.gmra.mrb[0].mxu0 %v3959
        %v3961 = vpop.f32.mrb[0].mxu0
        %v3962 = vadd.f32 %v3689, %v3961
        %v3963 = vpop.f32.mrb[0].mxu0
        %3964 = vmatprep.mubr.f32.mxu0 0.0
        %v3965 = vand.u32 %v2411, 4294901760
        %3966 = vmatmul.mubr.f32.gmra.mrb[0].mxu0 %v3965
        %v3967 = vpop.f32.mrb[0].mxu0
        %v3968 = vadd.f32 %v3697, %v3967
        %v3969 = vpop.f32.mrb[0].mxu0
        %3970 = vmatprep.mubr.f32.mxu0 0.0
        %v3971 = vand.u32 %v2414, 4294901760
        %3972 = vmatmul.mubr.f32.gmra.mrb[0].mxu0 %v3971
        %v3973 = vpop.f32.mrb[0].mxu0
        %v3974 = vadd.f32 %v3705, %v3973
        %v3975 = vpop.f32.mrb[0].mxu0
        %3976 = vdwg.mxu0
        %3977 = vmatprep.subr.mxu0 0.0
        %v3978 = vand.u32 %v2308, 4294901760
        %3979 = vmatpush1.msra.mxu0 %v3978
        %3980 = vmatprep.subr.mxu0 0.0
        %v3981 = vand.u32 %v2309, 4294901760
        %3982 = vmatpush1.msra.mxu0 %v3981
        %3983 = vmatprep.subr.mxu0 0.0
        %v3984 = vand.u32 %v2310, 4294901760
        %3985 = vmatpush1.msra.mxu0 %v3984
        %3986 = vmatprep.subr.mxu0 0.0
        %v3987 = vand.u32 %v2418, 4294901760
        %3988 = vmatpush1.msra.mxu0 %v3987
        %3989 = vmatprep.subr.mxu0 0.0
        %3990 = vmatpush1.msra.mxu0 0.0
        %3991 = vmatprep.subr.mxu0 0.0
        %3992 = vmatpush1.msra.mxu0 0.0
        %3993 = vmatprep.subr.mxu0 0.0
        %3994 = vmatpush1.msra.mxu0 0.0
        %3995 = vmatprep.subr.mxu0 0.0
        %3996 = vmatpush1.msra.mxu0 0.0
        %3997 = vmatprep.subr.mxu0 0.0
        %3998 = vmatpush1.msra.mxu0 0.0
        %3999 = vmatprep.subr.mxu0 0.0
        %4000 = vmatpush1.msra.mxu0 0.0
        %4001 = vmatprep.subr.mxu0 0.0
        %4002 = vmatpush1.msra.mxu0 0.0
        %4003 = vmatprep.subr.mxu0 0.0
        %4004 = vmatpush1.msra.mxu0 0.0
        %4005 = vmatprep.subr.mxu0 0.0
        %4006 = vmatpush1.msra.mxu0 0.0
        %4007 = vmatprep.subr.mxu0 0.0
        %4008 = vmatpush1.msra.mxu0 0.0
        %4009 = vmatprep.subr.mxu0 0.0
        %4010 = vmatpush1.msra.mxu0 0.0
        %4011 = vmatprep.subr.mxu0 0.0
        %4012 = vmatpush1.msra.mxu0 0.0
        %4013 = vmatprep.subr.mxu0 0.0
        %4014 = vmatpush1.msra.mxu0 0.0
        %4015 = vmatprep.subr.mxu0 0.0
        %4016 = vmatpush1.msra.mxu0 0.0
        %4017 = vmatprep.subr.mxu0 0.0
        %4018 = vmatpush1.msra.mxu0 0.0
        %4019 = vmatprep.subr.mxu0 0.0
        %4020 = vmatpush1.msra.mxu0 0.0
        %4021 = vmatprep.subr.mxu0 0.0
        %4022 = vmatpush1.msra.mxu0 0.0
        %4023 = vmatprep.subr.mxu0 0.0
        %4024 = vmatpush1.msra.mxu0 0.0
        %4025 = vmatprep.subr.mxu0 0.0
        %4026 = vmatpush1.msra.mxu0 0.0
        %4027 = vmatprep.subr.mxu0 0.0
        %4028 = vmatpush1.msra.mxu0 0.0
        %4029 = vmatprep.subr.mxu0 0.0
        %4030 = vmatpush1.msra.mxu0 0.0
        %4031 = vmatprep.subr.mxu0 0.0
        %4032 = vmatpush1.msra.mxu0 0.0
        %4033 = vmatprep.subr.mxu0 0.0
        %4034 = vmatpush1.msra.mxu0 0.0
        %4035 = vmatprep.subr.mxu0 0.0
        %4036 = vmatpush1.msra.mxu0 0.0
        %4037 = vmatprep.subr.mxu0 0.0
        %4038 = vmatpush1.msra.mxu0 0.0
        %4039 = vmatprep.subr.mxu0 0.0
        %4040 = vmatpush1.msra.mxu0 0.0
        %4041 = vmatprep.subr.mxu0 0.0
        %4042 = vmatpush1.msra.mxu0 0.0
        %4043 = vmatprep.subr.mxu0 0.0
        %4044 = vmatpush1.msra.mxu0 0.0
        %4045 = vmatprep.mubr.f32.mxu0 0.0
        %v4046 = vand.u32 %v2321, 4294901760
        %4047 = vmatmul.mubr.f32.gmra.mrb[0].mxu0 %v4046
        %v4048 = vpop.f32.mrb[0].mxu0
        %v4049 = vadd.f32 %v3788, %v4048
        %v4050 = vpop.f32.mrb[0].mxu0
        %4051 = vmatprep.mubr.f32.mxu0 0.0
        %v4052 = vand.u32 %v2324, 4294901760
        %4053 = vmatmul.mubr.f32.gmra.mrb[0].mxu0 %v4052
        %v4054 = vpop.f32.mrb[0].mxu0
        %v4055 = vadd.f32 %v3794, %v4054
        %v4056 = vpop.f32.mrb[0].mxu0
        %4057 = vmatprep.mubr.f32.mxu0 0.0
        %v4058 = vand.u32 %v2327, 4294901760
        %4059 = vmatmul.mubr.f32.gmra.mrb[0].mxu0 %v4058
        %v4060 = vpop.f32.mrb[0].mxu0
        %v4061 = vadd.f32 %v3800, %v4060
        %v4062 = vpop.f32.mrb[0].mxu0
        %4063 = vmatprep.mubr.f32.mxu0 0.0
        %v4064 = vand.u32 %v2330, 4294901760
        %4065 = vmatmul.mubr.f32.gmra.mrb[0].mxu0 %v4064
        %v4066 = vpop.f32.mrb[0].mxu0
        %v4067 = vadd.f32 %v3806, %v4066
        %v4068 = vpop.f32.mrb[0].mxu0
        %4069 = vmatprep.mubr.f32.mxu0 0.0
        %v4070 = vand.u32 %v2333, 4294901760
        %4071 = vmatmul.mubr.f32.gmra.mrb[0].mxu0 %v4070
        %v4072 = vpop.f32.mrb[0].mxu0
        %v4073 = vadd.f32 %v3812, %v4072
        %v4074 = vpop.f32.mrb[0].mxu0
        %4075 = vmatprep.mubr.f32.mxu0 0.0
        %v4076 = vand.u32 %v2336, 4294901760
        %4077 = vmatmul.mubr.f32.gmra.mrb[0].mxu0 %v4076
        %v4078 = vpop.f32.mrb[0].mxu0
        %v4079 = vadd.f32 %v3818, %v4078
        %v4080 = vpop.f32.mrb[0].mxu0
        %4081 = vmatprep.mubr.f32.mxu0 0.0
        %v4082 = vand.u32 %v2339, 4294901760
        %4083 = vmatmul.mubr.f32.gmra.mrb[0].mxu0 %v4082
        %v4084 = vpop.f32.mrb[0].mxu0
        %v4085 = vadd.f32 %v3824, %v4084
        %v4086 = vpop.f32.mrb[0].mxu0
        %4087 = vmatprep.mubr.f32.mxu0 0.0
        %v4088 = vand.u32 %v2342, 4294901760
        %4089 = vmatmul.mubr.f32.gmra.mrb[0].mxu0 %v4088
        %v4090 = vpop.f32.mrb[0].mxu0
        %v4091 = vadd.f32 %v3830, %v4090
        %v4092 = vpop.f32.mrb[0].mxu0
        %4093 = vmatprep.mubr.f32.mxu0 0.0
        %v4094 = vand.u32 %v2345, 4294901760
        %4095 = vmatmul.mubr.f32.gmra.mrb[0].mxu0 %v4094
        %v4096 = vpop.f32.mrb[0].mxu0
        %v4097 = vadd.f32 %v3836, %v4096
        %v4098 = vpop.f32.mrb[0].mxu0
        %4099 = vmatprep.mubr.f32.mxu0 0.0
        %v4100 = vand.u32 %v2348, 4294901760
        %4101 = vmatmul.mubr.f32.gmra.mrb[0].mxu0 %v4100
        %v4102 = vpop.f32.mrb[0].mxu0
        %v4103 = vadd.f32 %v3842, %v4102
        %v4104 = vpop.f32.mrb[0].mxu0
        %4105 = vmatprep.mubr.f32.mxu0 0.0
        %v4106 = vand.u32 %v2351, 4294901760
        %4107 = vmatmul.mubr.f32.gmra.mrb[0].mxu0 %v4106
        %v4108 = vpop.f32.mrb[0].mxu0
        %v4109 = vadd.f32 %v3848, %v4108
        %v4110 = vpop.f32.mrb[0].mxu0
        %4111 = vmatprep.mubr.f32.mxu0 0.0
        %v4112 = vand.u32 %v2354, 4294901760
        %4113 = vmatmul.mubr.f32.gmra.mrb[0].mxu0 %v4112
        %v4114 = vpop.f32.mrb[0].mxu0
        %v4115 = vadd.f32 %v3854, %v4114
        %v4116 = vpop.f32.mrb[0].mxu0
        %4117 = vmatprep.mubr.f32.mxu0 0.0
        %v4118 = vand.u32 %v2357, 4294901760
        %4119 = vmatmul.mubr.f32.gmra.mrb[0].mxu0 %v4118
        %v4120 = vpop.f32.mrb[0].mxu0
        %v4121 = vadd.f32 %v3860, %v4120
        %v4122 = vpop.f32.mrb[0].mxu0
        %4123 = vmatprep.mubr.f32.mxu0 0.0
        %v4124 = vand.u32 %v2360, 4294901760
        %4125 = vmatmul.mubr.f32.gmra.mrb[0].mxu0 %v4124
        %v4126 = vpop.f32.mrb[0].mxu0
        %v4127 = vadd.f32 %v3866, %v4126
        %v4128 = vpop.f32.mrb[0].mxu0
        %4129 = vmatprep.mubr.f32.mxu0 0.0
        %v4130 = vand.u32 %v2363, 4294901760
        %4131 = vmatmul.mubr.f32.gmra.mrb[0].mxu0 %v4130
        %v4132 = vpop.f32.mrb[0].mxu0
        %v4133 = vadd.f32 %v3872, %v4132
        %v4134 = vpop.f32.mrb[0].mxu0
        %4135 = vmatprep.mubr.f32.mxu0 0.0
        %v4136 = vand.u32 %v2366, 4294901760
        %4137 = vmatmul.mubr.f32.gmra.mrb[0].mxu0 %v4136
        %v4138 = vpop.f32.mrb[0].mxu0
        %v4139 = vadd.f32 %v3878, %v4138
        %v4140 = vpop.f32.mrb[0].mxu0
        %4141 = vmatprep.mubr.f32.mxu0 0.0
        %v4142 = vand.u32 %v2369, 4294901760
        %4143 = vmatmul.mubr.f32.gmra.mrb[0].mxu0 %v4142
        %v4144 = vpop.f32.mrb[0].mxu0
        %v4145 = vadd.f32 %v3884, %v4144
        %v4146 = vpop.f32.mrb[0].mxu0
        %4147 = vmatprep.mubr.f32.mxu0 0.0
        %v4148 = vand.u32 %v2372, 4294901760
        %4149 = vmatmul.mubr.f32.gmra.mrb[0].mxu0 %v4148
        %v4150 = vpop.f32.mrb[0].mxu0
        %v4151 = vadd.f32 %v3890, %v4150
        %v4152 = vpop.f32.mrb[0].mxu0
        %4153 = vmatprep.mubr.f32.mxu0 0.0
        %v4154 = vand.u32 %v2375, 4294901760
        %4155 = vmatmul.mubr.f32.gmra.mrb[0].mxu0 %v4154
        %v4156 = vpop.f32.mrb[0].mxu0
        %v4157 = vadd.f32 %v3896, %v4156
        %v4158 = vpop.f32.mrb[0].mxu0
        %4159 = vmatprep.mubr.f32.mxu0 0.0
        %v4160 = vand.u32 %v2378, 4294901760
        %4161 = vmatmul.mubr.f32.gmra.mrb[0].mxu0 %v4160
        %v4162 = vpop.f32.mrb[0].mxu0
        %v4163 = vadd.f32 %v3902, %v4162
        %v4164 = vpop.f32.mrb[0].mxu0
        %4165 = vmatprep.mubr.f32.mxu0 0.0
        %v4166 = vand.u32 %v2381, 4294901760
        %4167 = vmatmul.mubr.f32.gmra.mrb[0].mxu0 %v4166
        %v4168 = vpop.f32.mrb[0].mxu0
        %v4169 = vadd.f32 %v3908, %v4168
        %v4170 = vpop.f32.mrb[0].mxu0
        %4171 = vmatprep.mubr.f32.mxu0 0.0
        %v4172 = vand.u32 %v2384, 4294901760
        %4173 = vmatmul.mubr.f32.gmra.mrb[0].mxu0 %v4172
        %v4174 = vpop.f32.mrb[0].mxu0
        %v4175 = vadd.f32 %v3914, %v4174
        %v4176 = vpop.f32.mrb[0].mxu0
        %4177 = vmatprep.mubr.f32.mxu0 0.0
        %v4178 = vand.u32 %v2387, 4294901760
        %4179 = vmatmul.mubr.f32.gmra.mrb[0].mxu0 %v4178
        %v4180 = vpop.f32.mrb[0].mxu0
        %v4181 = vadd.f32 %v3920, %v4180
        %v4182 = vpop.f32.mrb[0].mxu0
        %4183 = vmatprep.mubr.f32.mxu0 0.0
        %v4184 = vand.u32 %v2390, 4294901760
        %4185 = vmatmul.mubr.f32.gmra.mrb[0].mxu0 %v4184
        %v4186 = vpop.f32.mrb[0].mxu0
        %v4187 = vadd.f32 %v3926, %v4186
        %v4188 = vpop.f32.mrb[0].mxu0
        %4189 = vmatprep.mubr.f32.mxu0 0.0
        %v4190 = vand.u32 %v2393, 4294901760
        %4191 = vmatmul.mubr.f32.gmra.mrb[0].mxu0 %v4190
        %v4192 = vpop.f32.mrb[0].mxu0
        %v4193 = vadd.f32 %v3932, %v4192
        %v4194 = vpop.f32.mrb[0].mxu0
        %4195 = vmatprep.mubr.f32.mxu0 0.0
        %v4196 = vand.u32 %v2396, 4294901760
        %4197 = vmatmul.mubr.f32.gmra.mrb[0].mxu0 %v4196
        %v4198 = vpop.f32.mrb[0].mxu0
        %v4199 = vadd.f32 %v3938, %v4198
        %v4200 = vpop.f32.mrb[0].mxu0
        %4201 = vmatprep.mubr.f32.mxu0 0.0
        %v4202 = vand.u32 %v2399, 4294901760
        %4203 = vmatmul.mubr.f32.gmra.mrb[0].mxu0 %v4202
        %v4204 = vpop.f32.mrb[0].mxu0
        %v4205 = vadd.f32 %v3944, %v4204
        %v4206 = vpop.f32.mrb[0].mxu0
        %4207 = vmatprep.mubr.f32.mxu0 0.0
        %v4208 = vand.u32 %v2402, 4294901760
        %4209 = vmatmul.mubr.f32.gmra.mrb[0].mxu0 %v4208
        %v4210 = vpop.f32.mrb[0].mxu0
        %v4211 = vadd.f32 %v3950, %v4210
        %v4212 = vpop.f32.mrb[0].mxu0
        %4213 = vmatprep.mubr.f32.mxu0 0.0
        %v4214 = vand.u32 %v2405, 4294901760
        %4215 = vmatmul.mubr.f32.gmra.mrb[0].mxu0 %v4214
        %v4216 = vpop.f32.mrb[0].mxu0
        %v4217 = vadd.f32 %v3956, %v4216
        %v4218 = vpop.f32.mrb[0].mxu0
        %4219 = vmatprep.mubr.f32.mxu0 0.0
        %v4220 = vand.u32 %v2408, 4294901760
        %4221 = vmatmul.mubr.f32.gmra.mrb[0].mxu0 %v4220
        %v4222 = vpop.f32.mrb[0].mxu0
        %v4223 = vadd.f32 %v3962, %v4222
        %v4224 = vpop.f32.mrb[0].mxu0
        %4225 = vmatprep.mubr.f32.mxu0 0.0
        %v4226 = vand.u32 %v2411, 4294901760
        %4227 = vmatmul.mubr.f32.gmra.mrb[0].mxu0 %v4226
        %v4228 = vpop.f32.mrb[0].mxu0
        %v4229 = vadd.f32 %v3968, %v4228
        %v4230 = vpop.f32.mrb[0].mxu0
        %4231 = vmatprep.mubr.f32.mxu0 0.0
        %v4232 = vand.u32 %v2414, 4294901760
        %4233 = vmatmul.mubr.f32.gmra.mrb[0].mxu0 %v4232
        %v4234 = vpop.f32.mrb[0].mxu0
        %v4235 = vadd.f32 %v3974, %v4234
        %v4236 = vpop.f32.mrb[0].mxu0
        %4237 = vdwg.mxu0
        %v4238 = vmax.f32 %v4049, 0.0
        %v4239 = vmax.f32 %v4055, 0.0
        %v4240 = vmax.f32 %v4061, 0.0
        %v4241 = vmax.f32 %v4067, 0.0
        %v4242 = vmax.f32 %v4073, 0.0
        %v4243 = vmax.f32 %v4079, 0.0
        %v4244 = vmax.f32 %v4085, 0.0
        %v4245 = vmax.f32 %v4091, 0.0
        %v4246 = vmax.f32 %v4097, 0.0
        %v4247 = vmax.f32 %v4103, 0.0
        %v4248 = vmax.f32 %v4109, 0.0
        %v4249 = vmax.f32 %v4115, 0.0
        %v4250 = vmax.f32 %v4121, 0.0
        %v4251 = vmax.f32 %v4127, 0.0
        %v4252 = vmax.f32 %v4133, 0.0
        %v4253 = vmax.f32 %v4139, 0.0
        %v4254 = vmax.f32 %v4145, 0.0
        %v4255 = vmax.f32 %v4151, 0.0
        %v4256 = vmax.f32 %v4157, 0.0
        %v4257 = vmax.f32 %v4163, 0.0
        %v4258 = vmax.f32 %v4169, 0.0
        %v4259 = vmax.f32 %v4175, 0.0
        %v4260 = vmax.f32 %v4181, 0.0
        %v4261 = vmax.f32 %v4187, 0.0
        %v4262 = vmax.f32 %v4193, 0.0
        %v4263 = vmax.f32 %v4199, 0.0
        %v4264 = vmax.f32 %v4205, 0.0
        %v4265 = vmax.f32 %v4211, 0.0
        %v4266 = vmax.f32 %v4217, 0.0
        %v4267 = vmax.f32 %v4223, 0.0
        %v4268 = vmax.f32 %v4229, 0.0
        %v4269 = vmax.f32 %v4235, 0.0
        %v4270 = vld [vmem:[%s5] sm:$0xff]
        %v4271 = vld [vmem:[%s5 + $0x8] sm:$0xff]
        %v4272 = vld [vmem:[%s5 + $0x10] sm:$0xf]
        %v4273 = vld [vmem:[%s6] sm:$0x1]
        %v4275 = vlaneseq
        %v4276 = vshrl.u32 %v4275, 7
        %v4277 = vsub.s32 0, %v4276
        %v4278 = vrot.slane %v4273, %v4277
        %vm4280 = vcmask 162816
        %v4282 = vsel %vm4280, %v4238, 0
        %v4285 = vsel %vm4280, %v4239, 0
        %v4288 = vsel %vm4280, %v4240, 0
        %v4291 = vsel %vm4280, %v4241, 0
        %v4294 = vsel %vm4280, %v4242, 0
        %v4297 = vsel %vm4280, %v4243, 0
        %v4300 = vsel %vm4280, %v4244, 0
        %v4303 = vsel %vm4280, %v4245, 0
        %v4306 = vsel %vm4280, %v4246, 0
        %v4309 = vsel %vm4280, %v4247, 0
        %v4312 = vsel %vm4280, %v4248, 0
        %v4315 = vsel %vm4280, %v4249, 0
        %v4318 = vsel %vm4280, %v4250, 0
        %v4321 = vsel %vm4280, %v4251, 0
        %v4324 = vsel %vm4280, %v4252, 0
        %v4327 = vsel %vm4280, %v4253, 0
        %v4330 = vsel %vm4280, %v4254, 0
        %v4333 = vsel %vm4280, %v4255, 0
        %v4336 = vsel %vm4280, %v4256, 0
        %v4339 = vsel %vm4280, %v4257, 0
        %v4342 = vsel %vm4280, %v4258, 0
        %v4345 = vsel %vm4280, %v4259, 0
        %v4348 = vsel %vm4280, %v4260, 0
        %v4351 = vsel %vm4280, %v4261, 0
        %v4354 = vsel %vm4280, %v4262, 0
        %v4357 = vsel %vm4280, %v4263, 0
        %v4360 = vsel %vm4280, %v4264, 0
        %v4363 = vsel %vm4280, %v4265, 0
        %v4366 = vsel %vm4280, %v4266, 0
        %v4369 = vsel %vm4280, %v4267, 0
        %v4372 = vsel %vm4280, %v4268, 0
        %v4375 = vsel %vm4280, %v4269, 0
        %vm4377 = vcmask 1043456
        %v4379 = vsel %vm4377, %v4272, 0
        %4381 = vmatprep.subr.mxu0 0.0
        %v4382 = vand.u32 %v4270, 4294901760
        %4383 = vmatpush1.msra.mxu0 %v4382
        %4384 = vmatprep.subr.mxu0 0.0
        %v4385 = vand.u32 %v4271, 4294901760
        %4386 = vmatpush1.msra.mxu0 %v4385
        %4387 = vmatprep.subr.mxu0 0.0
        %v4388 = vand.u32 %v4379, 4294901760
        %4389 = vmatpush1.msra.mxu0 %v4388
        %4390 = vmatprep.subr.mxu0 0.0
        %4391 = vmatpush1.msra.mxu0 0.0
        %4392 = vmatprep.subr.mxu0 0.0
        %4393 = vmatpush1.msra.mxu0 0.0
        %4394 = vmatprep.subr.mxu0 0.0
        %4395 = vmatpush1.msra.mxu0 0.0
        %4396 = vmatprep.subr.mxu0 0.0
        %4397 = vmatpush1.msra.mxu0 0.0
        %4398 = vmatprep.subr.mxu0 0.0
        %4399 = vmatpush1.msra.mxu0 0.0
        %4400 = vmatprep.subr.mxu0 0.0
        %4401 = vmatpush1.msra.mxu0 0.0
        %4402 = vmatprep.subr.mxu0 0.0
        %4403 = vmatpush1.msra.mxu0 0.0
        %4404 = vmatprep.subr.mxu0 0.0
        %4405 = vmatpush1.msra.mxu0 0.0
        %4406 = vmatprep.subr.mxu0 0.0
        %4407 = vmatpush1.msra.mxu0 0.0
        %4408 = vmatprep.subr.mxu0 0.0
        %4409 = vmatpush1.msra.mxu0 0.0
        %4410 = vmatprep.subr.mxu0 0.0
        %4411 = vmatpush1.msra.mxu0 0.0
        %4412 = vmatprep.subr.mxu0 0.0
        %4413 = vmatpush1.msra.mxu0 0.0
        %4414 = vmatprep.subr.mxu0 0.0
        %4415 = vmatpush1.msra.mxu0 0.0
        %4416 = vmatprep.subr.mxu0 0.0
        %4417 = vmatpush1.msra.mxu0 0.0
        %4418 = vmatprep.subr.mxu0 0.0
        %4419 = vmatpush1.msra.mxu0 0.0
        %4420 = vmatprep.subr.mxu0 0.0
        %4421 = vmatpush1.msra.mxu0 0.0
        %4422 = vmatprep.subr.mxu0 0.0
        %4423 = vmatpush1.msra.mxu0 0.0
        %4424 = vmatprep.subr.mxu0 0.0
        %4425 = vmatpush1.msra.mxu0 0.0
        %4426 = vmatprep.subr.mxu0 0.0
        %4427 = vmatpush1.msra.mxu0 0.0
        %4428 = vmatprep.subr.mxu0 0.0
        %4429 = vmatpush1.msra.mxu0 0.0
        %4430 = vmatprep.subr.mxu0 0.0
        %4431 = vmatpush1.msra.mxu0 0.0
        %4432 = vmatprep.subr.mxu0 0.0
        %4433 = vmatpush1.msra.mxu0 0.0
        %4434 = vmatprep.subr.mxu0 0.0
        %4435 = vmatpush1.msra.mxu0 0.0
        %4436 = vmatprep.subr.mxu0 0.0
        %4437 = vmatpush1.msra.mxu0 0.0
        %4438 = vmatprep.subr.mxu0 0.0
        %4439 = vmatpush1.msra.mxu0 0.0
        %4440 = vmatprep.subr.mxu0 0.0
        %4441 = vmatpush1.msra.mxu0 0.0
        %4442 = vmatprep.subr.mxu0 0.0
        %4443 = vmatpush1.msra.mxu0 0.0
        %4444 = vmatprep.subr.mxu0 0.0
        %4445 = vmatpush1.msra.mxu0 0.0
        %4446 = vmatprep.subr.mxu0 0.0
        %4447 = vmatpush1.msra.mxu0 0.0
        %4448 = vmatprep.mubr.f32.mxu0 0.0
        %v4449 = vand.u32 %v4282, 4294901760
        %v4450 = vsub.f32 %v4282, %v4449
        %v4451 = vand.u32 %v4450, 4294901760
        %v4452 = vsub.f32 %v4450, %v4451
        %v4453 = vand.u32 %v4452, 4294901760
        %4454 = vmatmul.mubr.f32.gmra.mrb[0].mxu0 %v4453
        %v4455 = vpop.f32.mrb[0].mxu0
        %v4456 = vadd.f32 %v4278, %v4455
        %v4457 = vpop.f32.mrb[0].mxu0
        %4458 = vmatprep.mubr.f32.mxu0 0.0
        %v4459 = vand.u32 %v4285, 4294901760
        %v4460 = vsub.f32 %v4285, %v4459
        %v4461 = vand.u32 %v4460, 4294901760
        %v4462 = vsub.f32 %v4460, %v4461
        %v4463 = vand.u32 %v4462, 4294901760
        %4464 = vmatmul.mubr.f32.gmra.mrb[0].mxu0 %v4463
        %v4465 = vpop.f32.mrb[0].mxu0
        %v4466 = vadd.f32 %v4278, %v4465
        %v4467 = vpop.f32.mrb[0].mxu0
        %4468 = vmatprep.mubr.f32.mxu0 0.0
        %v4469 = vand.u32 %v4288, 4294901760
        %v4470 = vsub.f32 %v4288, %v4469
        %v4471 = vand.u32 %v4470, 4294901760
        %v4472 = vsub.f32 %v4470, %v4471
        %v4473 = vand.u32 %v4472, 4294901760
        %4474 = vmatmul.mubr.f32.gmra.mrb[0].mxu0 %v4473
        %v4475 = vpop.f32.mrb[0].mxu0
        %v4476 = vadd.f32 %v4278, %v4475
        %v4477 = vpop.f32.mrb[0].mxu0
        %4478 = vmatprep.mubr.f32.mxu0 0.0
        %v4479 = vand.u32 %v4291, 4294901760
        %v4480 = vsub.f32 %v4291, %v4479
        %v4481 = vand.u32 %v4480, 4294901760
        %v4482 = vsub.f32 %v4480, %v4481
        %v4483 = vand.u32 %v4482, 4294901760
        %4484 = vmatmul.mubr.f32.gmra.mrb[0].mxu0 %v4483
        %v4485 = vpop.f32.mrb[0].mxu0
        %v4486 = vadd.f32 %v4278, %v4485
        %v4487 = vpop.f32.mrb[0].mxu0
        %4488 = vmatprep.mubr.f32.mxu0 0.0
        %v4489 = vand.u32 %v4294, 4294901760
        %v4490 = vsub.f32 %v4294, %v4489
        %v4491 = vand.u32 %v4490, 4294901760
        %v4492 = vsub.f32 %v4490, %v4491
        %v4493 = vand.u32 %v4492, 4294901760
        %4494 = vmatmul.mubr.f32.gmra.mrb[0].mxu0 %v4493
        %v4495 = vpop.f32.mrb[0].mxu0
        %v4496 = vadd.f32 %v4278, %v4495
        %v4497 = vpop.f32.mrb[0].mxu0
        %4498 = vmatprep.mubr.f32.mxu0 0.0
        %v4499 = vand.u32 %v4297, 4294901760
        %v4500 = vsub.f32 %v4297, %v4499
        %v4501 = vand.u32 %v4500, 4294901760
        %v4502 = vsub.f32 %v4500, %v4501
        %v4503 = vand.u32 %v4502, 4294901760
        %4504 = vmatmul.mubr.f32.gmra.mrb[0].mxu0 %v4503
        %v4505 = vpop.f32.mrb[0].mxu0
        %v4506 = vadd.f32 %v4278, %v4505
        %v4507 = vpop.f32.mrb[0].mxu0
        %4508 = vmatprep.mubr.f32.mxu0 0.0
        %v4509 = vand.u32 %v4300, 4294901760
        %v4510 = vsub.f32 %v4300, %v4509
        %v4511 = vand.u32 %v4510, 4294901760
        %v4512 = vsub.f32 %v4510, %v4511
        %v4513 = vand.u32 %v4512, 4294901760
        %4514 = vmatmul.mubr.f32.gmra.mrb[0].mxu0 %v4513
        %v4515 = vpop.f32.mrb[0].mxu0
        %v4516 = vadd.f32 %v4278, %v4515
        %v4517 = vpop.f32.mrb[0].mxu0
        %4518 = vmatprep.mubr.f32.mxu0 0.0
        %v4519 = vand.u32 %v4303, 4294901760
        %v4520 = vsub.f32 %v4303, %v4519
        %v4521 = vand.u32 %v4520, 4294901760
        %v4522 = vsub.f32 %v4520, %v4521
        %v4523 = vand.u32 %v4522, 4294901760
        %4524 = vmatmul.mubr.f32.gmra.mrb[0].mxu0 %v4523
        %v4525 = vpop.f32.mrb[0].mxu0
        %v4526 = vadd.f32 %v4278, %v4525
        %v4527 = vpop.f32.mrb[0].mxu0
        %4528 = vmatprep.mubr.f32.mxu0 0.0
        %v4529 = vand.u32 %v4306, 4294901760
        %v4530 = vsub.f32 %v4306, %v4529
        %v4531 = vand.u32 %v4530, 4294901760
        %v4532 = vsub.f32 %v4530, %v4531
        %v4533 = vand.u32 %v4532, 4294901760
        %4534 = vmatmul.mubr.f32.gmra.mrb[0].mxu0 %v4533
        %v4535 = vpop.f32.mrb[0].mxu0
        %v4536 = vadd.f32 %v4278, %v4535
        %v4537 = vpop.f32.mrb[0].mxu0
        %4538 = vmatprep.mubr.f32.mxu0 0.0
        %v4539 = vand.u32 %v4309, 4294901760
        %v4540 = vsub.f32 %v4309, %v4539
        %v4541 = vand.u32 %v4540, 4294901760
        %v4542 = vsub.f32 %v4540, %v4541
        %v4543 = vand.u32 %v4542, 4294901760
        %4544 = vmatmul.mubr.f32.gmra.mrb[0].mxu0 %v4543
        %v4545 = vpop.f32.mrb[0].mxu0
        %v4546 = vadd.f32 %v4278, %v4545
        %v4547 = vpop.f32.mrb[0].mxu0
        %4548 = vmatprep.mubr.f32.mxu0 0.0
        %v4549 = vand.u32 %v4312, 4294901760
        %v4550 = vsub.f32 %v4312, %v4549
        %v4551 = vand.u32 %v4550, 4294901760
        %v4552 = vsub.f32 %v4550, %v4551
        %v4553 = vand.u32 %v4552, 4294901760
        %4554 = vmatmul.mubr.f32.gmra.mrb[0].mxu0 %v4553
        %v4555 = vpop.f32.mrb[0].mxu0
        %v4556 = vadd.f32 %v4278, %v4555
        %v4557 = vpop.f32.mrb[0].mxu0
        %4558 = vmatprep.mubr.f32.mxu0 0.0
        %v4559 = vand.u32 %v4315, 4294901760
        %v4560 = vsub.f32 %v4315, %v4559
        %v4561 = vand.u32 %v4560, 4294901760
        %v4562 = vsub.f32 %v4560, %v4561
        %v4563 = vand.u32 %v4562, 4294901760
        %4564 = vmatmul.mubr.f32.gmra.mrb[0].mxu0 %v4563
        %v4565 = vpop.f32.mrb[0].mxu0
        %v4566 = vadd.f32 %v4278, %v4565
        %v4567 = vpop.f32.mrb[0].mxu0
        %4568 = vmatprep.mubr.f32.mxu0 0.0
        %v4569 = vand.u32 %v4318, 4294901760
        %v4570 = vsub.f32 %v4318, %v4569
        %v4571 = vand.u32 %v4570, 4294901760
        %v4572 = vsub.f32 %v4570, %v4571
        %v4573 = vand.u32 %v4572, 4294901760
        %4574 = vmatmul.mubr.f32.gmra.mrb[0].mxu0 %v4573
        %v4575 = vpop.f32.mrb[0].mxu0
        %v4576 = vadd.f32 %v4278, %v4575
        %v4577 = vpop.f32.mrb[0].mxu0
        %4578 = vmatprep.mubr.f32.mxu0 0.0
        %v4579 = vand.u32 %v4321, 4294901760
        %v4580 = vsub.f32 %v4321, %v4579
        %v4581 = vand.u32 %v4580, 4294901760
        %v4582 = vsub.f32 %v4580, %v4581
        %v4583 = vand.u32 %v4582, 4294901760
        %4584 = vmatmul.mubr.f32.gmra.mrb[0].mxu0 %v4583
        %v4585 = vpop.f32.mrb[0].mxu0
        %v4586 = vadd.f32 %v4278, %v4585
        %v4587 = vpop.f32.mrb[0].mxu0
        %4588 = vmatprep.mubr.f32.mxu0 0.0
        %v4589 = vand.u32 %v4324, 4294901760
        %v4590 = vsub.f32 %v4324, %v4589
        %v4591 = vand.u32 %v4590, 4294901760
        %v4592 = vsub.f32 %v4590, %v4591
        %v4593 = vand.u32 %v4592, 4294901760
        %4594 = vmatmul.mubr.f32.gmra.mrb[0].mxu0 %v4593
        %v4595 = vpop.f32.mrb[0].mxu0
        %v4596 = vadd.f32 %v4278, %v4595
        %v4597 = vpop.f32.mrb[0].mxu0
        %4598 = vmatprep.mubr.f32.mxu0 0.0
        %v4599 = vand.u32 %v4327, 4294901760
        %v4600 = vsub.f32 %v4327, %v4599
        %v4601 = vand.u32 %v4600, 4294901760
        %v4602 = vsub.f32 %v4600, %v4601
        %v4603 = vand.u32 %v4602, 4294901760
        %4604 = vmatmul.mubr.f32.gmra.mrb[0].mxu0 %v4603
        %v4605 = vpop.f32.mrb[0].mxu0
        %v4606 = vadd.f32 %v4278, %v4605
        %v4607 = vpop.f32.mrb[0].mxu0
        %4608 = vmatprep.mubr.f32.mxu0 0.0
        %v4609 = vand.u32 %v4330, 4294901760
        %v4610 = vsub.f32 %v4330, %v4609
        %v4611 = vand.u32 %v4610, 4294901760
        %v4612 = vsub.f32 %v4610, %v4611
        %v4613 = vand.u32 %v4612, 4294901760
        %4614 = vmatmul.mubr.f32.gmra.mrb[0].mxu0 %v4613
        %v4615 = vpop.f32.mrb[0].mxu0
        %v4616 = vadd.f32 %v4278, %v4615
        %v4617 = vpop.f32.mrb[0].mxu0
        %4618 = vmatprep.mubr.f32.mxu0 0.0
        %v4619 = vand.u32 %v4333, 4294901760
        %v4620 = vsub.f32 %v4333, %v4619
        %v4621 = vand.u32 %v4620, 4294901760
        %v4622 = vsub.f32 %v4620, %v4621
        %v4623 = vand.u32 %v4622, 4294901760
        %4624 = vmatmul.mubr.f32.gmra.mrb[0].mxu0 %v4623
        %v4625 = vpop.f32.mrb[0].mxu0
        %v4626 = vadd.f32 %v4278, %v4625
        %v4627 = vpop.f32.mrb[0].mxu0
        %4628 = vmatprep.mubr.f32.mxu0 0.0
        %v4629 = vand.u32 %v4336, 4294901760
        %v4630 = vsub.f32 %v4336, %v4629
        %v4631 = vand.u32 %v4630, 4294901760
        %v4632 = vsub.f32 %v4630, %v4631
        %v4633 = vand.u32 %v4632, 4294901760
        %4634 = vmatmul.mubr.f32.gmra.mrb[0].mxu0 %v4633
        %v4635 = vpop.f32.mrb[0].mxu0
        %v4636 = vadd.f32 %v4278, %v4635
        %v4637 = vpop.f32.mrb[0].mxu0
        %4638 = vmatprep.mubr.f32.mxu0 0.0
        %v4639 = vand.u32 %v4339, 4294901760
        %v4640 = vsub.f32 %v4339, %v4639
        %v4641 = vand.u32 %v4640, 4294901760
        %v4642 = vsub.f32 %v4640, %v4641
        %v4643 = vand.u32 %v4642, 4294901760
        %4644 = vmatmul.mubr.f32.gmra.mrb[0].mxu0 %v4643
        %v4645 = vpop.f32.mrb[0].mxu0
        %v4646 = vadd.f32 %v4278, %v4645
        %v4647 = vpop.f32.mrb[0].mxu0
        %4648 = vmatprep.mubr.f32.mxu0 0.0
        %v4649 = vand.u32 %v4342, 4294901760
        %v4650 = vsub.f32 %v4342, %v4649
        %v4651 = vand.u32 %v4650, 4294901760
        %v4652 = vsub.f32 %v4650, %v4651
        %v4653 = vand.u32 %v4652, 4294901760
        %4654 = vmatmul.mubr.f32.gmra.mrb[0].mxu0 %v4653
        %v4655 = vpop.f32.mrb[0].mxu0
        %v4656 = vadd.f32 %v4278, %v4655
        %v4657 = vpop.f32.mrb[0].mxu0
        %4658 = vmatprep.mubr.f32.mxu0 0.0
        %v4659 = vand.u32 %v4345, 4294901760
        %v4660 = vsub.f32 %v4345, %v4659
        %v4661 = vand.u32 %v4660, 4294901760
        %v4662 = vsub.f32 %v4660, %v4661
        %v4663 = vand.u32 %v4662, 4294901760
        %4664 = vmatmul.mubr.f32.gmra.mrb[0].mxu0 %v4663
        %v4665 = vpop.f32.mrb[0].mxu0
        %v4666 = vadd.f32 %v4278, %v4665
        %v4667 = vpop.f32.mrb[0].mxu0
        %4668 = vmatprep.mubr.f32.mxu0 0.0
        %v4669 = vand.u32 %v4348, 4294901760
        %v4670 = vsub.f32 %v4348, %v4669
        %v4671 = vand.u32 %v4670, 4294901760
        %v4672 = vsub.f32 %v4670, %v4671
        %v4673 = vand.u32 %v4672, 4294901760
        %4674 = vmatmul.mubr.f32.gmra.mrb[0].mxu0 %v4673
        %v4675 = vpop.f32.mrb[0].mxu0
        %v4676 = vadd.f32 %v4278, %v4675
        %v4677 = vpop.f32.mrb[0].mxu0
        %4678 = vmatprep.mubr.f32.mxu0 0.0
        %v4679 = vand.u32 %v4351, 4294901760
        %v4680 = vsub.f32 %v4351, %v4679
        %v4681 = vand.u32 %v4680, 4294901760
        %v4682 = vsub.f32 %v4680, %v4681
        %v4683 = vand.u32 %v4682, 4294901760
        %4684 = vmatmul.mubr.f32.gmra.mrb[0].mxu0 %v4683
        %v4685 = vpop.f32.mrb[0].mxu0
        %v4686 = vadd.f32 %v4278, %v4685
        %v4687 = vpop.f32.mrb[0].mxu0
        %4688 = vmatprep.mubr.f32.mxu0 0.0
        %v4689 = vand.u32 %v4354, 4294901760
        %v4690 = vsub.f32 %v4354, %v4689
        %v4691 = vand.u32 %v4690, 4294901760
        %v4692 = vsub.f32 %v4690, %v4691
        %v4693 = vand.u32 %v4692, 4294901760
        %4694 = vmatmul.mubr.f32.gmra.mrb[0].mxu0 %v4693
        %v4695 = vpop.f32.mrb[0].mxu0
        %v4696 = vadd.f32 %v4278, %v4695
        %v4697 = vpop.f32.mrb[0].mxu0
        %4698 = vmatprep.mubr.f32.mxu0 0.0
        %v4699 = vand.u32 %v4357, 4294901760
        %v4700 = vsub.f32 %v4357, %v4699
        %v4701 = vand.u32 %v4700, 4294901760
        %v4702 = vsub.f32 %v4700, %v4701
        %v4703 = vand.u32 %v4702, 4294901760
        %4704 = vmatmul.mubr.f32.gmra.mrb[0].mxu0 %v4703
        %v4705 = vpop.f32.mrb[0].mxu0
        %v4706 = vadd.f32 %v4278, %v4705
        %v4707 = vpop.f32.mrb[0].mxu0
        %4708 = vmatprep.mubr.f32.mxu0 0.0
        %v4709 = vand.u32 %v4360, 4294901760
        %v4710 = vsub.f32 %v4360, %v4709
        %v4711 = vand.u32 %v4710, 4294901760
        %v4712 = vsub.f32 %v4710, %v4711
        %v4713 = vand.u32 %v4712, 4294901760
        %4714 = vmatmul.mubr.f32.gmra.mrb[0].mxu0 %v4713
        %v4715 = vpop.f32.mrb[0].mxu0
        %v4716 = vadd.f32 %v4278, %v4715
        %v4717 = vpop.f32.mrb[0].mxu0
        %4718 = vmatprep.mubr.f32.mxu0 0.0
        %v4719 = vand.u32 %v4363, 4294901760
        %v4720 = vsub.f32 %v4363, %v4719
        %v4721 = vand.u32 %v4720, 4294901760
        %v4722 = vsub.f32 %v4720, %v4721
        %v4723 = vand.u32 %v4722, 4294901760
        %4724 = vmatmul.mubr.f32.gmra.mrb[0].mxu0 %v4723
        %v4725 = vpop.f32.mrb[0].mxu0
        %v4726 = vadd.f32 %v4278, %v4725
        %v4727 = vpop.f32.mrb[0].mxu0
        %4728 = vmatprep.mubr.f32.mxu0 0.0
        %v4729 = vand.u32 %v4366, 4294901760
        %v4730 = vsub.f32 %v4366, %v4729
        %v4731 = vand.u32 %v4730, 4294901760
        %v4732 = vsub.f32 %v4730, %v4731
        %v4733 = vand.u32 %v4732, 4294901760
        %4734 = vmatmul.mubr.f32.gmra.mrb[0].mxu0 %v4733
        %v4735 = vpop.f32.mrb[0].mxu0
        %v4736 = vadd.f32 %v4278, %v4735
        %v4737 = vpop.f32.mrb[0].mxu0
        %4738 = vmatprep.mubr.f32.mxu0 0.0
        %v4739 = vand.u32 %v4369, 4294901760
        %v4740 = vsub.f32 %v4369, %v4739
        %v4741 = vand.u32 %v4740, 4294901760
        %v4742 = vsub.f32 %v4740, %v4741
        %v4743 = vand.u32 %v4742, 4294901760
        %4744 = vmatmul.mubr.f32.gmra.mrb[0].mxu0 %v4743
        %v4745 = vpop.f32.mrb[0].mxu0
        %v4746 = vadd.f32 %v4278, %v4745
        %v4747 = vpop.f32.mrb[0].mxu0
        %4748 = vmatprep.mubr.f32.mxu0 0.0
        %v4749 = vand.u32 %v4372, 4294901760
        %v4750 = vsub.f32 %v4372, %v4749
        %v4751 = vand.u32 %v4750, 4294901760
        %v4752 = vsub.f32 %v4750, %v4751
        %v4753 = vand.u32 %v4752, 4294901760
        %4754 = vmatmul.mubr.f32.gmra.mrb[0].mxu0 %v4753
        %v4755 = vpop.f32.mrb[0].mxu0
        %v4756 = vadd.f32 %v4278, %v4755
        %v4757 = vpop.f32.mrb[0].mxu0
        %4758 = vmatprep.mubr.f32.mxu0 0.0
        %v4759 = vand.u32 %v4375, 4294901760
        %v4760 = vsub.f32 %v4375, %v4759
        %v4761 = vand.u32 %v4760, 4294901760
        %v4762 = vsub.f32 %v4760, %v4761
        %v4763 = vand.u32 %v4762, 4294901760
        %4764 = vmatmul.mubr.f32.gmra.mrb[0].mxu0 %v4763
        %v4765 = vpop.f32.mrb[0].mxu0
        %v4766 = vadd.f32 %v4278, %v4765
        %v4767 = vpop.f32.mrb[0].mxu0
        %4768 = vdwg.mxu0
        %4769 = vmatprep.subr.mxu0 0.0
        %v4770 = vand.u32 %v4270, 4294901760
        %v4771 = vsub.f32 %v4270, %v4770
        %v4772 = vand.u32 %v4771, 4294901760
        %v4773 = vsub.f32 %v4771, %v4772
        %v4774 = vand.u32 %v4773, 4294901760
        %4775 = vmatpush1.msra.mxu0 %v4774
        %4776 = vmatprep.subr.mxu0 0.0
        %v4777 = vand.u32 %v4271, 4294901760
        %v4778 = vsub.f32 %v4271, %v4777
        %v4779 = vand.u32 %v4778, 4294901760
        %v4780 = vsub.f32 %v4778, %v4779
        %v4781 = vand.u32 %v4780, 4294901760
        %4782 = vmatpush1.msra.mxu0 %v4781
        %4783 = vmatprep.subr.mxu0 0.0
        %v4784 = vand.u32 %v4379, 4294901760
        %v4785 = vsub.f32 %v4379, %v4784
        %v4786 = vand.u32 %v4785, 4294901760
        %v4787 = vsub.f32 %v4785, %v4786
        %v4788 = vand.u32 %v4787, 4294901760
        %4789 = vmatpush1.msra.mxu0 %v4788
        %4790 = vmatprep.subr.mxu0 0.0
        %4791 = vmatpush1.msra.mxu0 0.0
        %4792 = vmatprep.subr.mxu0 0.0
        %4793 = vmatpush1.msra.mxu0 0.0
        %4794 = vmatprep.subr.mxu0 0.0
        %4795 = vmatpush1.msra.mxu0 0.0
        %4796 = vmatprep.subr.mxu0 0.0
        %4797 = vmatpush1.msra.mxu0 0.0
        %4798 = vmatprep.subr.mxu0 0.0
        %4799 = vmatpush1.msra.mxu0 0.0
        %4800 = vmatprep.subr.mxu0 0.0
        %4801 = vmatpush1.msra.mxu0 0.0
        %4802 = vmatprep.subr.mxu0 0.0
        %4803 = vmatpush1.msra.mxu0 0.0
        %4804 = vmatprep.subr.mxu0 0.0
        %4805 = vmatpush1.msra.mxu0 0.0
        %4806 = vmatprep.subr.mxu0 0.0
        %4807 = vmatpush1.msra.mxu0 0.0
        %4808 = vmatprep.subr.mxu0 0.0
        %4809 = vmatpush1.msra.mxu0 0.0
        %4810 = vmatprep.subr.mxu0 0.0
        %4811 = vmatpush1.msra.mxu0 0.0
        %4812 = vmatprep.subr.mxu0 0.0
        %4813 = vmatpush1.msra.mxu0 0.0
        %4814 = vmatprep.subr.mxu0 0.0
        %4815 = vmatpush1.msra.mxu0 0.0
        %4816 = vmatprep.subr.mxu0 0.0
        %4817 = vmatpush1.msra.mxu0 0.0
        %4818 = vmatprep.subr.mxu0 0.0
        %4819 = vmatpush1.msra.mxu0 0.0
        %4820 = vmatprep.subr.mxu0 0.0
        %4821 = vmatpush1.msra.mxu0 0.0
        %4822 = vmatprep.subr.mxu0 0.0
        %4823 = vmatpush1.msra.mxu0 0.0
        %4824 = vmatprep.subr.mxu0 0.0
        %4825 = vmatpush1.msra.mxu0 0.0
        %4826 = vmatprep.subr.mxu0 0.0
        %4827 = vmatpush1.msra.mxu0 0.0
        %4828 = vmatprep.subr.mxu0 0.0
        %4829 = vmatpush1.msra.mxu0 0.0
        %4830 = vmatprep.subr.mxu0 0.0
        %4831 = vmatpush1.msra.mxu0 0.0
        %4832 = vmatprep.subr.mxu0 0.0
        %4833 = vmatpush1.msra.mxu0 0.0
        %4834 = vmatprep.subr.mxu0 0.0
        %4835 = vmatpush1.msra.mxu0 0.0
        %4836 = vmatprep.subr.mxu0 0.0
        %4837 = vmatpush1.msra.mxu0 0.0
        %4838 = vmatprep.subr.mxu0 0.0
        %4839 = vmatpush1.msra.mxu0 0.0
        %4840 = vmatprep.subr.mxu0 0.0
        %4841 = vmatpush1.msra.mxu0 0.0
        %4842 = vmatprep.subr.mxu0 0.0
        %4843 = vmatpush1.msra.mxu0 0.0
        %4844 = vmatprep.subr.mxu0 0.0
        %4845 = vmatpush1.msra.mxu0 0.0
        %4846 = vmatprep.subr.mxu0 0.0
        %4847 = vmatpush1.msra.mxu0 0.0
        %4848 = vmatprep.mubr.f32.mxu0 0.0
        %v4849 = vand.u32 %v4282, 4294901760
        %4850 = vmatmul.mubr.f32.gmra.mrb[0].mxu0 %v4849
        %v4851 = vpop.f32.mrb[0].mxu0
        %v4852 = vadd.f32 %v4456, %v4851
        %v4853 = vpop.f32.mrb[0].mxu0
        %4854 = vmatprep.mubr.f32.mxu0 0.0
        %v4855 = vand.u32 %v4285, 4294901760
        %4856 = vmatmul.mubr.f32.gmra.mrb[0].mxu0 %v4855
        %v4857 = vpop.f32.mrb[0].mxu0
        %v4858 = vadd.f32 %v4466, %v4857
        %v4859 = vpop.f32.mrb[0].mxu0
        %4860 = vmatprep.mubr.f32.mxu0 0.0
        %v4861 = vand.u32 %v4288, 4294901760
        %4862 = vmatmul.mubr.f32.gmra.mrb[0].mxu0 %v4861
        %v4863 = vpop.f32.mrb[0].mxu0
        %v4864 = vadd.f32 %v4476, %v4863
        %v4865 = vpop.f32.mrb[0].mxu0
        %4866 = vmatprep.mubr.f32.mxu0 0.0
        %v4867 = vand.u32 %v4291, 4294901760
        %4868 = vmatmul.mubr.f32.gmra.mrb[0].mxu0 %v4867
        %v4869 = vpop.f32.mrb[0].mxu0
        %v4870 = vadd.f32 %v4486, %v4869
        %v4871 = vpop.f32.mrb[0].mxu0
        %4872 = vmatprep.mubr.f32.mxu0 0.0
        %v4873 = vand.u32 %v4294, 4294901760
        %4874 = vmatmul.mubr.f32.gmra.mrb[0].mxu0 %v4873
        %v4875 = vpop.f32.mrb[0].mxu0
        %v4876 = vadd.f32 %v4496, %v4875
        %v4877 = vpop.f32.mrb[0].mxu0
        %4878 = vmatprep.mubr.f32.mxu0 0.0
        %v4879 = vand.u32 %v4297, 4294901760
        %4880 = vmatmul.mubr.f32.gmra.mrb[0].mxu0 %v4879
        %v4881 = vpop.f32.mrb[0].mxu0
        %v4882 = vadd.f32 %v4506, %v4881
        %v4883 = vpop.f32.mrb[0].mxu0
        %4884 = vmatprep.mubr.f32.mxu0 0.0
        %v4885 = vand.u32 %v4300, 4294901760
        %4886 = vmatmul.mubr.f32.gmra.mrb[0].mxu0 %v4885
        %v4887 = vpop.f32.mrb[0].mxu0
        %v4888 = vadd.f32 %v4516, %v4887
        %v4889 = vpop.f32.mrb[0].mxu0
        %4890 = vmatprep.mubr.f32.mxu0 0.0
        %v4891 = vand.u32 %v4303, 4294901760
        %4892 = vmatmul.mubr.f32.gmra.mrb[0].mxu0 %v4891
        %v4893 = vpop.f32.mrb[0].mxu0
        %v4894 = vadd.f32 %v4526, %v4893
        %v4895 = vpop.f32.mrb[0].mxu0
        %4896 = vmatprep.mubr.f32.mxu0 0.0
        %v4897 = vand.u32 %v4306, 4294901760
        %4898 = vmatmul.mubr.f32.gmra.mrb[0].mxu0 %v4897
        %v4899 = vpop.f32.mrb[0].mxu0
        %v4900 = vadd.f32 %v4536, %v4899
        %v4901 = vpop.f32.mrb[0].mxu0
        %4902 = vmatprep.mubr.f32.mxu0 0.0
        %v4903 = vand.u32 %v4309, 4294901760
        %4904 = vmatmul.mubr.f32.gmra.mrb[0].mxu0 %v4903
        %v4905 = vpop.f32.mrb[0].mxu0
        %v4906 = vadd.f32 %v4546, %v4905
        %v4907 = vpop.f32.mrb[0].mxu0
        %4908 = vmatprep.mubr.f32.mxu0 0.0
        %v4909 = vand.u32 %v4312, 4294901760
        %4910 = vmatmul.mubr.f32.gmra.mrb[0].mxu0 %v4909
        %v4911 = vpop.f32.mrb[0].mxu0
        %v4912 = vadd.f32 %v4556, %v4911
        %v4913 = vpop.f32.mrb[0].mxu0
        %4914 = vmatprep.mubr.f32.mxu0 0.0
        %v4915 = vand.u32 %v4315, 4294901760
        %4916 = vmatmul.mubr.f32.gmra.mrb[0].mxu0 %v4915
        %v4917 = vpop.f32.mrb[0].mxu0
        %v4918 = vadd.f32 %v4566, %v4917
        %v4919 = vpop.f32.mrb[0].mxu0
        %4920 = vmatprep.mubr.f32.mxu0 0.0
        %v4921 = vand.u32 %v4318, 4294901760
        %4922 = vmatmul.mubr.f32.gmra.mrb[0].mxu0 %v4921
        %v4923 = vpop.f32.mrb[0].mxu0
        %v4924 = vadd.f32 %v4576, %v4923
        %v4925 = vpop.f32.mrb[0].mxu0
        %4926 = vmatprep.mubr.f32.mxu0 0.0
        %v4927 = vand.u32 %v4321, 4294901760
        %4928 = vmatmul.mubr.f32.gmra.mrb[0].mxu0 %v4927
        %v4929 = vpop.f32.mrb[0].mxu0
        %v4930 = vadd.f32 %v4586, %v4929
        %v4931 = vpop.f32.mrb[0].mxu0
        %4932 = vmatprep.mubr.f32.mxu0 0.0
        %v4933 = vand.u32 %v4324, 4294901760
        %4934 = vmatmul.mubr.f32.gmra.mrb[0].mxu0 %v4933
        %v4935 = vpop.f32.mrb[0].mxu0
        %v4936 = vadd.f32 %v4596, %v4935
        %v4937 = vpop.f32.mrb[0].mxu0
        %4938 = vmatprep.mubr.f32.mxu0 0.0
        %v4939 = vand.u32 %v4327, 4294901760
        %4940 = vmatmul.mubr.f32.gmra.mrb[0].mxu0 %v4939
        %v4941 = vpop.f32.mrb[0].mxu0
        %v4942 = vadd.f32 %v4606, %v4941
        %v4943 = vpop.f32.mrb[0].mxu0
        %4944 = vmatprep.mubr.f32.mxu0 0.0
        %v4945 = vand.u32 %v4330, 4294901760
        %4946 = vmatmul.mubr.f32.gmra.mrb[0].mxu0 %v4945
        %v4947 = vpop.f32.mrb[0].mxu0
        %v4948 = vadd.f32 %v4616, %v4947
        %v4949 = vpop.f32.mrb[0].mxu0
        %4950 = vmatprep.mubr.f32.mxu0 0.0
        %v4951 = vand.u32 %v4333, 4294901760
        %4952 = vmatmul.mubr.f32.gmra.mrb[0].mxu0 %v4951
        %v4953 = vpop.f32.mrb[0].mxu0
        %v4954 = vadd.f32 %v4626, %v4953
        %v4955 = vpop.f32.mrb[0].mxu0
        %4956 = vmatprep.mubr.f32.mxu0 0.0
        %v4957 = vand.u32 %v4336, 4294901760
        %4958 = vmatmul.mubr.f32.gmra.mrb[0].mxu0 %v4957
        %v4959 = vpop.f32.mrb[0].mxu0
        %v4960 = vadd.f32 %v4636, %v4959
        %v4961 = vpop.f32.mrb[0].mxu0
        %4962 = vmatprep.mubr.f32.mxu0 0.0
        %v4963 = vand.u32 %v4339, 4294901760
        %4964 = vmatmul.mubr.f32.gmra.mrb[0].mxu0 %v4963
        %v4965 = vpop.f32.mrb[0].mxu0
        %v4966 = vadd.f32 %v4646, %v4965
        %v4967 = vpop.f32.mrb[0].mxu0
        %4968 = vmatprep.mubr.f32.mxu0 0.0
        %v4969 = vand.u32 %v4342, 4294901760
        %4970 = vmatmul.mubr.f32.gmra.mrb[0].mxu0 %v4969
        %v4971 = vpop.f32.mrb[0].mxu0
        %v4972 = vadd.f32 %v4656, %v4971
        %v4973 = vpop.f32.mrb[0].mxu0
        %4974 = vmatprep.mubr.f32.mxu0 0.0
        %v4975 = vand.u32 %v4345, 4294901760
        %4976 = vmatmul.mubr.f32.gmra.mrb[0].mxu0 %v4975
        %v4977 = vpop.f32.mrb[0].mxu0
        %v4978 = vadd.f32 %v4666, %v4977
        %v4979 = vpop.f32.mrb[0].mxu0
        %4980 = vmatprep.mubr.f32.mxu0 0.0
        %v4981 = vand.u32 %v4348, 4294901760
        %4982 = vmatmul.mubr.f32.gmra.mrb[0].mxu0 %v4981
        %v4983 = vpop.f32.mrb[0].mxu0
        %v4984 = vadd.f32 %v4676, %v4983
        %v4985 = vpop.f32.mrb[0].mxu0
        %4986 = vmatprep.mubr.f32.mxu0 0.0
        %v4987 = vand.u32 %v4351, 4294901760
        %4988 = vmatmul.mubr.f32.gmra.mrb[0].mxu0 %v4987
        %v4989 = vpop.f32.mrb[0].mxu0
        %v4990 = vadd.f32 %v4686, %v4989
        %v4991 = vpop.f32.mrb[0].mxu0
        %4992 = vmatprep.mubr.f32.mxu0 0.0
        %v4993 = vand.u32 %v4354, 4294901760
        %4994 = vmatmul.mubr.f32.gmra.mrb[0].mxu0 %v4993
        %v4995 = vpop.f32.mrb[0].mxu0
        %v4996 = vadd.f32 %v4696, %v4995
        %v4997 = vpop.f32.mrb[0].mxu0
        %4998 = vmatprep.mubr.f32.mxu0 0.0
        %v4999 = vand.u32 %v4357, 4294901760
        %5000 = vmatmul.mubr.f32.gmra.mrb[0].mxu0 %v4999
        %v5001 = vpop.f32.mrb[0].mxu0
        %v5002 = vadd.f32 %v4706, %v5001
        %v5003 = vpop.f32.mrb[0].mxu0
        %5004 = vmatprep.mubr.f32.mxu0 0.0
        %v5005 = vand.u32 %v4360, 4294901760
        %5006 = vmatmul.mubr.f32.gmra.mrb[0].mxu0 %v5005
        %v5007 = vpop.f32.mrb[0].mxu0
        %v5008 = vadd.f32 %v4716, %v5007
        %v5009 = vpop.f32.mrb[0].mxu0
        %5010 = vmatprep.mubr.f32.mxu0 0.0
        %v5011 = vand.u32 %v4363, 4294901760
        %5012 = vmatmul.mubr.f32.gmra.mrb[0].mxu0 %v5011
        %v5013 = vpop.f32.mrb[0].mxu0
        %v5014 = vadd.f32 %v4726, %v5013
        %v5015 = vpop.f32.mrb[0].mxu0
        %5016 = vmatprep.mubr.f32.mxu0 0.0
        %v5017 = vand.u32 %v4366, 4294901760
        %5018 = vmatmul.mubr.f32.gmra.mrb[0].mxu0 %v5017
        %v5019 = vpop.f32.mrb[0].mxu0
        %v5020 = vadd.f32 %v4736, %v5019
        %v5021 = vpop.f32.mrb[0].mxu0
        %5022 = vmatprep.mubr.f32.mxu0 0.0
        %v5023 = vand.u32 %v4369, 4294901760
        %5024 = vmatmul.mubr.f32.gmra.mrb[0].mxu0 %v5023
        %v5025 = vpop.f32.mrb[0].mxu0
        %v5026 = vadd.f32 %v4746, %v5025
        %v5027 = vpop.f32.mrb[0].mxu0
        %5028 = vmatprep.mubr.f32.mxu0 0.0
        %v5029 = vand.u32 %v4372, 4294901760
        %5030 = vmatmul.mubr.f32.gmra.mrb[0].mxu0 %v5029
        %v5031 = vpop.f32.mrb[0].mxu0
        %v5032 = vadd.f32 %v4756, %v5031
        %v5033 = vpop.f32.mrb[0].mxu0
        %5034 = vmatprep.mubr.f32.mxu0 0.0
        %v5035 = vand.u32 %v4375, 4294901760
        %5036 = vmatmul.mubr.f32.gmra.mrb[0].mxu0 %v5035
        %v5037 = vpop.f32.mrb[0].mxu0
        %v5038 = vadd.f32 %v4766, %v5037
        %v5039 = vpop.f32.mrb[0].mxu0
        %5040 = vdwg.mxu0
        %5041 = vmatprep.subr.mxu0 0.0
        %v5042 = vand.u32 %v4270, 4294901760
        %v5043 = vsub.f32 %v4270, %v5042
        %5044 = vmatpush1.msra.mxu0 %v5043
        %5045 = vmatprep.subr.mxu0 0.0
        %v5046 = vand.u32 %v4271, 4294901760
        %v5047 = vsub.f32 %v4271, %v5046
        %5048 = vmatpush1.msra.mxu0 %v5047
        %5049 = vmatprep.subr.mxu0 0.0
        %v5050 = vand.u32 %v4379, 4294901760
        %v5051 = vsub.f32 %v4379, %v5050
        %5052 = vmatpush1.msra.mxu0 %v5051
        %5053 = vmatprep.subr.mxu0 0.0
        %5054 = vmatpush1.msra.mxu0 0.0
        %5055 = vmatprep.subr.mxu0 0.0
        %5056 = vmatpush1.msra.mxu0 0.0
        %5057 = vmatprep.subr.mxu0 0.0
        %5058 = vmatpush1.msra.mxu0 0.0
        %5059 = vmatprep.subr.mxu0 0.0
        %5060 = vmatpush1.msra.mxu0 0.0
        %5061 = vmatprep.subr.mxu0 0.0
        %5062 = vmatpush1.msra.mxu0 0.0
        %5063 = vmatprep.subr.mxu0 0.0
        %5064 = vmatpush1.msra.mxu0 0.0
        %5065 = vmatprep.subr.mxu0 0.0
        %5066 = vmatpush1.msra.mxu0 0.0
        %5067 = vmatprep.subr.mxu0 0.0
        %5068 = vmatpush1.msra.mxu0 0.0
        %5069 = vmatprep.subr.mxu0 0.0
        %5070 = vmatpush1.msra.mxu0 0.0
        %5071 = vmatprep.subr.mxu0 0.0
        %5072 = vmatpush1.msra.mxu0 0.0
        %5073 = vmatprep.subr.mxu0 0.0
        %5074 = vmatpush1.msra.mxu0 0.0
        %5075 = vmatprep.subr.mxu0 0.0
        %5076 = vmatpush1.msra.mxu0 0.0
        %5077 = vmatprep.subr.mxu0 0.0
        %5078 = vmatpush1.msra.mxu0 0.0
        %5079 = vmatprep.subr.mxu0 0.0
        %5080 = vmatpush1.msra.mxu0 0.0
        %5081 = vmatprep.subr.mxu0 0.0
        %5082 = vmatpush1.msra.mxu0 0.0
        %5083 = vmatprep.subr.mxu0 0.0
        %5084 = vmatpush1.msra.mxu0 0.0
        %5085 = vmatprep.subr.mxu0 0.0
        %5086 = vmatpush1.msra.mxu0 0.0
        %5087 = vmatprep.subr.mxu0 0.0
        %5088 = vmatpush1.msra.mxu0 0.0
        %5089 = vmatprep.subr.mxu0 0.0
        %5090 = vmatpush1.msra.mxu0 0.0
        %5091 = vmatprep.subr.mxu0 0.0
        %5092 = vmatpush1.msra.mxu0 0.0
        %5093 = vmatprep.subr.mxu0 0.0
        %5094 = vmatpush1.msra.mxu0 0.0
        %5095 = vmatprep.subr.mxu0 0.0
        %5096 = vmatpush1.msra.mxu0 0.0
        %5097 = vmatprep.subr.mxu0 0.0
        %5098 = vmatpush1.msra.mxu0 0.0
        %5099 = vmatprep.subr.mxu0 0.0
        %5100 = vmatpush1.msra.mxu0 0.0
        %5101 = vmatprep.subr.mxu0 0.0
        %5102 = vmatpush1.msra.mxu0 0.0
        %5103 = vmatprep.subr.mxu0 0.0
        %5104 = vmatpush1.msra.mxu0 0.0
        %5105 = vmatprep.subr.mxu0 0.0
        %5106 = vmatpush1.msra.mxu0 0.0
        %5107 = vmatprep.subr.mxu0 0.0
        %5108 = vmatpush1.msra.mxu0 0.0
        %5109 = vmatprep.subr.mxu0 0.0
        %5110 = vmatpush1.msra.mxu0 0.0
        %5111 = vmatprep.mubr.f32.mxu0 0.0
        %v5112 = vand.u32 %v4282, 4294901760
        %v5113 = vsub.f32 %v4282, %v5112
        %5114 = vmatmul.mubr.f32.gmra.mrb[0].mxu0 %v5113
        %v5115 = vpop.f32.mrb[0].mxu0
        %v5116 = vadd.f32 %v4852, %v5115
        %v5117 = vpop.f32.mrb[0].mxu0
        %5118 = vmatprep.mubr.f32.mxu0 0.0
        %v5119 = vand.u32 %v4285, 4294901760
        %v5120 = vsub.f32 %v4285, %v5119
        %5121 = vmatmul.mubr.f32.gmra.mrb[0].mxu0 %v5120
        %v5122 = vpop.f32.mrb[0].mxu0
        %v5123 = vadd.f32 %v4858, %v5122
        %v5124 = vpop.f32.mrb[0].mxu0
        %5125 = vmatprep.mubr.f32.mxu0 0.0
        %v5126 = vand.u32 %v4288, 4294901760
        %v5127 = vsub.f32 %v4288, %v5126
        %5128 = vmatmul.mubr.f32.gmra.mrb[0].mxu0 %v5127
        %v5129 = vpop.f32.mrb[0].mxu0
        %v5130 = vadd.f32 %v4864, %v5129
        %v5131 = vpop.f32.mrb[0].mxu0
        %5132 = vmatprep.mubr.f32.mxu0 0.0
        %v5133 = vand.u32 %v4291, 4294901760
        %v5134 = vsub.f32 %v4291, %v5133
        %5135 = vmatmul.mubr.f32.gmra.mrb[0].mxu0 %v5134
        %v5136 = vpop.f32.mrb[0].mxu0
        %v5137 = vadd.f32 %v4870, %v5136
        %v5138 = vpop.f32.mrb[0].mxu0
        %5139 = vmatprep.mubr.f32.mxu0 0.0
        %v5140 = vand.u32 %v4294, 4294901760
        %v5141 = vsub.f32 %v4294, %v5140
        %5142 = vmatmul.mubr.f32.gmra.mrb[0].mxu0 %v5141
        %v5143 = vpop.f32.mrb[0].mxu0
        %v5144 = vadd.f32 %v4876, %v5143
        %v5145 = vpop.f32.mrb[0].mxu0
        %5146 = vmatprep.mubr.f32.mxu0 0.0
        %v5147 = vand.u32 %v4297, 4294901760
        %v5148 = vsub.f32 %v4297, %v5147
        %5149 = vmatmul.mubr.f32.gmra.mrb[0].mxu0 %v5148
        %v5150 = vpop.f32.mrb[0].mxu0
        %v5151 = vadd.f32 %v4882, %v5150
        %v5152 = vpop.f32.mrb[0].mxu0
        %5153 = vmatprep.mubr.f32.mxu0 0.0
        %v5154 = vand.u32 %v4300, 4294901760
        %v5155 = vsub.f32 %v4300, %v5154
        %5156 = vmatmul.mubr.f32.gmra.mrb[0].mxu0 %v5155
        %v5157 = vpop.f32.mrb[0].mxu0
        %v5158 = vadd.f32 %v4888, %v5157
        %v5159 = vpop.f32.mrb[0].mxu0
        %5160 = vmatprep.mubr.f32.mxu0 0.0
        %v5161 = vand.u32 %v4303, 4294901760
        %v5162 = vsub.f32 %v4303, %v5161
        %5163 = vmatmul.mubr.f32.gmra.mrb[0].mxu0 %v5162
        %v5164 = vpop.f32.mrb[0].mxu0
        %v5165 = vadd.f32 %v4894, %v5164
        %v5166 = vpop.f32.mrb[0].mxu0
        %5167 = vmatprep.mubr.f32.mxu0 0.0
        %v5168 = vand.u32 %v4306, 4294901760
        %v5169 = vsub.f32 %v4306, %v5168
        %5170 = vmatmul.mubr.f32.gmra.mrb[0].mxu0 %v5169
        %v5171 = vpop.f32.mrb[0].mxu0
        %v5172 = vadd.f32 %v4900, %v5171
        %v5173 = vpop.f32.mrb[0].mxu0
        %5174 = vmatprep.mubr.f32.mxu0 0.0
        %v5175 = vand.u32 %v4309, 4294901760
        %v5176 = vsub.f32 %v4309, %v5175
        %5177 = vmatmul.mubr.f32.gmra.mrb[0].mxu0 %v5176
        %v5178 = vpop.f32.mrb[0].mxu0
        %v5179 = vadd.f32 %v4906, %v5178
        %v5180 = vpop.f32.mrb[0].mxu0
        %5181 = vmatprep.mubr.f32.mxu0 0.0
        %v5182 = vand.u32 %v4312, 4294901760
        %v5183 = vsub.f32 %v4312, %v5182
        %5184 = vmatmul.mubr.f32.gmra.mrb[0].mxu0 %v5183
        %v5185 = vpop.f32.mrb[0].mxu0
        %v5186 = vadd.f32 %v4912, %v5185
        %v5187 = vpop.f32.mrb[0].mxu0
        %5188 = vmatprep.mubr.f32.mxu0 0.0
        %v5189 = vand.u32 %v4315, 4294901760
        %v5190 = vsub.f32 %v4315, %v5189
        %5191 = vmatmul.mubr.f32.gmra.mrb[0].mxu0 %v5190
        %v5192 = vpop.f32.mrb[0].mxu0
        %v5193 = vadd.f32 %v4918, %v5192
        %v5194 = vpop.f32.mrb[0].mxu0
        %5195 = vmatprep.mubr.f32.mxu0 0.0
        %v5196 = vand.u32 %v4318, 4294901760
        %v5197 = vsub.f32 %v4318, %v5196
        %5198 = vmatmul.mubr.f32.gmra.mrb[0].mxu0 %v5197
        %v5199 = vpop.f32.mrb[0].mxu0
        %v5200 = vadd.f32 %v4924, %v5199
        %v5201 = vpop.f32.mrb[0].mxu0
        %5202 = vmatprep.mubr.f32.mxu0 0.0
        %v5203 = vand.u32 %v4321, 4294901760
        %v5204 = vsub.f32 %v4321, %v5203
        %5205 = vmatmul.mubr.f32.gmra.mrb[0].mxu0 %v5204
        %v5206 = vpop.f32.mrb[0].mxu0
        %v5207 = vadd.f32 %v4930, %v5206
        %v5208 = vpop.f32.mrb[0].mxu0
        %5209 = vmatprep.mubr.f32.mxu0 0.0
        %v5210 = vand.u32 %v4324, 4294901760
        %v5211 = vsub.f32 %v4324, %v5210
        %5212 = vmatmul.mubr.f32.gmra.mrb[0].mxu0 %v5211
        %v5213 = vpop.f32.mrb[0].mxu0
        %v5214 = vadd.f32 %v4936, %v5213
        %v5215 = vpop.f32.mrb[0].mxu0
        %5216 = vmatprep.mubr.f32.mxu0 0.0
        %v5217 = vand.u32 %v4327, 4294901760
        %v5218 = vsub.f32 %v4327, %v5217
        %5219 = vmatmul.mubr.f32.gmra.mrb[0].mxu0 %v5218
        %v5220 = vpop.f32.mrb[0].mxu0
        %v5221 = vadd.f32 %v4942, %v5220
        %v5222 = vpop.f32.mrb[0].mxu0
        %5223 = vmatprep.mubr.f32.mxu0 0.0
        %v5224 = vand.u32 %v4330, 4294901760
        %v5225 = vsub.f32 %v4330, %v5224
        %5226 = vmatmul.mubr.f32.gmra.mrb[0].mxu0 %v5225
        %v5227 = vpop.f32.mrb[0].mxu0
        %v5228 = vadd.f32 %v4948, %v5227
        %v5229 = vpop.f32.mrb[0].mxu0
        %5230 = vmatprep.mubr.f32.mxu0 0.0
        %v5231 = vand.u32 %v4333, 4294901760
        %v5232 = vsub.f32 %v4333, %v5231
        %5233 = vmatmul.mubr.f32.gmra.mrb[0].mxu0 %v5232
        %v5234 = vpop.f32.mrb[0].mxu0
        %v5235 = vadd.f32 %v4954, %v5234
        %v5236 = vpop.f32.mrb[0].mxu0
        %5237 = vmatprep.mubr.f32.mxu0 0.0
        %v5238 = vand.u32 %v4336, 4294901760
        %v5239 = vsub.f32 %v4336, %v5238
        %5240 = vmatmul.mubr.f32.gmra.mrb[0].mxu0 %v5239
        %v5241 = vpop.f32.mrb[0].mxu0
        %v5242 = vadd.f32 %v4960, %v5241
        %v5243 = vpop.f32.mrb[0].mxu0
        %5244 = vmatprep.mubr.f32.mxu0 0.0
        %v5245 = vand.u32 %v4339, 4294901760
        %v5246 = vsub.f32 %v4339, %v5245
        %5247 = vmatmul.mubr.f32.gmra.mrb[0].mxu0 %v5246
        %v5248 = vpop.f32.mrb[0].mxu0
        %v5249 = vadd.f32 %v4966, %v5248
        %v5250 = vpop.f32.mrb[0].mxu0
        %5251 = vmatprep.mubr.f32.mxu0 0.0
        %v5252 = vand.u32 %v4342, 4294901760
        %v5253 = vsub.f32 %v4342, %v5252
        %5254 = vmatmul.mubr.f32.gmra.mrb[0].mxu0 %v5253
        %v5255 = vpop.f32.mrb[0].mxu0
        %v5256 = vadd.f32 %v4972, %v5255
        %v5257 = vpop.f32.mrb[0].mxu0
        %5258 = vmatprep.mubr.f32.mxu0 0.0
        %v5259 = vand.u32 %v4345, 4294901760
        %v5260 = vsub.f32 %v4345, %v5259
        %5261 = vmatmul.mubr.f32.gmra.mrb[0].mxu0 %v5260
        %v5262 = vpop.f32.mrb[0].mxu0
        %v5263 = vadd.f32 %v4978, %v5262
        %v5264 = vpop.f32.mrb[0].mxu0
        %5265 = vmatprep.mubr.f32.mxu0 0.0
        %v5266 = vand.u32 %v4348, 4294901760
        %v5267 = vsub.f32 %v4348, %v5266
        %5268 = vmatmul.mubr.f32.gmra.mrb[0].mxu0 %v5267
        %v5269 = vpop.f32.mrb[0].mxu0
        %v5270 = vadd.f32 %v4984, %v5269
        %v5271 = vpop.f32.mrb[0].mxu0
        %5272 = vmatprep.mubr.f32.mxu0 0.0
        %v5273 = vand.u32 %v4351, 4294901760
        %v5274 = vsub.f32 %v4351, %v5273
        %5275 = vmatmul.mubr.f32.gmra.mrb[0].mxu0 %v5274
        %v5276 = vpop.f32.mrb[0].mxu0
        %v5277 = vadd.f32 %v4990, %v5276
        %v5278 = vpop.f32.mrb[0].mxu0
        %5279 = vmatprep.mubr.f32.mxu0 0.0
        %v5280 = vand.u32 %v4354, 4294901760
        %v5281 = vsub.f32 %v4354, %v5280
        %5282 = vmatmul.mubr.f32.gmra.mrb[0].mxu0 %v5281
        %v5283 = vpop.f32.mrb[0].mxu0
        %v5284 = vadd.f32 %v4996, %v5283
        %v5285 = vpop.f32.mrb[0].mxu0
        %5286 = vmatprep.mubr.f32.mxu0 0.0
        %v5287 = vand.u32 %v4357, 4294901760
        %v5288 = vsub.f32 %v4357, %v5287
        %5289 = vmatmul.mubr.f32.gmra.mrb[0].mxu0 %v5288
        %v5290 = vpop.f32.mrb[0].mxu0
        %v5291 = vadd.f32 %v5002, %v5290
        %v5292 = vpop.f32.mrb[0].mxu0
        %5293 = vmatprep.mubr.f32.mxu0 0.0
        %v5294 = vand.u32 %v4360, 4294901760
        %v5295 = vsub.f32 %v4360, %v5294
        %5296 = vmatmul.mubr.f32.gmra.mrb[0].mxu0 %v5295
        %v5297 = vpop.f32.mrb[0].mxu0
        %v5298 = vadd.f32 %v5008, %v5297
        %v5299 = vpop.f32.mrb[0].mxu0
        %5300 = vmatprep.mubr.f32.mxu0 0.0
        %v5301 = vand.u32 %v4363, 4294901760
        %v5302 = vsub.f32 %v4363, %v5301
        %5303 = vmatmul.mubr.f32.gmra.mrb[0].mxu0 %v5302
        %v5304 = vpop.f32.mrb[0].mxu0
        %v5305 = vadd.f32 %v5014, %v5304
        %v5306 = vpop.f32.mrb[0].mxu0
        %5307 = vmatprep.mubr.f32.mxu0 0.0
        %v5308 = vand.u32 %v4366, 4294901760
        %v5309 = vsub.f32 %v4366, %v5308
        %5310 = vmatmul.mubr.f32.gmra.mrb[0].mxu0 %v5309
        %v5311 = vpop.f32.mrb[0].mxu0
        %v5312 = vadd.f32 %v5020, %v5311
        %v5313 = vpop.f32.mrb[0].mxu0
        %5314 = vmatprep.mubr.f32.mxu0 0.0
        %v5315 = vand.u32 %v4369, 4294901760
        %v5316 = vsub.f32 %v4369, %v5315
        %5317 = vmatmul.mubr.f32.gmra.mrb[0].mxu0 %v5316
        %v5318 = vpop.f32.mrb[0].mxu0
        %v5319 = vadd.f32 %v5026, %v5318
        %v5320 = vpop.f32.mrb[0].mxu0
        %5321 = vmatprep.mubr.f32.mxu0 0.0
        %v5322 = vand.u32 %v4372, 4294901760
        %v5323 = vsub.f32 %v4372, %v5322
        %5324 = vmatmul.mubr.f32.gmra.mrb[0].mxu0 %v5323
        %v5325 = vpop.f32.mrb[0].mxu0
        %v5326 = vadd.f32 %v5032, %v5325
        %v5327 = vpop.f32.mrb[0].mxu0
        %5328 = vmatprep.mubr.f32.mxu0 0.0
        %v5329 = vand.u32 %v4375, 4294901760
        %v5330 = vsub.f32 %v4375, %v5329
        %5331 = vmatmul.mubr.f32.gmra.mrb[0].mxu0 %v5330
        %v5332 = vpop.f32.mrb[0].mxu0
        %v5333 = vadd.f32 %v5038, %v5332
        %v5334 = vpop.f32.mrb[0].mxu0
        %5335 = vdwg.mxu0
        %5336 = vmatprep.subr.mxu0 0.0
        %v5337 = vand.u32 %v4270, 4294901760
        %5338 = vmatpush1.msra.mxu0 %v5337
        %5339 = vmatprep.subr.mxu0 0.0
        %v5340 = vand.u32 %v4271, 4294901760
        %5341 = vmatpush1.msra.mxu0 %v5340
        %5342 = vmatprep.subr.mxu0 0.0
        %v5343 = vand.u32 %v4379, 4294901760
        %5344 = vmatpush1.msra.mxu0 %v5343
        %5345 = vmatprep.subr.mxu0 0.0
        %5346 = vmatpush1.msra.mxu0 0.0
        %5347 = vmatprep.subr.mxu0 0.0
        %5348 = vmatpush1.msra.mxu0 0.0
        %5349 = vmatprep.subr.mxu0 0.0
        %5350 = vmatpush1.msra.mxu0 0.0
        %5351 = vmatprep.subr.mxu0 0.0
        %5352 = vmatpush1.msra.mxu0 0.0
        %5353 = vmatprep.subr.mxu0 0.0
        %5354 = vmatpush1.msra.mxu0 0.0
        %5355 = vmatprep.subr.mxu0 0.0
        %5356 = vmatpush1.msra.mxu0 0.0
        %5357 = vmatprep.subr.mxu0 0.0
        %5358 = vmatpush1.msra.mxu0 0.0
        %5359 = vmatprep.subr.mxu0 0.0
        %5360 = vmatpush1.msra.mxu0 0.0
        %5361 = vmatprep.subr.mxu0 0.0
        %5362 = vmatpush1.msra.mxu0 0.0
        %5363 = vmatprep.subr.mxu0 0.0
        %5364 = vmatpush1.msra.mxu0 0.0
        %5365 = vmatprep.subr.mxu0 0.0
        %5366 = vmatpush1.msra.mxu0 0.0
        %5367 = vmatprep.subr.mxu0 0.0
        %5368 = vmatpush1.msra.mxu0 0.0
        %5369 = vmatprep.subr.mxu0 0.0
        %5370 = vmatpush1.msra.mxu0 0.0
        %5371 = vmatprep.subr.mxu0 0.0
        %5372 = vmatpush1.msra.mxu0 0.0
        %5373 = vmatprep.subr.mxu0 0.0
        %5374 = vmatpush1.msra.mxu0 0.0
        %5375 = vmatprep.subr.mxu0 0.0
        %5376 = vmatpush1.msra.mxu0 0.0
        %5377 = vmatprep.subr.mxu0 0.0
        %5378 = vmatpush1.msra.mxu0 0.0
        %5379 = vmatprep.subr.mxu0 0.0
        %5380 = vmatpush1.msra.mxu0 0.0
        %5381 = vmatprep.subr.mxu0 0.0
        %5382 = vmatpush1.msra.mxu0 0.0
        %5383 = vmatprep.subr.mxu0 0.0
        %5384 = vmatpush1.msra.mxu0 0.0
        %5385 = vmatprep.subr.mxu0 0.0
        %5386 = vmatpush1.msra.mxu0 0.0
        %5387 = vmatprep.subr.mxu0 0.0
        %5388 = vmatpush1.msra.mxu0 0.0
        %5389 = vmatprep.subr.mxu0 0.0
        %5390 = vmatpush1.msra.mxu0 0.0
        %5391 = vmatprep.subr.mxu0 0.0
        %5392 = vmatpush1.msra.mxu0 0.0
        %5393 = vmatprep.subr.mxu0 0.0
        %5394 = vmatpush1.msra.mxu0 0.0
        %5395 = vmatprep.subr.mxu0 0.0
        %5396 = vmatpush1.msra.mxu0 0.0
        %5397 = vmatprep.subr.mxu0 0.0
        %5398 = vmatpush1.msra.mxu0 0.0
        %5399 = vmatprep.subr.mxu0 0.0
        %5400 = vmatpush1.msra.mxu0 0.0
        %5401 = vmatprep.subr.mxu0 0.0
        %5402 = vmatpush1.msra.mxu0 0.0
        %5403 = vmatprep.mubr.f32.mxu0 0.0
        %v5404 = vand.u32 %v4282, 4294901760
        %v5405 = vsub.f32 %v4282, %v5404
        %v5406 = vand.u32 %v5405, 4294901760
        %5407 = vmatmul.mubr.f32.gmra.mrb[0].mxu0 %v5406
        %v5408 = vpop.f32.mrb[0].mxu0
        %v5409 = vadd.f32 %v5116, %v5408
        %v5410 = vpop.f32.mrb[0].mxu0
        %5411 = vmatprep.mubr.f32.mxu0 0.0
        %v5412 = vand.u32 %v4285, 4294901760
        %v5413 = vsub.f32 %v4285, %v5412
        %v5414 = vand.u32 %v5413, 4294901760
        %5415 = vmatmul.mubr.f32.gmra.mrb[0].mxu0 %v5414
        %v5416 = vpop.f32.mrb[0].mxu0
        %v5417 = vadd.f32 %v5123, %v5416
        %v5418 = vpop.f32.mrb[0].mxu0
        %5419 = vmatprep.mubr.f32.mxu0 0.0
        %v5420 = vand.u32 %v4288, 4294901760
        %v5421 = vsub.f32 %v4288, %v5420
        %v5422 = vand.u32 %v5421, 4294901760
        %5423 = vmatmul.mubr.f32.gmra.mrb[0].mxu0 %v5422
        %v5424 = vpop.f32.mrb[0].mxu0
        %v5425 = vadd.f32 %v5130, %v5424
        %v5426 = vpop.f32.mrb[0].mxu0
        %5427 = vmatprep.mubr.f32.mxu0 0.0
        %v5428 = vand.u32 %v4291, 4294901760
        %v5429 = vsub.f32 %v4291, %v5428
        %v5430 = vand.u32 %v5429, 4294901760
        %5431 = vmatmul.mubr.f32.gmra.mrb[0].mxu0 %v5430
        %v5432 = vpop.f32.mrb[0].mxu0
        %v5433 = vadd.f32 %v5137, %v5432
        %v5434 = vpop.f32.mrb[0].mxu0
        %5435 = vmatprep.mubr.f32.mxu0 0.0
        %v5436 = vand.u32 %v4294, 4294901760
        %v5437 = vsub.f32 %v4294, %v5436
        %v5438 = vand.u32 %v5437, 4294901760
        %5439 = vmatmul.mubr.f32.gmra.mrb[0].mxu0 %v5438
        %v5440 = vpop.f32.mrb[0].mxu0
        %v5441 = vadd.f32 %v5144, %v5440
        %v5442 = vpop.f32.mrb[0].mxu0
        %5443 = vmatprep.mubr.f32.mxu0 0.0
        %v5444 = vand.u32 %v4297, 4294901760
        %v5445 = vsub.f32 %v4297, %v5444
        %v5446 = vand.u32 %v5445, 4294901760
        %5447 = vmatmul.mubr.f32.gmra.mrb[0].mxu0 %v5446
        %v5448 = vpop.f32.mrb[0].mxu0
        %v5449 = vadd.f32 %v5151, %v5448
        %v5450 = vpop.f32.mrb[0].mxu0
        %5451 = vmatprep.mubr.f32.mxu0 0.0
        %v5452 = vand.u32 %v4300, 4294901760
        %v5453 = vsub.f32 %v4300, %v5452
        %v5454 = vand.u32 %v5453, 4294901760
        %5455 = vmatmul.mubr.f32.gmra.mrb[0].mxu0 %v5454
        %v5456 = vpop.f32.mrb[0].mxu0
        %v5457 = vadd.f32 %v5158, %v5456
        %v5458 = vpop.f32.mrb[0].mxu0
        %5459 = vmatprep.mubr.f32.mxu0 0.0
        %v5460 = vand.u32 %v4303, 4294901760
        %v5461 = vsub.f32 %v4303, %v5460
        %v5462 = vand.u32 %v5461, 4294901760
        %5463 = vmatmul.mubr.f32.gmra.mrb[0].mxu0 %v5462
        %v5464 = vpop.f32.mrb[0].mxu0
        %v5465 = vadd.f32 %v5165, %v5464
        %v5466 = vpop.f32.mrb[0].mxu0
        %5467 = vmatprep.mubr.f32.mxu0 0.0
        %v5468 = vand.u32 %v4306, 4294901760
        %v5469 = vsub.f32 %v4306, %v5468
        %v5470 = vand.u32 %v5469, 4294901760
        %5471 = vmatmul.mubr.f32.gmra.mrb[0].mxu0 %v5470
        %v5472 = vpop.f32.mrb[0].mxu0
        %v5473 = vadd.f32 %v5172, %v5472
        %v5474 = vpop.f32.mrb[0].mxu0
        %5475 = vmatprep.mubr.f32.mxu0 0.0
        %v5476 = vand.u32 %v4309, 4294901760
        %v5477 = vsub.f32 %v4309, %v5476
        %v5478 = vand.u32 %v5477, 4294901760
        %5479 = vmatmul.mubr.f32.gmra.mrb[0].mxu0 %v5478
        %v5480 = vpop.f32.mrb[0].mxu0
        %v5481 = vadd.f32 %v5179, %v5480
        %v5482 = vpop.f32.mrb[0].mxu0
        %5483 = vmatprep.mubr.f32.mxu0 0.0
        %v5484 = vand.u32 %v4312, 4294901760
        %v5485 = vsub.f32 %v4312, %v5484
        %v5486 = vand.u32 %v5485, 4294901760
        %5487 = vmatmul.mubr.f32.gmra.mrb[0].mxu0 %v5486
        %v5488 = vpop.f32.mrb[0].mxu0
        %v5489 = vadd.f32 %v5186, %v5488
        %v5490 = vpop.f32.mrb[0].mxu0
        %5491 = vmatprep.mubr.f32.mxu0 0.0
        %v5492 = vand.u32 %v4315, 4294901760
        %v5493 = vsub.f32 %v4315, %v5492
        %v5494 = vand.u32 %v5493, 4294901760
        %5495 = vmatmul.mubr.f32.gmra.mrb[0].mxu0 %v5494
        %v5496 = vpop.f32.mrb[0].mxu0
        %v5497 = vadd.f32 %v5193, %v5496
        %v5498 = vpop.f32.mrb[0].mxu0
        %5499 = vmatprep.mubr.f32.mxu0 0.0
        %v5500 = vand.u32 %v4318, 4294901760
        %v5501 = vsub.f32 %v4318, %v5500
        %v5502 = vand.u32 %v5501, 4294901760
        %5503 = vmatmul.mubr.f32.gmra.mrb[0].mxu0 %v5502
        %v5504 = vpop.f32.mrb[0].mxu0
        %v5505 = vadd.f32 %v5200, %v5504
        %v5506 = vpop.f32.mrb[0].mxu0
        %5507 = vmatprep.mubr.f32.mxu0 0.0
        %v5508 = vand.u32 %v4321, 4294901760
        %v5509 = vsub.f32 %v4321, %v5508
        %v5510 = vand.u32 %v5509, 4294901760
        %5511 = vmatmul.mubr.f32.gmra.mrb[0].mxu0 %v5510
        %v5512 = vpop.f32.mrb[0].mxu0
        %v5513 = vadd.f32 %v5207, %v5512
        %v5514 = vpop.f32.mrb[0].mxu0
        %5515 = vmatprep.mubr.f32.mxu0 0.0
        %v5516 = vand.u32 %v4324, 4294901760
        %v5517 = vsub.f32 %v4324, %v5516
        %v5518 = vand.u32 %v5517, 4294901760
        %5519 = vmatmul.mubr.f32.gmra.mrb[0].mxu0 %v5518
        %v5520 = vpop.f32.mrb[0].mxu0
        %v5521 = vadd.f32 %v5214, %v5520
        %v5522 = vpop.f32.mrb[0].mxu0
        %5523 = vmatprep.mubr.f32.mxu0 0.0
        %v5524 = vand.u32 %v4327, 4294901760
        %v5525 = vsub.f32 %v4327, %v5524
        %v5526 = vand.u32 %v5525, 4294901760
        %5527 = vmatmul.mubr.f32.gmra.mrb[0].mxu0 %v5526
        %v5528 = vpop.f32.mrb[0].mxu0
        %v5529 = vadd.f32 %v5221, %v5528
        %v5530 = vpop.f32.mrb[0].mxu0
        %5531 = vmatprep.mubr.f32.mxu0 0.0
        %v5532 = vand.u32 %v4330, 4294901760
        %v5533 = vsub.f32 %v4330, %v5532
        %v5534 = vand.u32 %v5533, 4294901760
        %5535 = vmatmul.mubr.f32.gmra.mrb[0].mxu0 %v5534
        %v5536 = vpop.f32.mrb[0].mxu0
        %v5537 = vadd.f32 %v5228, %v5536
        %v5538 = vpop.f32.mrb[0].mxu0
        %5539 = vmatprep.mubr.f32.mxu0 0.0
        %v5540 = vand.u32 %v4333, 4294901760
        %v5541 = vsub.f32 %v4333, %v5540
        %v5542 = vand.u32 %v5541, 4294901760
        %5543 = vmatmul.mubr.f32.gmra.mrb[0].mxu0 %v5542
        %v5544 = vpop.f32.mrb[0].mxu0
        %v5545 = vadd.f32 %v5235, %v5544
        %v5546 = vpop.f32.mrb[0].mxu0
        %5547 = vmatprep.mubr.f32.mxu0 0.0
        %v5548 = vand.u32 %v4336, 4294901760
        %v5549 = vsub.f32 %v4336, %v5548
        %v5550 = vand.u32 %v5549, 4294901760
        %5551 = vmatmul.mubr.f32.gmra.mrb[0].mxu0 %v5550
        %v5552 = vpop.f32.mrb[0].mxu0
        %v5553 = vadd.f32 %v5242, %v5552
        %v5554 = vpop.f32.mrb[0].mxu0
        %5555 = vmatprep.mubr.f32.mxu0 0.0
        %v5556 = vand.u32 %v4339, 4294901760
        %v5557 = vsub.f32 %v4339, %v5556
        %v5558 = vand.u32 %v5557, 4294901760
        %5559 = vmatmul.mubr.f32.gmra.mrb[0].mxu0 %v5558
        %v5560 = vpop.f32.mrb[0].mxu0
        %v5561 = vadd.f32 %v5249, %v5560
        %v5562 = vpop.f32.mrb[0].mxu0
        %5563 = vmatprep.mubr.f32.mxu0 0.0
        %v5564 = vand.u32 %v4342, 4294901760
        %v5565 = vsub.f32 %v4342, %v5564
        %v5566 = vand.u32 %v5565, 4294901760
        %5567 = vmatmul.mubr.f32.gmra.mrb[0].mxu0 %v5566
        %v5568 = vpop.f32.mrb[0].mxu0
        %v5569 = vadd.f32 %v5256, %v5568
        %v5570 = vpop.f32.mrb[0].mxu0
        %5571 = vmatprep.mubr.f32.mxu0 0.0
        %v5572 = vand.u32 %v4345, 4294901760
        %v5573 = vsub.f32 %v4345, %v5572
        %v5574 = vand.u32 %v5573, 4294901760
        %5575 = vmatmul.mubr.f32.gmra.mrb[0].mxu0 %v5574
        %v5576 = vpop.f32.mrb[0].mxu0
        %v5577 = vadd.f32 %v5263, %v5576
        %v5578 = vpop.f32.mrb[0].mxu0
        %5579 = vmatprep.mubr.f32.mxu0 0.0
        %v5580 = vand.u32 %v4348, 4294901760
        %v5581 = vsub.f32 %v4348, %v5580
        %v5582 = vand.u32 %v5581, 4294901760
        %5583 = vmatmul.mubr.f32.gmra.mrb[0].mxu0 %v5582
        %v5584 = vpop.f32.mrb[0].mxu0
        %v5585 = vadd.f32 %v5270, %v5584
        %v5586 = vpop.f32.mrb[0].mxu0
        %5587 = vmatprep.mubr.f32.mxu0 0.0
        %v5588 = vand.u32 %v4351, 4294901760
        %v5589 = vsub.f32 %v4351, %v5588
        %v5590 = vand.u32 %v5589, 4294901760
        %5591 = vmatmul.mubr.f32.gmra.mrb[0].mxu0 %v5590
        %v5592 = vpop.f32.mrb[0].mxu0
        %v5593 = vadd.f32 %v5277, %v5592
        %v5594 = vpop.f32.mrb[0].mxu0
        %5595 = vmatprep.mubr.f32.mxu0 0.0
        %v5596 = vand.u32 %v4354, 4294901760
        %v5597 = vsub.f32 %v4354, %v5596
        %v5598 = vand.u32 %v5597, 4294901760
        %5599 = vmatmul.mubr.f32.gmra.mrb[0].mxu0 %v5598
        %v5600 = vpop.f32.mrb[0].mxu0
        %v5601 = vadd.f32 %v5284, %v5600
        %v5602 = vpop.f32.mrb[0].mxu0
        %5603 = vmatprep.mubr.f32.mxu0 0.0
        %v5604 = vand.u32 %v4357, 4294901760
        %v5605 = vsub.f32 %v4357, %v5604
        %v5606 = vand.u32 %v5605, 4294901760
        %5607 = vmatmul.mubr.f32.gmra.mrb[0].mxu0 %v5606
        %v5608 = vpop.f32.mrb[0].mxu0
        %v5609 = vadd.f32 %v5291, %v5608
        %v5610 = vpop.f32.mrb[0].mxu0
        %5611 = vmatprep.mubr.f32.mxu0 0.0
        %v5612 = vand.u32 %v4360, 4294901760
        %v5613 = vsub.f32 %v4360, %v5612
        %v5614 = vand.u32 %v5613, 4294901760
        %5615 = vmatmul.mubr.f32.gmra.mrb[0].mxu0 %v5614
        %v5616 = vpop.f32.mrb[0].mxu0
        %v5617 = vadd.f32 %v5298, %v5616
        %v5618 = vpop.f32.mrb[0].mxu0
        %5619 = vmatprep.mubr.f32.mxu0 0.0
        %v5620 = vand.u32 %v4363, 4294901760
        %v5621 = vsub.f32 %v4363, %v5620
        %v5622 = vand.u32 %v5621, 4294901760
        %5623 = vmatmul.mubr.f32.gmra.mrb[0].mxu0 %v5622
        %v5624 = vpop.f32.mrb[0].mxu0
        %v5625 = vadd.f32 %v5305, %v5624
        %v5626 = vpop.f32.mrb[0].mxu0
        %5627 = vmatprep.mubr.f32.mxu0 0.0
        %v5628 = vand.u32 %v4366, 4294901760
        %v5629 = vsub.f32 %v4366, %v5628
        %v5630 = vand.u32 %v5629, 4294901760
        %5631 = vmatmul.mubr.f32.gmra.mrb[0].mxu0 %v5630
        %v5632 = vpop.f32.mrb[0].mxu0
        %v5633 = vadd.f32 %v5312, %v5632
        %v5634 = vpop.f32.mrb[0].mxu0
        %5635 = vmatprep.mubr.f32.mxu0 0.0
        %v5636 = vand.u32 %v4369, 4294901760
        %v5637 = vsub.f32 %v4369, %v5636
        %v5638 = vand.u32 %v5637, 4294901760
        %5639 = vmatmul.mubr.f32.gmra.mrb[0].mxu0 %v5638
        %v5640 = vpop.f32.mrb[0].mxu0
        %v5641 = vadd.f32 %v5319, %v5640
        %v5642 = vpop.f32.mrb[0].mxu0
        %5643 = vmatprep.mubr.f32.mxu0 0.0
        %v5644 = vand.u32 %v4372, 4294901760
        %v5645 = vsub.f32 %v4372, %v5644
        %v5646 = vand.u32 %v5645, 4294901760
        %5647 = vmatmul.mubr.f32.gmra.mrb[0].mxu0 %v5646
        %v5648 = vpop.f32.mrb[0].mxu0
        %v5649 = vadd.f32 %v5326, %v5648
        %v5650 = vpop.f32.mrb[0].mxu0
        %5651 = vmatprep.mubr.f32.mxu0 0.0
        %v5652 = vand.u32 %v4375, 4294901760
        %v5653 = vsub.f32 %v4375, %v5652
        %v5654 = vand.u32 %v5653, 4294901760
        %5655 = vmatmul.mubr.f32.gmra.mrb[0].mxu0 %v5654
        %v5656 = vpop.f32.mrb[0].mxu0
        %v5657 = vadd.f32 %v5333, %v5656
        %v5658 = vpop.f32.mrb[0].mxu0
        %5659 = vdwg.mxu0
        %5660 = vmatprep.subr.mxu0 0.0
        %v5661 = vand.u32 %v4270, 4294901760
        %v5662 = vsub.f32 %v4270, %v5661
        %v5663 = vand.u32 %v5662, 4294901760
        %5664 = vmatpush1.msra.mxu0 %v5663
        %5665 = vmatprep.subr.mxu0 0.0
        %v5666 = vand.u32 %v4271, 4294901760
        %v5667 = vsub.f32 %v4271, %v5666
        %v5668 = vand.u32 %v5667, 4294901760
        %5669 = vmatpush1.msra.mxu0 %v5668
        %5670 = vmatprep.subr.mxu0 0.0
        %v5671 = vand.u32 %v4379, 4294901760
        %v5672 = vsub.f32 %v4379, %v5671
        %v5673 = vand.u32 %v5672, 4294901760
        %5674 = vmatpush1.msra.mxu0 %v5673
        %5675 = vmatprep.subr.mxu0 0.0
        %5676 = vmatpush1.msra.mxu0 0.0
        %5677 = vmatprep.subr.mxu0 0.0
        %5678 = vmatpush1.msra.mxu0 0.0
        %5679 = vmatprep.subr.mxu0 0.0
        %5680 = vmatpush1.msra.mxu0 0.0
        %5681 = vmatprep.subr.mxu0 0.0
        %5682 = vmatpush1.msra.mxu0 0.0
        %5683 = vmatprep.subr.mxu0 0.0
        %5684 = vmatpush1.msra.mxu0 0.0
        %5685 = vmatprep.subr.mxu0 0.0
        %5686 = vmatpush1.msra.mxu0 0.0
        %5687 = vmatprep.subr.mxu0 0.0
        %5688 = vmatpush1.msra.mxu0 0.0
        %5689 = vmatprep.subr.mxu0 0.0
        %5690 = vmatpush1.msra.mxu0 0.0
        %5691 = vmatprep.subr.mxu0 0.0
        %5692 = vmatpush1.msra.mxu0 0.0
        %5693 = vmatprep.subr.mxu0 0.0
        %5694 = vmatpush1.msra.mxu0 0.0
        %5695 = vmatprep.subr.mxu0 0.0
        %5696 = vmatpush1.msra.mxu0 0.0
        %5697 = vmatprep.subr.mxu0 0.0
        %5698 = vmatpush1.msra.mxu0 0.0
        %5699 = vmatprep.subr.mxu0 0.0
        %5700 = vmatpush1.msra.mxu0 0.0
        %5701 = vmatprep.subr.mxu0 0.0
        %5702 = vmatpush1.msra.mxu0 0.0
        %5703 = vmatprep.subr.mxu0 0.0
        %5704 = vmatpush1.msra.mxu0 0.0
        %5705 = vmatprep.subr.mxu0 0.0
        %5706 = vmatpush1.msra.mxu0 0.0
        %5707 = vmatprep.subr.mxu0 0.0
        %5708 = vmatpush1.msra.mxu0 0.0
        %5709 = vmatprep.subr.mxu0 0.0
        %5710 = vmatpush1.msra.mxu0 0.0
        %5711 = vmatprep.subr.mxu0 0.0
        %5712 = vmatpush1.msra.mxu0 0.0
        %5713 = vmatprep.subr.mxu0 0.0
        %5714 = vmatpush1.msra.mxu0 0.0
        %5715 = vmatprep.subr.mxu0 0.0
        %5716 = vmatpush1.msra.mxu0 0.0
        %5717 = vmatprep.subr.mxu0 0.0
        %5718 = vmatpush1.msra.mxu0 0.0
        %5719 = vmatprep.subr.mxu0 0.0
        %5720 = vmatpush1.msra.mxu0 0.0
        %5721 = vmatprep.subr.mxu0 0.0
        %5722 = vmatpush1.msra.mxu0 0.0
        %5723 = vmatprep.subr.mxu0 0.0
        %5724 = vmatpush1.msra.mxu0 0.0
        %5725 = vmatprep.subr.mxu0 0.0
        %5726 = vmatpush1.msra.mxu0 0.0
        %5727 = vmatprep.subr.mxu0 0.0
        %5728 = vmatpush1.msra.mxu0 0.0
        %5729 = vmatprep.subr.mxu0 0.0
        %5730 = vmatpush1.msra.mxu0 0.0
        %5731 = vmatprep.subr.mxu0 0.0
        %5732 = vmatpush1.msra.mxu0 0.0
        %5733 = vmatprep.mubr.f32.mxu0 0.0
        %v5734 = vand.u32 %v4282, 4294901760
        %5735 = vmatmul.mubr.f32.gmra.mrb[0].mxu0 %v5734
        %v5736 = vpop.f32.mrb[0].mxu0
        %v5737 = vadd.f32 %v5409, %v5736
        %v5738 = vpop.f32.mrb[0].mxu0
        %5739 = vmatprep.mubr.f32.mxu0 0.0
        %v5740 = vand.u32 %v4285, 4294901760
        %5741 = vmatmul.mubr.f32.gmra.mrb[0].mxu0 %v5740
        %v5742 = vpop.f32.mrb[0].mxu0
        %v5743 = vadd.f32 %v5417, %v5742
        %v5744 = vpop.f32.mrb[0].mxu0
        %5745 = vmatprep.mubr.f32.mxu0 0.0
        %v5746 = vand.u32 %v4288, 4294901760
        %5747 = vmatmul.mubr.f32.gmra.mrb[0].mxu0 %v5746
        %v5748 = vpop.f32.mrb[0].mxu0
        %v5749 = vadd.f32 %v5425, %v5748
        %v5750 = vpop.f32.mrb[0].mxu0
        %5751 = vmatprep.mubr.f32.mxu0 0.0
        %v5752 = vand.u32 %v4291, 4294901760
        %5753 = vmatmul.mubr.f32.gmra.mrb[0].mxu0 %v5752
        %v5754 = vpop.f32.mrb[0].mxu0
        %v5755 = vadd.f32 %v5433, %v5754
        %v5756 = vpop.f32.mrb[0].mxu0
        %5757 = vmatprep.mubr.f32.mxu0 0.0
        %v5758 = vand.u32 %v4294, 4294901760
        %5759 = vmatmul.mubr.f32.gmra.mrb[0].mxu0 %v5758
        %v5760 = vpop.f32.mrb[0].mxu0
        %v5761 = vadd.f32 %v5441, %v5760
        %v5762 = vpop.f32.mrb[0].mxu0
        %5763 = vmatprep.mubr.f32.mxu0 0.0
        %v5764 = vand.u32 %v4297, 4294901760
        %5765 = vmatmul.mubr.f32.gmra.mrb[0].mxu0 %v5764
        %v5766 = vpop.f32.mrb[0].mxu0
        %v5767 = vadd.f32 %v5449, %v5766
        %v5768 = vpop.f32.mrb[0].mxu0
        %5769 = vmatprep.mubr.f32.mxu0 0.0
        %v5770 = vand.u32 %v4300, 4294901760
        %5771 = vmatmul.mubr.f32.gmra.mrb[0].mxu0 %v5770
        %v5772 = vpop.f32.mrb[0].mxu0
        %v5773 = vadd.f32 %v5457, %v5772
        %v5774 = vpop.f32.mrb[0].mxu0
        %5775 = vmatprep.mubr.f32.mxu0 0.0
        %v5776 = vand.u32 %v4303, 4294901760
        %5777 = vmatmul.mubr.f32.gmra.mrb[0].mxu0 %v5776
        %v5778 = vpop.f32.mrb[0].mxu0
        %v5779 = vadd.f32 %v5465, %v5778
        %v5780 = vpop.f32.mrb[0].mxu0
        %5781 = vmatprep.mubr.f32.mxu0 0.0
        %v5782 = vand.u32 %v4306, 4294901760
        %5783 = vmatmul.mubr.f32.gmra.mrb[0].mxu0 %v5782
        %v5784 = vpop.f32.mrb[0].mxu0
        %v5785 = vadd.f32 %v5473, %v5784
        %v5786 = vpop.f32.mrb[0].mxu0
        %5787 = vmatprep.mubr.f32.mxu0 0.0
        %v5788 = vand.u32 %v4309, 4294901760
        %5789 = vmatmul.mubr.f32.gmra.mrb[0].mxu0 %v5788
        %v5790 = vpop.f32.mrb[0].mxu0
        %v5791 = vadd.f32 %v5481, %v5790
        %v5792 = vpop.f32.mrb[0].mxu0
        %5793 = vmatprep.mubr.f32.mxu0 0.0
        %v5794 = vand.u32 %v4312, 4294901760
        %5795 = vmatmul.mubr.f32.gmra.mrb[0].mxu0 %v5794
        %v5796 = vpop.f32.mrb[0].mxu0
        %v5797 = vadd.f32 %v5489, %v5796
        %v5798 = vpop.f32.mrb[0].mxu0
        %5799 = vmatprep.mubr.f32.mxu0 0.0
        %v5800 = vand.u32 %v4315, 4294901760
        %5801 = vmatmul.mubr.f32.gmra.mrb[0].mxu0 %v5800
        %v5802 = vpop.f32.mrb[0].mxu0
        %v5803 = vadd.f32 %v5497, %v5802
        %v5804 = vpop.f32.mrb[0].mxu0
        %5805 = vmatprep.mubr.f32.mxu0 0.0
        %v5806 = vand.u32 %v4318, 4294901760
        %5807 = vmatmul.mubr.f32.gmra.mrb[0].mxu0 %v5806
        %v5808 = vpop.f32.mrb[0].mxu0
        %v5809 = vadd.f32 %v5505, %v5808
        %v5810 = vpop.f32.mrb[0].mxu0
        %5811 = vmatprep.mubr.f32.mxu0 0.0
        %v5812 = vand.u32 %v4321, 4294901760
        %5813 = vmatmul.mubr.f32.gmra.mrb[0].mxu0 %v5812
        %v5814 = vpop.f32.mrb[0].mxu0
        %v5815 = vadd.f32 %v5513, %v5814
        %v5816 = vpop.f32.mrb[0].mxu0
        %5817 = vmatprep.mubr.f32.mxu0 0.0
        %v5818 = vand.u32 %v4324, 4294901760
        %5819 = vmatmul.mubr.f32.gmra.mrb[0].mxu0 %v5818
        %v5820 = vpop.f32.mrb[0].mxu0
        %v5821 = vadd.f32 %v5521, %v5820
        %v5822 = vpop.f32.mrb[0].mxu0
        %5823 = vmatprep.mubr.f32.mxu0 0.0
        %v5824 = vand.u32 %v4327, 4294901760
        %5825 = vmatmul.mubr.f32.gmra.mrb[0].mxu0 %v5824
        %v5826 = vpop.f32.mrb[0].mxu0
        %v5827 = vadd.f32 %v5529, %v5826
        %v5828 = vpop.f32.mrb[0].mxu0
        %5829 = vmatprep.mubr.f32.mxu0 0.0
        %v5830 = vand.u32 %v4330, 4294901760
        %5831 = vmatmul.mubr.f32.gmra.mrb[0].mxu0 %v5830
        %v5832 = vpop.f32.mrb[0].mxu0
        %v5833 = vadd.f32 %v5537, %v5832
        %v5834 = vpop.f32.mrb[0].mxu0
        %5835 = vmatprep.mubr.f32.mxu0 0.0
        %v5836 = vand.u32 %v4333, 4294901760
        %5837 = vmatmul.mubr.f32.gmra.mrb[0].mxu0 %v5836
        %v5838 = vpop.f32.mrb[0].mxu0
        %v5839 = vadd.f32 %v5545, %v5838
        %v5840 = vpop.f32.mrb[0].mxu0
        %5841 = vmatprep.mubr.f32.mxu0 0.0
        %v5842 = vand.u32 %v4336, 4294901760
        %5843 = vmatmul.mubr.f32.gmra.mrb[0].mxu0 %v5842
        %v5844 = vpop.f32.mrb[0].mxu0
        %v5845 = vadd.f32 %v5553, %v5844
        %v5846 = vpop.f32.mrb[0].mxu0
        %5847 = vmatprep.mubr.f32.mxu0 0.0
        %v5848 = vand.u32 %v4339, 4294901760
        %5849 = vmatmul.mubr.f32.gmra.mrb[0].mxu0 %v5848
        %v5850 = vpop.f32.mrb[0].mxu0
        %v5851 = vadd.f32 %v5561, %v5850
        %v5852 = vpop.f32.mrb[0].mxu0
        %5853 = vmatprep.mubr.f32.mxu0 0.0
        %v5854 = vand.u32 %v4342, 4294901760
        %5855 = vmatmul.mubr.f32.gmra.mrb[0].mxu0 %v5854
        %v5856 = vpop.f32.mrb[0].mxu0
        %v5857 = vadd.f32 %v5569, %v5856
        %v5858 = vpop.f32.mrb[0].mxu0
        %5859 = vmatprep.mubr.f32.mxu0 0.0
        %v5860 = vand.u32 %v4345, 4294901760
        %5861 = vmatmul.mubr.f32.gmra.mrb[0].mxu0 %v5860
        %v5862 = vpop.f32.mrb[0].mxu0
        %v5863 = vadd.f32 %v5577, %v5862
        %v5864 = vpop.f32.mrb[0].mxu0
        %5865 = vmatprep.mubr.f32.mxu0 0.0
        %v5866 = vand.u32 %v4348, 4294901760
        %5867 = vmatmul.mubr.f32.gmra.mrb[0].mxu0 %v5866
        %v5868 = vpop.f32.mrb[0].mxu0
        %v5869 = vadd.f32 %v5585, %v5868
        %v5870 = vpop.f32.mrb[0].mxu0
        %5871 = vmatprep.mubr.f32.mxu0 0.0
        %v5872 = vand.u32 %v4351, 4294901760
        %5873 = vmatmul.mubr.f32.gmra.mrb[0].mxu0 %v5872
        %v5874 = vpop.f32.mrb[0].mxu0
        %v5875 = vadd.f32 %v5593, %v5874
        %v5876 = vpop.f32.mrb[0].mxu0
        %5877 = vmatprep.mubr.f32.mxu0 0.0
        %v5878 = vand.u32 %v4354, 4294901760
        %5879 = vmatmul.mubr.f32.gmra.mrb[0].mxu0 %v5878
        %v5880 = vpop.f32.mrb[0].mxu0
        %v5881 = vadd.f32 %v5601, %v5880
        %v5882 = vpop.f32.mrb[0].mxu0
        %5883 = vmatprep.mubr.f32.mxu0 0.0
        %v5884 = vand.u32 %v4357, 4294901760
        %5885 = vmatmul.mubr.f32.gmra.mrb[0].mxu0 %v5884
        %v5886 = vpop.f32.mrb[0].mxu0
        %v5887 = vadd.f32 %v5609, %v5886
        %v5888 = vpop.f32.mrb[0].mxu0
        %5889 = vmatprep.mubr.f32.mxu0 0.0
        %v5890 = vand.u32 %v4360, 4294901760
        %5891 = vmatmul.mubr.f32.gmra.mrb[0].mxu0 %v5890
        %v5892 = vpop.f32.mrb[0].mxu0
        %v5893 = vadd.f32 %v5617, %v5892
        %v5894 = vpop.f32.mrb[0].mxu0
        %5895 = vmatprep.mubr.f32.mxu0 0.0
        %v5896 = vand.u32 %v4363, 4294901760
        %5897 = vmatmul.mubr.f32.gmra.mrb[0].mxu0 %v5896
        %v5898 = vpop.f32.mrb[0].mxu0
        %v5899 = vadd.f32 %v5625, %v5898
        %v5900 = vpop.f32.mrb[0].mxu0
        %5901 = vmatprep.mubr.f32.mxu0 0.0
        %v5902 = vand.u32 %v4366, 4294901760
        %5903 = vmatmul.mubr.f32.gmra.mrb[0].mxu0 %v5902
        %v5904 = vpop.f32.mrb[0].mxu0
        %v5905 = vadd.f32 %v5633, %v5904
        %v5906 = vpop.f32.mrb[0].mxu0
        %5907 = vmatprep.mubr.f32.mxu0 0.0
        %v5908 = vand.u32 %v4369, 4294901760
        %5909 = vmatmul.mubr.f32.gmra.mrb[0].mxu0 %v5908
        %v5910 = vpop.f32.mrb[0].mxu0
        %v5911 = vadd.f32 %v5641, %v5910
        %v5912 = vpop.f32.mrb[0].mxu0
        %5913 = vmatprep.mubr.f32.mxu0 0.0
        %v5914 = vand.u32 %v4372, 4294901760
        %5915 = vmatmul.mubr.f32.gmra.mrb[0].mxu0 %v5914
        %v5916 = vpop.f32.mrb[0].mxu0
        %v5917 = vadd.f32 %v5649, %v5916
        %v5918 = vpop.f32.mrb[0].mxu0
        %5919 = vmatprep.mubr.f32.mxu0 0.0
        %v5920 = vand.u32 %v4375, 4294901760
        %5921 = vmatmul.mubr.f32.gmra.mrb[0].mxu0 %v5920
        %v5922 = vpop.f32.mrb[0].mxu0
        %v5923 = vadd.f32 %v5657, %v5922
        %v5924 = vpop.f32.mrb[0].mxu0
        %5925 = vdwg.mxu0
        %5926 = vmatprep.subr.mxu0 0.0
        %v5927 = vand.u32 %v4270, 4294901760
        %5928 = vmatpush1.msra.mxu0 %v5927
        %5929 = vmatprep.subr.mxu0 0.0
        %v5930 = vand.u32 %v4271, 4294901760
        %5931 = vmatpush1.msra.mxu0 %v5930
        %5932 = vmatprep.subr.mxu0 0.0
        %v5933 = vand.u32 %v4379, 4294901760
        %5934 = vmatpush1.msra.mxu0 %v5933
        %5935 = vmatprep.subr.mxu0 0.0
        %5936 = vmatpush1.msra.mxu0 0.0
        %5937 = vmatprep.subr.mxu0 0.0
        %5938 = vmatpush1.msra.mxu0 0.0
        %5939 = vmatprep.subr.mxu0 0.0
        %5940 = vmatpush1.msra.mxu0 0.0
        %5941 = vmatprep.subr.mxu0 0.0
        %5942 = vmatpush1.msra.mxu0 0.0
        %5943 = vmatprep.subr.mxu0 0.0
        %5944 = vmatpush1.msra.mxu0 0.0
        %5945 = vmatprep.subr.mxu0 0.0
        %5946 = vmatpush1.msra.mxu0 0.0
        %5947 = vmatprep.subr.mxu0 0.0
        %5948 = vmatpush1.msra.mxu0 0.0
        %5949 = vmatprep.subr.mxu0 0.0
        %5950 = vmatpush1.msra.mxu0 0.0
        %5951 = vmatprep.subr.mxu0 0.0
        %5952 = vmatpush1.msra.mxu0 0.0
        %5953 = vmatprep.subr.mxu0 0.0
        %5954 = vmatpush1.msra.mxu0 0.0
        %5955 = vmatprep.subr.mxu0 0.0
        %5956 = vmatpush1.msra.mxu0 0.0
        %5957 = vmatprep.subr.mxu0 0.0
        %5958 = vmatpush1.msra.mxu0 0.0
        %5959 = vmatprep.subr.mxu0 0.0
        %5960 = vmatpush1.msra.mxu0 0.0
        %5961 = vmatprep.subr.mxu0 0.0
        %5962 = vmatpush1.msra.mxu0 0.0
        %5963 = vmatprep.subr.mxu0 0.0
        %5964 = vmatpush1.msra.mxu0 0.0
        %5965 = vmatprep.subr.mxu0 0.0
        %5966 = vmatpush1.msra.mxu0 0.0
        %5967 = vmatprep.subr.mxu0 0.0
        %5968 = vmatpush1.msra.mxu0 0.0
        %5969 = vmatprep.subr.mxu0 0.0
        %5970 = vmatpush1.msra.mxu0 0.0
        %5971 = vmatprep.subr.mxu0 0.0
        %5972 = vmatpush1.msra.mxu0 0.0
        %5973 = vmatprep.subr.mxu0 0.0
        %5974 = vmatpush1.msra.mxu0 0.0
        %5975 = vmatprep.subr.mxu0 0.0
        %5976 = vmatpush1.msra.mxu0 0.0
        %5977 = vmatprep.subr.mxu0 0.0
        %5978 = vmatpush1.msra.mxu0 0.0
        %5979 = vmatprep.subr.mxu0 0.0
        %5980 = vmatpush1.msra.mxu0 0.0
        %5981 = vmatprep.subr.mxu0 0.0
        %5982 = vmatpush1.msra.mxu0 0.0
        %5983 = vmatprep.subr.mxu0 0.0
        %5984 = vmatpush1.msra.mxu0 0.0
        %5985 = vmatprep.subr.mxu0 0.0
        %5986 = vmatpush1.msra.mxu0 0.0
        %5987 = vmatprep.subr.mxu0 0.0
        %5988 = vmatpush1.msra.mxu0 0.0
        %5989 = vmatprep.subr.mxu0 0.0
        %5990 = vmatpush1.msra.mxu0 0.0
        %5991 = vmatprep.subr.mxu0 0.0
        %5992 = vmatpush1.msra.mxu0 0.0
        %5993 = vmatprep.mubr.f32.mxu0 0.0
        %v5994 = vand.u32 %v4282, 4294901760
        %5995 = vmatmul.mubr.f32.gmra.mrb[0].mxu0 %v5994
        %v5996 = vpop.f32.mrb[0].mxu0
        %v5997 = vadd.f32 %v5737, %v5996
        %v5998 = vpop.f32.mrb[0].mxu0
        %5999 = vmatprep.mubr.f32.mxu0 0.0
        %v6000 = vand.u32 %v4285, 4294901760
        %6001 = vmatmul.mubr.f32.gmra.mrb[0].mxu0 %v6000
        %v6002 = vpop.f32.mrb[0].mxu0
        %v6003 = vadd.f32 %v5743, %v6002
        %v6004 = vpop.f32.mrb[0].mxu0
        %6005 = vmatprep.mubr.f32.mxu0 0.0
        %v6006 = vand.u32 %v4288, 4294901760
        %6007 = vmatmul.mubr.f32.gmra.mrb[0].mxu0 %v6006
        %v6008 = vpop.f32.mrb[0].mxu0
        %v6009 = vadd.f32 %v5749, %v6008
        %v6010 = vpop.f32.mrb[0].mxu0
        %6011 = vmatprep.mubr.f32.mxu0 0.0
        %v6012 = vand.u32 %v4291, 4294901760
        %6013 = vmatmul.mubr.f32.gmra.mrb[0].mxu0 %v6012
        %v6014 = vpop.f32.mrb[0].mxu0
        %v6015 = vadd.f32 %v5755, %v6014
        %v6016 = vpop.f32.mrb[0].mxu0
        %6017 = vmatprep.mubr.f32.mxu0 0.0
        %v6018 = vand.u32 %v4294, 4294901760
        %6019 = vmatmul.mubr.f32.gmra.mrb[0].mxu0 %v6018
        %v6020 = vpop.f32.mrb[0].mxu0
        %v6021 = vadd.f32 %v5761, %v6020
        %v6022 = vpop.f32.mrb[0].mxu0
        %6023 = vmatprep.mubr.f32.mxu0 0.0
        %v6024 = vand.u32 %v4297, 4294901760
        %6025 = vmatmul.mubr.f32.gmra.mrb[0].mxu0 %v6024
        %v6026 = vpop.f32.mrb[0].mxu0
        %v6027 = vadd.f32 %v5767, %v6026
        %v6028 = vpop.f32.mrb[0].mxu0
        %6029 = vmatprep.mubr.f32.mxu0 0.0
        %v6030 = vand.u32 %v4300, 4294901760
        %6031 = vmatmul.mubr.f32.gmra.mrb[0].mxu0 %v6030
        %v6032 = vpop.f32.mrb[0].mxu0
        %v6033 = vadd.f32 %v5773, %v6032
        %v6034 = vpop.f32.mrb[0].mxu0
        %6035 = vmatprep.mubr.f32.mxu0 0.0
        %v6036 = vand.u32 %v4303, 4294901760
        %6037 = vmatmul.mubr.f32.gmra.mrb[0].mxu0 %v6036
        %v6038 = vpop.f32.mrb[0].mxu0
        %v6039 = vadd.f32 %v5779, %v6038
        %v6040 = vpop.f32.mrb[0].mxu0
        %6041 = vmatprep.mubr.f32.mxu0 0.0
        %v6042 = vand.u32 %v4306, 4294901760
        %6043 = vmatmul.mubr.f32.gmra.mrb[0].mxu0 %v6042
        %v6044 = vpop.f32.mrb[0].mxu0
        %v6045 = vadd.f32 %v5785, %v6044
        %v6046 = vpop.f32.mrb[0].mxu0
        %6047 = vmatprep.mubr.f32.mxu0 0.0
        %v6048 = vand.u32 %v4309, 4294901760
        %6049 = vmatmul.mubr.f32.gmra.mrb[0].mxu0 %v6048
        %v6050 = vpop.f32.mrb[0].mxu0
        %v6051 = vadd.f32 %v5791, %v6050
        %v6052 = vpop.f32.mrb[0].mxu0
        %6053 = vmatprep.mubr.f32.mxu0 0.0
        %v6054 = vand.u32 %v4312, 4294901760
        %6055 = vmatmul.mubr.f32.gmra.mrb[0].mxu0 %v6054
        %v6056 = vpop.f32.mrb[0].mxu0
        %v6057 = vadd.f32 %v5797, %v6056
        %v6058 = vpop.f32.mrb[0].mxu0
        %6059 = vmatprep.mubr.f32.mxu0 0.0
        %v6060 = vand.u32 %v4315, 4294901760
        %6061 = vmatmul.mubr.f32.gmra.mrb[0].mxu0 %v6060
        %v6062 = vpop.f32.mrb[0].mxu0
        %v6063 = vadd.f32 %v5803, %v6062
        %v6064 = vpop.f32.mrb[0].mxu0
        %6065 = vmatprep.mubr.f32.mxu0 0.0
        %v6066 = vand.u32 %v4318, 4294901760
        %6067 = vmatmul.mubr.f32.gmra.mrb[0].mxu0 %v6066
        %v6068 = vpop.f32.mrb[0].mxu0
        %v6069 = vadd.f32 %v5809, %v6068
        %v6070 = vpop.f32.mrb[0].mxu0
        %6071 = vmatprep.mubr.f32.mxu0 0.0
        %v6072 = vand.u32 %v4321, 4294901760
        %6073 = vmatmul.mubr.f32.gmra.mrb[0].mxu0 %v6072
        %v6074 = vpop.f32.mrb[0].mxu0
        %v6075 = vadd.f32 %v5815, %v6074
        %v6076 = vpop.f32.mrb[0].mxu0
        %6077 = vmatprep.mubr.f32.mxu0 0.0
        %v6078 = vand.u32 %v4324, 4294901760
        %6079 = vmatmul.mubr.f32.gmra.mrb[0].mxu0 %v6078
        %v6080 = vpop.f32.mrb[0].mxu0
        %v6081 = vadd.f32 %v5821, %v6080
        %v6082 = vpop.f32.mrb[0].mxu0
        %6083 = vmatprep.mubr.f32.mxu0 0.0
        %v6084 = vand.u32 %v4327, 4294901760
        %6085 = vmatmul.mubr.f32.gmra.mrb[0].mxu0 %v6084
        %v6086 = vpop.f32.mrb[0].mxu0
        %v6087 = vadd.f32 %v5827, %v6086
        %v6088 = vpop.f32.mrb[0].mxu0
        %6089 = vmatprep.mubr.f32.mxu0 0.0
        %v6090 = vand.u32 %v4330, 4294901760
        %6091 = vmatmul.mubr.f32.gmra.mrb[0].mxu0 %v6090
        %v6092 = vpop.f32.mrb[0].mxu0
        %v6093 = vadd.f32 %v5833, %v6092
        %v6094 = vpop.f32.mrb[0].mxu0
        %6095 = vmatprep.mubr.f32.mxu0 0.0
        %v6096 = vand.u32 %v4333, 4294901760
        %6097 = vmatmul.mubr.f32.gmra.mrb[0].mxu0 %v6096
        %v6098 = vpop.f32.mrb[0].mxu0
        %v6099 = vadd.f32 %v5839, %v6098
        %v6100 = vpop.f32.mrb[0].mxu0
        %6101 = vmatprep.mubr.f32.mxu0 0.0
        %v6102 = vand.u32 %v4336, 4294901760
        %6103 = vmatmul.mubr.f32.gmra.mrb[0].mxu0 %v6102
        %v6104 = vpop.f32.mrb[0].mxu0
        %v6105 = vadd.f32 %v5845, %v6104
        %v6106 = vpop.f32.mrb[0].mxu0
        %6107 = vmatprep.mubr.f32.mxu0 0.0
        %v6108 = vand.u32 %v4339, 4294901760
        %6109 = vmatmul.mubr.f32.gmra.mrb[0].mxu0 %v6108
        %v6110 = vpop.f32.mrb[0].mxu0
        %v6111 = vadd.f32 %v5851, %v6110
        %v6112 = vpop.f32.mrb[0].mxu0
        %6113 = vmatprep.mubr.f32.mxu0 0.0
        %v6114 = vand.u32 %v4342, 4294901760
        %6115 = vmatmul.mubr.f32.gmra.mrb[0].mxu0 %v6114
        %v6116 = vpop.f32.mrb[0].mxu0
        %v6117 = vadd.f32 %v5857, %v6116
        %v6118 = vpop.f32.mrb[0].mxu0
        %6119 = vmatprep.mubr.f32.mxu0 0.0
        %v6120 = vand.u32 %v4345, 4294901760
        %6121 = vmatmul.mubr.f32.gmra.mrb[0].mxu0 %v6120
        %v6122 = vpop.f32.mrb[0].mxu0
        %v6123 = vadd.f32 %v5863, %v6122
        %v6124 = vpop.f32.mrb[0].mxu0
        %6125 = vmatprep.mubr.f32.mxu0 0.0
        %v6126 = vand.u32 %v4348, 4294901760
        %6127 = vmatmul.mubr.f32.gmra.mrb[0].mxu0 %v6126
        %v6128 = vpop.f32.mrb[0].mxu0
        %v6129 = vadd.f32 %v5869, %v6128
        %v6130 = vpop.f32.mrb[0].mxu0
        %6131 = vmatprep.mubr.f32.mxu0 0.0
        %v6132 = vand.u32 %v4351, 4294901760
        %6133 = vmatmul.mubr.f32.gmra.mrb[0].mxu0 %v6132
        %v6134 = vpop.f32.mrb[0].mxu0
        %v6135 = vadd.f32 %v5875, %v6134
        %v6136 = vpop.f32.mrb[0].mxu0
        %6137 = vmatprep.mubr.f32.mxu0 0.0
        %v6138 = vand.u32 %v4354, 4294901760
        %6139 = vmatmul.mubr.f32.gmra.mrb[0].mxu0 %v6138
        %v6140 = vpop.f32.mrb[0].mxu0
        %v6141 = vadd.f32 %v5881, %v6140
        %v6142 = vpop.f32.mrb[0].mxu0
        %6143 = vmatprep.mubr.f32.mxu0 0.0
        %v6144 = vand.u32 %v4357, 4294901760
        %6145 = vmatmul.mubr.f32.gmra.mrb[0].mxu0 %v6144
        %v6146 = vpop.f32.mrb[0].mxu0
        %v6147 = vadd.f32 %v5887, %v6146
        %v6148 = vpop.f32.mrb[0].mxu0
        %6149 = vmatprep.mubr.f32.mxu0 0.0
        %v6150 = vand.u32 %v4360, 4294901760
        %6151 = vmatmul.mubr.f32.gmra.mrb[0].mxu0 %v6150
        %v6152 = vpop.f32.mrb[0].mxu0
        %v6153 = vadd.f32 %v5893, %v6152
        %v6154 = vpop.f32.mrb[0].mxu0
        %6155 = vmatprep.mubr.f32.mxu0 0.0
        %v6156 = vand.u32 %v4363, 4294901760
        %6157 = vmatmul.mubr.f32.gmra.mrb[0].mxu0 %v6156
        %v6158 = vpop.f32.mrb[0].mxu0
        %v6159 = vadd.f32 %v5899, %v6158
        %v6160 = vpop.f32.mrb[0].mxu0
        %6161 = vmatprep.mubr.f32.mxu0 0.0
        %v6162 = vand.u32 %v4366, 4294901760
        %6163 = vmatmul.mubr.f32.gmra.mrb[0].mxu0 %v6162
        %v6164 = vpop.f32.mrb[0].mxu0
        %v6165 = vadd.f32 %v5905, %v6164
        %v6166 = vpop.f32.mrb[0].mxu0
        %6167 = vmatprep.mubr.f32.mxu0 0.0
        %v6168 = vand.u32 %v4369, 4294901760
        %6169 = vmatmul.mubr.f32.gmra.mrb[0].mxu0 %v6168
        %v6170 = vpop.f32.mrb[0].mxu0
        %v6171 = vadd.f32 %v5911, %v6170
        %v6172 = vpop.f32.mrb[0].mxu0
        %6173 = vmatprep.mubr.f32.mxu0 0.0
        %v6174 = vand.u32 %v4372, 4294901760
        %6175 = vmatmul.mubr.f32.gmra.mrb[0].mxu0 %v6174
        %v6176 = vpop.f32.mrb[0].mxu0
        %v6177 = vadd.f32 %v5917, %v6176
        %v6178 = vpop.f32.mrb[0].mxu0
        %6179 = vmatprep.mubr.f32.mxu0 0.0
        %v6180 = vand.u32 %v4375, 4294901760
        %6181 = vmatmul.mubr.f32.gmra.mrb[0].mxu0 %v6180
        %v6182 = vpop.f32.mrb[0].mxu0
        %v6183 = vadd.f32 %v5923, %v6182
        %v6184 = vpop.f32.mrb[0].mxu0
        %6185 = vdwg.mxu0
        %vm6186 = vcmask 220160
        %6187 = vst.msk [vmem:[%s280] sm:$0xff] %vm6186, %v5997
        %6188 = vst.msk [vmem:[%s280 + $0x8] sm:$0xff] %vm6186, %v6003
        %6189 = vst.msk [vmem:[%s280 + $0x10] sm:$0xff] %vm6186, %v6009
        %6190 = vst.msk [vmem:[%s280 + $0x18] sm:$0xff] %vm6186, %v6015
        %6191 = vst.msk [vmem:[%s280 + $0x20] sm:$0xff] %vm6186, %v6021
        %6192 = vst.msk [vmem:[%s280 + $0x28] sm:$0xff] %vm6186, %v6027
        %6193 = vst.msk [vmem:[%s280 + $0x30] sm:$0xff] %vm6186, %v6033
        %6194 = vst.msk [vmem:[%s280 + $0x38] sm:$0xff] %vm6186, %v6039
        %6195 = vst.msk [vmem:[%s280 + $0x40] sm:$0xff] %vm6186, %v6045
        %6196 = vst.msk [vmem:[%s280 + $0x48] sm:$0xff] %vm6186, %v6051
        %6197 = vst.msk [vmem:[%s280 + $0x50] sm:$0xff] %vm6186, %v6057
        %6198 = vst.msk [vmem:[%s280 + $0x58] sm:$0xff] %vm6186, %v6063
        %6199 = vst.msk [vmem:[%s280 + $0x60] sm:$0xff] %vm6186, %v6069
        %6200 = vst.msk [vmem:[%s280 + $0x68] sm:$0xff] %vm6186, %v6075
        %6201 = vst.msk [vmem:[%s280 + $0x70] sm:$0xff] %vm6186, %v6081
        %6202 = vst.msk [vmem:[%s280 + $0x78] sm:$0xff] %vm6186, %v6087
        %6203 = vst.msk [vmem:[%s280 + $0x80] sm:$0xff] %vm6186, %v6093
        %6204 = vst.msk [vmem:[%s280 + $0x88] sm:$0xff] %vm6186, %v6099
        %6205 = vst.msk [vmem:[%s280 + $0x90] sm:$0xff] %vm6186, %v6105
        %6206 = vst.msk [vmem:[%s280 + $0x98] sm:$0xff] %vm6186, %v6111
        %6207 = vst.msk [vmem:[%s280 + $0xa0] sm:$0xff] %vm6186, %v6117
        %6208 = vst.msk [vmem:[%s280 + $0xa8] sm:$0xff] %vm6186, %v6123
        %6209 = vst.msk [vmem:[%s280 + $0xb0] sm:$0xff] %vm6186, %v6129
        %6210 = vst.msk [vmem:[%s280 + $0xb8] sm:$0xff] %vm6186, %v6135
        %6211 = vst.msk [vmem:[%s280 + $0xc0] sm:$0xff] %vm6186, %v6141
        %6212 = vst.msk [vmem:[%s280 + $0xc8] sm:$0xff] %vm6186, %v6147
        %6213 = vst.msk [vmem:[%s280 + $0xd0] sm:$0xff] %vm6186, %v6153
        %6214 = vst.msk [vmem:[%s280 + $0xd8] sm:$0xff] %vm6186, %v6159
        %6215 = vst.msk [vmem:[%s280 + $0xe0] sm:$0xff] %vm6186, %v6165
        %6216 = vst.msk [vmem:[%s280 + $0xe8] sm:$0xff] %vm6186, %v6171
        %6217 = vst.msk [vmem:[%s280 + $0xf0] sm:$0xff] %vm6186, %v6177
        %6218 = vst.msk [vmem:[%s280 + $0xf8] sm:$0xff] %vm6186, %v6183
        %s6219 = sand.u32 %s178, 1
        %s6220 = sand.u32 %s178, 1
        %s6221 = smul.addr %s6220, 256
        %s6222 = scalar_lea.vmem [#allocation2], %s6221
        // Predicated region
        $region49: #{tpu_custom_call.1} parent=47 // pred_check
          %p6223 = pneg %p188
        $region50: #{tpu_custom_call.1} parent=47 // pred_check_branch
          %6225 = sbr.rel (%p6223) target = $region52
        $region51: #{tpu_custom_call.1} parent=47 // pred_region
          %s6226 = smul.u32 32, %s18
          %s6227 = ssub.s32 125, %s6226
          %p6228 = scmp.lt.s32.totalorder %s6227, 32
          %s6229 = scalar_select %p6228, %s6227, 32
          %s6230 = smul.u32 128, %s6229
          %p6231 = scmp.ne.s32.totalorder 0, %s6230
          %s6232 = smul.addr %s6226, 8
          %s6233 = scalar_lea.vmem %s7, %s6232
          // Predicated region
          $region53: #{tpu_custom_call.1} parent=51 // pred_check
            %p6234 = pneg %p6231
          $region54: #{tpu_custom_call.1} parent=51 // pred_check_branch
            %6236 = sbr.rel (%p6234) target = $region56
          $region55: #{tpu_custom_call.1} parent=51 // pred_region
            // Predicated region
            $region57: #{tpu_custom_call.1} parent=55 // pred_check
              _
            $region58: #{tpu_custom_call.1} parent=55 // pred_check_branch
              %6238 = sbr.rel (0) target = $region60
            $region59: #{tpu_custom_call.1} parent=55 // pred_region
              // Predicated region
              $region79: #{tpu_custom_call.1} parent=59 // pred_check
                _
              $region80: #{tpu_custom_call.1} parent=59 // pred_check_branch
                %6349 = sbr.rel (0) target = $region82
              $region81: #{tpu_custom_call.1} parent=59 // pred_region
                %s6350 = sshrl.u32 %s6229, 5
                // While loop
                $region83: #{tpu_custom_call.1} parent=81 // loop_pre_header
                  _
                $region84: #{tpu_custom_call.1} parent=81 // loop_header
                  %s6352 = sphi 0, %s6354
                  %p6353 = scmp.ge.s32.totalorder %s6352, %s6350
                  %s6357 = sphi 0, %s6426
                  %s6358 = sphi %s6222, %s6429
                  %s6359 = sphi %s6233, %s6430
                $region85: #{tpu_custom_call.1} parent=81 // loop_header_branch
                  %6356 = sbr.rel (%p6353) target = $region89
                $region86: #{tpu_custom_call.1} parent=81 // loop_body
                  %v6360 = vld [vmem:[%s6358] sm:$0xff]
                  %6361 = vst [vmem:[%s6359] sm:$0xff] %v6360
                  %v6362 = vld [vmem:[%s6358 + $0x8] sm:$0xff]
                  %6363 = vst [vmem:[%s6359 + $0x8] sm:$0xff] %v6362
                  %v6364 = vld [vmem:[%s6358 + $0x10] sm:$0xff]
                  %6365 = vst [vmem:[%s6359 + $0x10] sm:$0xff] %v6364
                  %v6366 = vld [vmem:[%s6358 + $0x18] sm:$0xff]
                  %6367 = vst [vmem:[%s6359 + $0x18] sm:$0xff] %v6366
                  %v6368 = vld [vmem:[%s6358 + $0x20] sm:$0xff]
                  %6369 = vst [vmem:[%s6359 + $0x20] sm:$0xff] %v6368
                  %v6370 = vld [vmem:[%s6358 + $0x28] sm:$0xff]
                  %6371 = vst [vmem:[%s6359 + $0x28] sm:$0xff] %v6370
                  %v6372 = vld [vmem:[%s6358 + $0x30] sm:$0xff]
                  %6373 = vst [vmem:[%s6359 + $0x30] sm:$0xff] %v6372
                  %v6374 = vld [vmem:[%s6358 + $0x38] sm:$0xff]
                  %6375 = vst [vmem:[%s6359 + $0x38] sm:$0xff] %v6374
                  %v6376 = vld [vmem:[%s6358 + $0x40] sm:$0xff]
                  %6377 = vst [vmem:[%s6359 + $0x40] sm:$0xff] %v6376
                  %v6378 = vld [vmem:[%s6358 + $0x48] sm:$0xff]
                  %6379 = vst [vmem:[%s6359 + $0x48] sm:$0xff] %v6378
                  %v6380 = vld [vmem:[%s6358 + $0x50] sm:$0xff]
                  %6381 = vst [vmem:[%s6359 + $0x50] sm:$0xff] %v6380
                  %v6382 = vld [vmem:[%s6358 + $0x58] sm:$0xff]
                  %6383 = vst [vmem:[%s6359 + $0x58] sm:$0xff] %v6382
                  %v6384 = vld [vmem:[%s6358 + $0x60] sm:$0xff]
                  %6385 = vst [vmem:[%s6359 + $0x60] sm:$0xff] %v6384
                  %v6386 = vld [vmem:[%s6358 + $0x68] sm:$0xff]
                  %6387 = vst [vmem:[%s6359 + $0x68] sm:$0xff] %v6386
                  %v6388 = vld [vmem:[%s6358 + $0x70] sm:$0xff]
                  %6389 = vst [vmem:[%s6359 + $0x70] sm:$0xff] %v6388
                  %v6390 = vld [vmem:[%s6358 + $0x78] sm:$0xff]
                  %6391 = vst [vmem:[%s6359 + $0x78] sm:$0xff] %v6390
                  %v6392 = vld [vmem:[%s6358 + $0x80] sm:$0xff]
                  %6393 = vst [vmem:[%s6359 + $0x80] sm:$0xff] %v6392
                  %v6394 = vld [vmem:[%s6358 + $0x88] sm:$0xff]
                  %6395 = vst [vmem:[%s6359 + $0x88] sm:$0xff] %v6394
                  %v6396 = vld [vmem:[%s6358 + $0x90] sm:$0xff]
                  %6397 = vst [vmem:[%s6359 + $0x90] sm:$0xff] %v6396
                  %v6398 = vld [vmem:[%s6358 + $0x98] sm:$0xff]
                  %6399 = vst [vmem:[%s6359 + $0x98] sm:$0xff] %v6398
                  %v6400 = vld [vmem:[%s6358 + $0xa0] sm:$0xff]
                  %6401 = vst [vmem:[%s6359 + $0xa0] sm:$0xff] %v6400
                  %v6402 = vld [vmem:[%s6358 + $0xa8] sm:$0xff]
                  %6403 = vst [vmem:[%s6359 + $0xa8] sm:$0xff] %v6402
                  %v6404 = vld [vmem:[%s6358 + $0xb0] sm:$0xff]
                  %6405 = vst [vmem:[%s6359 + $0xb0] sm:$0xff] %v6404
                  %v6406 = vld [vmem:[%s6358 + $0xb8] sm:$0xff]
                  %6407 = vst [vmem:[%s6359 + $0xb8] sm:$0xff] %v6406
                  %v6408 = vld [vmem:[%s6358 + $0xc0] sm:$0xff]
                  %6409 = vst [vmem:[%s6359 + $0xc0] sm:$0xff] %v6408
                  %v6410 = vld [vmem:[%s6358 + $0xc8] sm:$0xff]
                  %6411 = vst [vmem:[%s6359 + $0xc8] sm:$0xff] %v6410
                  %v6412 = vld [vmem:[%s6358 + $0xd0] sm:$0xff]
                  %6413 = vst [vmem:[%s6359 + $0xd0] sm:$0xff] %v6412
                  %v6414 = vld [vmem:[%s6358 + $0xd8] sm:$0xff]
                  %6415 = vst [vmem:[%s6359 + $0xd8] sm:$0xff] %v6414
                  %v6416 = vld [vmem:[%s6358 + $0xe0] sm:$0xff]
                  %6417 = vst [vmem:[%s6359 + $0xe0] sm:$0xff] %v6416
                  %v6418 = vld [vmem:[%s6358 + $0xe8] sm:$0xff]
                  %6419 = vst [vmem:[%s6359 + $0xe8] sm:$0xff] %v6418
                  %v6420 = vld [vmem:[%s6358 + $0xf0] sm:$0xff]
                  %6421 = vst [vmem:[%s6359 + $0xf0] sm:$0xff] %v6420
                  %v6422 = vld [vmem:[%s6358 + $0xf8] sm:$0xff]
                  %6423 = vst [vmem:[%s6359 + $0xf8] sm:$0xff] %v6422
                  %s6424 = sadd.s32 1, %s6357
                  %p6425 = scmp.ge.s32.totalorder %s6424, %s6350
                  %s6426 = scalar_select %p6425, 0, %s6424
                  %s6427 = smul.u32 %s6426, 256
                  %s6428 = smul.u32 %s6426, 256
                  %s6429 = scalar_lea.vmem %s6222, %s6427 [#allocation2]
                  %s6430 = scalar_lea.vmem %s6233, %s6428
                $region87: #{tpu_custom_call.1} parent=81 // loop_footer
                  %s6354 = sadd.s32 %s6352, 1
                $region88: #{tpu_custom_call.1} parent=81 // loop_footer_branch
                  %6351 = sbr.rel target = $region84
                $region89: #{tpu_custom_call.1} parent=81 // loop_exit
                  _
                %s6431 = sshrl.u32 %s6229, 5
                %s6432 = sand.u32 %s6229, 31
                %s6433 = smul.u32 %s6431, 32
                %s6434 = smul.u32 8, %s6433
                %s6435 = scalar_lea.vmem %s6222, %s6434 [#allocation2]
                %s6436 = smul.u32 8, %s6433
                %s6437 = scalar_lea.vmem %s6233, %s6436
                // While loop
                $region90: #{tpu_custom_call.1} parent=81 // loop_pre_header
                  _
                $region91: #{tpu_custom_call.1} parent=81 // loop_header
                  %s6439 = sphi 0, %s6441
                  %p6440 = scmp.ge.s32.totalorder %s6439, %s6432
                  %s6444 = sphi 0, %s6451
                  %s6445 = sphi %s6435, %s6454
                  %s6446 = sphi %s6437, %s6455
                $region92: #{tpu_custom_call.1} parent=81 // loop_header_branch
                  %6443 = sbr.rel (%p6440) target = $region96
                $region93: #{tpu_custom_call.1} parent=81 // loop_body
                  %v6447 = vld [vmem:[%s6445] sm:$0xff]
                  %6448 = vst [vmem:[%s6446] sm:$0xff] %v6447
                  %s6449 = sadd.s32 1, %s6444
                  %p6450 = scmp.ge.s32.totalorder %s6449, %s6432
                  %s6451 = scalar_select %p6450, 0, %s6449
                  %s6452 = smul.u32 %s6451, 8
                  %s6453 = smul.u32 %s6451, 8
                  %s6454 = scalar_lea.vmem %s6435, %s6452 [#allocation2]
                  %s6455 = scalar_lea.vmem %s6437, %s6453
                $region94: #{tpu_custom_call.1} parent=81 // loop_footer
                  %s6441 = sadd.s32 %s6439, 1
                $region95: #{tpu_custom_call.1} parent=81 // loop_footer_branch
                  %6438 = sbr.rel target = $region91
                $region96: #{tpu_custom_call.1} parent=81 // loop_exit
                  _
              $region82: #{tpu_custom_call.1} parent=59 // pred_fallthru
                _
              // Predicated region
              $region97: #{tpu_custom_call.1} parent=59 // pred_check
                _
              $region98: #{tpu_custom_call.1} parent=59 // pred_check_branch
                %6457 = sbr.rel target = $region100
              $region99: #{tpu_custom_call.1} parent=59 // pred_region
                _
              $region100: #{tpu_custom_call.1} parent=59 // pred_fallthru
                _
            $region60: #{tpu_custom_call.1} parent=55 // pred_fallthru
              _
            // Predicated region
            $region61: #{tpu_custom_call.1} parent=55 // pred_check
              _
            $region62: #{tpu_custom_call.1} parent=55 // pred_check_branch
              %6240 = sbr.rel target = $region64
            $region63: #{tpu_custom_call.1} parent=55 // pred_region
              %s6242 = sshrl.u32 %s6229, 5
              // While loop
              $region65: #{tpu_custom_call.1} parent=63 // loop_pre_header
                _
              $region66: #{tpu_custom_call.1} parent=63 // loop_header
                %s6244 = sphi 0, %s6246
                %p6245 = scmp.ge.s32.totalorder %s6244, %s6242
                %s6249 = sphi 0, %s6318
                %s6250 = sphi %s6222, %s6321
                %s6251 = sphi %s6233, %s6322
              $region67: #{tpu_custom_call.1} parent=63 // loop_header_branch
                %6248 = sbr.rel (%p6245) target = $region71
              $region68: #{tpu_custom_call.1} parent=63 // loop_body
                %v6252 = vld [vmem:[%s6250] sm:$0xff]
                %6253 = vst [vmem:[%s6251] sm:$0xff] %v6252
                %v6254 = vld [vmem:[%s6250 + $0x8] sm:$0xff]
                %6255 = vst [vmem:[%s6251 + $0x8] sm:$0xff] %v6254
                %v6256 = vld [vmem:[%s6250 + $0x10] sm:$0xff]
                %6257 = vst [vmem:[%s6251 + $0x10] sm:$0xff] %v6256
                %v6258 = vld [vmem:[%s6250 + $0x18] sm:$0xff]
                %6259 = vst [vmem:[%s6251 + $0x18] sm:$0xff] %v6258
                %v6260 = vld [vmem:[%s6250 + $0x20] sm:$0xff]
                %6261 = vst [vmem:[%s6251 + $0x20] sm:$0xff] %v6260
                %v6262 = vld [vmem:[%s6250 + $0x28] sm:$0xff]
                %6263 = vst [vmem:[%s6251 + $0x28] sm:$0xff] %v6262
                %v6264 = vld [vmem:[%s6250 + $0x30] sm:$0xff]
                %6265 = vst [vmem:[%s6251 + $0x30] sm:$0xff] %v6264
                %v6266 = vld [vmem:[%s6250 + $0x38] sm:$0xff]
                %6267 = vst [vmem:[%s6251 + $0x38] sm:$0xff] %v6266
                %v6268 = vld [vmem:[%s6250 + $0x40] sm:$0xff]
                %6269 = vst [vmem:[%s6251 + $0x40] sm:$0xff] %v6268
                %v6270 = vld [vmem:[%s6250 + $0x48] sm:$0xff]
                %6271 = vst [vmem:[%s6251 + $0x48] sm:$0xff] %v6270
                %v6272 = vld [vmem:[%s6250 + $0x50] sm:$0xff]
                %6273 = vst [vmem:[%s6251 + $0x50] sm:$0xff] %v6272
                %v6274 = vld [vmem:[%s6250 + $0x58] sm:$0xff]
                %6275 = vst [vmem:[%s6251 + $0x58] sm:$0xff] %v6274
                %v6276 = vld [vmem:[%s6250 + $0x60] sm:$0xff]
                %6277 = vst [vmem:[%s6251 + $0x60] sm:$0xff] %v6276
                %v6278 = vld [vmem:[%s6250 + $0x68] sm:$0xff]
                %6279 = vst [vmem:[%s6251 + $0x68] sm:$0xff] %v6278
                %v6280 = vld [vmem:[%s6250 + $0x70] sm:$0xff]
                %6281 = vst [vmem:[%s6251 + $0x70] sm:$0xff] %v6280
                %v6282 = vld [vmem:[%s6250 + $0x78] sm:$0xff]
                %6283 = vst [vmem:[%s6251 + $0x78] sm:$0xff] %v6282
                %v6284 = vld [vmem:[%s6250 + $0x80] sm:$0xff]
                %6285 = vst [vmem:[%s6251 + $0x80] sm:$0xff] %v6284
                %v6286 = vld [vmem:[%s6250 + $0x88] sm:$0xff]
                %6287 = vst [vmem:[%s6251 + $0x88] sm:$0xff] %v6286
                %v6288 = vld [vmem:[%s6250 + $0x90] sm:$0xff]
                %6289 = vst [vmem:[%s6251 + $0x90] sm:$0xff] %v6288
                %v6290 = vld [vmem:[%s6250 + $0x98] sm:$0xff]
                %6291 = vst [vmem:[%s6251 + $0x98] sm:$0xff] %v6290
                %v6292 = vld [vmem:[%s6250 + $0xa0] sm:$0xff]
                %6293 = vst [vmem:[%s6251 + $0xa0] sm:$0xff] %v6292
                %v6294 = vld [vmem:[%s6250 + $0xa8] sm:$0xff]
                %6295 = vst [vmem:[%s6251 + $0xa8] sm:$0xff] %v6294
                %v6296 = vld [vmem:[%s6250 + $0xb0] sm:$0xff]
                %6297 = vst [vmem:[%s6251 + $0xb0] sm:$0xff] %v6296
                %v6298 = vld [vmem:[%s6250 + $0xb8] sm:$0xff]
                %6299 = vst [vmem:[%s6251 + $0xb8] sm:$0xff] %v6298
                %v6300 = vld [vmem:[%s6250 + $0xc0] sm:$0xff]
                %6301 = vst [vmem:[%s6251 + $0xc0] sm:$0xff] %v6300
                %v6302 = vld [vmem:[%s6250 + $0xc8] sm:$0xff]
                %6303 = vst [vmem:[%s6251 + $0xc8] sm:$0xff] %v6302
                %v6304 = vld [vmem:[%s6250 + $0xd0] sm:$0xff]
                %6305 = vst [vmem:[%s6251 + $0xd0] sm:$0xff] %v6304
                %v6306 = vld [vmem:[%s6250 + $0xd8] sm:$0xff]
                %6307 = vst [vmem:[%s6251 + $0xd8] sm:$0xff] %v6306
                %v6308 = vld [vmem:[%s6250 + $0xe0] sm:$0xff]
                %6309 = vst [vmem:[%s6251 + $0xe0] sm:$0xff] %v6308
                %v6310 = vld [vmem:[%s6250 + $0xe8] sm:$0xff]
                %6311 = vst [vmem:[%s6251 + $0xe8] sm:$0xff] %v6310
                %v6312 = vld [vmem:[%s6250 + $0xf0] sm:$0xff]
                %6313 = vst [vmem:[%s6251 + $0xf0] sm:$0xff] %v6312
                %v6314 = vld [vmem:[%s6250 + $0xf8] sm:$0xff]
                %6315 = vst [vmem:[%s6251 + $0xf8] sm:$0xff] %v6314
                %s6316 = sadd.s32 1, %s6249
                %p6317 = scmp.ge.s32.totalorder %s6316, %s6242
                %s6318 = scalar_select %p6317, 0, %s6316
                %s6319 = smul.u32 %s6318, 256
                %s6320 = smul.u32 %s6318, 256
                %s6321 = scalar_lea.vmem %s6222, %s6319 [#allocation2]
                %s6322 = scalar_lea.vmem %s6233, %s6320
              $region69: #{tpu_custom_call.1} parent=63 // loop_footer
                %s6246 = sadd.s32 %s6244, 1
              $region70: #{tpu_custom_call.1} parent=63 // loop_footer_branch
                %6243 = sbr.rel target = $region66
              $region71: #{tpu_custom_call.1} parent=63 // loop_exit
                _
              %s6323 = sshrl.u32 %s6229, 5
              %s6324 = sand.u32 %s6229, 31
              %s6325 = smul.u32 %s6323, 32
              %s6326 = smul.u32 8, %s6325
              %s6327 = scalar_lea.vmem %s6222, %s6326 [#allocation2]
              %s6328 = smul.u32 8, %s6325
              %s6329 = scalar_lea.vmem %s6233, %s6328
              // While loop
              $region72: #{tpu_custom_call.1} parent=63 // loop_pre_header
                _
              $region73: #{tpu_custom_call.1} parent=63 // loop_header
                %s6331 = sphi 0, %s6333
                %p6332 = scmp.ge.s32.totalorder %s6331, %s6324
                %s6336 = sphi 0, %s6343
                %s6337 = sphi %s6327, %s6346
                %s6338 = sphi %s6329, %s6347
              $region74: #{tpu_custom_call.1} parent=63 // loop_header_branch
                %6335 = sbr.rel (%p6332) target = $region78
              $region75: #{tpu_custom_call.1} parent=63 // loop_body
                %v6339 = vld [vmem:[%s6337] sm:$0xff]
                %6340 = vst [vmem:[%s6338] sm:$0xff] %v6339
                %s6341 = sadd.s32 1, %s6336
                %p6342 = scmp.ge.s32.totalorder %s6341, %s6324
                %s6343 = scalar_select %p6342, 0, %s6341
                %s6344 = smul.u32 %s6343, 8
                %s6345 = smul.u32 %s6343, 8
                %s6346 = scalar_lea.vmem %s6327, %s6344 [#allocation2]
                %s6347 = scalar_lea.vmem %s6329, %s6345
              $region76: #{tpu_custom_call.1} parent=63 // loop_footer
                %s6333 = sadd.s32 %s6331, 1
              $region77: #{tpu_custom_call.1} parent=63 // loop_footer_branch
                %6330 = sbr.rel target = $region73
              $region78: #{tpu_custom_call.1} parent=63 // loop_exit
                _
            $region64: #{tpu_custom_call.1} parent=55 // pred_fallthru
              _
          $region56: #{tpu_custom_call.1} parent=51 // pred_fallthru
            _
          %6458 = vnop
        $region52: #{tpu_custom_call.1} parent=47 // pred_fallthru
          _
      $region48: #{tpu_custom_call.1} parent=5 // pred_fallthru
        _
      %p6459 = scmp.le.s32.totalorder 2, %s13
      // Predicated region
      $region101: #{tpu_custom_call.1} parent=5 // pred_check
        %p6460 = pneg %p6459
      $region102: #{tpu_custom_call.1} parent=5 // pred_check_branch
        %6462 = sbr.rel (%p6460) target = $region104
      $region103: #{tpu_custom_call.1} parent=5 // pred_region
        %s6463 = ssub.s32 %s13, 2
        // Predicated region
        $region105: #{tpu_custom_call.1} parent=103 // pred_check
          %p6464 = pneg %p194
        $region106: #{tpu_custom_call.1} parent=103 // pred_check_branch
          %6466 = sbr.rel (%p6464) target = $region108
        $region107: #{tpu_custom_call.1} parent=103 // pred_region
          %s6467 = sand.u32 %s179, 1
          %s6468 = sand.u32 %s179, 1
          %s6469 = smul.addr %s6468, 256
          %s6470 = scalar_lea.vmem [#allocation2], %s6469
        $region108: #{tpu_custom_call.1} parent=103 // pred_fallthru
          _
      $region104: #{tpu_custom_call.1} parent=5 // pred_fallthru
        _
    $region6: #{tpu_custom_call.1} parent=1 // loop_footer
      %s17 = sadd.s32 1, %s13
    $region7: #{tpu_custom_call.1} parent=1 // loop_footer_branch
      %12 = sbr.rel target = $region3
    $region8: #{tpu_custom_call.1} parent=1 // loop_exit
      _

</llo_original>
